<compile_context>
chip_gen: v7x
topology: tpu7x:2x2x1
jax: 0.10.0
libtpu: 0.0.40
codegen_flags: <defaults>
</compile_context>

<pallas_src>
import jax
import jax.numpy as jnp
import numpy as np
from jax.experimental import pallas as pl
from jax.experimental.pallas import tpu as pltpu

EPS = 1e-5
F32 = jnp.float32
BF16 = jnp.bfloat16


# ----------------------------- Pallas kernel --------------------------------

def _detector_kernel(x_ref, bd1_ref, b1t_ref, rs1_ref, cs1_ref,
                     bd2_ref, b2t_ref, rs2_ref, cs2_ref,
                     w1p_ref, fb1_ref, w2e_ref, fb2_ref,
                     o_ref, acc1_ref, acc2_ref):
    B = o_ref.shape[0]            # samples per grid step
    L1 = acc1_ref.shape[0]        # B*32 - 4 conv1 output band rows
    L2 = acc2_ref.shape[0]        # B*16 - 4 conv2 output band rows

    # ---- stage 1: conv1 (bn1 folded) as 5 banded matmuls over the whole
    #      batch band (per-sample row stride 32); f32 VMEM accumulator. ----
    # TODO(synk): training-mode Dropout2d / batch-statistic BatchNorm are not
    # implemented (eval semantics only).
    acc1_ref[...] = jnp.broadcast_to(b1t_ref[...], acc1_ref.shape)
    for i in range(5):
        acc1_ref[...] += jnp.dot(x_ref[i:i + L1, :], bd1_ref[i],
                                 preferred_element_type=F32)
    a1 = acc1_ref[...].astype(BF16)                  # (L1, 280)

    # 2x2 max-pool + relu: even/odd row-selection matmuls (also compacts the
    # 32-row bands to 16-row bands), then even/odd lane-selection matmuls.
    zr = jnp.maximum(jnp.dot(rs1_ref[0], a1, preferred_element_type=F32),
                     jnp.dot(rs1_ref[1], a1, preferred_element_type=F32))
    zrb = zr.astype(BF16)                            # (B*16, 280)
    p1 = jnp.maximum(
        jnp.maximum(jnp.dot(zrb, cs1_ref[0], preferred_element_type=F32),
                    jnp.dot(zrb, cs1_ref[1], preferred_element_type=F32)),
        0.0).astype(BF16)                            # (B*16, 140) rows b*16+h

    # ---- stage 2: conv2 (bn2 folded); Dropout2d is identity in eval mode ----
    acc2_ref[...] = jnp.broadcast_to(b2t_ref[...], acc2_ref.shape)
    for i in range(5):
        acc2_ref[...] += jnp.dot(p1[i:i + L2, :], bd2_ref[i],
                                 preferred_element_type=F32)
    a2 = acc2_ref[...].astype(BF16)                  # (L2, 200)

    # row pool emits p2 in h-major order (rows h*B + b) so fc1's per-h slices
    # are 8-aligned contiguous blocks of B rows.
    zr2 = jnp.maximum(jnp.dot(rs2_ref[0], a2, preferred_element_type=F32),
                      jnp.dot(rs2_ref[1], a2, preferred_element_type=F32))
    zr2b = zr2.astype(BF16)                          # (5*B, 200)
    p2 = jnp.maximum(
        jnp.maximum(jnp.dot(zr2b, cs2_ref[0], preferred_element_type=F32),
                    jnp.dot(zr2b, cs2_ref[1], preferred_element_type=F32)),
        0.0)                                         # (5*B, 100) f32

    # ---- fc1 (bn4 + PyTorch C,H,W flatten permutation folded) --------------
    h1 = jnp.broadcast_to(fb1_ref[...], (B, 50))
    for h in range(5):
        h1 = h1 + jnp.dot(p2[h * B:(h + 1) * B, :].astype(BF16),
                          w1p_ref[h], preferred_element_type=F32)

    # ---- fc2 (bn5 folded); weights lane-padded to 128 for a dense store ----
    out = jnp.dot(h1.astype(BF16), w2e_ref[...],
                  preferred_element_type=F32) + fb2_ref[...]      # (B, 128)
    o_ref[...] = out


# -------------------------- weight / operand prep ---------------------------
# Run ONCE per parameter set (hoisted out of the per-call jit).

def prepare_detector_operands(P, block_b=8):
    assert block_b % 8 == 0, "block_b must be a multiple of 8"
    B = int(block_b)

    def bn_affine(p):
        g, b, m, v = p
        s = g / jnp.sqrt(v + EPS)
        return s, b - m * s

    s1, t1 = bn_affine(P["bn1"])
    s2, t2 = bn_affine(P["bn2"])
    s4, t4 = bn_affine(P["bn4"])
    s5, t5 = bn_affine(P["bn5"])

    # fold BN2d into conv weights / biases
    w1e = P["w1"] * s1[None, :, None, None]                       # (10,3,5,5)
    b1e = P["b1"] + jnp.einsum("oihw,i->o", P["w1"], t1)
    w2e = P["w2"] * s2[None, :, None, None]                       # (20,10,5,5)
    b2e = P["b2"] + jnp.einsum("oihw,i->o", P["w2"], t2)

    # banded (im2col-free) conv weights: BD[i][w*cin+c, ow*cout+co]
    def banded(w_oihw, w_in, w_out):
        cout, cin, kh, kw = w_oihw.shape
        m = (jnp.arange(w_in)[:, None, None]
             == jnp.arange(w_out)[None, :, None]
             + jnp.arange(kw)[None, None, :]).astype(w_oihw.dtype)
        t = jnp.einsum("wpj,ocij->iwcpo", m, w_oihw)
        return t.reshape(kh, w_in * cin, w_out * cout)

    bd1 = banded(w1e, 32, 28)                        # (5, 96, 280)
    bd2 = banded(w2e, 14, 10)                        # (5, 140, 200)
    b1t = jnp.tile(b1e, 28).reshape(1, 280)
    b2t = jnp.tile(b2e, 10).reshape(1, 200)

    # batched even/odd row-pool selection matrices (band-layout aware).
    def row_select_band(in_stride, out_stride, h_out):
        L = B * in_stride - 4
        s = np.zeros((2, B * out_stride, L), np.float32)
        for b in range(B):
            for j in range(h_out):
                s[0, b * out_stride + j, b * in_stride + 2 * j] = 1.0
                s[1, b * out_stride + j, b * in_stride + 2 * j + 1] = 1.0
        return jnp.asarray(s)

    def row_select_hmajor(in_stride, h_out):
        L = B * in_stride - 4
        s = np.zeros((2, h_out * B, L), np.float32)
        for h in range(h_out):
            for b in range(B):
                s[0, h * B + b, b * in_stride + 2 * h] = 1.0
                s[1, h * B + b, b * in_stride + 2 * h + 1] = 1.0
        return jnp.asarray(s)

    rs1 = row_select_band(32, 16, 14)                # (2, B*16, B*32-4)
    rs2 = row_select_hmajor(16, 5)                   # (2, 5*B,  B*16-4)

    # even/odd column (lane) pool selections
    def col_select(w_in, c):
        wp = w_in // 2
        se = (np.arange(w_in)[:, None] == 2 * np.arange(wp)[None, :]).astype(np.float32)
        so = (np.arange(w_in)[:, None] == 2 * np.arange(wp)[None, :] + 1).astype(np.float32)
        eye = np.eye(c, dtype=np.float32)
        return jnp.asarray(np.stack([np.kron(se, eye), np.kron(so, eye)]))

    cs1 = col_select(28, 10)                         # (2, 280, 140)
    cs2 = col_select(10, 20)                         # (2, 200, 100)

    # fc1: fold bn4 + the PyTorch view(-1, 500) (C,H,W) flatten permutation
    fw1e = P["fw1"] * s4[None, :]                                 # (50, 500)
    fb1e = P["fb1"] + P["fw1"] @ t4                               # (50,)
    w1p = fw1e.reshape(50, 20, 5, 5)                              # [o, c, h, w]
    w1p = jnp.transpose(w1p, (2, 3, 1, 0)).reshape(5, 100, 50)    # [h][w*20+c, o]
    fb1 = fb1e.reshape(1, 50)

    # fc2: fold bn5; pad output lanes to 128 for a lane-dense final store
    fw2e = P["fw2"] * s5[None, :]                                 # (1, 50)
    fb2e = P["fb2"] + P["fw2"] @ t5                               # (1,)
    w2p = jnp.zeros((50, 128), F32).at[:, 0].set(fw2e[0])
    fb2 = jnp.zeros((1, 128), F32).at[0, 0].set(fb2e[0])

    bf = lambda a: a.astype(BF16)
    return dict(bd1=bf(bd1), b1t=b1t.astype(F32),
                rs1=bf(rs1), cs1=bf(cs1),
                bd2=bf(bd2), b2t=b2t.astype(F32),
                rs2=bf(rs2), cs2=bf(cs2),
                w1p=bf(w1p), fb1=fb1.astype(F32),
                w2e=bf(w2p), fb2=fb2.astype(F32))


# ------------------------------ forward pass ---------------------------------

@jax.jit
def detector_forward(x_nchw, ops):
    n = x_nchw.shape[0]
    B = ops["rs1"].shape[1] // 16                    # samples per grid step
    n_pad = ((n + B - 1) // B) * B
    grid = n_pad // B

    # NCHW -> NHWC -> (N*32, 96); lane index = 3*w + c, per-sample row stride 32
    x2d = jnp.transpose(x_nchw, (0, 2, 3, 1)).reshape(n * 32, 96).astype(BF16)
    if n_pad != n:
        x2d = jnp.pad(x2d, ((0, (n_pad - n) * 32), (0, 0)))

    def full(a):
        shape = a.shape
        return pl.BlockSpec(shape, lambda g: (0,) * len(shape))

    out = pl.pallas_call(
        _detector_kernel,
        out_shape=jax.ShapeDtypeStruct((n_pad, 128), F32),
        grid_spec=pltpu.PrefetchScalarGridSpec(
            num_scalar_prefetch=0,
            grid=(grid,),
            in_specs=[
                pl.BlockSpec((B * 32, 96), lambda g: (g, 0)),     # sample block
                full(ops["bd1"]), full(ops["b1t"]),
                full(ops["rs1"]), full(ops["cs1"]),
                full(ops["bd2"]), full(ops["b2t"]),
                full(ops["rs2"]), full(ops["cs2"]),
                full(ops["w1p"]), full(ops["fb1"]),
                full(ops["w2e"]), full(ops["fb2"]),
            ],
            out_specs=pl.BlockSpec((B, 128), lambda g: (g, 0)),
            scratch_shapes=[pltpu.VMEM((B * 32 - 4, 280), F32),   # conv1 acc
                            pltpu.VMEM((B * 16 - 4, 200), F32)],  # conv2 acc
        ),
        compiler_params=pltpu.CompilerParams(
            dimension_semantics=("parallel",)),
    )(x2d, ops["bd1"], ops["b1t"], ops["rs1"], ops["cs1"],
      ops["bd2"], ops["b2t"], ops["rs2"], ops["cs2"],
      ops["w1p"], ops["fb1"], ops["w2e"], ops["fb2"])
    return out[:n, :1]                                            # (N, 1)


# --------------------------- deterministic params ----------------------------

def init_params(key):
    ks = jax.random.split(key, 12)

    def bn(k, c):
        k1, k2, k3, k4 = jax.random.split(k, 4)
        return (jax.random.uniform(k1, (c,), minval=0.8, maxval=1.2),
                0.1 * jax.random.normal(k2, (c,)),
                0.1 * jax.random.normal(k3, (c,)),
                jax.random.uniform(k4, (c,), minval=0.5, maxval=1.5))

    P = {
        "w1": 0.10 * jax.random.normal(ks[0], (10, 3, 5, 5)),
        "b1": 0.10 * jax.random.normal(ks[1], (10,)),
        "w2": 0.05 * jax.random.normal(ks[2], (20, 10, 5, 5)),
        "b2": 0.10 * jax.random.normal(ks[3], (20,)),
        "fw1": 0.05 * jax.random.normal(ks[4], (50, 500)),
        "fb1": 0.10 * jax.random.normal(ks[5], (50,)),
        "fw2": 0.10 * jax.random.normal(ks[6], (1, 50)),
        "fb2": 0.10 * jax.random.normal(ks[7], (1,)),
        "bn1": bn(ks[8], 3),
        "bn2": bn(ks[9], 10),
        "bn4": bn(ks[10], 500),
        "bn5": bn(ks[11], 50),
        # norm3 (BatchNorm2d(20)) exists in __init__ but is unused in forward.
    }
    return jax.tree_util.tree_map(lambda a: a.astype(jnp.float32), P)


# ------------------------------ pure-JAX ref ----------------------------------

def reference_forward(x, P):
    def bn2d(h, p):
        g, b, m, v = p
        inv = 1.0 / jnp.sqrt(v + EPS)
        return ((h - m[None, :, None, None]) * (g * inv)[None, :, None, None]
                + b[None, :, None, None])

    def bn1d(h, p):
        g, b, m, v = p
        return (h - m) / jnp.sqrt(v + EPS) * g + b

    def conv(h, w, b):
        y = jax.lax.conv_general_dilated(
            h, w, (1, 1), "VALID", dimension_numbers=("NCHW", "OIHW", "NCHW"))
        return y + b[None, :, None, None]

    def maxpool2(h):
        return jax.lax.reduce_window(h, -jnp.inf, jax.lax.max,
                                     (1, 1, 2, 2), (1, 1, 2, 2), "VALID")

    h = jax.nn.relu(maxpool2(conv(bn2d(x, P["bn1"]), P["w1"], P["b1"])))
    h = jax.nn.relu(maxpool2(conv(bn2d(h, P["bn2"]), P["w2"], P["b2"])))
    h = h.reshape(h.shape[0], -1)
    h = bn1d(h, P["bn4"]) @ P["fw1"].T + P["fb1"]
    h = bn1d(h, P["bn5"]) @ P["fw2"].T + P["fb2"]
    return h


if __name__ == "__main__":
    key = jax.random.PRNGKey(0)
    kx, kp = jax.random.split(key)
    x = jax.random.normal(kx, (10, 3, 32, 32), dtype=jnp.float32)
    P = init_params(kp)

    ops = prepare_detector_operands(P, block_b=8)     # hoisted: once per params
    out = jax.block_until_ready(detector_forward(x, ops))
    ref = jax.block_until_ready(reference_forward(x, P))

    assert out.shape == (10, 1), out.shape
    np.testing.assert_allclose(np.asarray(out), np.asarray(ref),
                               rtol=5e-2, atol=5e-2)
    print("KERNEL_OK")
</pallas_src>

<mosaic_0001>
module attributes {stable_mosaic.version = 11 : i64} {
  func.func @_detector_kernel(%arg0: i32, %arg1: memref<256x96xbf16, #tpu.memory_space<vmem>>, %arg2: memref<5x96x280xbf16, #tpu.memory_space<vmem>>, %arg3: memref<1x280xf32, #tpu.memory_space<vmem>>, %arg4: memref<2x128x252xbf16, #tpu.memory_space<vmem>>, %arg5: memref<2x280x140xbf16, #tpu.memory_space<vmem>>, %arg6: memref<5x140x200xbf16, #tpu.memory_space<vmem>>, %arg7: memref<1x200xf32, #tpu.memory_space<vmem>>, %arg8: memref<2x40x124xbf16, #tpu.memory_space<vmem>>, %arg9: memref<2x200x100xbf16, #tpu.memory_space<vmem>>, %arg10: memref<5x100x50xbf16, #tpu.memory_space<vmem>>, %arg11: memref<1x50xf32, #tpu.memory_space<vmem>>, %arg12: memref<50x128xbf16, #tpu.memory_space<vmem>>, %arg13: memref<1x128xf32, #tpu.memory_space<vmem>>, %arg14: memref<8x128xf32, #tpu.memory_space<vmem>>, %arg15: memref<252x280xf32, #tpu.memory_space<vmem>>, %arg16: memref<124x200xf32, #tpu.memory_space<vmem>>) attributes {dimension_semantics = [#tpu.dimension_semantics<parallel>], iteration_bounds = array<i64: 2>, scalar_prefetch = 0 : i64, scratch_operands = 2 : i64, tpu.core_type = #tpu.core_type<tc>, window_params = [{transform_indices = @transform_0, window_bounds = array<i64: 256, 96>}, {pipeline_mode = #tpu.pipeline_mode<synchronous>, transform_indices = @transform_1, window_bounds = array<i64: 5, 96, 280>}, {pipeline_mode = #tpu.pipeline_mode<synchronous>, transform_indices = @transform_2, window_bounds = array<i64: 1, 280>}, {pipeline_mode = #tpu.pipeline_mode<synchronous>, transform_indices = @transform_3, window_bounds = array<i64: 2, 128, 252>}, {pipeline_mode = #tpu.pipeline_mode<synchronous>, transform_indices = @transform_4, window_bounds = array<i64: 2, 280, 140>}, {pipeline_mode = #tpu.pipeline_mode<synchronous>, transform_indices = @transform_5, window_bounds = array<i64: 5, 140, 200>}, {pipeline_mode = #tpu.pipeline_mode<synchronous>, transform_indices = @transform_6, window_bounds = array<i64: 1, 200>}, {pipeline_mode = #tpu.pipeline_mode<synchronous>, transform_indices = @transform_7, window_bounds = array<i64: 2, 40, 124>}, {pipeline_mode = #tpu.pipeline_mode<synchronous>, transform_indices = @transform_8, window_bounds = array<i64: 2, 200, 100>}, {pipeline_mode = #tpu.pipeline_mode<synchronous>, transform_indices = @transform_9, window_bounds = array<i64: 5, 100, 50>}, {pipeline_mode = #tpu.pipeline_mode<synchronous>, transform_indices = @transform_10, window_bounds = array<i64: 1, 50>}, {pipeline_mode = #tpu.pipeline_mode<synchronous>, transform_indices = @transform_11, window_bounds = array<i64: 50, 128>}, {pipeline_mode = #tpu.pipeline_mode<synchronous>, transform_indices = @transform_12, window_bounds = array<i64: 1, 128>}, {transform_indices = @transform_13, window_bounds = array<i64: 8, 128>}]} {
    %c0 = arith.constant 0 : index
    %c0_0 = arith.constant 0 : index
    %0 = vector.load %arg3[%c0, %c0_0] : memref<1x280xf32, #tpu.memory_space<vmem>>, vector<1x280xf32>
    %1 = vector.shape_cast %0 : vector<1x280xf32> to vector<1x280xf32>
    %2 = vector.broadcast %1 : vector<1x280xf32> to vector<252x280xf32>
    %c0_1 = arith.constant 0 : index
    %c0_2 = arith.constant 0 : index
    %3 = vector.load %arg15[%c0_1, %c0_2] : memref<252x280xf32, #tpu.memory_space<vmem>>, vector<252x280xf32>
    tpu.vector_store %arg15[%c0_1, %c0_2], %2 {strides = array<i32>} : memref<252x280xf32, #tpu.memory_space<vmem>>, vector<252x280xf32>,
    %c0_3 = arith.constant 0 : index
    %c0_4 = arith.constant 0 : index
    %4 = vector.load %arg15[%c0_3, %c0_4] : memref<252x280xf32, #tpu.memory_space<vmem>>, vector<252x280xf32>
    %c0_5 = arith.constant 0 : index
    %c0_6 = arith.constant 0 : index
    %5 = vector.load %arg1[%c0_5, %c0_6] : memref<256x96xbf16, #tpu.memory_space<vmem>>, vector<252x96xbf16>
    %c0_7 = arith.constant 0 : index
    %c0_8 = arith.constant 0 : index
    %c0_9 = arith.constant 0 : index
    %6 = vector.load %arg2[%c0_7, %c0_8, %c0_9] : memref<5x96x280xbf16, #tpu.memory_space<vmem>>, vector<1x96x280xbf16>
    %7 = vector.shape_cast %6 : vector<1x96x280xbf16> to vector<96x280xbf16>
    %cst = arith.constant dense<0.000000e+00> : vector<252x280xf32>
    %8 = tpu.matmul %5, %7, %cst {dimension_numbers = #tpu.dot_dimension_numbers<[1], [0], [0], [1], [0, 0, 1, 1], [], []>} : vector<252x96xbf16>, vector<96x280xbf16>, vector<252x280xf32> -> vector<252x280xf32>
    %9 = arith.addf %4, %8 : vector<252x280xf32>
    %c0_10 = arith.constant 0 : index
    %c0_11 = arith.constant 0 : index
    %10 = vector.load %arg15[%c0_10, %c0_11] : memref<252x280xf32, #tpu.memory_space<vmem>>, vector<252x280xf32>
    tpu.vector_store %arg15[%c0_10, %c0_11], %9 {strides = array<i32>} : memref<252x280xf32, #tpu.memory_space<vmem>>, vector<252x280xf32>,
    %c0_12 = arith.constant 0 : index
    %c0_13 = arith.constant 0 : index
    %11 = vector.load %arg15[%c0_12, %c0_13] : memref<252x280xf32, #tpu.memory_space<vmem>>, vector<252x280xf32>
    %c1 = arith.constant 1 : index
    %c0_14 = arith.constant 0 : index
    %12 = vector.load %arg1[%c1, %c0_14] : memref<256x96xbf16, #tpu.memory_space<vmem>>, vector<252x96xbf16>
    %c1_15 = arith.constant 1 : index
    %c0_16 = arith.constant 0 : index
    %c0_17 = arith.constant 0 : index
    %13 = vector.load %arg2[%c1_15, %c0_16, %c0_17] : memref<5x96x280xbf16, #tpu.memory_space<vmem>>, vector<1x96x280xbf16>
    %14 = vector.shape_cast %13 : vector<1x96x280xbf16> to vector<96x280xbf16>
    %cst_18 = arith.constant dense<0.000000e+00> : vector<252x280xf32>
    %15 = tpu.matmul %12, %14, %cst_18 {dimension_numbers = #tpu.dot_dimension_numbers<[1], [0], [0], [1], [0, 0, 1, 1], [], []>} : vector<252x96xbf16>, vector<96x280xbf16>, vector<252x280xf32> -> vector<252x280xf32>
    %16 = arith.addf %11, %15 : vector<252x280xf32>
    %c0_19 = arith.constant 0 : index
    %c0_20 = arith.constant 0 : index
    %17 = vector.load %arg15[%c0_19, %c0_20] : memref<252x280xf32, #tpu.memory_space<vmem>>, vector<252x280xf32>
    tpu.vector_store %arg15[%c0_19, %c0_20], %16 {strides = array<i32>} : memref<252x280xf32, #tpu.memory_space<vmem>>, vector<252x280xf32>,
    %c0_21 = arith.constant 0 : index
    %c0_22 = arith.constant 0 : index
    %18 = vector.load %arg15[%c0_21, %c0_22] : memref<252x280xf32, #tpu.memory_space<vmem>>, vector<252x280xf32>
    %c2 = arith.constant 2 : index
    %c0_23 = arith.constant 0 : index
    %19 = vector.load %arg1[%c2, %c0_23] : memref<256x96xbf16, #tpu.memory_space<vmem>>, vector<252x96xbf16>
    %c2_24 = arith.constant 2 : index
    %c0_25 = arith.constant 0 : index
    %c0_26 = arith.constant 0 : index
    %20 = vector.load %arg2[%c2_24, %c0_25, %c0_26] : memref<5x96x280xbf16, #tpu.memory_space<vmem>>, vector<1x96x280xbf16>
    %21 = vector.shape_cast %20 : vector<1x96x280xbf16> to vector<96x280xbf16>
    %cst_27 = arith.constant dense<0.000000e+00> : vector<252x280xf32>
    %22 = tpu.matmul %19, %21, %cst_27 {dimension_numbers = #tpu.dot_dimension_numbers<[1], [0], [0], [1], [0, 0, 1, 1], [], []>} : vector<252x96xbf16>, vector<96x280xbf16>, vector<252x280xf32> -> vector<252x280xf32>
    %23 = arith.addf %18, %22 : vector<252x280xf32>
    %c0_28 = arith.constant 0 : index
    %c0_29 = arith.constant 0 : index
    %24 = vector.load %arg15[%c0_28, %c0_29] : memref<252x280xf32, #tpu.memory_space<vmem>>, vector<252x280xf32>
    tpu.vector_store %arg15[%c0_28, %c0_29], %23 {strides = array<i32>} : memref<252x280xf32, #tpu.memory_space<vmem>>, vector<252x280xf32>,
    %c0_30 = arith.constant 0 : index
    %c0_31 = arith.constant 0 : index
    %25 = vector.load %arg15[%c0_30, %c0_31] : memref<252x280xf32, #tpu.memory_space<vmem>>, vector<252x280xf32>
    %c3 = arith.constant 3 : index
    %c0_32 = arith.constant 0 : index
    %26 = vector.load %arg1[%c3, %c0_32] : memref<256x96xbf16, #tpu.memory_space<vmem>>, vector<252x96xbf16>
    %c3_33 = arith.constant 3 : index
    %c0_34 = arith.constant 0 : index
    %c0_35 = arith.constant 0 : index
    %27 = vector.load %arg2[%c3_33, %c0_34, %c0_35] : memref<5x96x280xbf16, #tpu.memory_space<vmem>>, vector<1x96x280xbf16>
    %28 = vector.shape_cast %27 : vector<1x96x280xbf16> to vector<96x280xbf16>
    %cst_36 = arith.constant dense<0.000000e+00> : vector<252x280xf32>
    %29 = tpu.matmul %26, %28, %cst_36 {dimension_numbers = #tpu.dot_dimension_numbers<[1], [0], [0], [1], [0, 0, 1, 1], [], []>} : vector<252x96xbf16>, vector<96x280xbf16>, vector<252x280xf32> -> vector<252x280xf32>
    %30 = arith.addf %25, %29 : vector<252x280xf32>
    %c0_37 = arith.constant 0 : index
    %c0_38 = arith.constant 0 : index
    %31 = vector.load %arg15[%c0_37, %c0_38] : memref<252x280xf32, #tpu.memory_space<vmem>>, vector<252x280xf32>
    tpu.vector_store %arg15[%c0_37, %c0_38], %30 {strides = array<i32>} : memref<252x280xf32, #tpu.memory_space<vmem>>, vector<252x280xf32>,
    %c0_39 = arith.constant 0 : index
    %c0_40 = arith.constant 0 : index
    %32 = vector.load %arg15[%c0_39, %c0_40] : memref<252x280xf32, #tpu.memory_space<vmem>>, vector<252x280xf32>
    %c4 = arith.constant 4 : index
    %c0_41 = arith.constant 0 : index
    %33 = vector.load %arg1[%c4, %c0_41] : memref<256x96xbf16, #tpu.memory_space<vmem>>, vector<252x96xbf16>
    %c4_42 = arith.constant 4 : index
    %c0_43 = arith.constant 0 : index
    %c0_44 = arith.constant 0 : index
    %34 = vector.load %arg2[%c4_42, %c0_43, %c0_44] : memref<5x96x280xbf16, #tpu.memory_space<vmem>>, vector<1x96x280xbf16>
    %35 = vector.shape_cast %34 : vector<1x96x280xbf16> to vector<96x280xbf16>
    %cst_45 = arith.constant dense<0.000000e+00> : vector<252x280xf32>
    %36 = tpu.matmul %33, %35, %cst_45 {dimension_numbers = #tpu.dot_dimension_numbers<[1], [0], [0], [1], [0, 0, 1, 1], [], []>} : vector<252x96xbf16>, vector<96x280xbf16>, vector<252x280xf32> -> vector<252x280xf32>
    %37 = arith.addf %32, %36 : vector<252x280xf32>
    %c0_46 = arith.constant 0 : index
    %c0_47 = arith.constant 0 : index
    %38 = vector.load %arg15[%c0_46, %c0_47] : memref<252x280xf32, #tpu.memory_space<vmem>>, vector<252x280xf32>
    tpu.vector_store %arg15[%c0_46, %c0_47], %37 {strides = array<i32>} : memref<252x280xf32, #tpu.memory_space<vmem>>, vector<252x280xf32>,
    %c0_48 = arith.constant 0 : index
    %c0_49 = arith.constant 0 : index
    %39 = vector.load %arg15[%c0_48, %c0_49] : memref<252x280xf32, #tpu.memory_space<vmem>>, vector<252x280xf32>
    %40 = arith.truncf %39 : vector<252x280xf32> to vector<252x280xbf16>
    %c0_50 = arith.constant 0 : index
    %c0_51 = arith.constant 0 : index
    %c0_52 = arith.constant 0 : index
    %41 = vector.load %arg4[%c0_50, %c0_51, %c0_52] : memref<2x128x252xbf16, #tpu.memory_space<vmem>>, vector<1x128x252xbf16>
    %42 = vector.shape_cast %41 : vector<1x128x252xbf16> to vector<128x252xbf16>
    %cst_53 = arith.constant dense<0.000000e+00> : vector<128x280xf32>
    %43 = tpu.matmul %42, %40, %cst_53 {dimension_numbers = #tpu.dot_dimension_numbers<[1], [0], [0], [1], [0, 0, 1, 1], [], []>} : vector<128x252xbf16>, vector<252x280xbf16>, vector<128x280xf32> -> vector<128x280xf32>
    %c1_54 = arith.constant 1 : index
    %c0_55 = arith.constant 0 : index
    %c0_56 = arith.constant 0 : index
    %44 = vector.load %arg4[%c1_54, %c0_55, %c0_56] : memref<2x128x252xbf16, #tpu.memory_space<vmem>>, vector<1x128x252xbf16>
    %45 = vector.shape_cast %44 : vector<1x128x252xbf16> to vector<128x252xbf16>
    %cst_57 = arith.constant dense<0.000000e+00> : vector<128x280xf32>
    %46 = tpu.matmul %45, %40, %cst_57 {dimension_numbers = #tpu.dot_dimension_numbers<[1], [0], [0], [1], [0, 0, 1, 1], [], []>} : vector<128x252xbf16>, vector<252x280xbf16>, vector<128x280xf32> -> vector<128x280xf32>
    %47 = arith.maximumf %43, %46 : vector<128x280xf32>
    %48 = arith.truncf %47 : vector<128x280xf32> to vector<128x280xbf16>
    %c0_58 = arith.constant 0 : index
    %c0_59 = arith.constant 0 : index
    %c0_60 = arith.constant 0 : index
    %49 = vector.load %arg5[%c0_58, %c0_59, %c0_60] : memref<2x280x140xbf16, #tpu.memory_space<vmem>>, vector<1x280x140xbf16>
    %50 = vector.shape_cast %49 : vector<1x280x140xbf16> to vector<280x140xbf16>
    %cst_61 = arith.constant dense<0.000000e+00> : vector<128x140xf32>
    %51 = tpu.matmul %48, %50, %cst_61 {dimension_numbers = #tpu.dot_dimension_numbers<[1], [0], [0], [1], [0, 0, 1, 1], [], []>} : vector<128x280xbf16>, vector<280x140xbf16>, vector<128x140xf32> -> vector<128x140xf32>
    %c1_62 = arith.constant 1 : index
    %c0_63 = arith.constant 0 : index
    %c0_64 = arith.constant 0 : index
    %52 = vector.load %arg5[%c1_62, %c0_63, %c0_64] : memref<2x280x140xbf16, #tpu.memory_space<vmem>>, vector<1x280x140xbf16>
    %53 = vector.shape_cast %52 : vector<1x280x140xbf16> to vector<280x140xbf16>
    %cst_65 = arith.constant dense<0.000000e+00> : vector<128x140xf32>
    %54 = tpu.matmul %48, %53, %cst_65 {dimension_numbers = #tpu.dot_dimension_numbers<[1], [0], [0], [1], [0, 0, 1, 1], [], []>} : vector<128x280xbf16>, vector<280x140xbf16>, vector<128x140xf32> -> vector<128x140xf32>
    %55 = arith.maximumf %51, %54 : vector<128x140xf32>
    %cst_66 = arith.constant 0.000000e+00 : f32
    %56 = vector.broadcast %cst_66 : f32 to vector<128x140xf32>
    %57 = arith.maximumf %55, %56 : vector<128x140xf32>
    %58 = arith.truncf %57 : vector<128x140xf32> to vector<128x140xbf16>
    %c0_67 = arith.constant 0 : index
    %c0_68 = arith.constant 0 : index
    %59 = vector.load %arg7[%c0_67, %c0_68] : memref<1x200xf32, #tpu.memory_space<vmem>>, vector<1x200xf32>
    %60 = vector.shape_cast %59 : vector<1x200xf32> to vector<1x200xf32>
    %61 = vector.broadcast %60 : vector<1x200xf32> to vector<124x200xf32>
    %c0_69 = arith.constant 0 : index
    %c0_70 = arith.constant 0 : index
    %62 = vector.load %arg16[%c0_69, %c0_70] : memref<124x200xf32, #tpu.memory_space<vmem>>, vector<124x200xf32>
    tpu.vector_store %arg16[%c0_69, %c0_70], %61 {strides = array<i32>} : memref<124x200xf32, #tpu.memory_space<vmem>>, vector<124x200xf32>,
    %c0_71 = arith.constant 0 : index
    %c0_72 = arith.constant 0 : index
    %63 = vector.load %arg16[%c0_71, %c0_72] : memref<124x200xf32, #tpu.memory_space<vmem>>, vector<124x200xf32>
    %64 = vector.extract_strided_slice %58 {offsets = [0, 0], sizes = [124, 140], strides = [1, 1]} : vector<128x140xbf16> to vector<124x140xbf16>
    %c0_73 = arith.constant 0 : index
    %c0_74 = arith.constant 0 : index
    %c0_75 = arith.constant 0 : index
    %65 = vector.load %arg6[%c0_73, %c0_74, %c0_75] : memref<5x140x200xbf16, #tpu.memory_space<vmem>>, vector<1x140x200xbf16>
    %66 = vector.shape_cast %65 : vector<1x140x200xbf16> to vector<140x200xbf16>
    %cst_76 = arith.constant dense<0.000000e+00> : vector<124x200xf32>
    %67 = tpu.matmul %64, %66, %cst_76 {dimension_numbers = #tpu.dot_dimension_numbers<[1], [0], [0], [1], [0, 0, 1, 1], [], []>} : vector<124x140xbf16>, vector<140x200xbf16>, vector<124x200xf32> -> vector<124x200xf32>
    %68 = arith.addf %63, %67 : vector<124x200xf32>
    %c0_77 = arith.constant 0 : index
    %c0_78 = arith.constant 0 : index
    %69 = vector.load %arg16[%c0_77, %c0_78] : memref<124x200xf32, #tpu.memory_space<vmem>>, vector<124x200xf32>
    tpu.vector_store %arg16[%c0_77, %c0_78], %68 {strides = array<i32>} : memref<124x200xf32, #tpu.memory_space<vmem>>, vector<124x200xf32>,
    %c0_79 = arith.constant 0 : index
    %c0_80 = arith.constant 0 : index
    %70 = vector.load %arg16[%c0_79, %c0_80] : memref<124x200xf32, #tpu.memory_space<vmem>>, vector<124x200xf32>
    %71 = vector.extract_strided_slice %58 {offsets = [1, 0], sizes = [124, 140], strides = [1, 1]} : vector<128x140xbf16> to vector<124x140xbf16>
    %c1_81 = arith.constant 1 : index
    %c0_82 = arith.constant 0 : index
    %c0_83 = arith.constant 0 : index
    %72 = vector.load %arg6[%c1_81, %c0_82, %c0_83] : memref<5x140x200xbf16, #tpu.memory_space<vmem>>, vector<1x140x200xbf16>
    %73 = vector.shape_cast %72 : vector<1x140x200xbf16> to vector<140x200xbf16>
    %cst_84 = arith.constant dense<0.000000e+00> : vector<124x200xf32>
    %74 = tpu.matmul %71, %73, %cst_84 {dimension_numbers = #tpu.dot_dimension_numbers<[1], [0], [0], [1], [0, 0, 1, 1], [], []>} : vector<124x140xbf16>, vector<140x200xbf16>, vector<124x200xf32> -> vector<124x200xf32>
    %75 = arith.addf %70, %74 : vector<124x200xf32>
    %c0_85 = arith.constant 0 : index
    %c0_86 = arith.constant 0 : index
    %76 = vector.load %arg16[%c0_85, %c0_86] : memref<124x200xf32, #tpu.memory_space<vmem>>, vector<124x200xf32>
    tpu.vector_store %arg16[%c0_85, %c0_86], %75 {strides = array<i32>} : memref<124x200xf32, #tpu.memory_space<vmem>>, vector<124x200xf32>,
    %c0_87 = arith.constant 0 : index
    %c0_88 = arith.constant 0 : index
    %77 = vector.load %arg16[%c0_87, %c0_88] : memref<124x200xf32, #tpu.memory_space<vmem>>, vector<124x200xf32>
    %78 = vector.extract_strided_slice %58 {offsets = [2, 0], sizes = [124, 140], strides = [1, 1]} : vector<128x140xbf16> to vector<124x140xbf16>
    %c2_89 = arith.constant 2 : index
    %c0_90 = arith.constant 0 : index
    %c0_91 = arith.constant 0 : index
    %79 = vector.load %arg6[%c2_89, %c0_90, %c0_91] : memref<5x140x200xbf16, #tpu.memory_space<vmem>>, vector<1x140x200xbf16>
    %80 = vector.shape_cast %79 : vector<1x140x200xbf16> to vector<140x200xbf16>
    %cst_92 = arith.constant dense<0.000000e+00> : vector<124x200xf32>
    %81 = tpu.matmul %78, %80, %cst_92 {dimension_numbers = #tpu.dot_dimension_numbers<[1], [0], [0], [1], [0, 0, 1, 1], [], []>} : vector<124x140xbf16>, vector<140x200xbf16>, vector<124x200xf32> -> vector<124x200xf32>
    %82 = arith.addf %77, %81 : vector<124x200xf32>
    %c0_93 = arith.constant 0 : index
    %c0_94 = arith.constant 0 : index
    %83 = vector.load %arg16[%c0_93, %c0_94] : memref<124x200xf32, #tpu.memory_space<vmem>>, vector<124x200xf32>
    tpu.vector_store %arg16[%c0_93, %c0_94], %82 {strides = array<i32>} : memref<124x200xf32, #tpu.memory_space<vmem>>, vector<124x200xf32>,
    %c0_95 = arith.constant 0 : index
    %c0_96 = arith.constant 0 : index
    %84 = vector.load %arg16[%c0_95, %c0_96] : memref<124x200xf32, #tpu.memory_space<vmem>>, vector<124x200xf32>
    %85 = vector.extract_strided_slice %58 {offsets = [3, 0], sizes = [124, 140], strides = [1, 1]} : vector<128x140xbf16> to vector<124x140xbf16>
    %c3_97 = arith.constant 3 : index
    %c0_98 = arith.constant 0 : index
    %c0_99 = arith.constant 0 : index
    %86 = vector.load %arg6[%c3_97, %c0_98, %c0_99] : memref<5x140x200xbf16, #tpu.memory_space<vmem>>, vector<1x140x200xbf16>
    %87 = vector.shape_cast %86 : vector<1x140x200xbf16> to vector<140x200xbf16>
    %cst_100 = arith.constant dense<0.000000e+00> : vector<124x200xf32>
    %88 = tpu.matmul %85, %87, %cst_100 {dimension_numbers = #tpu.dot_dimension_numbers<[1], [0], [0], [1], [0, 0, 1, 1], [], []>} : vector<124x140xbf16>, vector<140x200xbf16>, vector<124x200xf32> -> vector<124x200xf32>
    %89 = arith.addf %84, %88 : vector<124x200xf32>
    %c0_101 = arith.constant 0 : index
    %c0_102 = arith.constant 0 : index
    %90 = vector.load %arg16[%c0_101, %c0_102] : memref<124x200xf32, #tpu.memory_space<vmem>>, vector<124x200xf32>
    tpu.vector_store %arg16[%c0_101, %c0_102], %89 {strides = array<i32>} : memref<124x200xf32, #tpu.memory_space<vmem>>, vector<124x200xf32>,
    %c0_103 = arith.constant 0 : index
    %c0_104 = arith.constant 0 : index
    %91 = vector.load %arg16[%c0_103, %c0_104] : memref<124x200xf32, #tpu.memory_space<vmem>>, vector<124x200xf32>
    %92 = vector.extract_strided_slice %58 {offsets = [4, 0], sizes = [124, 140], strides = [1, 1]} : vector<128x140xbf16> to vector<124x140xbf16>
    %c4_105 = arith.constant 4 : index
    %c0_106 = arith.constant 0 : index
    %c0_107 = arith.constant 0 : index
    %93 = vector.load %arg6[%c4_105, %c0_106, %c0_107] : memref<5x140x200xbf16, #tpu.memory_space<vmem>>, vector<1x140x200xbf16>
    %94 = vector.shape_cast %93 : vector<1x140x200xbf16> to vector<140x200xbf16>
    %cst_108 = arith.constant dense<0.000000e+00> : vector<124x200xf32>
    %95 = tpu.matmul %92, %94, %cst_108 {dimension_numbers = #tpu.dot_dimension_numbers<[1], [0], [0], [1], [0, 0, 1, 1], [], []>} : vector<124x140xbf16>, vector<140x200xbf16>, vector<124x200xf32> -> vector<124x200xf32>
    %96 = arith.addf %91, %95 : vector<124x200xf32>
    %c0_109 = arith.constant 0 : index
    %c0_110 = arith.constant 0 : index
    %97 = vector.load %arg16[%c0_109, %c0_110] : memref<124x200xf32, #tpu.memory_space<vmem>>, vector<124x200xf32>
    tpu.vector_store %arg16[%c0_109, %c0_110], %96 {strides = array<i32>} : memref<124x200xf32, #tpu.memory_space<vmem>>, vector<124x200xf32>,
    %c0_111 = arith.constant 0 : index
    %c0_112 = arith.constant 0 : index
    %98 = vector.load %arg16[%c0_111, %c0_112] : memref<124x200xf32, #tpu.memory_space<vmem>>, vector<124x200xf32>
    %99 = arith.truncf %98 : vector<124x200xf32> to vector<124x200xbf16>
    %c0_113 = arith.constant 0 : index
    %c0_114 = arith.constant 0 : index
    %c0_115 = arith.constant 0 : index
    %100 = vector.load %arg8[%c0_113, %c0_114, %c0_115] : memref<2x40x124xbf16, #tpu.memory_space<vmem>>, vector<1x40x124xbf16>
    %101 = vector.shape_cast %100 : vector<1x40x124xbf16> to vector<40x124xbf16>
    %cst_116 = arith.constant dense<0.000000e+00> : vector<40x200xf32>
    %102 = tpu.matmul %101, %99, %cst_116 {dimension_numbers = #tpu.dot_dimension_numbers<[1], [0], [0], [1], [0, 0, 1, 1], [], []>} : vector<40x124xbf16>, vector<124x200xbf16>, vector<40x200xf32> -> vector<40x200xf32>
    %c1_117 = arith.constant 1 : index
    %c0_118 = arith.constant 0 : index
    %c0_119 = arith.constant 0 : index
    %103 = vector.load %arg8[%c1_117, %c0_118, %c0_119] : memref<2x40x124xbf16, #tpu.memory_space<vmem>>, vector<1x40x124xbf16>
    %104 = vector.shape_cast %103 : vector<1x40x124xbf16> to vector<40x124xbf16>
    %cst_120 = arith.constant dense<0.000000e+00> : vector<40x200xf32>
    %105 = tpu.matmul %104, %99, %cst_120 {dimension_numbers = #tpu.dot_dimension_numbers<[1], [0], [0], [1], [0, 0, 1, 1], [], []>} : vector<40x124xbf16>, vector<124x200xbf16>, vector<40x200xf32> -> vector<40x200xf32>
    %106 = arith.maximumf %102, %105 : vector<40x200xf32>
    %107 = arith.truncf %106 : vector<40x200xf32> to vector<40x200xbf16>
    %c0_121 = arith.constant 0 : index
    %c0_122 = arith.constant 0 : index
    %c0_123 = arith.constant 0 : index
    %108 = vector.load %arg9[%c0_121, %c0_122, %c0_123] : memref<2x200x100xbf16, #tpu.memory_space<vmem>>, vector<1x200x100xbf16>
    %109 = vector.shape_cast %108 : vector<1x200x100xbf16> to vector<200x100xbf16>
    %cst_124 = arith.constant dense<0.000000e+00> : vector<40x100xf32>
    %110 = tpu.matmul %107, %109, %cst_124 {dimension_numbers = #tpu.dot_dimension_numbers<[1], [0], [0], [1], [0, 0, 1, 1], [], []>} : vector<40x200xbf16>, vector<200x100xbf16>, vector<40x100xf32> -> vector<40x100xf32>
    %c1_125 = arith.constant 1 : index
    %c0_126 = arith.constant 0 : index
    %c0_127 = arith.constant 0 : index
    %111 = vector.load %arg9[%c1_125, %c0_126, %c0_127] : memref<2x200x100xbf16, #tpu.memory_space<vmem>>, vector<1x200x100xbf16>
    %112 = vector.shape_cast %111 : vector<1x200x100xbf16> to vector<200x100xbf16>
    %cst_128 = arith.constant dense<0.000000e+00> : vector<40x100xf32>
    %113 = tpu.matmul %107, %112, %cst_128 {dimension_numbers = #tpu.dot_dimension_numbers<[1], [0], [0], [1], [0, 0, 1, 1], [], []>} : vector<40x200xbf16>, vector<200x100xbf16>, vector<40x100xf32> -> vector<40x100xf32>
    %114 = arith.maximumf %110, %113 : vector<40x100xf32>
    %cst_129 = arith.constant 0.000000e+00 : f32
    %115 = vector.broadcast %cst_129 : f32 to vector<40x100xf32>
    %116 = arith.maximumf %114, %115 : vector<40x100xf32>
    %c0_130 = arith.constant 0 : index
    %c0_131 = arith.constant 0 : index
    %117 = vector.load %arg11[%c0_130, %c0_131] : memref<1x50xf32, #tpu.memory_space<vmem>>, vector<1x50xf32>
    %118 = vector.shape_cast %117 : vector<1x50xf32> to vector<1x50xf32>
    %119 = vector.broadcast %118 : vector<1x50xf32> to vector<8x50xf32>
    %120 = vector.extract_strided_slice %116 {offsets = [0, 0], sizes = [8, 100], strides = [1, 1]} : vector<40x100xf32> to vector<8x100xf32>
    %121 = arith.truncf %120 : vector<8x100xf32> to vector<8x100xbf16>
    %c0_132 = arith.constant 0 : index
    %c0_133 = arith.constant 0 : index
    %c0_134 = arith.constant 0 : index
    %122 = vector.load %arg10[%c0_132, %c0_133, %c0_134] : memref<5x100x50xbf16, #tpu.memory_space<vmem>>, vector<1x100x50xbf16>
    %123 = vector.shape_cast %122 : vector<1x100x50xbf16> to vector<100x50xbf16>
    %cst_135 = arith.constant dense<0.000000e+00> : vector<8x50xf32>
    %124 = tpu.matmul %121, %123, %cst_135 {dimension_numbers = #tpu.dot_dimension_numbers<[1], [0], [0], [1], [0, 0, 1, 1], [], []>} : vector<8x100xbf16>, vector<100x50xbf16>, vector<8x50xf32> -> vector<8x50xf32>
    %125 = arith.addf %119, %124 : vector<8x50xf32>
    %126 = vector.extract_strided_slice %116 {offsets = [8, 0], sizes = [8, 100], strides = [1, 1]} : vector<40x100xf32> to vector<8x100xf32>
    %127 = arith.truncf %126 : vector<8x100xf32> to vector<8x100xbf16>
    %c1_136 = arith.constant 1 : index
    %c0_137 = arith.constant 0 : index
    %c0_138 = arith.constant 0 : index
    %128 = vector.load %arg10[%c1_136, %c0_137, %c0_138] : memref<5x100x50xbf16, #tpu.memory_space<vmem>>, vector<1x100x50xbf16>
    %129 = vector.shape_cast %128 : vector<1x100x50xbf16> to vector<100x50xbf16>
    %cst_139 = arith.constant dense<0.000000e+00> : vector<8x50xf32>
    %130 = tpu.matmul %127, %129, %cst_139 {dimension_numbers = #tpu.dot_dimension_numbers<[1], [0], [0], [1], [0, 0, 1, 1], [], []>} : vector<8x100xbf16>, vector<100x50xbf16>, vector<8x50xf32> -> vector<8x50xf32>
    %131 = arith.addf %125, %130 : vector<8x50xf32>
    %132 = vector.extract_strided_slice %116 {offsets = [16, 0], sizes = [8, 100], strides = [1, 1]} : vector<40x100xf32> to vector<8x100xf32>
    %133 = arith.truncf %132 : vector<8x100xf32> to vector<8x100xbf16>
    %c2_140 = arith.constant 2 : index
    %c0_141 = arith.constant 0 : index
    %c0_142 = arith.constant 0 : index
    %134 = vector.load %arg10[%c2_140, %c0_141, %c0_142] : memref<5x100x50xbf16, #tpu.memory_space<vmem>>, vector<1x100x50xbf16>
    %135 = vector.shape_cast %134 : vector<1x100x50xbf16> to vector<100x50xbf16>
    %cst_143 = arith.constant dense<0.000000e+00> : vector<8x50xf32>
    %136 = tpu.matmul %133, %135, %cst_143 {dimension_numbers = #tpu.dot_dimension_numbers<[1], [0], [0], [1], [0, 0, 1, 1], [], []>} : vector<8x100xbf16>, vector<100x50xbf16>, vector<8x50xf32> -> vector<8x50xf32>
    %137 = arith.addf %131, %136 : vector<8x50xf32>
    %138 = vector.extract_strided_slice %116 {offsets = [24, 0], sizes = [8, 100], strides = [1, 1]} : vector<40x100xf32> to vector<8x100xf32>
    %139 = arith.truncf %138 : vector<8x100xf32> to vector<8x100xbf16>
    %c3_144 = arith.constant 3 : index
    %c0_145 = arith.constant 0 : index
    %c0_146 = arith.constant 0 : index
    %140 = vector.load %arg10[%c3_144, %c0_145, %c0_146] : memref<5x100x50xbf16, #tpu.memory_space<vmem>>, vector<1x100x50xbf16>
    %141 = vector.shape_cast %140 : vector<1x100x50xbf16> to vector<100x50xbf16>
    %cst_147 = arith.constant dense<0.000000e+00> : vector<8x50xf32>
    %142 = tpu.matmul %139, %141, %cst_147 {dimension_numbers = #tpu.dot_dimension_numbers<[1], [0], [0], [1], [0, 0, 1, 1], [], []>} : vector<8x100xbf16>, vector<100x50xbf16>, vector<8x50xf32> -> vector<8x50xf32>
    %143 = arith.addf %137, %142 : vector<8x50xf32>
    %144 = vector.extract_strided_slice %116 {offsets = [32, 0], sizes = [8, 100], strides = [1, 1]} : vector<40x100xf32> to vector<8x100xf32>
    %145 = arith.truncf %144 : vector<8x100xf32> to vector<8x100xbf16>
    %c4_148 = arith.constant 4 : index
    %c0_149 = arith.constant 0 : index
    %c0_150 = arith.constant 0 : index
    %146 = vector.load %arg10[%c4_148, %c0_149, %c0_150] : memref<5x100x50xbf16, #tpu.memory_space<vmem>>, vector<1x100x50xbf16>
    %147 = vector.shape_cast %146 : vector<1x100x50xbf16> to vector<100x50xbf16>
    %cst_151 = arith.constant dense<0.000000e+00> : vector<8x50xf32>
    %148 = tpu.matmul %145, %147, %cst_151 {dimension_numbers = #tpu.dot_dimension_numbers<[1], [0], [0], [1], [0, 0, 1, 1], [], []>} : vector<8x100xbf16>, vector<100x50xbf16>, vector<8x50xf32> -> vector<8x50xf32>
    %149 = arith.addf %143, %148 : vector<8x50xf32>
    %150 = arith.truncf %149 : vector<8x50xf32> to vector<8x50xbf16>
    %c0_152 = arith.constant 0 : index
    %c0_153 = arith.constant 0 : index
    %151 = vector.load %arg12[%c0_152, %c0_153] : memref<50x128xbf16, #tpu.memory_space<vmem>>, vector<50x128xbf16>
    %cst_154 = arith.constant dense<0.000000e+00> : vector<8x128xf32>
    %152 = tpu.matmul %150, %151, %cst_154 {dimension_numbers = #tpu.dot_dimension_numbers<[1], [0], [0], [1], [0, 0, 1, 1], [], []>} : vector<8x50xbf16>, vector<50x128xbf16>, vector<8x128xf32> -> vector<8x128xf32>
    %c0_155 = arith.constant 0 : index
    %c0_156 = arith.constant 0 : index
    %153 = vector.load %arg13[%c0_155, %c0_156] : memref<1x128xf32, #tpu.memory_space<vmem>>, vector<1x128xf32>
    %154 = vector.broadcast %153 : vector<1x128xf32> to vector<8x128xf32>
    %155 = arith.addf %152, %154 : vector<8x128xf32>
    %c0_157 = arith.constant 0 : index
    %c0_158 = arith.constant 0 : index
    %156 = vector.load %arg14[%c0_157, %c0_158] : memref<8x128xf32, #tpu.memory_space<vmem>>, vector<8x128xf32>
    tpu.vector_store %arg14[%c0_157, %c0_158], %155 {strides = array<i32>} : memref<8x128xf32, #tpu.memory_space<vmem>>, vector<8x128xf32>,
    return
  }
  func.func @transform_0(%arg0: i32) -> (i32, i32) {
    %c0_i32 = arith.constant 0 : i32
    %c0_i32_0 = arith.constant 0 : i32
    return %arg0, %c0_i32 : i32, i32
  }
  func.func @transform_1(%arg0: i32) -> (i32, i32, i32) {
    %c0_i32 = arith.constant 0 : i32
    %c0_i32_0 = arith.constant 0 : i32
    %c0_i32_1 = arith.constant 0 : i32
    %c0_i32_2 = arith.constant 0 : i32
    return %c0_i32, %c0_i32_0, %c0_i32_1 : i32, i32, i32
  }
  func.func @transform_2(%arg0: i32) -> (i32, i32) {
    %c0_i32 = arith.constant 0 : i32
    %c0_i32_0 = arith.constant 0 : i32
    %c0_i32_1 = arith.constant 0 : i32
    return %c0_i32, %c0_i32_0 : i32, i32
  }
  func.func @transform_3(%arg0: i32) -> (i32, i32, i32) {
    %c0_i32 = arith.constant 0 : i32
    %c0_i32_0 = arith.constant 0 : i32
    %c0_i32_1 = arith.constant 0 : i32
    %c0_i32_2 = arith.constant 0 : i32
    return %c0_i32, %c0_i32_0, %c0_i32_1 : i32, i32, i32
  }
  func.func @transform_4(%arg0: i32) -> (i32, i32, i32) {
    %c0_i32 = arith.constant 0 : i32
    %c0_i32_0 = arith.constant 0 : i32
    %c0_i32_1 = arith.constant 0 : i32
    %c0_i32_2 = arith.constant 0 : i32
    return %c0_i32, %c0_i32_0, %c0_i32_1 : i32, i32, i32
  }
  func.func @transform_5(%arg0: i32) -> (i32, i32, i32) {
    %c0_i32 = arith.constant 0 : i32
    %c0_i32_0 = arith.constant 0 : i32
    %c0_i32_1 = arith.constant 0 : i32
    %c0_i32_2 = arith.constant 0 : i32
    return %c0_i32, %c0_i32_0, %c0_i32_1 : i32, i32, i32
  }
  func.func @transform_6(%arg0: i32) -> (i32, i32) {
    %c0_i32 = arith.constant 0 : i32
    %c0_i32_0 = arith.constant 0 : i32
    %c0_i32_1 = arith.constant 0 : i32
    return %c0_i32, %c0_i32_0 : i32, i32
  }
  func.func @transform_7(%arg0: i32) -> (i32, i32, i32) {
    %c0_i32 = arith.constant 0 : i32
    %c0_i32_0 = arith.constant 0 : i32
    %c0_i32_1 = arith.constant 0 : i32
    %c0_i32_2 = arith.constant 0 : i32
    return %c0_i32, %c0_i32_0, %c0_i32_1 : i32, i32, i32
  }
  func.func @transform_8(%arg0: i32) -> (i32, i32, i32) {
    %c0_i32 = arith.constant 0 : i32
    %c0_i32_0 = arith.constant 0 : i32
    %c0_i32_1 = arith.constant 0 : i32
    %c0_i32_2 = arith.constant 0 : i32
    return %c0_i32, %c0_i32_0, %c0_i32_1 : i32, i32, i32
  }
  func.func @transform_9(%arg0: i32) -> (i32, i32, i32) {
    %c0_i32 = arith.constant 0 : i32
    %c0_i32_0 = arith.constant 0 : i32
    %c0_i32_1 = arith.constant 0 : i32
    %c0_i32_2 = arith.constant 0 : i32
    return %c0_i32, %c0_i32_0, %c0_i32_1 : i32, i32, i32
  }
  func.func @transform_10(%arg0: i32) -> (i32, i32) {
    %c0_i32 = arith.constant 0 : i32
    %c0_i32_0 = arith.constant 0 : i32
    %c0_i32_1 = arith.constant 0 : i32
    return %c0_i32, %c0_i32_0 : i32, i32
  }
  func.func @transform_11(%arg0: i32) -> (i32, i32) {
    %c0_i32 = arith.constant 0 : i32
    %c0_i32_0 = arith.constant 0 : i32
    %c0_i32_1 = arith.constant 0 : i32
    return %c0_i32, %c0_i32_0 : i32, i32
  }
  func.func @transform_12(%arg0: i32) -> (i32, i32) {
    %c0_i32 = arith.constant 0 : i32
    %c0_i32_0 = arith.constant 0 : i32
    %c0_i32_1 = arith.constant 0 : i32
    return %c0_i32, %c0_i32_0 : i32, i32
  }
  func.func @transform_13(%arg0: i32) -> (i32, i32) {
    %c0_i32 = arith.constant 0 : i32
    %c0_i32_0 = arith.constant 0 : i32
    return %arg0, %c0_i32 : i32, i32
  }
}

</mosaic_0001>

<llo_original>
// kernel: detector_forward.1
$region0: #{detector_forward.1}
  #allocation0 [shape = 'u32[]', space=smem, size = 0x4, offset = 0x4, fixed_abs, tag = 'smem constant byte address 0x4 - core index']
  #allocation1 [shape = 'u32[144,128]{1,0:T(1,128)}', space=vmem, size = 0x12000, scoped, tag = 'internal scratch']
  #allocation2 [shape = 'f32[252,280]{1,0:T(8,128)}', space=vmem, size = 0x60000, scoped, tag = 'scratch operand']
  #allocation3 [shape = 'f32[124,200]{1,0:T(8,128)}', space=vmem, size = 0x20000, scoped, tag = 'scratch operand']
  %s0 = inlined_call_operand.vmem [shape: bf16[512,96], index: 0, kind: input, shape index: {}]
  %s1 = inlined_call_operand.vmem [shape: bf16[5,96,280], index: 1, kind: input, shape index: {}]
  %s2 = inlined_call_operand.vmem [shape: f32[1,280], index: 2, kind: input, shape index: {}]
  %s3 = inlined_call_operand.vmem [shape: bf16[2,128,252], index: 3, kind: input, shape index: {}]
  %s4 = inlined_call_operand.vmem [shape: bf16[2,280,140], index: 4, kind: input, shape index: {}]
  %s5 = inlined_call_operand.vmem [shape: bf16[5,140,200], index: 5, kind: input, shape index: {}]
  %s6 = inlined_call_operand.vmem [shape: f32[1,200], index: 6, kind: input, shape index: {}]
  %s7 = inlined_call_operand.vmem [shape: bf16[2,40,124], index: 7, kind: input, shape index: {}]
  %s8 = inlined_call_operand.vmem [shape: bf16[2,200,100], index: 8, kind: input, shape index: {}]
  %s9 = inlined_call_operand.vmem [shape: bf16[5,100,50], index: 9, kind: input, shape index: {}]
  %s10 = inlined_call_operand.vmem [shape: f32[1,50], index: 10, kind: input, shape index: {}]
  %s11 = inlined_call_operand.vmem [shape: bf16[50,128], index: 11, kind: input, shape index: {}]
  %s12 = inlined_call_operand.vmem [shape: f32[1,128], index: 12, kind: input, shape index: {}]
  %s13 = inlined_call_operand.vmem [shape: f32[16,128], index: 13, kind: output, shape index: {}]
  %s14 = sld [smem:[#allocation0]]
  $region85: #{detector_forward.1} parent=0
    _
  %s16 = ssub.s32 1, %s14
  %s17 = scalar_select 0, %s16, %s14
  loop: start=0, step=1, limit=4
  $region2: #{detector_forward.1} parent=0 // loop_pre_header
    _
  $region3: #{detector_forward.1} parent=0 // loop_header
    %s19 = sphi 0, %s23
    %p20 = scmp.ge.s32.totalorder %s19, 4
    %s29 = sphi 0, %s31
    %s32 = sphi 0, %s29
    %s33 = sphi 0, %s32
    %s49 = sphi 0, %s33
    %s53 = sphi 0, %s53
    %s55 = sphi 0, %s53
    %s56 = sphi 0, %s55
    %s70 = sphi 0, %s56
    %s74 = sphi 0, %s74
    %s76 = sphi 0, %s74
    %s77 = sphi 0, %s76
    %s91 = sphi 0, %s77
    %s95 = sphi 0, %s95
    %s97 = sphi 0, %s95
    %s98 = sphi 0, %s97
    %s112 = sphi 0, %s98
    %s116 = sphi 0, %s116
    %s118 = sphi 0, %s116
    %s119 = sphi 0, %s118
    %s133 = sphi 0, %s119
    %s137 = sphi 0, %s137
    %s139 = sphi 0, %s137
    %s140 = sphi 0, %s139
    %s154 = sphi 0, %s140
    %s158 = sphi 0, %s158
    %s160 = sphi 0, %s158
    %s161 = sphi 0, %s160
    %s175 = sphi 0, %s161
    %s179 = sphi 0, %s179
    %s181 = sphi 0, %s179
    %s182 = sphi 0, %s181
    %s196 = sphi 0, %s182
    %s200 = sphi 0, %s200
    %s202 = sphi 0, %s200
    %s203 = sphi 0, %s202
    %s217 = sphi 0, %s203
    %s221 = sphi 0, %s221
    %s223 = sphi 0, %s221
    %s224 = sphi 0, %s223
    %s238 = sphi 0, %s224
    %s242 = sphi 0, %s242
    %s244 = sphi 0, %s242
    %s245 = sphi 0, %s244
    %s259 = sphi 0, %s245
    %s263 = sphi 0, %s263
    %s265 = sphi 0, %s263
    %s266 = sphi 0, %s265
    %s280 = sphi 0, %s266
    %s284 = sphi 0, %s284
    %s286 = sphi 0, %s284
    %s287 = sphi 0, %s286
    %s301 = sphi 0, %s287
    %s307 = sphi 0, %s309
    %s310 = sphi 0, %s307
    %s311 = sphi 0, %s310
    %s327 = sphi 0, %s311
  $region4: #{detector_forward.1} parent=0 // loop_header_branch
    %22 = sbr.rel (%p20) target = $region8
  $region5: #{detector_forward.1} parent=0 // loop_body
    %s24 = ssub.s32 %s19, 1
    %s25 = ssub.s32 %s19, 2
    %s26 = sadd.s32 %s19, 1
    %s27 = ssub.s32 %s19, %s26
    %p28 = scmp.eq.s32.totalorder %s27, 0
    %s30 = sadd.s32 %s29, 1
    %s31 = scalar_select %p28, %s29, %s30
    %p34 = pneg %p28
    %p35 = scmp.eq.s32.totalorder %s19, 1
    %p36 = por %p34, %p35
    %p37 = scmp.ne.s32.totalorder %s29, %s32
    %p38 = scmp.eq.s32.totalorder %s19, 0
    %p39 = por %p37, %p38
    %p40 = scmp.ne.s32.totalorder %s29, %s32
    %p41 = scmp.eq.s32.totalorder %s24, 1
    %p42 = por %p40, %p41
    %p43 = scmp.ne.s32.totalorder %s32, %s33
    %p44 = scmp.eq.s32.totalorder %s24, 0
    %p45 = por %p43, %p44
    %p46 = scmp.ne.s32.totalorder %s32, %s33
    %p47 = scmp.eq.s32.totalorder %s25, 1
    %p48 = por %p46, %p47
    %p50 = scmp.ne.s32.totalorder %s33, %s49
    %p51 = scmp.eq.s32.totalorder %s25, 0
    %p52 = por %p50, %p51
    %s54 = sadd.s32 %s53, 1
    %p57 = scmp.eq.s32.totalorder %s19, 1
    %p58 = scmp.ne.s32.totalorder %s53, %s55
    %p59 = scmp.eq.s32.totalorder %s19, 0
    %p60 = por %p58, %p59
    %p61 = scmp.ne.s32.totalorder %s53, %s55
    %p62 = scmp.eq.s32.totalorder %s24, 1
    %p63 = por %p61, %p62
    %p64 = scmp.ne.s32.totalorder %s55, %s56
    %p65 = scmp.eq.s32.totalorder %s24, 0
    %p66 = por %p64, %p65
    %p67 = scmp.ne.s32.totalorder %s55, %s56
    %p68 = scmp.eq.s32.totalorder %s25, 1
    %p69 = por %p67, %p68
    %p71 = scmp.ne.s32.totalorder %s56, %s70
    %p72 = scmp.eq.s32.totalorder %s25, 0
    %p73 = por %p71, %p72
    %s75 = sadd.s32 %s74, 1
    %p78 = scmp.eq.s32.totalorder %s19, 1
    %p79 = scmp.ne.s32.totalorder %s74, %s76
    %p80 = scmp.eq.s32.totalorder %s19, 0
    %p81 = por %p79, %p80
    %p82 = scmp.ne.s32.totalorder %s74, %s76
    %p83 = scmp.eq.s32.totalorder %s24, 1
    %p84 = por %p82, %p83
    %p85 = scmp.ne.s32.totalorder %s76, %s77
    %p86 = scmp.eq.s32.totalorder %s24, 0
    %p87 = por %p85, %p86
    %p88 = scmp.ne.s32.totalorder %s76, %s77
    %p89 = scmp.eq.s32.totalorder %s25, 1
    %p90 = por %p88, %p89
    %p92 = scmp.ne.s32.totalorder %s77, %s91
    %p93 = scmp.eq.s32.totalorder %s25, 0
    %p94 = por %p92, %p93
    %s96 = sadd.s32 %s95, 1
    %p99 = scmp.eq.s32.totalorder %s19, 1
    %p100 = scmp.ne.s32.totalorder %s95, %s97
    %p101 = scmp.eq.s32.totalorder %s19, 0
    %p102 = por %p100, %p101
    %p103 = scmp.ne.s32.totalorder %s95, %s97
    %p104 = scmp.eq.s32.totalorder %s24, 1
    %p105 = por %p103, %p104
    %p106 = scmp.ne.s32.totalorder %s97, %s98
    %p107 = scmp.eq.s32.totalorder %s24, 0
    %p108 = por %p106, %p107
    %p109 = scmp.ne.s32.totalorder %s97, %s98
    %p110 = scmp.eq.s32.totalorder %s25, 1
    %p111 = por %p109, %p110
    %p113 = scmp.ne.s32.totalorder %s98, %s112
    %p114 = scmp.eq.s32.totalorder %s25, 0
    %p115 = por %p113, %p114
    %s117 = sadd.s32 %s116, 1
    %p120 = scmp.eq.s32.totalorder %s19, 1
    %p121 = scmp.ne.s32.totalorder %s116, %s118
    %p122 = scmp.eq.s32.totalorder %s19, 0
    %p123 = por %p121, %p122
    %p124 = scmp.ne.s32.totalorder %s116, %s118
    %p125 = scmp.eq.s32.totalorder %s24, 1
    %p126 = por %p124, %p125
    %p127 = scmp.ne.s32.totalorder %s118, %s119
    %p128 = scmp.eq.s32.totalorder %s24, 0
    %p129 = por %p127, %p128
    %p130 = scmp.ne.s32.totalorder %s118, %s119
    %p131 = scmp.eq.s32.totalorder %s25, 1
    %p132 = por %p130, %p131
    %p134 = scmp.ne.s32.totalorder %s119, %s133
    %p135 = scmp.eq.s32.totalorder %s25, 0
    %p136 = por %p134, %p135
    %s138 = sadd.s32 %s137, 1
    %p141 = scmp.eq.s32.totalorder %s19, 1
    %p142 = scmp.ne.s32.totalorder %s137, %s139
    %p143 = scmp.eq.s32.totalorder %s19, 0
    %p144 = por %p142, %p143
    %p145 = scmp.ne.s32.totalorder %s137, %s139
    %p146 = scmp.eq.s32.totalorder %s24, 1
    %p147 = por %p145, %p146
    %p148 = scmp.ne.s32.totalorder %s139, %s140
    %p149 = scmp.eq.s32.totalorder %s24, 0
    %p150 = por %p148, %p149
    %p151 = scmp.ne.s32.totalorder %s139, %s140
    %p152 = scmp.eq.s32.totalorder %s25, 1
    %p153 = por %p151, %p152
    %p155 = scmp.ne.s32.totalorder %s140, %s154
    %p156 = scmp.eq.s32.totalorder %s25, 0
    %p157 = por %p155, %p156
    %s159 = sadd.s32 %s158, 1
    %p162 = scmp.eq.s32.totalorder %s19, 1
    %p163 = scmp.ne.s32.totalorder %s158, %s160
    %p164 = scmp.eq.s32.totalorder %s19, 0
    %p165 = por %p163, %p164
    %p166 = scmp.ne.s32.totalorder %s158, %s160
    %p167 = scmp.eq.s32.totalorder %s24, 1
    %p168 = por %p166, %p167
    %p169 = scmp.ne.s32.totalorder %s160, %s161
    %p170 = scmp.eq.s32.totalorder %s24, 0
    %p171 = por %p169, %p170
    %p172 = scmp.ne.s32.totalorder %s160, %s161
    %p173 = scmp.eq.s32.totalorder %s25, 1
    %p174 = por %p172, %p173
    %p176 = scmp.ne.s32.totalorder %s161, %s175
    %p177 = scmp.eq.s32.totalorder %s25, 0
    %p178 = por %p176, %p177
    %s180 = sadd.s32 %s179, 1
    %p183 = scmp.eq.s32.totalorder %s19, 1
    %p184 = scmp.ne.s32.totalorder %s179, %s181
    %p185 = scmp.eq.s32.totalorder %s19, 0
    %p186 = por %p184, %p185
    %p187 = scmp.ne.s32.totalorder %s179, %s181
    %p188 = scmp.eq.s32.totalorder %s24, 1
    %p189 = por %p187, %p188
    %p190 = scmp.ne.s32.totalorder %s181, %s182
    %p191 = scmp.eq.s32.totalorder %s24, 0
    %p192 = por %p190, %p191
    %p193 = scmp.ne.s32.totalorder %s181, %s182
    %p194 = scmp.eq.s32.totalorder %s25, 1
    %p195 = por %p193, %p194
    %p197 = scmp.ne.s32.totalorder %s182, %s196
    %p198 = scmp.eq.s32.totalorder %s25, 0
    %p199 = por %p197, %p198
    %s201 = sadd.s32 %s200, 1
    %p204 = scmp.eq.s32.totalorder %s19, 1
    %p205 = scmp.ne.s32.totalorder %s200, %s202
    %p206 = scmp.eq.s32.totalorder %s19, 0
    %p207 = por %p205, %p206
    %p208 = scmp.ne.s32.totalorder %s200, %s202
    %p209 = scmp.eq.s32.totalorder %s24, 1
    %p210 = por %p208, %p209
    %p211 = scmp.ne.s32.totalorder %s202, %s203
    %p212 = scmp.eq.s32.totalorder %s24, 0
    %p213 = por %p211, %p212
    %p214 = scmp.ne.s32.totalorder %s202, %s203
    %p215 = scmp.eq.s32.totalorder %s25, 1
    %p216 = por %p214, %p215
    %p218 = scmp.ne.s32.totalorder %s203, %s217
    %p219 = scmp.eq.s32.totalorder %s25, 0
    %p220 = por %p218, %p219
    %s222 = sadd.s32 %s221, 1
    %p225 = scmp.eq.s32.totalorder %s19, 1
    %p226 = scmp.ne.s32.totalorder %s221, %s223
    %p227 = scmp.eq.s32.totalorder %s19, 0
    %p228 = por %p226, %p227
    %p229 = scmp.ne.s32.totalorder %s221, %s223
    %p230 = scmp.eq.s32.totalorder %s24, 1
    %p231 = por %p229, %p230
    %p232 = scmp.ne.s32.totalorder %s223, %s224
    %p233 = scmp.eq.s32.totalorder %s24, 0
    %p234 = por %p232, %p233
    %p235 = scmp.ne.s32.totalorder %s223, %s224
    %p236 = scmp.eq.s32.totalorder %s25, 1
    %p237 = por %p235, %p236
    %p239 = scmp.ne.s32.totalorder %s224, %s238
    %p240 = scmp.eq.s32.totalorder %s25, 0
    %p241 = por %p239, %p240
    %s243 = sadd.s32 %s242, 1
    %p246 = scmp.eq.s32.totalorder %s19, 1
    %p247 = scmp.ne.s32.totalorder %s242, %s244
    %p248 = scmp.eq.s32.totalorder %s19, 0
    %p249 = por %p247, %p248
    %p250 = scmp.ne.s32.totalorder %s242, %s244
    %p251 = scmp.eq.s32.totalorder %s24, 1
    %p252 = por %p250, %p251
    %p253 = scmp.ne.s32.totalorder %s244, %s245
    %p254 = scmp.eq.s32.totalorder %s24, 0
    %p255 = por %p253, %p254
    %p256 = scmp.ne.s32.totalorder %s244, %s245
    %p257 = scmp.eq.s32.totalorder %s25, 1
    %p258 = por %p256, %p257
    %p260 = scmp.ne.s32.totalorder %s245, %s259
    %p261 = scmp.eq.s32.totalorder %s25, 0
    %p262 = por %p260, %p261
    %s264 = sadd.s32 %s263, 1
    %p267 = scmp.eq.s32.totalorder %s19, 1
    %p268 = scmp.ne.s32.totalorder %s263, %s265
    %p269 = scmp.eq.s32.totalorder %s19, 0
    %p270 = por %p268, %p269
    %p271 = scmp.ne.s32.totalorder %s263, %s265
    %p272 = scmp.eq.s32.totalorder %s24, 1
    %p273 = por %p271, %p272
    %p274 = scmp.ne.s32.totalorder %s265, %s266
    %p275 = scmp.eq.s32.totalorder %s24, 0
    %p276 = por %p274, %p275
    %p277 = scmp.ne.s32.totalorder %s265, %s266
    %p278 = scmp.eq.s32.totalorder %s25, 1
    %p279 = por %p277, %p278
    %p281 = scmp.ne.s32.totalorder %s266, %s280
    %p282 = scmp.eq.s32.totalorder %s25, 0
    %p283 = por %p281, %p282
    %s285 = sadd.s32 %s284, 1
    %p288 = scmp.eq.s32.totalorder %s19, 1
    %p289 = scmp.ne.s32.totalorder %s284, %s286
    %p290 = scmp.eq.s32.totalorder %s19, 0
    %p291 = por %p289, %p290
    %p292 = scmp.ne.s32.totalorder %s284, %s286
    %p293 = scmp.eq.s32.totalorder %s24, 1
    %p294 = por %p292, %p293
    %p295 = scmp.ne.s32.totalorder %s286, %s287
    %p296 = scmp.eq.s32.totalorder %s24, 0
    %p297 = por %p295, %p296
    %p298 = scmp.ne.s32.totalorder %s286, %s287
    %p299 = scmp.eq.s32.totalorder %s25, 1
    %p300 = por %p298, %p299
    %p302 = scmp.ne.s32.totalorder %s287, %s301
    %p303 = scmp.eq.s32.totalorder %s25, 0
    %p304 = por %p302, %p303
    %s305 = ssub.s32 %s19, %s26
    %p306 = scmp.eq.s32.totalorder %s305, 0
    %s308 = sadd.s32 %s307, 1
    %s309 = scalar_select %p306, %s307, %s308
    %p312 = pneg %p306
    %p313 = scmp.eq.s32.totalorder %s19, 1
    %p314 = por %p312, %p313
    %p315 = scmp.ne.s32.totalorder %s307, %s310
    %p316 = scmp.eq.s32.totalorder %s19, 0
    %p317 = por %p315, %p316
    %p318 = scmp.ne.s32.totalorder %s307, %s310
    %p319 = scmp.eq.s32.totalorder %s24, 1
    %p320 = por %p318, %p319
    %p321 = scmp.ne.s32.totalorder %s310, %s311
    %p322 = scmp.eq.s32.totalorder %s24, 0
    %p323 = por %p321, %p322
    %p324 = scmp.ne.s32.totalorder %s310, %s311
    %p325 = scmp.eq.s32.totalorder %s25, 1
    %p326 = por %p324, %p325
    %p328 = scmp.ne.s32.totalorder %s311, %s327
    %p329 = scmp.eq.s32.totalorder %s25, 0
    %p330 = por %p328, %p329
    %p331 = scmp.le.s32.totalorder 1, %s19
    %p332 = scmp.lt.s32.totalorder %s19, 3
    %p333 = pnand %p331, %p332
    %p334 = pneg %p333
    // Predicated region
    $region9: #{detector_forward.1} parent=5 // pred_check
      _
    $region10: #{detector_forward.1} parent=5 // pred_check_branch
      %336 = sbr.rel (%p333) target = $region12
    $region11: #{detector_forward.1} parent=5 // pred_region
      %s337 = ssub.s32 %s19, 1
      // Predicated region
      $region13: #{detector_forward.1} parent=11 // pred_check
        %p338 = pneg %p66
      $region14: #{detector_forward.1} parent=11 // pred_check_branch
        %340 = sbr.rel (%p338) target = $region16
      $region15: #{detector_forward.1} parent=11 // pred_region
        _
      $region16: #{detector_forward.1} parent=11 // pred_fallthru
        _
      // Predicated region
      $region17: #{detector_forward.1} parent=11 // pred_check
        %p341 = pneg %p87
      $region18: #{detector_forward.1} parent=11 // pred_check_branch
        %343 = sbr.rel (%p341) target = $region20
      $region19: #{detector_forward.1} parent=11 // pred_region
        _
      $region20: #{detector_forward.1} parent=11 // pred_fallthru
        _
      // Predicated region
      $region21: #{detector_forward.1} parent=11 // pred_check
        %p344 = pneg %p108
      $region22: #{detector_forward.1} parent=11 // pred_check_branch
        %346 = sbr.rel (%p344) target = $region24
      $region23: #{detector_forward.1} parent=11 // pred_region
        _
      $region24: #{detector_forward.1} parent=11 // pred_fallthru
        _
      // Predicated region
      $region25: #{detector_forward.1} parent=11 // pred_check
        %p347 = pneg %p129
      $region26: #{detector_forward.1} parent=11 // pred_check_branch
        %349 = sbr.rel (%p347) target = $region28
      $region27: #{detector_forward.1} parent=11 // pred_region
        _
      $region28: #{detector_forward.1} parent=11 // pred_fallthru
        _
      // Predicated region
      $region29: #{detector_forward.1} parent=11 // pred_check
        %p350 = pneg %p150
      $region30: #{detector_forward.1} parent=11 // pred_check_branch
        %352 = sbr.rel (%p350) target = $region32
      $region31: #{detector_forward.1} parent=11 // pred_region
        _
      $region32: #{detector_forward.1} parent=11 // pred_fallthru
        _
      // Predicated region
      $region33: #{detector_forward.1} parent=11 // pred_check
        %p353 = pneg %p171
      $region34: #{detector_forward.1} parent=11 // pred_check_branch
        %355 = sbr.rel (%p353) target = $region36
      $region35: #{detector_forward.1} parent=11 // pred_region
        _
      $region36: #{detector_forward.1} parent=11 // pred_fallthru
        _
      // Predicated region
      $region37: #{detector_forward.1} parent=11 // pred_check
        %p356 = pneg %p192
      $region38: #{detector_forward.1} parent=11 // pred_check_branch
        %358 = sbr.rel (%p356) target = $region40
      $region39: #{detector_forward.1} parent=11 // pred_region
        _
      $region40: #{detector_forward.1} parent=11 // pred_fallthru
        _
      // Predicated region
      $region41: #{detector_forward.1} parent=11 // pred_check
        %p359 = pneg %p213
      $region42: #{detector_forward.1} parent=11 // pred_check_branch
        %361 = sbr.rel (%p359) target = $region44
      $region43: #{detector_forward.1} parent=11 // pred_region
        _
      $region44: #{detector_forward.1} parent=11 // pred_fallthru
        _
      // Predicated region
      $region45: #{detector_forward.1} parent=11 // pred_check
        %p362 = pneg %p234
      $region46: #{detector_forward.1} parent=11 // pred_check_branch
        %364 = sbr.rel (%p362) target = $region48
      $region47: #{detector_forward.1} parent=11 // pred_region
        _
      $region48: #{detector_forward.1} parent=11 // pred_fallthru
        _
      // Predicated region
      $region49: #{detector_forward.1} parent=11 // pred_check
        %p365 = pneg %p255
      $region50: #{detector_forward.1} parent=11 // pred_check_branch
        %367 = sbr.rel (%p365) target = $region52
      $region51: #{detector_forward.1} parent=11 // pred_region
        _
      $region52: #{detector_forward.1} parent=11 // pred_fallthru
        _
      // Predicated region
      $region53: #{detector_forward.1} parent=11 // pred_check
        %p368 = pneg %p276
      $region54: #{detector_forward.1} parent=11 // pred_check_branch
        %370 = sbr.rel (%p368) target = $region56
      $region55: #{detector_forward.1} parent=11 // pred_region
        _
      $region56: #{detector_forward.1} parent=11 // pred_fallthru
        _
      // Predicated region
      $region57: #{detector_forward.1} parent=11 // pred_check
        %p371 = pneg %p297
      $region58: #{detector_forward.1} parent=11 // pred_check_branch
        %373 = sbr.rel (%p371) target = $region60
      $region59: #{detector_forward.1} parent=11 // pred_region
        _
      $region60: #{detector_forward.1} parent=11 // pred_fallthru
        _
    $region12: #{detector_forward.1} parent=5 // pred_fallthru
      _
    %p374 = scmp.lt.s32.totalorder %s19, 2
    // Predicated region
    $region61: #{detector_forward.1} parent=5 // pred_check
      %p375 = pneg %p374
    $region62: #{detector_forward.1} parent=5 // pred_check_branch
      %377 = sbr.rel (%p375) target = $region64
    $region63: #{detector_forward.1} parent=5 // pred_region
      // Predicated region
      $region65: #{detector_forward.1} parent=63 // pred_check
        %p378 = pneg %p39
      $region66: #{detector_forward.1} parent=63 // pred_check_branch
        %380 = sbr.rel (%p378) target = $region68
      $region67: #{detector_forward.1} parent=63 // pred_region
        %s381 = smul.u32 32, %s19
        %p382 = scmp.lt.s32.totalorder %s381, 63
        %s383 = scalar_select %p382, %s381, 63
        %s384 = smul.addr %s383, 4
        %s385 = scalar_lea.vmem %s0, %s384
        %s386 = smul.u32 32, %s19
      $region68: #{detector_forward.1} parent=63 // pred_fallthru
        _
    $region64: #{detector_forward.1} parent=5 // pred_fallthru
      _
    %p387 = scmp.le.s32.totalorder 1, %s19
    %p388 = scmp.lt.s32.totalorder %s19, 3
    %p389 = pnand %p387, %p388
    %p390 = pneg %p389
    // Predicated region
    $region69: #{detector_forward.1} parent=5 // pred_check
      _
    $region70: #{detector_forward.1} parent=5 // pred_check_branch
      %392 = sbr.rel (%p389) target = $region72
    $region71: #{detector_forward.1} parent=5 // pred_region
      %s393 = ssub.s32 %s19, 1
      %s394 = smul.u32 32, %s24
      %p395 = scmp.lt.s32.totalorder %s394, 63
      %s396 = scalar_select %p395, %s394, 63
      %s397 = smul.addr %s396, 4
      %s398 = scalar_lea.vmem %s0, %s397
      %p399 = pneg %p45
      %p400 = pneg %p42
      %p401 = pneg %p66
      %p402 = pneg %p63
      %p403 = pneg %p87
      %p404 = pneg %p84
      %p405 = pneg %p108
      %p406 = pneg %p105
      %p407 = pneg %p129
      %p408 = pneg %p126
      %p409 = pneg %p150
      %p410 = pneg %p147
      %p411 = pneg %p171
      %p412 = pneg %p168
      %p413 = pneg %p192
      %p414 = pneg %p189
      %p415 = pneg %p213
      %p416 = pneg %p210
      %p417 = pneg %p234
      %p418 = pneg %p231
      %p419 = pneg %p255
      %p420 = pneg %p252
      %p421 = pneg %p276
      %p422 = pneg %p273
      %p423 = pneg %p297
      %p424 = pneg %p294
      %p425 = pneg %p323
      %p426 = pneg %p320
      %p427 = scmp.lt.s32.totalorder %s24, 1
      %s428 = scalar_select %p427, %s24, 1
      %s429 = smul.addr %s428, 8
      %s430 = scalar_lea.vmem %s13, %s429
      %s431 = smul.u32 32, %s24
      %p432 = scmp.lt.s32.totalorder %s431, 63
      %s433 = scalar_select %p432, %s431, 63
      %s434 = smul.addr %s433, 4
      %s435 = scalar_lea.vmem %s0, %s434
      %s436 = smul.u32 32, %s24
      %p437 = scmp.lt.s32.totalorder %s24, 1
      %s438 = scalar_select %p437, %s24, 1
      %s439 = smul.addr %s438, 8
      %s440 = scalar_lea.vmem %s13, %s439
      %v442 = vld [vmem:[%s2] sm:$0x7]
      %v444 = vlaneseq
      %v445 = vshrl.u32 %v444, 7
      %v446 = vsub.s32 0, %v445
      %v447 = vrot.slane %v442, %v446
      %v448 = vlaneseq
      %v449 = vshrl.u32 %v448, 7
      %v450 = vsub.s32 1, %v449
      %v451 = vrot.slane %v442, %v450
      %v452 = vlaneseq
      %v453 = vshrl.u32 %v452, 7
      %v454 = vsub.s32 2, %v453
      %v455 = vrot.slane %v442, %v454
      %459 = vst [vmem:[#allocation2] sm:$0xff] %v447
      %460 = vst [vmem:[#allocation2 + $0x8] sm:$0xff] %v451
      %vm461 = vcmask 195584
      %462 = vst.msk [vmem:[#allocation2 + $0x10] sm:$0xff] %vm461, %v455
      %463 = vst [vmem:[#allocation2 + $0x18] sm:$0xff] %v447
      %464 = vst [vmem:[#allocation2 + $0x20] sm:$0xff] %v451
      %465 = vst.msk [vmem:[#allocation2 + $0x28] sm:$0xff] %vm461, %v455
      %466 = vst [vmem:[#allocation2 + $0x30] sm:$0xff] %v447
      %467 = vst [vmem:[#allocation2 + $0x38] sm:$0xff] %v451
      %468 = vst.msk [vmem:[#allocation2 + $0x40] sm:$0xff] %vm461, %v455
      %469 = vst [vmem:[#allocation2 + $0x48] sm:$0xff] %v447
      %470 = vst [vmem:[#allocation2 + $0x50] sm:$0xff] %v451
      %471 = vst.msk [vmem:[#allocation2 + $0x58] sm:$0xff] %vm461, %v455
      %472 = vst [vmem:[#allocation2 + $0x60] sm:$0xff] %v447
      %473 = vst [vmem:[#allocation2 + $0x68] sm:$0xff] %v451
      %474 = vst.msk [vmem:[#allocation2 + $0x70] sm:$0xff] %vm461, %v455
      %475 = vst [vmem:[#allocation2 + $0x78] sm:$0xff] %v447
      %476 = vst [vmem:[#allocation2 + $0x80] sm:$0xff] %v451
      %477 = vst.msk [vmem:[#allocation2 + $0x88] sm:$0xff] %vm461, %v455
      %478 = vst [vmem:[#allocation2 + $0x90] sm:$0xff] %v447
      %479 = vst [vmem:[#allocation2 + $0x98] sm:$0xff] %v451
      %480 = vst.msk [vmem:[#allocation2 + $0xa0] sm:$0xff] %vm461, %v455
      %481 = vst [vmem:[#allocation2 + $0xa8] sm:$0xff] %v447
      %482 = vst [vmem:[#allocation2 + $0xb0] sm:$0xff] %v451
      %483 = vst.msk [vmem:[#allocation2 + $0xb8] sm:$0xff] %vm461, %v455
      %484 = vst [vmem:[#allocation2 + $0xc0] sm:$0xff] %v447
      %485 = vst [vmem:[#allocation2 + $0xc8] sm:$0xff] %v451
      %486 = vst.msk [vmem:[#allocation2 + $0xd0] sm:$0xff] %vm461, %v455
      %487 = vst [vmem:[#allocation2 + $0xd8] sm:$0xff] %v447
      %488 = vst [vmem:[#allocation2 + $0xe0] sm:$0xff] %v451
      %489 = vst.msk [vmem:[#allocation2 + $0xe8] sm:$0xff] %vm461, %v455
      %490 = vst [vmem:[#allocation2 + $0xf0] sm:$0xff] %v447
      %491 = vst [vmem:[#allocation2 + $0xf8] sm:$0xff] %v451
      %492 = vst.msk [vmem:[#allocation2 + $0x100] sm:$0xff] %vm461, %v455
      %493 = vst [vmem:[#allocation2 + $0x108] sm:$0xff] %v447
      %494 = vst [vmem:[#allocation2 + $0x110] sm:$0xff] %v451
      %495 = vst.msk [vmem:[#allocation2 + $0x118] sm:$0xff] %vm461, %v455
      %496 = vst [vmem:[#allocation2 + $0x120] sm:$0xff] %v447
      %497 = vst [vmem:[#allocation2 + $0x128] sm:$0xff] %v451
      %498 = vst.msk [vmem:[#allocation2 + $0x130] sm:$0xff] %vm461, %v455
      %499 = vst [vmem:[#allocation2 + $0x138] sm:$0xff] %v447
      %500 = vst [vmem:[#allocation2 + $0x140] sm:$0xff] %v451
      %501 = vst.msk [vmem:[#allocation2 + $0x148] sm:$0xff] %vm461, %v455
      %502 = vst [vmem:[#allocation2 + $0x150] sm:$0xff] %v447
      %503 = vst [vmem:[#allocation2 + $0x158] sm:$0xff] %v451
      %504 = vst.msk [vmem:[#allocation2 + $0x160] sm:$0xff] %vm461, %v455
      %505 = vst [vmem:[#allocation2 + $0x168] sm:$0xff] %v447
      %506 = vst [vmem:[#allocation2 + $0x170] sm:$0xff] %v451
      %507 = vst.msk [vmem:[#allocation2 + $0x178] sm:$0xff] %vm461, %v455
      %508 = vst [vmem:[#allocation2 + $0x180] sm:$0xff] %v447
      %509 = vst [vmem:[#allocation2 + $0x188] sm:$0xff] %v451
      %510 = vst.msk [vmem:[#allocation2 + $0x190] sm:$0xff] %vm461, %v455
      %511 = vst [vmem:[#allocation2 + $0x198] sm:$0xff] %v447
      %512 = vst [vmem:[#allocation2 + $0x1a0] sm:$0xff] %v451
      %513 = vst.msk [vmem:[#allocation2 + $0x1a8] sm:$0xff] %vm461, %v455
      %514 = vst [vmem:[#allocation2 + $0x1b0] sm:$0xff] %v447
      %515 = vst [vmem:[#allocation2 + $0x1b8] sm:$0xff] %v451
      %516 = vst.msk [vmem:[#allocation2 + $0x1c0] sm:$0xff] %vm461, %v455
      %517 = vst [vmem:[#allocation2 + $0x1c8] sm:$0xff] %v447
      %518 = vst [vmem:[#allocation2 + $0x1d0] sm:$0xff] %v451
      %519 = vst.msk [vmem:[#allocation2 + $0x1d8] sm:$0xff] %vm461, %v455
      %520 = vst [vmem:[#allocation2 + $0x1e0] sm:$0xff] %v447
      %521 = vst [vmem:[#allocation2 + $0x1e8] sm:$0xff] %v451
      %522 = vst.msk [vmem:[#allocation2 + $0x1f0] sm:$0xff] %vm461, %v455
      %523 = vst [vmem:[#allocation2 + $0x1f8] sm:$0xff] %v447
      %524 = vst [vmem:[#allocation2 + $0x200] sm:$0xff] %v451
      %525 = vst.msk [vmem:[#allocation2 + $0x208] sm:$0xff] %vm461, %v455
      %526 = vst [vmem:[#allocation2 + $0x210] sm:$0xff] %v447
      %527 = vst [vmem:[#allocation2 + $0x218] sm:$0xff] %v451
      %528 = vst.msk [vmem:[#allocation2 + $0x220] sm:$0xff] %vm461, %v455
      %529 = vst [vmem:[#allocation2 + $0x228] sm:$0xff] %v447
      %530 = vst [vmem:[#allocation2 + $0x230] sm:$0xff] %v451
      %531 = vst.msk [vmem:[#allocation2 + $0x238] sm:$0xff] %vm461, %v455
      %532 = vst [vmem:[#allocation2 + $0x240] sm:$0xff] %v447
      %533 = vst [vmem:[#allocation2 + $0x248] sm:$0xff] %v451
      %534 = vst.msk [vmem:[#allocation2 + $0x250] sm:$0xff] %vm461, %v455
      %535 = vst [vmem:[#allocation2 + $0x258] sm:$0xff] %v447
      %536 = vst [vmem:[#allocation2 + $0x260] sm:$0xff] %v451
      %537 = vst.msk [vmem:[#allocation2 + $0x268] sm:$0xff] %vm461, %v455
      %538 = vst [vmem:[#allocation2 + $0x270] sm:$0xff] %v447
      %539 = vst [vmem:[#allocation2 + $0x278] sm:$0xff] %v451
      %540 = vst.msk [vmem:[#allocation2 + $0x280] sm:$0xff] %vm461, %v455
      %541 = vst [vmem:[#allocation2 + $0x288] sm:$0xff] %v447
      %542 = vst [vmem:[#allocation2 + $0x290] sm:$0xff] %v451
      %543 = vst.msk [vmem:[#allocation2 + $0x298] sm:$0xff] %vm461, %v455
      %544 = vst [vmem:[#allocation2 + $0x2a0] sm:$0xff] %v447
      %545 = vst [vmem:[#allocation2 + $0x2a8] sm:$0xff] %v451
      %546 = vst.msk [vmem:[#allocation2 + $0x2b0] sm:$0xff] %vm461, %v455
      %547 = vst [vmem:[#allocation2 + $0x2b8] sm:$0xff] %v447
      %548 = vst [vmem:[#allocation2 + $0x2c0] sm:$0xff] %v451
      %549 = vst.msk [vmem:[#allocation2 + $0x2c8] sm:$0xff] %vm461, %v455
      %550 = vst [vmem:[#allocation2 + $0x2d0] sm:$0xff] %v447
      %551 = vst [vmem:[#allocation2 + $0x2d8] sm:$0xff] %v451
      %552 = vst.msk [vmem:[#allocation2 + $0x2e0] sm:$0xff] %vm461, %v455
      %553 = vst [vmem:[#allocation2 + $0x2e8] sm:$0xf] %v447
      %554 = vst [vmem:[#allocation2 + $0x2f0] sm:$0xf] %v451
      %vm555 = vcmask 191488
      %556 = vst.msk [vmem:[#allocation2 + $0x2f8] sm:$0xf] %vm555, %v455
      %v557 = vld [vmem:[#allocation2] sm:$0xff]
      %v558 = vld [vmem:[#allocation2 + $0x8] sm:$0xff]
      %v559 = vld [vmem:[#allocation2 + $0x10] sm:$0xff]
      %v560 = vld [vmem:[#allocation2 + $0x18] sm:$0xff]
      %v561 = vld [vmem:[#allocation2 + $0x20] sm:$0xff]
      %v562 = vld [vmem:[#allocation2 + $0x28] sm:$0xff]
      %v563 = vld [vmem:[#allocation2 + $0x30] sm:$0xff]
      %v564 = vld [vmem:[#allocation2 + $0x38] sm:$0xff]
      %v565 = vld [vmem:[#allocation2 + $0x40] sm:$0xff]
      %v566 = vld [vmem:[#allocation2 + $0x48] sm:$0xff]
      %v567 = vld [vmem:[#allocation2 + $0x50] sm:$0xff]
      %v568 = vld [vmem:[#allocation2 + $0x58] sm:$0xff]
      %v569 = vld [vmem:[#allocation2 + $0x60] sm:$0xff]
      %v570 = vld [vmem:[#allocation2 + $0x68] sm:$0xff]
      %v571 = vld [vmem:[#allocation2 + $0x70] sm:$0xff]
      %v572 = vld [vmem:[#allocation2 + $0x78] sm:$0xff]
      %v573 = vld [vmem:[#allocation2 + $0x80] sm:$0xff]
      %v574 = vld [vmem:[#allocation2 + $0x88] sm:$0xff]
      %v575 = vld [vmem:[#allocation2 + $0x90] sm:$0xff]
      %v576 = vld [vmem:[#allocation2 + $0x98] sm:$0xff]
      %v577 = vld [vmem:[#allocation2 + $0xa0] sm:$0xff]
      %v578 = vld [vmem:[#allocation2 + $0xa8] sm:$0xff]
      %v579 = vld [vmem:[#allocation2 + $0xb0] sm:$0xff]
      %v580 = vld [vmem:[#allocation2 + $0xb8] sm:$0xff]
      %v581 = vld [vmem:[#allocation2 + $0xc0] sm:$0xff]
      %v582 = vld [vmem:[#allocation2 + $0xc8] sm:$0xff]
      %v583 = vld [vmem:[#allocation2 + $0xd0] sm:$0xff]
      %v584 = vld [vmem:[#allocation2 + $0xd8] sm:$0xff]
      %v585 = vld [vmem:[#allocation2 + $0xe0] sm:$0xff]
      %v586 = vld [vmem:[#allocation2 + $0xe8] sm:$0xff]
      %v587 = vld [vmem:[#allocation2 + $0xf0] sm:$0xff]
      %v588 = vld [vmem:[#allocation2 + $0xf8] sm:$0xff]
      %v589 = vld [vmem:[#allocation2 + $0x100] sm:$0xff]
      %v590 = vld [vmem:[#allocation2 + $0x108] sm:$0xff]
      %v591 = vld [vmem:[#allocation2 + $0x110] sm:$0xff]
      %v592 = vld [vmem:[#allocation2 + $0x118] sm:$0xff]
      %v593 = vld [vmem:[#allocation2 + $0x120] sm:$0xff]
      %v594 = vld [vmem:[#allocation2 + $0x128] sm:$0xff]
      %v595 = vld [vmem:[#allocation2 + $0x130] sm:$0xff]
      %v596 = vld [vmem:[#allocation2 + $0x138] sm:$0xff]
      %v597 = vld [vmem:[#allocation2 + $0x140] sm:$0xff]
      %v598 = vld [vmem:[#allocation2 + $0x148] sm:$0xff]
      %v599 = vld [vmem:[#allocation2 + $0x150] sm:$0xff]
      %v600 = vld [vmem:[#allocation2 + $0x158] sm:$0xff]
      %v601 = vld [vmem:[#allocation2 + $0x160] sm:$0xff]
      %v602 = vld [vmem:[#allocation2 + $0x168] sm:$0xff]
      %v603 = vld [vmem:[#allocation2 + $0x170] sm:$0xff]
      %v604 = vld [vmem:[#allocation2 + $0x178] sm:$0xff]
      %v605 = vld [vmem:[#allocation2 + $0x180] sm:$0xff]
      %v606 = vld [vmem:[#allocation2 + $0x188] sm:$0xff]
      %v607 = vld [vmem:[#allocation2 + $0x190] sm:$0xff]
      %v608 = vld [vmem:[#allocation2 + $0x198] sm:$0xff]
      %v609 = vld [vmem:[#allocation2 + $0x1a0] sm:$0xff]
      %v610 = vld [vmem:[#allocation2 + $0x1a8] sm:$0xff]
      %v611 = vld [vmem:[#allocation2 + $0x1b0] sm:$0xff]
      %v612 = vld [vmem:[#allocation2 + $0x1b8] sm:$0xff]
      %v613 = vld [vmem:[#allocation2 + $0x1c0] sm:$0xff]
      %v614 = vld [vmem:[#allocation2 + $0x1c8] sm:$0xff]
      %v615 = vld [vmem:[#allocation2 + $0x1d0] sm:$0xff]
      %v616 = vld [vmem:[#allocation2 + $0x1d8] sm:$0xff]
      %v617 = vld [vmem:[#allocation2 + $0x1e0] sm:$0xff]
      %v618 = vld [vmem:[#allocation2 + $0x1e8] sm:$0xff]
      %v619 = vld [vmem:[#allocation2 + $0x1f0] sm:$0xff]
      %v620 = vld [vmem:[#allocation2 + $0x1f8] sm:$0xff]
      %v621 = vld [vmem:[#allocation2 + $0x200] sm:$0xff]
      %v622 = vld [vmem:[#allocation2 + $0x208] sm:$0xff]
      %v623 = vld [vmem:[#allocation2 + $0x210] sm:$0xff]
      %v624 = vld [vmem:[#allocation2 + $0x218] sm:$0xff]
      %v625 = vld [vmem:[#allocation2 + $0x220] sm:$0xff]
      %v626 = vld [vmem:[#allocation2 + $0x228] sm:$0xff]
      %v627 = vld [vmem:[#allocation2 + $0x230] sm:$0xff]
      %v628 = vld [vmem:[#allocation2 + $0x238] sm:$0xff]
      %v629 = vld [vmem:[#allocation2 + $0x240] sm:$0xff]
      %v630 = vld [vmem:[#allocation2 + $0x248] sm:$0xff]
      %v631 = vld [vmem:[#allocation2 + $0x250] sm:$0xff]
      %v632 = vld [vmem:[#allocation2 + $0x258] sm:$0xff]
      %v633 = vld [vmem:[#allocation2 + $0x260] sm:$0xff]
      %v634 = vld [vmem:[#allocation2 + $0x268] sm:$0xff]
      %v635 = vld [vmem:[#allocation2 + $0x270] sm:$0xff]
      %v636 = vld [vmem:[#allocation2 + $0x278] sm:$0xff]
      %v637 = vld [vmem:[#allocation2 + $0x280] sm:$0xff]
      %v638 = vld [vmem:[#allocation2 + $0x288] sm:$0xff]
      %v639 = vld [vmem:[#allocation2 + $0x290] sm:$0xff]
      %v640 = vld [vmem:[#allocation2 + $0x298] sm:$0xff]
      %v641 = vld [vmem:[#allocation2 + $0x2a0] sm:$0xff]
      %v642 = vld [vmem:[#allocation2 + $0x2a8] sm:$0xff]
      %v643 = vld [vmem:[#allocation2 + $0x2b0] sm:$0xff]
      %v644 = vld [vmem:[#allocation2 + $0x2b8] sm:$0xff]
      %v645 = vld [vmem:[#allocation2 + $0x2c0] sm:$0xff]
      %v646 = vld [vmem:[#allocation2 + $0x2c8] sm:$0xff]
      %v647 = vld [vmem:[#allocation2 + $0x2d0] sm:$0xff]
      %v648 = vld [vmem:[#allocation2 + $0x2d8] sm:$0xff]
      %v649 = vld [vmem:[#allocation2 + $0x2e0] sm:$0xff]
      %v650 = vld [vmem:[#allocation2 + $0x2e8] sm:$0xf]
      %v651 = vld [vmem:[#allocation2 + $0x2f0] sm:$0xf]
      %v652 = vld [vmem:[#allocation2 + $0x2f8] sm:$0xf]
      %v653 = vld [vmem:[%s435] sm:$0xf]
      %v654 = vld [vmem:[%s435 + $0x4] sm:$0xf]
      %v655 = vld [vmem:[%s435 + $0x8] sm:$0xf]
      %v656 = vld [vmem:[%s435 + $0xc] sm:$0xf]
      %v657 = vld [vmem:[%s435 + $0x10] sm:$0xf]
      %v658 = vld [vmem:[%s435 + $0x14] sm:$0xf]
      %v659 = vld [vmem:[%s435 + $0x18] sm:$0xf]
      %v660 = vld [vmem:[%s435 + $0x1c] sm:$0xf]
      %v661 = vld [vmem:[%s435 + $0x20] sm:$0xf]
      %v662 = vld [vmem:[%s435 + $0x24] sm:$0xf]
      %v663 = vld [vmem:[%s435 + $0x28] sm:$0xf]
      %v664 = vld [vmem:[%s435 + $0x2c] sm:$0xf]
      %v665 = vld [vmem:[%s435 + $0x30] sm:$0xf]
      %v666 = vld [vmem:[%s435 + $0x34] sm:$0xf]
      %v667 = vld [vmem:[%s435 + $0x38] sm:$0xf]
      %v668 = vld [vmem:[%s435 + $0x3c] sm:$0xf]
      %v669 = vld [vmem:[%s435 + $0x40] sm:$0xf]
      %v670 = vld [vmem:[%s435 + $0x44] sm:$0xf]
      %v671 = vld [vmem:[%s435 + $0x48] sm:$0xf]
      %v672 = vld [vmem:[%s435 + $0x4c] sm:$0xf]
      %v673 = vld [vmem:[%s435 + $0x50] sm:$0xf]
      %v674 = vld [vmem:[%s435 + $0x54] sm:$0xf]
      %v675 = vld [vmem:[%s435 + $0x58] sm:$0xf]
      %v676 = vld [vmem:[%s435 + $0x5c] sm:$0xf]
      %v677 = vld [vmem:[%s435 + $0x60] sm:$0xf]
      %v678 = vld [vmem:[%s435 + $0x64] sm:$0xf]
      %v679 = vld [vmem:[%s435 + $0x68] sm:$0xf]
      %v680 = vld [vmem:[%s435 + $0x6c] sm:$0xf]
      %v681 = vld [vmem:[%s435 + $0x70] sm:$0xf]
      %v682 = vld [vmem:[%s435 + $0x74] sm:$0xf]
      %v683 = vld [vmem:[%s435 + $0x78] sm:$0xf]
      %v684 = vld [vmem:[%s435 + $0x7c] sm:$0x3]
      %v685 = vld [vmem:[%s1] sm:$0xff]
      %v686 = vld [vmem:[%s1 + $0x8] sm:$0xf]
      %v687 = vld [vmem:[%s1 + $0xc] sm:$0xff]
      %v688 = vld [vmem:[%s1 + $0x14] sm:$0xf]
      %v689 = vld [vmem:[%s1 + $0x18] sm:$0xff]
      %v690 = vld [vmem:[%s1 + $0x20] sm:$0xf]
      %v691 = vld [vmem:[%s1 + $0x24] sm:$0xff]
      %v692 = vld [vmem:[%s1 + $0x2c] sm:$0xf]
      %v693 = vld [vmem:[%s1 + $0x30] sm:$0xff]
      %v694 = vld [vmem:[%s1 + $0x38] sm:$0xf]
      %v695 = vld [vmem:[%s1 + $0x3c] sm:$0xff]
      %v696 = vld [vmem:[%s1 + $0x44] sm:$0xf]
      %v697 = vld [vmem:[%s1 + $0x48] sm:$0xff]
      %v698 = vld [vmem:[%s1 + $0x50] sm:$0xf]
      %v699 = vld [vmem:[%s1 + $0x54] sm:$0xff]
      %v700 = vld [vmem:[%s1 + $0x5c] sm:$0xf]
      %v701 = vld [vmem:[%s1 + $0x60] sm:$0xff]
      %v702 = vld [vmem:[%s1 + $0x68] sm:$0xf]
      %v703 = vld [vmem:[%s1 + $0x6c] sm:$0xff]
      %v704 = vld [vmem:[%s1 + $0x74] sm:$0xf]
      %v705 = vld [vmem:[%s1 + $0x78] sm:$0xff]
      %v706 = vld [vmem:[%s1 + $0x80] sm:$0xf]
      %v707 = vld [vmem:[%s1 + $0x84] sm:$0xff]
      %v708 = vld [vmem:[%s1 + $0x8c] sm:$0xf]
      %v741 = vunpack.c.l.b16 %v653
      %v742 = vunpack.c.l.b16 %v654
      %v743 = vunpack.c.l.b16 %v655
      %v744 = vunpack.c.l.b16 %v656
      %v745 = vunpack.c.l.b16 %v657
      %v746 = vunpack.c.l.b16 %v658
      %v747 = vunpack.c.l.b16 %v659
      %v748 = vunpack.c.l.b16 %v660
      %v749 = vunpack.c.l.b16 %v661
      %v750 = vunpack.c.l.b16 %v662
      %v751 = vunpack.c.l.b16 %v663
      %v752 = vunpack.c.l.b16 %v664
      %v753 = vunpack.c.l.b16 %v665
      %v754 = vunpack.c.l.b16 %v666
      %v755 = vunpack.c.l.b16 %v667
      %v756 = vunpack.c.l.b16 %v668
      %v757 = vunpack.c.l.b16 %v669
      %v758 = vunpack.c.l.b16 %v670
      %v759 = vunpack.c.l.b16 %v671
      %v760 = vunpack.c.l.b16 %v672
      %v761 = vunpack.c.l.b16 %v673
      %v762 = vunpack.c.l.b16 %v674
      %v763 = vunpack.c.l.b16 %v675
      %v764 = vunpack.c.l.b16 %v676
      %v765 = vunpack.c.l.b16 %v677
      %v766 = vunpack.c.l.b16 %v678
      %v767 = vunpack.c.l.b16 %v679
      %v768 = vunpack.c.l.b16 %v680
      %v769 = vunpack.c.l.b16 %v681
      %v770 = vunpack.c.l.b16 %v682
      %v771 = vunpack.c.l.b16 %v683
      %v772 = vunpack.c.l.b16 %v684
      %v773 = vpack.c.b16 %v742, %v741
      %v774 = vpack.c.b16 %v744, %v743
      %v775 = vpack.c.b16 %v746, %v745
      %v776 = vpack.c.b16 %v748, %v747
      %v777 = vpack.c.b16 %v750, %v749
      %v778 = vpack.c.b16 %v752, %v751
      %v779 = vpack.c.b16 %v754, %v753
      %v780 = vpack.c.b16 %v756, %v755
      %v781 = vpack.c.b16 %v758, %v757
      %v782 = vpack.c.b16 %v760, %v759
      %v783 = vpack.c.b16 %v762, %v761
      %v784 = vpack.c.b16 %v764, %v763
      %v785 = vpack.c.b16 %v766, %v765
      %v786 = vpack.c.b16 %v768, %v767
      %v787 = vpack.c.b16 %v770, %v769
      %v788 = vpack.c.b16 %v772, %v771
      %v813 = vunpack.c.l.b16 %v685
      %v814 = vunpack.c.h.b16 %v685
      %v815 = vunpack.c.l.b16 %v686
      %v816 = vunpack.c.l.b16 %v687
      %v817 = vunpack.c.h.b16 %v687
      %v818 = vunpack.c.l.b16 %v688
      %v819 = vunpack.c.l.b16 %v689
      %v820 = vunpack.c.h.b16 %v689
      %v821 = vunpack.c.l.b16 %v690
      %v822 = vunpack.c.l.b16 %v691
      %v823 = vunpack.c.h.b16 %v691
      %v824 = vunpack.c.l.b16 %v692
      %v825 = vunpack.c.l.b16 %v693
      %v826 = vunpack.c.h.b16 %v693
      %v827 = vunpack.c.l.b16 %v694
      %v828 = vunpack.c.l.b16 %v695
      %v829 = vunpack.c.h.b16 %v695
      %v830 = vunpack.c.l.b16 %v696
      %v831 = vunpack.c.l.b16 %v697
      %v832 = vunpack.c.h.b16 %v697
      %v833 = vunpack.c.l.b16 %v698
      %v834 = vunpack.c.l.b16 %v699
      %v835 = vunpack.c.h.b16 %v699
      %v836 = vunpack.c.l.b16 %v700
      %v837 = vunpack.c.l.b16 %v701
      %v838 = vunpack.c.h.b16 %v701
      %v839 = vunpack.c.l.b16 %v702
      %v840 = vunpack.c.l.b16 %v703
      %v841 = vunpack.c.h.b16 %v703
      %v842 = vunpack.c.l.b16 %v704
      %v843 = vunpack.c.l.b16 %v705
      %v844 = vunpack.c.h.b16 %v705
      %v845 = vunpack.c.l.b16 %v706
      %v846 = vunpack.c.l.b16 %v707
      %v847 = vunpack.c.h.b16 %v707
      %v848 = vunpack.c.l.b16 %v708
      %v849 = vpack.c.b16 %v816, %v813
      %v850 = vpack.c.b16 %v817, %v814
      %v851 = vpack.c.b16 %v818, %v815
      %v852 = vpack.c.b16 %v822, %v819
      %v853 = vpack.c.b16 %v823, %v820
      %v854 = vpack.c.b16 %v824, %v821
      %v855 = vpack.c.b16 %v828, %v825
      %v856 = vpack.c.b16 %v829, %v826
      %v857 = vpack.c.b16 %v830, %v827
      %v858 = vpack.c.b16 %v834, %v831
      %v859 = vpack.c.b16 %v835, %v832
      %v860 = vpack.c.b16 %v836, %v833
      %v861 = vpack.c.b16 %v840, %v837
      %v862 = vpack.c.b16 %v841, %v838
      %v863 = vpack.c.b16 %v842, %v839
      %v864 = vpack.c.b16 %v846, %v843
      %v865 = vpack.c.b16 %v847, %v844
      %v866 = vpack.c.b16 %v848, %v845
      %vm885 = vcmask 785408
      %v887 = vsel %vm885, %v773, 0
      %v890 = vsel %vm885, %v774, 0
      %v893 = vsel %vm885, %v775, 0
      %v896 = vsel %vm885, %v776, 0
      %v899 = vsel %vm885, %v777, 0
      %v902 = vsel %vm885, %v778, 0
      %v905 = vsel %vm885, %v779, 0
      %v908 = vsel %vm885, %v780, 0
      %v911 = vsel %vm885, %v781, 0
      %v914 = vsel %vm885, %v782, 0
      %v917 = vsel %vm885, %v783, 0
      %v920 = vsel %vm885, %v784, 0
      %v923 = vsel %vm885, %v785, 0
      %v926 = vsel %vm885, %v786, 0
      %v929 = vsel %vm885, %v787, 0
      %v932 = vsel %vm885, %v788, 0
      %934 = vmatprep.subr.bf16.mxu0 %v850
      %935 = vmatpush1.bf16.msra.mxu0 %v849
      %936 = vmatprep.subr.bf16.mxu0 %v853
      %937 = vmatpush1.bf16.msra.mxu0 %v852
      %938 = vmatprep.subr.bf16.mxu0 %v856
      %939 = vmatpush1.bf16.msra.mxu0 %v855
      %940 = vmatprep.subr.bf16.mxu0 %v859
      %941 = vmatpush1.bf16.msra.mxu0 %v858
      %942 = vmatprep.subr.bf16.mxu0 %v862
      %943 = vmatpush1.bf16.msra.mxu0 %v861
      %944 = vmatprep.subr.bf16.mxu0 %v865
      %945 = vmatpush1.bf16.msra.mxu0 %v864
      %946 = vmatprep.subr.bf16.mxu0 0
      %947 = vmatpush1.bf16.msra.mxu0 0
      %948 = vmatprep.subr.bf16.mxu0 0
      %949 = vmatpush1.bf16.msra.mxu0 0
      %950 = vmatprep.subr.bf16.mxu0 0
      %951 = vmatpush1.bf16.msra.mxu0 0
      %952 = vmatprep.subr.bf16.mxu0 0
      %953 = vmatpush1.bf16.msra.mxu0 0
      %954 = vmatprep.subr.bf16.mxu0 0
      %955 = vmatpush1.bf16.msra.mxu0 0
      %956 = vmatprep.subr.bf16.mxu0 0
      %957 = vmatpush1.bf16.msra.mxu0 0
      %958 = vmatprep.subr.bf16.mxu0 0
      %959 = vmatpush1.bf16.msra.mxu0 0
      %960 = vmatprep.subr.bf16.mxu0 0
      %961 = vmatpush1.bf16.msra.mxu0 0
      %962 = vmatprep.subr.bf16.mxu0 0
      %963 = vmatpush1.bf16.msra.mxu0 0
      %964 = vmatprep.subr.bf16.mxu0 0
      %965 = vmatpush1.bf16.msra.mxu0 0
      %966 = vmatprep.mubr.bf16.mxu0 0
      %967 = vmatmul.mubr.bf16.gmra.mrb[0].mxu0 %v887
      %v968 = vpop.f32.mrb[0].mxu0
      %v969 = vadd.f32 0.0, %v968
      %v970 = vpop.f32.mrb[0].mxu0
      %v971 = vadd.f32 0.0, %v970
      %v972 = vpop.f32.mrb[0].mxu0
      %v973 = vadd.f32 0.0, %v972
      %v974 = vpop.f32.mrb[0].mxu0
      %v975 = vadd.f32 0.0, %v974
      %976 = vmatprep.mubr.bf16.mxu0 0
      %977 = vmatmul.mubr.bf16.gmra.mrb[0].mxu0 %v890
      %v978 = vpop.f32.mrb[0].mxu0
      %v979 = vadd.f32 0.0, %v978
      %v980 = vpop.f32.mrb[0].mxu0
      %v981 = vadd.f32 0.0, %v980
      %v982 = vpop.f32.mrb[0].mxu0
      %v983 = vadd.f32 0.0, %v982
      %v984 = vpop.f32.mrb[0].mxu0
      %v985 = vadd.f32 0.0, %v984
      %986 = vmatprep.mubr.bf16.mxu0 0
      %987 = vmatmul.mubr.bf16.gmra.mrb[0].mxu0 %v893
      %v988 = vpop.f32.mrb[0].mxu0
      %v989 = vadd.f32 0.0, %v988
      %v990 = vpop.f32.mrb[0].mxu0
      %v991 = vadd.f32 0.0, %v990
      %v992 = vpop.f32.mrb[0].mxu0
      %v993 = vadd.f32 0.0, %v992
      %v994 = vpop.f32.mrb[0].mxu0
      %v995 = vadd.f32 0.0, %v994
      %996 = vmatprep.mubr.bf16.mxu0 0
      %997 = vmatmul.mubr.bf16.gmra.mrb[0].mxu0 %v896
      %v998 = vpop.f32.mrb[0].mxu0
      %v999 = vadd.f32 0.0, %v998
      %v1000 = vpop.f32.mrb[0].mxu0
      %v1001 = vadd.f32 0.0, %v1000
      %v1002 = vpop.f32.mrb[0].mxu0
      %v1003 = vadd.f32 0.0, %v1002
      %v1004 = vpop.f32.mrb[0].mxu0
      %v1005 = vadd.f32 0.0, %v1004
      %1006 = vmatprep.mubr.bf16.mxu0 0
      %1007 = vmatmul.mubr.bf16.gmra.mrb[0].mxu0 %v899
      %v1008 = vpop.f32.mrb[0].mxu0
      %v1009 = vadd.f32 0.0, %v1008
      %v1010 = vpop.f32.mrb[0].mxu0
      %v1011 = vadd.f32 0.0, %v1010
      %v1012 = vpop.f32.mrb[0].mxu0
      %v1013 = vadd.f32 0.0, %v1012
      %v1014 = vpop.f32.mrb[0].mxu0
      %v1015 = vadd.f32 0.0, %v1014
      %1016 = vmatprep.mubr.bf16.mxu0 0
      %1017 = vmatmul.mubr.bf16.gmra.mrb[0].mxu0 %v902
      %v1018 = vpop.f32.mrb[0].mxu0
      %v1019 = vadd.f32 0.0, %v1018
      %v1020 = vpop.f32.mrb[0].mxu0
      %v1021 = vadd.f32 0.0, %v1020
      %v1022 = vpop.f32.mrb[0].mxu0
      %v1023 = vadd.f32 0.0, %v1022
      %v1024 = vpop.f32.mrb[0].mxu0
      %v1025 = vadd.f32 0.0, %v1024
      %1026 = vmatprep.mubr.bf16.mxu0 0
      %1027 = vmatmul.mubr.bf16.gmra.mrb[0].mxu0 %v905
      %v1028 = vpop.f32.mrb[0].mxu0
      %v1029 = vadd.f32 0.0, %v1028
      %v1030 = vpop.f32.mrb[0].mxu0
      %v1031 = vadd.f32 0.0, %v1030
      %v1032 = vpop.f32.mrb[0].mxu0
      %v1033 = vadd.f32 0.0, %v1032
      %v1034 = vpop.f32.mrb[0].mxu0
      %v1035 = vadd.f32 0.0, %v1034
      %1036 = vmatprep.mubr.bf16.mxu0 0
      %1037 = vmatmul.mubr.bf16.gmra.mrb[0].mxu0 %v908
      %v1038 = vpop.f32.mrb[0].mxu0
      %v1039 = vadd.f32 0.0, %v1038
      %v1040 = vpop.f32.mrb[0].mxu0
      %v1041 = vadd.f32 0.0, %v1040
      %v1042 = vpop.f32.mrb[0].mxu0
      %v1043 = vadd.f32 0.0, %v1042
      %v1044 = vpop.f32.mrb[0].mxu0
      %v1045 = vadd.f32 0.0, %v1044
      %1046 = vmatprep.mubr.bf16.mxu0 0
      %1047 = vmatmul.mubr.bf16.gmra.mrb[0].mxu0 %v911
      %v1048 = vpop.f32.mrb[0].mxu0
      %v1049 = vadd.f32 0.0, %v1048
      %v1050 = vpop.f32.mrb[0].mxu0
      %v1051 = vadd.f32 0.0, %v1050
      %v1052 = vpop.f32.mrb[0].mxu0
      %v1053 = vadd.f32 0.0, %v1052
      %v1054 = vpop.f32.mrb[0].mxu0
      %v1055 = vadd.f32 0.0, %v1054
      %1056 = vmatprep.mubr.bf16.mxu0 0
      %1057 = vmatmul.mubr.bf16.gmra.mrb[0].mxu0 %v914
      %v1058 = vpop.f32.mrb[0].mxu0
      %v1059 = vadd.f32 0.0, %v1058
      %v1060 = vpop.f32.mrb[0].mxu0
      %v1061 = vadd.f32 0.0, %v1060
      %v1062 = vpop.f32.mrb[0].mxu0
      %v1063 = vadd.f32 0.0, %v1062
      %v1064 = vpop.f32.mrb[0].mxu0
      %v1065 = vadd.f32 0.0, %v1064
      %1066 = vmatprep.mubr.bf16.mxu0 0
      %1067 = vmatmul.mubr.bf16.gmra.mrb[0].mxu0 %v917
      %v1068 = vpop.f32.mrb[0].mxu0
      %v1069 = vadd.f32 0.0, %v1068
      %v1070 = vpop.f32.mrb[0].mxu0
      %v1071 = vadd.f32 0.0, %v1070
      %v1072 = vpop.f32.mrb[0].mxu0
      %v1073 = vadd.f32 0.0, %v1072
      %v1074 = vpop.f32.mrb[0].mxu0
      %v1075 = vadd.f32 0.0, %v1074
      %1076 = vmatprep.mubr.bf16.mxu0 0
      %1077 = vmatmul.mubr.bf16.gmra.mrb[0].mxu0 %v920
      %v1078 = vpop.f32.mrb[0].mxu0
      %v1079 = vadd.f32 0.0, %v1078
      %v1080 = vpop.f32.mrb[0].mxu0
      %v1081 = vadd.f32 0.0, %v1080
      %v1082 = vpop.f32.mrb[0].mxu0
      %v1083 = vadd.f32 0.0, %v1082
      %v1084 = vpop.f32.mrb[0].mxu0
      %v1085 = vadd.f32 0.0, %v1084
      %1086 = vmatprep.mubr.bf16.mxu0 0
      %1087 = vmatmul.mubr.bf16.gmra.mrb[0].mxu0 %v923
      %v1088 = vpop.f32.mrb[0].mxu0
      %v1089 = vadd.f32 0.0, %v1088
      %v1090 = vpop.f32.mrb[0].mxu0
      %v1091 = vadd.f32 0.0, %v1090
      %v1092 = vpop.f32.mrb[0].mxu0
      %v1093 = vadd.f32 0.0, %v1092
      %v1094 = vpop.f32.mrb[0].mxu0
      %v1095 = vadd.f32 0.0, %v1094
      %1096 = vmatprep.mubr.bf16.mxu0 0
      %1097 = vmatmul.mubr.bf16.gmra.mrb[0].mxu0 %v926
      %v1098 = vpop.f32.mrb[0].mxu0
      %v1099 = vadd.f32 0.0, %v1098
      %v1100 = vpop.f32.mrb[0].mxu0
      %v1101 = vadd.f32 0.0, %v1100
      %v1102 = vpop.f32.mrb[0].mxu0
      %v1103 = vadd.f32 0.0, %v1102
      %v1104 = vpop.f32.mrb[0].mxu0
      %v1105 = vadd.f32 0.0, %v1104
      %1106 = vmatprep.mubr.bf16.mxu0 0
      %1107 = vmatmul.mubr.bf16.gmra.mrb[0].mxu0 %v929
      %v1108 = vpop.f32.mrb[0].mxu0
      %v1109 = vadd.f32 0.0, %v1108
      %v1110 = vpop.f32.mrb[0].mxu0
      %v1111 = vadd.f32 0.0, %v1110
      %v1112 = vpop.f32.mrb[0].mxu0
      %v1113 = vadd.f32 0.0, %v1112
      %v1114 = vpop.f32.mrb[0].mxu0
      %v1115 = vadd.f32 0.0, %v1114
      %1116 = vmatprep.mubr.bf16.mxu0 0
      %1117 = vmatmul.mubr.bf16.gmra.mrb[0].mxu0 %v932
      %v1118 = vpop.f32.mrb[0].mxu0
      %v1119 = vadd.f32 0.0, %v1118
      %v1120 = vpop.f32.mrb[0].mxu0
      %v1121 = vadd.f32 0.0, %v1120
      %v1122 = vpop.f32.mrb[0].mxu0
      %v1123 = vadd.f32 0.0, %v1122
      %v1124 = vpop.f32.mrb[0].mxu0
      %v1125 = vadd.f32 0.0, %v1124
      %1126 = vdwg.mxu0
      %1127 = vmatprep.subr.bf16.mxu0 0
      %1128 = vmatpush1.bf16.msra.mxu0 %v851
      %1129 = vmatprep.subr.bf16.mxu0 0
      %1130 = vmatpush1.bf16.msra.mxu0 %v854
      %1131 = vmatprep.subr.bf16.mxu0 0
      %1132 = vmatpush1.bf16.msra.mxu0 %v857
      %1133 = vmatprep.subr.bf16.mxu0 0
      %1134 = vmatpush1.bf16.msra.mxu0 %v860
      %1135 = vmatprep.subr.bf16.mxu0 0
      %1136 = vmatpush1.bf16.msra.mxu0 %v863
      %1137 = vmatprep.subr.bf16.mxu0 0
      %1138 = vmatpush1.bf16.msra.mxu0 %v866
      %1139 = vmatprep.subr.bf16.mxu0 0
      %1140 = vmatpush1.bf16.msra.mxu0 0
      %1141 = vmatprep.subr.bf16.mxu0 0
      %1142 = vmatpush1.bf16.msra.mxu0 0
      %1143 = vmatprep.subr.bf16.mxu0 0
      %1144 = vmatpush1.bf16.msra.mxu0 0
      %1145 = vmatprep.subr.bf16.mxu0 0
      %1146 = vmatpush1.bf16.msra.mxu0 0
      %1147 = vmatprep.subr.bf16.mxu0 0
      %1148 = vmatpush1.bf16.msra.mxu0 0
      %1149 = vmatprep.subr.bf16.mxu0 0
      %1150 = vmatpush1.bf16.msra.mxu0 0
      %1151 = vmatprep.subr.bf16.mxu0 0
      %1152 = vmatpush1.bf16.msra.mxu0 0
      %1153 = vmatprep.subr.bf16.mxu0 0
      %1154 = vmatpush1.bf16.msra.mxu0 0
      %1155 = vmatprep.subr.bf16.mxu0 0
      %1156 = vmatpush1.bf16.msra.mxu0 0
      %1157 = vmatprep.subr.bf16.mxu0 0
      %1158 = vmatpush1.bf16.msra.mxu0 0
      %1159 = vmatprep.mubr.bf16.mxu0 0
      %1160 = vmatmul.mubr.bf16.gmra.mrb[0].mxu0 %v887
      %v1161 = vpop.f32.mrb[0].mxu0
      %v1162 = vadd.f32 0.0, %v1161
      %v1163 = vpop.f32.mrb[0].mxu0
      %v1164 = vpop.f32.mrb[0].mxu0
      %v1165 = vadd.f32 0.0, %v1164
      %v1166 = vpop.f32.mrb[0].mxu0
      %1167 = vmatprep.mubr.bf16.mxu0 0
      %1168 = vmatmul.mubr.bf16.gmra.mrb[0].mxu0 %v890
      %v1169 = vpop.f32.mrb[0].mxu0
      %v1170 = vadd.f32 0.0, %v1169
      %v1171 = vpop.f32.mrb[0].mxu0
      %v1172 = vpop.f32.mrb[0].mxu0
      %v1173 = vadd.f32 0.0, %v1172
      %v1174 = vpop.f32.mrb[0].mxu0
      %1175 = vmatprep.mubr.bf16.mxu0 0
      %1176 = vmatmul.mubr.bf16.gmra.mrb[0].mxu0 %v893
      %v1177 = vpop.f32.mrb[0].mxu0
      %v1178 = vadd.f32 0.0, %v1177
      %v1179 = vpop.f32.mrb[0].mxu0
      %v1180 = vpop.f32.mrb[0].mxu0
      %v1181 = vadd.f32 0.0, %v1180
      %v1182 = vpop.f32.mrb[0].mxu0
      %1183 = vmatprep.mubr.bf16.mxu0 0
      %1184 = vmatmul.mubr.bf16.gmra.mrb[0].mxu0 %v896
      %v1185 = vpop.f32.mrb[0].mxu0
      %v1186 = vadd.f32 0.0, %v1185
      %v1187 = vpop.f32.mrb[0].mxu0
      %v1188 = vpop.f32.mrb[0].mxu0
      %v1189 = vadd.f32 0.0, %v1188
      %v1190 = vpop.f32.mrb[0].mxu0
      %1191 = vmatprep.mubr.bf16.mxu0 0
      %1192 = vmatmul.mubr.bf16.gmra.mrb[0].mxu0 %v899
      %v1193 = vpop.f32.mrb[0].mxu0
      %v1194 = vadd.f32 0.0, %v1193
      %v1195 = vpop.f32.mrb[0].mxu0
      %v1196 = vpop.f32.mrb[0].mxu0
      %v1197 = vadd.f32 0.0, %v1196
      %v1198 = vpop.f32.mrb[0].mxu0
      %1199 = vmatprep.mubr.bf16.mxu0 0
      %1200 = vmatmul.mubr.bf16.gmra.mrb[0].mxu0 %v902
      %v1201 = vpop.f32.mrb[0].mxu0
      %v1202 = vadd.f32 0.0, %v1201
      %v1203 = vpop.f32.mrb[0].mxu0
      %v1204 = vpop.f32.mrb[0].mxu0
      %v1205 = vadd.f32 0.0, %v1204
      %v1206 = vpop.f32.mrb[0].mxu0
      %1207 = vmatprep.mubr.bf16.mxu0 0
      %1208 = vmatmul.mubr.bf16.gmra.mrb[0].mxu0 %v905
      %v1209 = vpop.f32.mrb[0].mxu0
      %v1210 = vadd.f32 0.0, %v1209
      %v1211 = vpop.f32.mrb[0].mxu0
      %v1212 = vpop.f32.mrb[0].mxu0
      %v1213 = vadd.f32 0.0, %v1212
      %v1214 = vpop.f32.mrb[0].mxu0
      %1215 = vmatprep.mubr.bf16.mxu0 0
      %1216 = vmatmul.mubr.bf16.gmra.mrb[0].mxu0 %v908
      %v1217 = vpop.f32.mrb[0].mxu0
      %v1218 = vadd.f32 0.0, %v1217
      %v1219 = vpop.f32.mrb[0].mxu0
      %v1220 = vpop.f32.mrb[0].mxu0
      %v1221 = vadd.f32 0.0, %v1220
      %v1222 = vpop.f32.mrb[0].mxu0
      %1223 = vmatprep.mubr.bf16.mxu0 0
      %1224 = vmatmul.mubr.bf16.gmra.mrb[0].mxu0 %v911
      %v1225 = vpop.f32.mrb[0].mxu0
      %v1226 = vadd.f32 0.0, %v1225
      %v1227 = vpop.f32.mrb[0].mxu0
      %v1228 = vpop.f32.mrb[0].mxu0
      %v1229 = vadd.f32 0.0, %v1228
      %v1230 = vpop.f32.mrb[0].mxu0
      %1231 = vmatprep.mubr.bf16.mxu0 0
      %1232 = vmatmul.mubr.bf16.gmra.mrb[0].mxu0 %v914
      %v1233 = vpop.f32.mrb[0].mxu0
      %v1234 = vadd.f32 0.0, %v1233
      %v1235 = vpop.f32.mrb[0].mxu0
      %v1236 = vpop.f32.mrb[0].mxu0
      %v1237 = vadd.f32 0.0, %v1236
      %v1238 = vpop.f32.mrb[0].mxu0
      %1239 = vmatprep.mubr.bf16.mxu0 0
      %1240 = vmatmul.mubr.bf16.gmra.mrb[0].mxu0 %v917
      %v1241 = vpop.f32.mrb[0].mxu0
      %v1242 = vadd.f32 0.0, %v1241
      %v1243 = vpop.f32.mrb[0].mxu0
      %v1244 = vpop.f32.mrb[0].mxu0
      %v1245 = vadd.f32 0.0, %v1244
      %v1246 = vpop.f32.mrb[0].mxu0
      %1247 = vmatprep.mubr.bf16.mxu0 0
      %1248 = vmatmul.mubr.bf16.gmra.mrb[0].mxu0 %v920
      %v1249 = vpop.f32.mrb[0].mxu0
      %v1250 = vadd.f32 0.0, %v1249
      %v1251 = vpop.f32.mrb[0].mxu0
      %v1252 = vpop.f32.mrb[0].mxu0
      %v1253 = vadd.f32 0.0, %v1252
      %v1254 = vpop.f32.mrb[0].mxu0
      %1255 = vmatprep.mubr.bf16.mxu0 0
      %1256 = vmatmul.mubr.bf16.gmra.mrb[0].mxu0 %v923
      %v1257 = vpop.f32.mrb[0].mxu0
      %v1258 = vadd.f32 0.0, %v1257
      %v1259 = vpop.f32.mrb[0].mxu0
      %v1260 = vpop.f32.mrb[0].mxu0
      %v1261 = vadd.f32 0.0, %v1260
      %v1262 = vpop.f32.mrb[0].mxu0
      %1263 = vmatprep.mubr.bf16.mxu0 0
      %1264 = vmatmul.mubr.bf16.gmra.mrb[0].mxu0 %v926
      %v1265 = vpop.f32.mrb[0].mxu0
      %v1266 = vadd.f32 0.0, %v1265
      %v1267 = vpop.f32.mrb[0].mxu0
      %v1268 = vpop.f32.mrb[0].mxu0
      %v1269 = vadd.f32 0.0, %v1268
      %v1270 = vpop.f32.mrb[0].mxu0
      %1271 = vmatprep.mubr.bf16.mxu0 0
      %1272 = vmatmul.mubr.bf16.gmra.mrb[0].mxu0 %v929
      %v1273 = vpop.f32.mrb[0].mxu0
      %v1274 = vadd.f32 0.0, %v1273
      %v1275 = vpop.f32.mrb[0].mxu0
      %v1276 = vpop.f32.mrb[0].mxu0
      %v1277 = vadd.f32 0.0, %v1276
      %v1278 = vpop.f32.mrb[0].mxu0
      %1279 = vmatprep.mubr.bf16.mxu0 0
      %1280 = vmatmul.mubr.bf16.gmra.mrb[0].mxu0 %v932
      %v1281 = vpop.f32.mrb[0].mxu0
      %v1282 = vadd.f32 0.0, %v1281
      %v1283 = vpop.f32.mrb[0].mxu0
      %v1284 = vpop.f32.mrb[0].mxu0
      %v1285 = vadd.f32 0.0, %v1284
      %v1286 = vpop.f32.mrb[0].mxu0
      %1287 = vdwg.mxu0
      %v1288 = vadd.f32 %v557, %v969
      %v1289 = vadd.f32 %v558, %v971
      %v1290 = vadd.f32 %v559, %v1162
      %v1291 = vadd.f32 %v560, %v973
      %v1292 = vadd.f32 %v561, %v975
      %v1293 = vadd.f32 %v562, %v1165
      %v1294 = vadd.f32 %v563, %v979
      %v1295 = vadd.f32 %v564, %v981
      %v1296 = vadd.f32 %v565, %v1170
      %v1297 = vadd.f32 %v566, %v983
      %v1298 = vadd.f32 %v567, %v985
      %v1299 = vadd.f32 %v568, %v1173
      %v1300 = vadd.f32 %v569, %v989
      %v1301 = vadd.f32 %v570, %v991
      %v1302 = vadd.f32 %v571, %v1178
      %v1303 = vadd.f32 %v572, %v993
      %v1304 = vadd.f32 %v573, %v995
      %v1305 = vadd.f32 %v574, %v1181
      %v1306 = vadd.f32 %v575, %v999
      %v1307 = vadd.f32 %v576, %v1001
      %v1308 = vadd.f32 %v577, %v1186
      %v1309 = vadd.f32 %v578, %v1003
      %v1310 = vadd.f32 %v579, %v1005
      %v1311 = vadd.f32 %v580, %v1189
      %v1312 = vadd.f32 %v581, %v1009
      %v1313 = vadd.f32 %v582, %v1011
      %v1314 = vadd.f32 %v583, %v1194
      %v1315 = vadd.f32 %v584, %v1013
      %v1316 = vadd.f32 %v585, %v1015
      %v1317 = vadd.f32 %v586, %v1197
      %v1318 = vadd.f32 %v587, %v1019
      %v1319 = vadd.f32 %v588, %v1021
      %v1320 = vadd.f32 %v589, %v1202
      %v1321 = vadd.f32 %v590, %v1023
      %v1322 = vadd.f32 %v591, %v1025
      %v1323 = vadd.f32 %v592, %v1205
      %v1324 = vadd.f32 %v593, %v1029
      %v1325 = vadd.f32 %v594, %v1031
      %v1326 = vadd.f32 %v595, %v1210
      %v1327 = vadd.f32 %v596, %v1033
      %v1328 = vadd.f32 %v597, %v1035
      %v1329 = vadd.f32 %v598, %v1213
      %v1330 = vadd.f32 %v599, %v1039
      %v1331 = vadd.f32 %v600, %v1041
      %v1332 = vadd.f32 %v601, %v1218
      %v1333 = vadd.f32 %v602, %v1043
      %v1334 = vadd.f32 %v603, %v1045
      %v1335 = vadd.f32 %v604, %v1221
      %v1336 = vadd.f32 %v605, %v1049
      %v1337 = vadd.f32 %v606, %v1051
      %v1338 = vadd.f32 %v607, %v1226
      %v1339 = vadd.f32 %v608, %v1053
      %v1340 = vadd.f32 %v609, %v1055
      %v1341 = vadd.f32 %v610, %v1229
      %v1342 = vadd.f32 %v611, %v1059
      %v1343 = vadd.f32 %v612, %v1061
      %v1344 = vadd.f32 %v613, %v1234
      %v1345 = vadd.f32 %v614, %v1063
      %v1346 = vadd.f32 %v615, %v1065
      %v1347 = vadd.f32 %v616, %v1237
      %v1348 = vadd.f32 %v617, %v1069
      %v1349 = vadd.f32 %v618, %v1071
      %v1350 = vadd.f32 %v619, %v1242
      %v1351 = vadd.f32 %v620, %v1073
      %v1352 = vadd.f32 %v621, %v1075
      %v1353 = vadd.f32 %v622, %v1245
      %v1354 = vadd.f32 %v623, %v1079
      %v1355 = vadd.f32 %v624, %v1081
      %v1356 = vadd.f32 %v625, %v1250
      %v1357 = vadd.f32 %v626, %v1083
      %v1358 = vadd.f32 %v627, %v1085
      %v1359 = vadd.f32 %v628, %v1253
      %v1360 = vadd.f32 %v629, %v1089
      %v1361 = vadd.f32 %v630, %v1091
      %v1362 = vadd.f32 %v631, %v1258
      %v1363 = vadd.f32 %v632, %v1093
      %v1364 = vadd.f32 %v633, %v1095
      %v1365 = vadd.f32 %v634, %v1261
      %v1366 = vadd.f32 %v635, %v1099
      %v1367 = vadd.f32 %v636, %v1101
      %v1368 = vadd.f32 %v637, %v1266
      %v1369 = vadd.f32 %v638, %v1103
      %v1370 = vadd.f32 %v639, %v1105
      %v1371 = vadd.f32 %v640, %v1269
      %v1372 = vadd.f32 %v641, %v1109
      %v1373 = vadd.f32 %v642, %v1111
      %v1374 = vadd.f32 %v643, %v1274
      %v1375 = vadd.f32 %v644, %v1113
      %v1376 = vadd.f32 %v645, %v1115
      %v1377 = vadd.f32 %v646, %v1277
      %v1378 = vadd.f32 %v647, %v1119
      %v1379 = vadd.f32 %v648, %v1121
      %v1380 = vadd.f32 %v649, %v1282
      %v1381 = vadd.f32 %v650, %v1123
      %v1382 = vadd.f32 %v651, %v1125
      %v1383 = vadd.f32 %v652, %v1285
      %1384 = vst [vmem:[#allocation2] sm:$0xff] %v1288
      %1385 = vst [vmem:[#allocation2 + $0x8] sm:$0xff] %v1289
      %1386 = vst.msk [vmem:[#allocation2 + $0x10] sm:$0xff] %vm461, %v1290
      %1387 = vst [vmem:[#allocation2 + $0x18] sm:$0xff] %v1291
      %1388 = vst [vmem:[#allocation2 + $0x20] sm:$0xff] %v1292
      %1389 = vst.msk [vmem:[#allocation2 + $0x28] sm:$0xff] %vm461, %v1293
      %1390 = vst [vmem:[#allocation2 + $0x30] sm:$0xff] %v1294
      %1391 = vst [vmem:[#allocation2 + $0x38] sm:$0xff] %v1295
      %1392 = vst.msk [vmem:[#allocation2 + $0x40] sm:$0xff] %vm461, %v1296
      %1393 = vst [vmem:[#allocation2 + $0x48] sm:$0xff] %v1297
      %1394 = vst [vmem:[#allocation2 + $0x50] sm:$0xff] %v1298
      %1395 = vst.msk [vmem:[#allocation2 + $0x58] sm:$0xff] %vm461, %v1299
      %1396 = vst [vmem:[#allocation2 + $0x60] sm:$0xff] %v1300
      %1397 = vst [vmem:[#allocation2 + $0x68] sm:$0xff] %v1301
      %1398 = vst.msk [vmem:[#allocation2 + $0x70] sm:$0xff] %vm461, %v1302
      %1399 = vst [vmem:[#allocation2 + $0x78] sm:$0xff] %v1303
      %1400 = vst [vmem:[#allocation2 + $0x80] sm:$0xff] %v1304
      %1401 = vst.msk [vmem:[#allocation2 + $0x88] sm:$0xff] %vm461, %v1305
      %1402 = vst [vmem:[#allocation2 + $0x90] sm:$0xff] %v1306
      %1403 = vst [vmem:[#allocation2 + $0x98] sm:$0xff] %v1307
      %1404 = vst.msk [vmem:[#allocation2 + $0xa0] sm:$0xff] %vm461, %v1308
      %1405 = vst [vmem:[#allocation2 + $0xa8] sm:$0xff] %v1309
      %1406 = vst [vmem:[#allocation2 + $0xb0] sm:$0xff] %v1310
      %1407 = vst.msk [vmem:[#allocation2 + $0xb8] sm:$0xff] %vm461, %v1311
      %1408 = vst [vmem:[#allocation2 + $0xc0] sm:$0xff] %v1312
      %1409 = vst [vmem:[#allocation2 + $0xc8] sm:$0xff] %v1313
      %1410 = vst.msk [vmem:[#allocation2 + $0xd0] sm:$0xff] %vm461, %v1314
      %1411 = vst [vmem:[#allocation2 + $0xd8] sm:$0xff] %v1315
      %1412 = vst [vmem:[#allocation2 + $0xe0] sm:$0xff] %v1316
      %1413 = vst.msk [vmem:[#allocation2 + $0xe8] sm:$0xff] %vm461, %v1317
      %1414 = vst [vmem:[#allocation2 + $0xf0] sm:$0xff] %v1318
      %1415 = vst [vmem:[#allocation2 + $0xf8] sm:$0xff] %v1319
      %1416 = vst.msk [vmem:[#allocation2 + $0x100] sm:$0xff] %vm461, %v1320
      %1417 = vst [vmem:[#allocation2 + $0x108] sm:$0xff] %v1321
      %1418 = vst [vmem:[#allocation2 + $0x110] sm:$0xff] %v1322
      %1419 = vst.msk [vmem:[#allocation2 + $0x118] sm:$0xff] %vm461, %v1323
      %1420 = vst [vmem:[#allocation2 + $0x120] sm:$0xff] %v1324
      %1421 = vst [vmem:[#allocation2 + $0x128] sm:$0xff] %v1325
      %1422 = vst.msk [vmem:[#allocation2 + $0x130] sm:$0xff] %vm461, %v1326
      %1423 = vst [vmem:[#allocation2 + $0x138] sm:$0xff] %v1327
      %1424 = vst [vmem:[#allocation2 + $0x140] sm:$0xff] %v1328
      %1425 = vst.msk [vmem:[#allocation2 + $0x148] sm:$0xff] %vm461, %v1329
      %1426 = vst [vmem:[#allocation2 + $0x150] sm:$0xff] %v1330
      %1427 = vst [vmem:[#allocation2 + $0x158] sm:$0xff] %v1331
      %1428 = vst.msk [vmem:[#allocation2 + $0x160] sm:$0xff] %vm461, %v1332
      %1429 = vst [vmem:[#allocation2 + $0x168] sm:$0xff] %v1333
      %1430 = vst [vmem:[#allocation2 + $0x170] sm:$0xff] %v1334
      %1431 = vst.msk [vmem:[#allocation2 + $0x178] sm:$0xff] %vm461, %v1335
      %1432 = vst [vmem:[#allocation2 + $0x180] sm:$0xff] %v1336
      %1433 = vst [vmem:[#allocation2 + $0x188] sm:$0xff] %v1337
      %1434 = vst.msk [vmem:[#allocation2 + $0x190] sm:$0xff] %vm461, %v1338
      %1435 = vst [vmem:[#allocation2 + $0x198] sm:$0xff] %v1339
      %1436 = vst [vmem:[#allocation2 + $0x1a0] sm:$0xff] %v1340
      %1437 = vst.msk [vmem:[#allocation2 + $0x1a8] sm:$0xff] %vm461, %v1341
      %1438 = vst [vmem:[#allocation2 + $0x1b0] sm:$0xff] %v1342
      %1439 = vst [vmem:[#allocation2 + $0x1b8] sm:$0xff] %v1343
      %1440 = vst.msk [vmem:[#allocation2 + $0x1c0] sm:$0xff] %vm461, %v1344
      %1441 = vst [vmem:[#allocation2 + $0x1c8] sm:$0xff] %v1345
      %1442 = vst [vmem:[#allocation2 + $0x1d0] sm:$0xff] %v1346
      %1443 = vst.msk [vmem:[#allocation2 + $0x1d8] sm:$0xff] %vm461, %v1347
      %1444 = vst [vmem:[#allocation2 + $0x1e0] sm:$0xff] %v1348
      %1445 = vst [vmem:[#allocation2 + $0x1e8] sm:$0xff] %v1349
      %1446 = vst.msk [vmem:[#allocation2 + $0x1f0] sm:$0xff] %vm461, %v1350
      %1447 = vst [vmem:[#allocation2 + $0x1f8] sm:$0xff] %v1351
      %1448 = vst [vmem:[#allocation2 + $0x200] sm:$0xff] %v1352
      %1449 = vst.msk [vmem:[#allocation2 + $0x208] sm:$0xff] %vm461, %v1353
      %1450 = vst [vmem:[#allocation2 + $0x210] sm:$0xff] %v1354
      %1451 = vst [vmem:[#allocation2 + $0x218] sm:$0xff] %v1355
      %1452 = vst.msk [vmem:[#allocation2 + $0x220] sm:$0xff] %vm461, %v1356
      %1453 = vst [vmem:[#allocation2 + $0x228] sm:$0xff] %v1357
      %1454 = vst [vmem:[#allocation2 + $0x230] sm:$0xff] %v1358
      %1455 = vst.msk [vmem:[#allocation2 + $0x238] sm:$0xff] %vm461, %v1359
      %1456 = vst [vmem:[#allocation2 + $0x240] sm:$0xff] %v1360
      %1457 = vst [vmem:[#allocation2 + $0x248] sm:$0xff] %v1361
      %1458 = vst.msk [vmem:[#allocation2 + $0x250] sm:$0xff] %vm461, %v1362
      %1459 = vst [vmem:[#allocation2 + $0x258] sm:$0xff] %v1363
      %1460 = vst [vmem:[#allocation2 + $0x260] sm:$0xff] %v1364
      %1461 = vst.msk [vmem:[#allocation2 + $0x268] sm:$0xff] %vm461, %v1365
      %1462 = vst [vmem:[#allocation2 + $0x270] sm:$0xff] %v1366
      %1463 = vst [vmem:[#allocation2 + $0x278] sm:$0xff] %v1367
      %1464 = vst.msk [vmem:[#allocation2 + $0x280] sm:$0xff] %vm461, %v1368
      %1465 = vst [vmem:[#allocation2 + $0x288] sm:$0xff] %v1369
      %1466 = vst [vmem:[#allocation2 + $0x290] sm:$0xff] %v1370
      %1467 = vst.msk [vmem:[#allocation2 + $0x298] sm:$0xff] %vm461, %v1371
      %1468 = vst [vmem:[#allocation2 + $0x2a0] sm:$0xff] %v1372
      %1469 = vst [vmem:[#allocation2 + $0x2a8] sm:$0xff] %v1373
      %1470 = vst.msk [vmem:[#allocation2 + $0x2b0] sm:$0xff] %vm461, %v1374
      %1471 = vst [vmem:[#allocation2 + $0x2b8] sm:$0xff] %v1375
      %1472 = vst [vmem:[#allocation2 + $0x2c0] sm:$0xff] %v1376
      %1473 = vst.msk [vmem:[#allocation2 + $0x2c8] sm:$0xff] %vm461, %v1377
      %1474 = vst [vmem:[#allocation2 + $0x2d0] sm:$0xff] %v1378
      %1475 = vst [vmem:[#allocation2 + $0x2d8] sm:$0xff] %v1379
      %1476 = vst.msk [vmem:[#allocation2 + $0x2e0] sm:$0xff] %vm461, %v1380
      %1477 = vst [vmem:[#allocation2 + $0x2e8] sm:$0xf] %v1381
      %1478 = vst [vmem:[#allocation2 + $0x2f0] sm:$0xf] %v1382
      %1479 = vst.msk [vmem:[#allocation2 + $0x2f8] sm:$0xf] %vm555, %v1383
      %v1480 = vld [vmem:[#allocation2] sm:$0xff]
      %v1481 = vld [vmem:[#allocation2 + $0x8] sm:$0xff]
      %v1482 = vld [vmem:[#allocation2 + $0x10] sm:$0xff]
      %v1483 = vld [vmem:[#allocation2 + $0x18] sm:$0xff]
      %v1484 = vld [vmem:[#allocation2 + $0x20] sm:$0xff]
      %v1485 = vld [vmem:[#allocation2 + $0x28] sm:$0xff]
      %v1486 = vld [vmem:[#allocation2 + $0x30] sm:$0xff]
      %v1487 = vld [vmem:[#allocation2 + $0x38] sm:$0xff]
      %v1488 = vld [vmem:[#allocation2 + $0x40] sm:$0xff]
      %v1489 = vld [vmem:[#allocation2 + $0x48] sm:$0xff]
      %v1490 = vld [vmem:[#allocation2 + $0x50] sm:$0xff]
      %v1491 = vld [vmem:[#allocation2 + $0x58] sm:$0xff]
      %v1492 = vld [vmem:[#allocation2 + $0x60] sm:$0xff]
      %v1493 = vld [vmem:[#allocation2 + $0x68] sm:$0xff]
      %v1494 = vld [vmem:[#allocation2 + $0x70] sm:$0xff]
      %v1495 = vld [vmem:[#allocation2 + $0x78] sm:$0xff]
      %v1496 = vld [vmem:[#allocation2 + $0x80] sm:$0xff]
      %v1497 = vld [vmem:[#allocation2 + $0x88] sm:$0xff]
      %v1498 = vld [vmem:[#allocation2 + $0x90] sm:$0xff]
      %v1499 = vld [vmem:[#allocation2 + $0x98] sm:$0xff]
      %v1500 = vld [vmem:[#allocation2 + $0xa0] sm:$0xff]
      %v1501 = vld [vmem:[#allocation2 + $0xa8] sm:$0xff]
      %v1502 = vld [vmem:[#allocation2 + $0xb0] sm:$0xff]
      %v1503 = vld [vmem:[#allocation2 + $0xb8] sm:$0xff]
      %v1504 = vld [vmem:[#allocation2 + $0xc0] sm:$0xff]
      %v1505 = vld [vmem:[#allocation2 + $0xc8] sm:$0xff]
      %v1506 = vld [vmem:[#allocation2 + $0xd0] sm:$0xff]
      %v1507 = vld [vmem:[#allocation2 + $0xd8] sm:$0xff]
      %v1508 = vld [vmem:[#allocation2 + $0xe0] sm:$0xff]
      %v1509 = vld [vmem:[#allocation2 + $0xe8] sm:$0xff]
      %v1510 = vld [vmem:[#allocation2 + $0xf0] sm:$0xff]
      %v1511 = vld [vmem:[#allocation2 + $0xf8] sm:$0xff]
      %v1512 = vld [vmem:[#allocation2 + $0x100] sm:$0xff]
      %v1513 = vld [vmem:[#allocation2 + $0x108] sm:$0xff]
      %v1514 = vld [vmem:[#allocation2 + $0x110] sm:$0xff]
      %v1515 = vld [vmem:[#allocation2 + $0x118] sm:$0xff]
      %v1516 = vld [vmem:[#allocation2 + $0x120] sm:$0xff]
      %v1517 = vld [vmem:[#allocation2 + $0x128] sm:$0xff]
      %v1518 = vld [vmem:[#allocation2 + $0x130] sm:$0xff]
      %v1519 = vld [vmem:[#allocation2 + $0x138] sm:$0xff]
      %v1520 = vld [vmem:[#allocation2 + $0x140] sm:$0xff]
      %v1521 = vld [vmem:[#allocation2 + $0x148] sm:$0xff]
      %v1522 = vld [vmem:[#allocation2 + $0x150] sm:$0xff]
      %v1523 = vld [vmem:[#allocation2 + $0x158] sm:$0xff]
      %v1524 = vld [vmem:[#allocation2 + $0x160] sm:$0xff]
      %v1525 = vld [vmem:[#allocation2 + $0x168] sm:$0xff]
      %v1526 = vld [vmem:[#allocation2 + $0x170] sm:$0xff]
      %v1527 = vld [vmem:[#allocation2 + $0x178] sm:$0xff]
      %v1528 = vld [vmem:[#allocation2 + $0x180] sm:$0xff]
      %v1529 = vld [vmem:[#allocation2 + $0x188] sm:$0xff]
      %v1530 = vld [vmem:[#allocation2 + $0x190] sm:$0xff]
      %v1531 = vld [vmem:[#allocation2 + $0x198] sm:$0xff]
      %v1532 = vld [vmem:[#allocation2 + $0x1a0] sm:$0xff]
      %v1533 = vld [vmem:[#allocation2 + $0x1a8] sm:$0xff]
      %v1534 = vld [vmem:[#allocation2 + $0x1b0] sm:$0xff]
      %v1535 = vld [vmem:[#allocation2 + $0x1b8] sm:$0xff]
      %v1536 = vld [vmem:[#allocation2 + $0x1c0] sm:$0xff]
      %v1537 = vld [vmem:[#allocation2 + $0x1c8] sm:$0xff]
      %v1538 = vld [vmem:[#allocation2 + $0x1d0] sm:$0xff]
      %v1539 = vld [vmem:[#allocation2 + $0x1d8] sm:$0xff]
      %v1540 = vld [vmem:[#allocation2 + $0x1e0] sm:$0xff]
      %v1541 = vld [vmem:[#allocation2 + $0x1e8] sm:$0xff]
      %v1542 = vld [vmem:[#allocation2 + $0x1f0] sm:$0xff]
      %v1543 = vld [vmem:[#allocation2 + $0x1f8] sm:$0xff]
      %v1544 = vld [vmem:[#allocation2 + $0x200] sm:$0xff]
      %v1545 = vld [vmem:[#allocation2 + $0x208] sm:$0xff]
      %v1546 = vld [vmem:[#allocation2 + $0x210] sm:$0xff]
      %v1547 = vld [vmem:[#allocation2 + $0x218] sm:$0xff]
      %v1548 = vld [vmem:[#allocation2 + $0x220] sm:$0xff]
      %v1549 = vld [vmem:[#allocation2 + $0x228] sm:$0xff]
      %v1550 = vld [vmem:[#allocation2 + $0x230] sm:$0xff]
      %v1551 = vld [vmem:[#allocation2 + $0x238] sm:$0xff]
      %v1552 = vld [vmem:[#allocation2 + $0x240] sm:$0xff]
      %v1553 = vld [vmem:[#allocation2 + $0x248] sm:$0xff]
      %v1554 = vld [vmem:[#allocation2 + $0x250] sm:$0xff]
      %v1555 = vld [vmem:[#allocation2 + $0x258] sm:$0xff]
      %v1556 = vld [vmem:[#allocation2 + $0x260] sm:$0xff]
      %v1557 = vld [vmem:[#allocation2 + $0x268] sm:$0xff]
      %v1558 = vld [vmem:[#allocation2 + $0x270] sm:$0xff]
      %v1559 = vld [vmem:[#allocation2 + $0x278] sm:$0xff]
      %v1560 = vld [vmem:[#allocation2 + $0x280] sm:$0xff]
      %v1561 = vld [vmem:[#allocation2 + $0x288] sm:$0xff]
      %v1562 = vld [vmem:[#allocation2 + $0x290] sm:$0xff]
      %v1563 = vld [vmem:[#allocation2 + $0x298] sm:$0xff]
      %v1564 = vld [vmem:[#allocation2 + $0x2a0] sm:$0xff]
      %v1565 = vld [vmem:[#allocation2 + $0x2a8] sm:$0xff]
      %v1566 = vld [vmem:[#allocation2 + $0x2b0] sm:$0xff]
      %v1567 = vld [vmem:[#allocation2 + $0x2b8] sm:$0xff]
      %v1568 = vld [vmem:[#allocation2 + $0x2c0] sm:$0xff]
      %v1569 = vld [vmem:[#allocation2 + $0x2c8] sm:$0xff]
      %v1570 = vld [vmem:[#allocation2 + $0x2d0] sm:$0xff]
      %v1571 = vld [vmem:[#allocation2 + $0x2d8] sm:$0xff]
      %v1572 = vld [vmem:[#allocation2 + $0x2e0] sm:$0xff]
      %v1573 = vld [vmem:[#allocation2 + $0x2e8] sm:$0xf]
      %v1574 = vld [vmem:[#allocation2 + $0x2f0] sm:$0xf]
      %v1575 = vld [vmem:[#allocation2 + $0x2f8] sm:$0xf]
      %v1576 = vld [vmem:[%s435] sm:$0xf]
      %v1577 = vld [vmem:[%s435 + $0x4] sm:$0xf]
      %v1578 = vld [vmem:[%s435 + $0x8] sm:$0xf]
      %v1579 = vld [vmem:[%s435 + $0xc] sm:$0xf]
      %v1580 = vld [vmem:[%s435 + $0x10] sm:$0xf]
      %v1581 = vld [vmem:[%s435 + $0x14] sm:$0xf]
      %v1582 = vld [vmem:[%s435 + $0x18] sm:$0xf]
      %v1583 = vld [vmem:[%s435 + $0x1c] sm:$0xf]
      %v1584 = vld [vmem:[%s435 + $0x20] sm:$0xf]
      %v1585 = vld [vmem:[%s435 + $0x24] sm:$0xf]
      %v1586 = vld [vmem:[%s435 + $0x28] sm:$0xf]
      %v1587 = vld [vmem:[%s435 + $0x2c] sm:$0xf]
      %v1588 = vld [vmem:[%s435 + $0x30] sm:$0xf]
      %v1589 = vld [vmem:[%s435 + $0x34] sm:$0xf]
      %v1590 = vld [vmem:[%s435 + $0x38] sm:$0xf]
      %v1591 = vld [vmem:[%s435 + $0x3c] sm:$0xf]
      %v1592 = vld [vmem:[%s435 + $0x40] sm:$0xf]
      %v1593 = vld [vmem:[%s435 + $0x44] sm:$0xf]
      %v1594 = vld [vmem:[%s435 + $0x48] sm:$0xf]
      %v1595 = vld [vmem:[%s435 + $0x4c] sm:$0xf]
      %v1596 = vld [vmem:[%s435 + $0x50] sm:$0xf]
      %v1597 = vld [vmem:[%s435 + $0x54] sm:$0xf]
      %v1598 = vld [vmem:[%s435 + $0x58] sm:$0xf]
      %v1599 = vld [vmem:[%s435 + $0x5c] sm:$0xf]
      %v1600 = vld [vmem:[%s435 + $0x60] sm:$0xf]
      %v1601 = vld [vmem:[%s435 + $0x64] sm:$0xf]
      %v1602 = vld [vmem:[%s435 + $0x68] sm:$0xf]
      %v1603 = vld [vmem:[%s435 + $0x6c] sm:$0xf]
      %v1604 = vld [vmem:[%s435 + $0x70] sm:$0xf]
      %v1605 = vld [vmem:[%s435 + $0x74] sm:$0xf]
      %v1606 = vld [vmem:[%s435 + $0x78] sm:$0xf]
      %v1607 = vld [vmem:[%s435 + $0x7c] sm:$0x7]
      %s1608 = scalar_lea.vmem %s1, 144
      %v1609 = vld [vmem:[%s1608] sm:$0xff]
      %v1610 = vld [vmem:[%s1608 + $0x8] sm:$0xf]
      %v1611 = vld [vmem:[%s1608 + $0xc] sm:$0xff]
      %v1612 = vld [vmem:[%s1608 + $0x14] sm:$0xf]
      %v1613 = vld [vmem:[%s1608 + $0x18] sm:$0xff]
      %v1614 = vld [vmem:[%s1608 + $0x20] sm:$0xf]
      %v1615 = vld [vmem:[%s1608 + $0x24] sm:$0xff]
      %v1616 = vld [vmem:[%s1608 + $0x2c] sm:$0xf]
      %v1617 = vld [vmem:[%s1608 + $0x30] sm:$0xff]
      %v1618 = vld [vmem:[%s1608 + $0x38] sm:$0xf]
      %v1619 = vld [vmem:[%s1608 + $0x3c] sm:$0xff]
      %v1620 = vld [vmem:[%s1608 + $0x44] sm:$0xf]
      %v1621 = vld [vmem:[%s1608 + $0x48] sm:$0xff]
      %v1622 = vld [vmem:[%s1608 + $0x50] sm:$0xf]
      %v1623 = vld [vmem:[%s1608 + $0x54] sm:$0xff]
      %v1624 = vld [vmem:[%s1608 + $0x5c] sm:$0xf]
      %v1625 = vld [vmem:[%s1608 + $0x60] sm:$0xff]
      %v1626 = vld [vmem:[%s1608 + $0x68] sm:$0xf]
      %v1627 = vld [vmem:[%s1608 + $0x6c] sm:$0xff]
      %v1628 = vld [vmem:[%s1608 + $0x74] sm:$0xf]
      %v1629 = vld [vmem:[%s1608 + $0x78] sm:$0xff]
      %v1630 = vld [vmem:[%s1608 + $0x80] sm:$0xf]
      %v1631 = vld [vmem:[%s1608 + $0x84] sm:$0xff]
      %v1632 = vld [vmem:[%s1608 + $0x8c] sm:$0xf]
      %v1665 = vunpack.c.l.b16 %v1576
      %v1666 = vunpack.c.l.b16 %v1577
      %v1667 = vunpack.c.l.b16 %v1578
      %v1668 = vunpack.c.l.b16 %v1579
      %v1669 = vunpack.c.l.b16 %v1580
      %v1670 = vunpack.c.l.b16 %v1581
      %v1671 = vunpack.c.l.b16 %v1582
      %v1672 = vunpack.c.l.b16 %v1583
      %v1673 = vunpack.c.l.b16 %v1584
      %v1674 = vunpack.c.l.b16 %v1585
      %v1675 = vunpack.c.l.b16 %v1586
      %v1676 = vunpack.c.l.b16 %v1587
      %v1677 = vunpack.c.l.b16 %v1588
      %v1678 = vunpack.c.l.b16 %v1589
      %v1679 = vunpack.c.l.b16 %v1590
      %v1680 = vunpack.c.l.b16 %v1591
      %v1681 = vunpack.c.l.b16 %v1592
      %v1682 = vunpack.c.l.b16 %v1593
      %v1683 = vunpack.c.l.b16 %v1594
      %v1684 = vunpack.c.l.b16 %v1595
      %v1685 = vunpack.c.l.b16 %v1596
      %v1686 = vunpack.c.l.b16 %v1597
      %v1687 = vunpack.c.l.b16 %v1598
      %v1688 = vunpack.c.l.b16 %v1599
      %v1689 = vunpack.c.l.b16 %v1600
      %v1690 = vunpack.c.l.b16 %v1601
      %v1691 = vunpack.c.l.b16 %v1602
      %v1692 = vunpack.c.l.b16 %v1603
      %v1693 = vunpack.c.l.b16 %v1604
      %v1694 = vunpack.c.l.b16 %v1605
      %v1695 = vunpack.c.l.b16 %v1606
      %v1696 = vunpack.c.l.b16 %v1607
      %v1697 = vpack.c.b16 %v1666, %v1665
      %v1698 = vpack.c.b16 %v1668, %v1667
      %v1699 = vpack.c.b16 %v1670, %v1669
      %v1700 = vpack.c.b16 %v1672, %v1671
      %v1701 = vpack.c.b16 %v1674, %v1673
      %v1702 = vpack.c.b16 %v1676, %v1675
      %v1703 = vpack.c.b16 %v1678, %v1677
      %v1704 = vpack.c.b16 %v1680, %v1679
      %v1705 = vpack.c.b16 %v1682, %v1681
      %v1706 = vpack.c.b16 %v1684, %v1683
      %v1707 = vpack.c.b16 %v1686, %v1685
      %v1708 = vpack.c.b16 %v1688, %v1687
      %v1709 = vpack.c.b16 %v1690, %v1689
      %v1710 = vpack.c.b16 %v1692, %v1691
      %v1711 = vpack.c.b16 %v1694, %v1693
      %v1712 = vpack.c.b16 %v1696, %v1695
      %vm1713 = vsmask.f32 7424
      %v1715 = vshrl.u32 %v1697, 16
      %v1717 = vshll.u32 %v1697, 16
      %v1719 = vrot.slane %v1717, 1
      %v1720 = vor.u32 %v1715, %v1719
      %v1722 = vshll.u32 %v1698, 16
      %v1724 = vrot.slane %v1722, 1
      %v1725 = vsel %vm1713, %v1720, %v1724
      %v1726 = vshrl.u32 %v1698, 16
      %v1728 = vor.u32 %v1726, %v1724
      %v1730 = vshll.u32 %v1699, 16
      %v1732 = vrot.slane %v1730, 1
      %v1733 = vsel %vm1713, %v1728, %v1732
      %v1734 = vshrl.u32 %v1699, 16
      %v1736 = vor.u32 %v1734, %v1732
      %v1738 = vshll.u32 %v1700, 16
      %v1740 = vrot.slane %v1738, 1
      %v1741 = vsel %vm1713, %v1736, %v1740
      %v1742 = vshrl.u32 %v1700, 16
      %v1744 = vor.u32 %v1742, %v1740
      %v1746 = vshll.u32 %v1701, 16
      %v1748 = vrot.slane %v1746, 1
      %v1749 = vsel %vm1713, %v1744, %v1748
      %v1750 = vshrl.u32 %v1701, 16
      %v1752 = vor.u32 %v1750, %v1748
      %v1754 = vshll.u32 %v1702, 16
      %v1756 = vrot.slane %v1754, 1
      %v1757 = vsel %vm1713, %v1752, %v1756
      %v1758 = vshrl.u32 %v1702, 16
      %v1760 = vor.u32 %v1758, %v1756
      %v1762 = vshll.u32 %v1703, 16
      %v1764 = vrot.slane %v1762, 1
      %v1765 = vsel %vm1713, %v1760, %v1764
      %v1766 = vshrl.u32 %v1703, 16
      %v1768 = vor.u32 %v1766, %v1764
      %v1770 = vshll.u32 %v1704, 16
      %v1772 = vrot.slane %v1770, 1
      %v1773 = vsel %vm1713, %v1768, %v1772
      %v1774 = vshrl.u32 %v1704, 16
      %v1776 = vor.u32 %v1774, %v1772
      %v1778 = vshll.u32 %v1705, 16
      %v1780 = vrot.slane %v1778, 1
      %v1781 = vsel %vm1713, %v1776, %v1780
      %v1782 = vshrl.u32 %v1705, 16
      %v1784 = vor.u32 %v1782, %v1780
      %v1786 = vshll.u32 %v1706, 16
      %v1788 = vrot.slane %v1786, 1
      %v1789 = vsel %vm1713, %v1784, %v1788
      %v1790 = vshrl.u32 %v1706, 16
      %v1792 = vor.u32 %v1790, %v1788
      %v1794 = vshll.u32 %v1707, 16
      %v1796 = vrot.slane %v1794, 1
      %v1797 = vsel %vm1713, %v1792, %v1796
      %v1798 = vshrl.u32 %v1707, 16
      %v1800 = vor.u32 %v1798, %v1796
      %v1802 = vshll.u32 %v1708, 16
      %v1804 = vrot.slane %v1802, 1
      %v1805 = vsel %vm1713, %v1800, %v1804
      %v1806 = vshrl.u32 %v1708, 16
      %v1808 = vor.u32 %v1806, %v1804
      %v1810 = vshll.u32 %v1709, 16
      %v1812 = vrot.slane %v1810, 1
      %v1813 = vsel %vm1713, %v1808, %v1812
      %v1814 = vshrl.u32 %v1709, 16
      %v1816 = vor.u32 %v1814, %v1812
      %v1818 = vshll.u32 %v1710, 16
      %v1820 = vrot.slane %v1818, 1
      %v1821 = vsel %vm1713, %v1816, %v1820
      %v1822 = vshrl.u32 %v1710, 16
      %v1824 = vor.u32 %v1822, %v1820
      %v1826 = vshll.u32 %v1711, 16
      %v1828 = vrot.slane %v1826, 1
      %v1829 = vsel %vm1713, %v1824, %v1828
      %v1830 = vshrl.u32 %v1711, 16
      %v1832 = vor.u32 %v1830, %v1828
      %v1834 = vshll.u32 %v1712, 16
      %v1836 = vrot.slane %v1834, 1
      %v1837 = vsel %vm1713, %v1832, %v1836
      %v1838 = vshrl.u32 %v1712, 16
      %v1840 = vor.u32 %v1838, %v1836
      %v1865 = vunpack.c.l.b16 %v1609
      %v1866 = vunpack.c.h.b16 %v1609
      %v1867 = vunpack.c.l.b16 %v1610
      %v1868 = vunpack.c.l.b16 %v1611
      %v1869 = vunpack.c.h.b16 %v1611
      %v1870 = vunpack.c.l.b16 %v1612
      %v1871 = vunpack.c.l.b16 %v1613
      %v1872 = vunpack.c.h.b16 %v1613
      %v1873 = vunpack.c.l.b16 %v1614
      %v1874 = vunpack.c.l.b16 %v1615
      %v1875 = vunpack.c.h.b16 %v1615
      %v1876 = vunpack.c.l.b16 %v1616
      %v1877 = vunpack.c.l.b16 %v1617
      %v1878 = vunpack.c.h.b16 %v1617
      %v1879 = vunpack.c.l.b16 %v1618
      %v1880 = vunpack.c.l.b16 %v1619
      %v1881 = vunpack.c.h.b16 %v1619
      %v1882 = vunpack.c.l.b16 %v1620
      %v1883 = vunpack.c.l.b16 %v1621
      %v1884 = vunpack.c.h.b16 %v1621
      %v1885 = vunpack.c.l.b16 %v1622
      %v1886 = vunpack.c.l.b16 %v1623
      %v1887 = vunpack.c.h.b16 %v1623
      %v1888 = vunpack.c.l.b16 %v1624
      %v1889 = vunpack.c.l.b16 %v1625
      %v1890 = vunpack.c.h.b16 %v1625
      %v1891 = vunpack.c.l.b16 %v1626
      %v1892 = vunpack.c.l.b16 %v1627
      %v1893 = vunpack.c.h.b16 %v1627
      %v1894 = vunpack.c.l.b16 %v1628
      %v1895 = vunpack.c.l.b16 %v1629
      %v1896 = vunpack.c.h.b16 %v1629
      %v1897 = vunpack.c.l.b16 %v1630
      %v1898 = vunpack.c.l.b16 %v1631
      %v1899 = vunpack.c.h.b16 %v1631
      %v1900 = vunpack.c.l.b16 %v1632
      %v1901 = vpack.c.b16 %v1868, %v1865
      %v1902 = vpack.c.b16 %v1869, %v1866
      %v1903 = vpack.c.b16 %v1870, %v1867
      %v1904 = vpack.c.b16 %v1874, %v1871
      %v1905 = vpack.c.b16 %v1875, %v1872
      %v1906 = vpack.c.b16 %v1876, %v1873
      %v1907 = vpack.c.b16 %v1880, %v1877
      %v1908 = vpack.c.b16 %v1881, %v1878
      %v1909 = vpack.c.b16 %v1882, %v1879
      %v1910 = vpack.c.b16 %v1886, %v1883
      %v1911 = vpack.c.b16 %v1887, %v1884
      %v1912 = vpack.c.b16 %v1888, %v1885
      %v1913 = vpack.c.b16 %v1892, %v1889
      %v1914 = vpack.c.b16 %v1893, %v1890
      %v1915 = vpack.c.b16 %v1894, %v1891
      %v1916 = vpack.c.b16 %v1898, %v1895
      %v1917 = vpack.c.b16 %v1899, %v1896
      %v1918 = vpack.c.b16 %v1900, %v1897
      %v1938 = vsel %vm885, %v1725, 0
      %v1941 = vsel %vm885, %v1733, 0
      %v1944 = vsel %vm885, %v1741, 0
      %v1947 = vsel %vm885, %v1749, 0
      %v1950 = vsel %vm885, %v1757, 0
      %v1953 = vsel %vm885, %v1765, 0
      %v1956 = vsel %vm885, %v1773, 0
      %v1959 = vsel %vm885, %v1781, 0
      %v1962 = vsel %vm885, %v1789, 0
      %v1965 = vsel %vm885, %v1797, 0
      %v1968 = vsel %vm885, %v1805, 0
      %v1971 = vsel %vm885, %v1813, 0
      %v1974 = vsel %vm885, %v1821, 0
      %v1977 = vsel %vm885, %v1829, 0
      %v1980 = vsel %vm885, %v1837, 0
      %v1983 = vsel %vm885, %v1840, 0
      %1985 = vmatprep.subr.bf16.mxu0 %v1902
      %1986 = vmatpush1.bf16.msra.mxu0 %v1901
      %1987 = vmatprep.subr.bf16.mxu0 %v1905
      %1988 = vmatpush1.bf16.msra.mxu0 %v1904
      %1989 = vmatprep.subr.bf16.mxu0 %v1908
      %1990 = vmatpush1.bf16.msra.mxu0 %v1907
      %1991 = vmatprep.subr.bf16.mxu0 %v1911
      %1992 = vmatpush1.bf16.msra.mxu0 %v1910
      %1993 = vmatprep.subr.bf16.mxu0 %v1914
      %1994 = vmatpush1.bf16.msra.mxu0 %v1913
      %1995 = vmatprep.subr.bf16.mxu0 %v1917
      %1996 = vmatpush1.bf16.msra.mxu0 %v1916
      %1997 = vmatprep.subr.bf16.mxu0 0
      %1998 = vmatpush1.bf16.msra.mxu0 0
      %1999 = vmatprep.subr.bf16.mxu0 0
      %2000 = vmatpush1.bf16.msra.mxu0 0
      %2001 = vmatprep.subr.bf16.mxu0 0
      %2002 = vmatpush1.bf16.msra.mxu0 0
      %2003 = vmatprep.subr.bf16.mxu0 0
      %2004 = vmatpush1.bf16.msra.mxu0 0
      %2005 = vmatprep.subr.bf16.mxu0 0
      %2006 = vmatpush1.bf16.msra.mxu0 0
      %2007 = vmatprep.subr.bf16.mxu0 0
      %2008 = vmatpush1.bf16.msra.mxu0 0
      %2009 = vmatprep.subr.bf16.mxu0 0
      %2010 = vmatpush1.bf16.msra.mxu0 0
      %2011 = vmatprep.subr.bf16.mxu0 0
      %2012 = vmatpush1.bf16.msra.mxu0 0
      %2013 = vmatprep.subr.bf16.mxu0 0
      %2014 = vmatpush1.bf16.msra.mxu0 0
      %2015 = vmatprep.subr.bf16.mxu0 0
      %2016 = vmatpush1.bf16.msra.mxu0 0
      %2017 = vmatprep.mubr.bf16.mxu0 0
      %2018 = vmatmul.mubr.bf16.gmra.mrb[0].mxu0 %v1938
      %v2019 = vpop.f32.mrb[0].mxu0
      %v2020 = vadd.f32 0.0, %v2019
      %v2021 = vpop.f32.mrb[0].mxu0
      %v2022 = vadd.f32 0.0, %v2021
      %v2023 = vpop.f32.mrb[0].mxu0
      %v2024 = vadd.f32 0.0, %v2023
      %v2025 = vpop.f32.mrb[0].mxu0
      %v2026 = vadd.f32 0.0, %v2025
      %2027 = vmatprep.mubr.bf16.mxu0 0
      %2028 = vmatmul.mubr.bf16.gmra.mrb[0].mxu0 %v1941
      %v2029 = vpop.f32.mrb[0].mxu0
      %v2030 = vadd.f32 0.0, %v2029
      %v2031 = vpop.f32.mrb[0].mxu0
      %v2032 = vadd.f32 0.0, %v2031
      %v2033 = vpop.f32.mrb[0].mxu0
      %v2034 = vadd.f32 0.0, %v2033
      %v2035 = vpop.f32.mrb[0].mxu0
      %v2036 = vadd.f32 0.0, %v2035
      %2037 = vmatprep.mubr.bf16.mxu0 0
      %2038 = vmatmul.mubr.bf16.gmra.mrb[0].mxu0 %v1944
      %v2039 = vpop.f32.mrb[0].mxu0
      %v2040 = vadd.f32 0.0, %v2039
      %v2041 = vpop.f32.mrb[0].mxu0
      %v2042 = vadd.f32 0.0, %v2041
      %v2043 = vpop.f32.mrb[0].mxu0
      %v2044 = vadd.f32 0.0, %v2043
      %v2045 = vpop.f32.mrb[0].mxu0
      %v2046 = vadd.f32 0.0, %v2045
      %2047 = vmatprep.mubr.bf16.mxu0 0
      %2048 = vmatmul.mubr.bf16.gmra.mrb[0].mxu0 %v1947
      %v2049 = vpop.f32.mrb[0].mxu0
      %v2050 = vadd.f32 0.0, %v2049
      %v2051 = vpop.f32.mrb[0].mxu0
      %v2052 = vadd.f32 0.0, %v2051
      %v2053 = vpop.f32.mrb[0].mxu0
      %v2054 = vadd.f32 0.0, %v2053
      %v2055 = vpop.f32.mrb[0].mxu0
      %v2056 = vadd.f32 0.0, %v2055
      %2057 = vmatprep.mubr.bf16.mxu0 0
      %2058 = vmatmul.mubr.bf16.gmra.mrb[0].mxu0 %v1950
      %v2059 = vpop.f32.mrb[0].mxu0
      %v2060 = vadd.f32 0.0, %v2059
      %v2061 = vpop.f32.mrb[0].mxu0
      %v2062 = vadd.f32 0.0, %v2061
      %v2063 = vpop.f32.mrb[0].mxu0
      %v2064 = vadd.f32 0.0, %v2063
      %v2065 = vpop.f32.mrb[0].mxu0
      %v2066 = vadd.f32 0.0, %v2065
      %2067 = vmatprep.mubr.bf16.mxu0 0
      %2068 = vmatmul.mubr.bf16.gmra.mrb[0].mxu0 %v1953
      %v2069 = vpop.f32.mrb[0].mxu0
      %v2070 = vadd.f32 0.0, %v2069
      %v2071 = vpop.f32.mrb[0].mxu0
      %v2072 = vadd.f32 0.0, %v2071
      %v2073 = vpop.f32.mrb[0].mxu0
      %v2074 = vadd.f32 0.0, %v2073
      %v2075 = vpop.f32.mrb[0].mxu0
      %v2076 = vadd.f32 0.0, %v2075
      %2077 = vmatprep.mubr.bf16.mxu0 0
      %2078 = vmatmul.mubr.bf16.gmra.mrb[0].mxu0 %v1956
      %v2079 = vpop.f32.mrb[0].mxu0
      %v2080 = vadd.f32 0.0, %v2079
      %v2081 = vpop.f32.mrb[0].mxu0
      %v2082 = vadd.f32 0.0, %v2081
      %v2083 = vpop.f32.mrb[0].mxu0
      %v2084 = vadd.f32 0.0, %v2083
      %v2085 = vpop.f32.mrb[0].mxu0
      %v2086 = vadd.f32 0.0, %v2085
      %2087 = vmatprep.mubr.bf16.mxu0 0
      %2088 = vmatmul.mubr.bf16.gmra.mrb[0].mxu0 %v1959
      %v2089 = vpop.f32.mrb[0].mxu0
      %v2090 = vadd.f32 0.0, %v2089
      %v2091 = vpop.f32.mrb[0].mxu0
      %v2092 = vadd.f32 0.0, %v2091
      %v2093 = vpop.f32.mrb[0].mxu0
      %v2094 = vadd.f32 0.0, %v2093
      %v2095 = vpop.f32.mrb[0].mxu0
      %v2096 = vadd.f32 0.0, %v2095
      %2097 = vmatprep.mubr.bf16.mxu0 0
      %2098 = vmatmul.mubr.bf16.gmra.mrb[0].mxu0 %v1962
      %v2099 = vpop.f32.mrb[0].mxu0
      %v2100 = vadd.f32 0.0, %v2099
      %v2101 = vpop.f32.mrb[0].mxu0
      %v2102 = vadd.f32 0.0, %v2101
      %v2103 = vpop.f32.mrb[0].mxu0
      %v2104 = vadd.f32 0.0, %v2103
      %v2105 = vpop.f32.mrb[0].mxu0
      %v2106 = vadd.f32 0.0, %v2105
      %2107 = vmatprep.mubr.bf16.mxu0 0
      %2108 = vmatmul.mubr.bf16.gmra.mrb[0].mxu0 %v1965
      %v2109 = vpop.f32.mrb[0].mxu0
      %v2110 = vadd.f32 0.0, %v2109
      %v2111 = vpop.f32.mrb[0].mxu0
      %v2112 = vadd.f32 0.0, %v2111
      %v2113 = vpop.f32.mrb[0].mxu0
      %v2114 = vadd.f32 0.0, %v2113
      %v2115 = vpop.f32.mrb[0].mxu0
      %v2116 = vadd.f32 0.0, %v2115
      %2117 = vmatprep.mubr.bf16.mxu0 0
      %2118 = vmatmul.mubr.bf16.gmra.mrb[0].mxu0 %v1968
      %v2119 = vpop.f32.mrb[0].mxu0
      %v2120 = vadd.f32 0.0, %v2119
      %v2121 = vpop.f32.mrb[0].mxu0
      %v2122 = vadd.f32 0.0, %v2121
      %v2123 = vpop.f32.mrb[0].mxu0
      %v2124 = vadd.f32 0.0, %v2123
      %v2125 = vpop.f32.mrb[0].mxu0
      %v2126 = vadd.f32 0.0, %v2125
      %2127 = vmatprep.mubr.bf16.mxu0 0
      %2128 = vmatmul.mubr.bf16.gmra.mrb[0].mxu0 %v1971
      %v2129 = vpop.f32.mrb[0].mxu0
      %v2130 = vadd.f32 0.0, %v2129
      %v2131 = vpop.f32.mrb[0].mxu0
      %v2132 = vadd.f32 0.0, %v2131
      %v2133 = vpop.f32.mrb[0].mxu0
      %v2134 = vadd.f32 0.0, %v2133
      %v2135 = vpop.f32.mrb[0].mxu0
      %v2136 = vadd.f32 0.0, %v2135
      %2137 = vmatprep.mubr.bf16.mxu0 0
      %2138 = vmatmul.mubr.bf16.gmra.mrb[0].mxu0 %v1974
      %v2139 = vpop.f32.mrb[0].mxu0
      %v2140 = vadd.f32 0.0, %v2139
      %v2141 = vpop.f32.mrb[0].mxu0
      %v2142 = vadd.f32 0.0, %v2141
      %v2143 = vpop.f32.mrb[0].mxu0
      %v2144 = vadd.f32 0.0, %v2143
      %v2145 = vpop.f32.mrb[0].mxu0
      %v2146 = vadd.f32 0.0, %v2145
      %2147 = vmatprep.mubr.bf16.mxu0 0
      %2148 = vmatmul.mubr.bf16.gmra.mrb[0].mxu0 %v1977
      %v2149 = vpop.f32.mrb[0].mxu0
      %v2150 = vadd.f32 0.0, %v2149
      %v2151 = vpop.f32.mrb[0].mxu0
      %v2152 = vadd.f32 0.0, %v2151
      %v2153 = vpop.f32.mrb[0].mxu0
      %v2154 = vadd.f32 0.0, %v2153
      %v2155 = vpop.f32.mrb[0].mxu0
      %v2156 = vadd.f32 0.0, %v2155
      %2157 = vmatprep.mubr.bf16.mxu0 0
      %2158 = vmatmul.mubr.bf16.gmra.mrb[0].mxu0 %v1980
      %v2159 = vpop.f32.mrb[0].mxu0
      %v2160 = vadd.f32 0.0, %v2159
      %v2161 = vpop.f32.mrb[0].mxu0
      %v2162 = vadd.f32 0.0, %v2161
      %v2163 = vpop.f32.mrb[0].mxu0
      %v2164 = vadd.f32 0.0, %v2163
      %v2165 = vpop.f32.mrb[0].mxu0
      %v2166 = vadd.f32 0.0, %v2165
      %2167 = vmatprep.mubr.bf16.mxu0 0
      %2168 = vmatmul.mubr.bf16.gmra.mrb[0].mxu0 %v1983
      %v2169 = vpop.f32.mrb[0].mxu0
      %v2170 = vadd.f32 0.0, %v2169
      %v2171 = vpop.f32.mrb[0].mxu0
      %v2172 = vadd.f32 0.0, %v2171
      %v2173 = vpop.f32.mrb[0].mxu0
      %v2174 = vadd.f32 0.0, %v2173
      %v2175 = vpop.f32.mrb[0].mxu0
      %v2176 = vadd.f32 0.0, %v2175
      %2177 = vdwg.mxu0
      %2178 = vmatprep.subr.bf16.mxu0 0
      %2179 = vmatpush1.bf16.msra.mxu0 %v1903
      %2180 = vmatprep.subr.bf16.mxu0 0
      %2181 = vmatpush1.bf16.msra.mxu0 %v1906
      %2182 = vmatprep.subr.bf16.mxu0 0
      %2183 = vmatpush1.bf16.msra.mxu0 %v1909
      %2184 = vmatprep.subr.bf16.mxu0 0
      %2185 = vmatpush1.bf16.msra.mxu0 %v1912
      %2186 = vmatprep.subr.bf16.mxu0 0
      %2187 = vmatpush1.bf16.msra.mxu0 %v1915
      %2188 = vmatprep.subr.bf16.mxu0 0
      %2189 = vmatpush1.bf16.msra.mxu0 %v1918
      %2190 = vmatprep.subr.bf16.mxu0 0
      %2191 = vmatpush1.bf16.msra.mxu0 0
      %2192 = vmatprep.subr.bf16.mxu0 0
      %2193 = vmatpush1.bf16.msra.mxu0 0
      %2194 = vmatprep.subr.bf16.mxu0 0
      %2195 = vmatpush1.bf16.msra.mxu0 0
      %2196 = vmatprep.subr.bf16.mxu0 0
      %2197 = vmatpush1.bf16.msra.mxu0 0
      %2198 = vmatprep.subr.bf16.mxu0 0
      %2199 = vmatpush1.bf16.msra.mxu0 0
      %2200 = vmatprep.subr.bf16.mxu0 0
      %2201 = vmatpush1.bf16.msra.mxu0 0
      %2202 = vmatprep.subr.bf16.mxu0 0
      %2203 = vmatpush1.bf16.msra.mxu0 0
      %2204 = vmatprep.subr.bf16.mxu0 0
      %2205 = vmatpush1.bf16.msra.mxu0 0
      %2206 = vmatprep.subr.bf16.mxu0 0
      %2207 = vmatpush1.bf16.msra.mxu0 0
      %2208 = vmatprep.subr.bf16.mxu0 0
      %2209 = vmatpush1.bf16.msra.mxu0 0
      %2210 = vmatprep.mubr.bf16.mxu0 0
      %2211 = vmatmul.mubr.bf16.gmra.mrb[0].mxu0 %v1938
      %v2212 = vpop.f32.mrb[0].mxu0
      %v2213 = vadd.f32 0.0, %v2212
      %v2214 = vpop.f32.mrb[0].mxu0
      %v2215 = vpop.f32.mrb[0].mxu0
      %v2216 = vadd.f32 0.0, %v2215
      %v2217 = vpop.f32.mrb[0].mxu0
      %2218 = vmatprep.mubr.bf16.mxu0 0
      %2219 = vmatmul.mubr.bf16.gmra.mrb[0].mxu0 %v1941
      %v2220 = vpop.f32.mrb[0].mxu0
      %v2221 = vadd.f32 0.0, %v2220
      %v2222 = vpop.f32.mrb[0].mxu0
      %v2223 = vpop.f32.mrb[0].mxu0
      %v2224 = vadd.f32 0.0, %v2223
      %v2225 = vpop.f32.mrb[0].mxu0
      %2226 = vmatprep.mubr.bf16.mxu0 0
      %2227 = vmatmul.mubr.bf16.gmra.mrb[0].mxu0 %v1944
      %v2228 = vpop.f32.mrb[0].mxu0
      %v2229 = vadd.f32 0.0, %v2228
      %v2230 = vpop.f32.mrb[0].mxu0
      %v2231 = vpop.f32.mrb[0].mxu0
      %v2232 = vadd.f32 0.0, %v2231
      %v2233 = vpop.f32.mrb[0].mxu0
      %2234 = vmatprep.mubr.bf16.mxu0 0
      %2235 = vmatmul.mubr.bf16.gmra.mrb[0].mxu0 %v1947
      %v2236 = vpop.f32.mrb[0].mxu0
      %v2237 = vadd.f32 0.0, %v2236
      %v2238 = vpop.f32.mrb[0].mxu0
      %v2239 = vpop.f32.mrb[0].mxu0
      %v2240 = vadd.f32 0.0, %v2239
      %v2241 = vpop.f32.mrb[0].mxu0
      %2242 = vmatprep.mubr.bf16.mxu0 0
      %2243 = vmatmul.mubr.bf16.gmra.mrb[0].mxu0 %v1950
      %v2244 = vpop.f32.mrb[0].mxu0
      %v2245 = vadd.f32 0.0, %v2244
      %v2246 = vpop.f32.mrb[0].mxu0
      %v2247 = vpop.f32.mrb[0].mxu0
      %v2248 = vadd.f32 0.0, %v2247
      %v2249 = vpop.f32.mrb[0].mxu0
      %2250 = vmatprep.mubr.bf16.mxu0 0
      %2251 = vmatmul.mubr.bf16.gmra.mrb[0].mxu0 %v1953
      %v2252 = vpop.f32.mrb[0].mxu0
      %v2253 = vadd.f32 0.0, %v2252
      %v2254 = vpop.f32.mrb[0].mxu0
      %v2255 = vpop.f32.mrb[0].mxu0
      %v2256 = vadd.f32 0.0, %v2255
      %v2257 = vpop.f32.mrb[0].mxu0
      %2258 = vmatprep.mubr.bf16.mxu0 0
      %2259 = vmatmul.mubr.bf16.gmra.mrb[0].mxu0 %v1956
      %v2260 = vpop.f32.mrb[0].mxu0
      %v2261 = vadd.f32 0.0, %v2260
      %v2262 = vpop.f32.mrb[0].mxu0
      %v2263 = vpop.f32.mrb[0].mxu0
      %v2264 = vadd.f32 0.0, %v2263
      %v2265 = vpop.f32.mrb[0].mxu0
      %2266 = vmatprep.mubr.bf16.mxu0 0
      %2267 = vmatmul.mubr.bf16.gmra.mrb[0].mxu0 %v1959
      %v2268 = vpop.f32.mrb[0].mxu0
      %v2269 = vadd.f32 0.0, %v2268
      %v2270 = vpop.f32.mrb[0].mxu0
      %v2271 = vpop.f32.mrb[0].mxu0
      %v2272 = vadd.f32 0.0, %v2271
      %v2273 = vpop.f32.mrb[0].mxu0
      %2274 = vmatprep.mubr.bf16.mxu0 0
      %2275 = vmatmul.mubr.bf16.gmra.mrb[0].mxu0 %v1962
      %v2276 = vpop.f32.mrb[0].mxu0
      %v2277 = vadd.f32 0.0, %v2276
      %v2278 = vpop.f32.mrb[0].mxu0
      %v2279 = vpop.f32.mrb[0].mxu0
      %v2280 = vadd.f32 0.0, %v2279
      %v2281 = vpop.f32.mrb[0].mxu0
      %2282 = vmatprep.mubr.bf16.mxu0 0
      %2283 = vmatmul.mubr.bf16.gmra.mrb[0].mxu0 %v1965
      %v2284 = vpop.f32.mrb[0].mxu0
      %v2285 = vadd.f32 0.0, %v2284
      %v2286 = vpop.f32.mrb[0].mxu0
      %v2287 = vpop.f32.mrb[0].mxu0
      %v2288 = vadd.f32 0.0, %v2287
      %v2289 = vpop.f32.mrb[0].mxu0
      %2290 = vmatprep.mubr.bf16.mxu0 0
      %2291 = vmatmul.mubr.bf16.gmra.mrb[0].mxu0 %v1968
      %v2292 = vpop.f32.mrb[0].mxu0
      %v2293 = vadd.f32 0.0, %v2292
      %v2294 = vpop.f32.mrb[0].mxu0
      %v2295 = vpop.f32.mrb[0].mxu0
      %v2296 = vadd.f32 0.0, %v2295
      %v2297 = vpop.f32.mrb[0].mxu0
      %2298 = vmatprep.mubr.bf16.mxu0 0
      %2299 = vmatmul.mubr.bf16.gmra.mrb[0].mxu0 %v1971
      %v2300 = vpop.f32.mrb[0].mxu0
      %v2301 = vadd.f32 0.0, %v2300
      %v2302 = vpop.f32.mrb[0].mxu0
      %v2303 = vpop.f32.mrb[0].mxu0
      %v2304 = vadd.f32 0.0, %v2303
      %v2305 = vpop.f32.mrb[0].mxu0
      %2306 = vmatprep.mubr.bf16.mxu0 0
      %2307 = vmatmul.mubr.bf16.gmra.mrb[0].mxu0 %v1974
      %v2308 = vpop.f32.mrb[0].mxu0
      %v2309 = vadd.f32 0.0, %v2308
      %v2310 = vpop.f32.mrb[0].mxu0
      %v2311 = vpop.f32.mrb[0].mxu0
      %v2312 = vadd.f32 0.0, %v2311
      %v2313 = vpop.f32.mrb[0].mxu0
      %2314 = vmatprep.mubr.bf16.mxu0 0
      %2315 = vmatmul.mubr.bf16.gmra.mrb[0].mxu0 %v1977
      %v2316 = vpop.f32.mrb[0].mxu0
      %v2317 = vadd.f32 0.0, %v2316
      %v2318 = vpop.f32.mrb[0].mxu0
      %v2319 = vpop.f32.mrb[0].mxu0
      %v2320 = vadd.f32 0.0, %v2319
      %v2321 = vpop.f32.mrb[0].mxu0
      %2322 = vmatprep.mubr.bf16.mxu0 0
      %2323 = vmatmul.mubr.bf16.gmra.mrb[0].mxu0 %v1980
      %v2324 = vpop.f32.mrb[0].mxu0
      %v2325 = vadd.f32 0.0, %v2324
      %v2326 = vpop.f32.mrb[0].mxu0
      %v2327 = vpop.f32.mrb[0].mxu0
      %v2328 = vadd.f32 0.0, %v2327
      %v2329 = vpop.f32.mrb[0].mxu0
      %2330 = vmatprep.mubr.bf16.mxu0 0
      %2331 = vmatmul.mubr.bf16.gmra.mrb[0].mxu0 %v1983
      %v2332 = vpop.f32.mrb[0].mxu0
      %v2333 = vadd.f32 0.0, %v2332
      %v2334 = vpop.f32.mrb[0].mxu0
      %v2335 = vpop.f32.mrb[0].mxu0
      %v2336 = vadd.f32 0.0, %v2335
      %v2337 = vpop.f32.mrb[0].mxu0
      %2338 = vdwg.mxu0
      %v2339 = vadd.f32 %v1480, %v2020
      %v2340 = vadd.f32 %v1481, %v2022
      %v2341 = vadd.f32 %v1482, %v2213
      %v2342 = vadd.f32 %v1483, %v2024
      %v2343 = vadd.f32 %v1484, %v2026
      %v2344 = vadd.f32 %v1485, %v2216
      %v2345 = vadd.f32 %v1486, %v2030
      %v2346 = vadd.f32 %v1487, %v2032
      %v2347 = vadd.f32 %v1488, %v2221
      %v2348 = vadd.f32 %v1489, %v2034
      %v2349 = vadd.f32 %v1490, %v2036
      %v2350 = vadd.f32 %v1491, %v2224
      %v2351 = vadd.f32 %v1492, %v2040
      %v2352 = vadd.f32 %v1493, %v2042
      %v2353 = vadd.f32 %v1494, %v2229
      %v2354 = vadd.f32 %v1495, %v2044
      %v2355 = vadd.f32 %v1496, %v2046
      %v2356 = vadd.f32 %v1497, %v2232
      %v2357 = vadd.f32 %v1498, %v2050
      %v2358 = vadd.f32 %v1499, %v2052
      %v2359 = vadd.f32 %v1500, %v2237
      %v2360 = vadd.f32 %v1501, %v2054
      %v2361 = vadd.f32 %v1502, %v2056
      %v2362 = vadd.f32 %v1503, %v2240
      %v2363 = vadd.f32 %v1504, %v2060
      %v2364 = vadd.f32 %v1505, %v2062
      %v2365 = vadd.f32 %v1506, %v2245
      %v2366 = vadd.f32 %v1507, %v2064
      %v2367 = vadd.f32 %v1508, %v2066
      %v2368 = vadd.f32 %v1509, %v2248
      %v2369 = vadd.f32 %v1510, %v2070
      %v2370 = vadd.f32 %v1511, %v2072
      %v2371 = vadd.f32 %v1512, %v2253
      %v2372 = vadd.f32 %v1513, %v2074
      %v2373 = vadd.f32 %v1514, %v2076
      %v2374 = vadd.f32 %v1515, %v2256
      %v2375 = vadd.f32 %v1516, %v2080
      %v2376 = vadd.f32 %v1517, %v2082
      %v2377 = vadd.f32 %v1518, %v2261
      %v2378 = vadd.f32 %v1519, %v2084
      %v2379 = vadd.f32 %v1520, %v2086
      %v2380 = vadd.f32 %v1521, %v2264
      %v2381 = vadd.f32 %v1522, %v2090
      %v2382 = vadd.f32 %v1523, %v2092
      %v2383 = vadd.f32 %v1524, %v2269
      %v2384 = vadd.f32 %v1525, %v2094
      %v2385 = vadd.f32 %v1526, %v2096
      %v2386 = vadd.f32 %v1527, %v2272
      %v2387 = vadd.f32 %v1528, %v2100
      %v2388 = vadd.f32 %v1529, %v2102
      %v2389 = vadd.f32 %v1530, %v2277
      %v2390 = vadd.f32 %v1531, %v2104
      %v2391 = vadd.f32 %v1532, %v2106
      %v2392 = vadd.f32 %v1533, %v2280
      %v2393 = vadd.f32 %v1534, %v2110
      %v2394 = vadd.f32 %v1535, %v2112
      %v2395 = vadd.f32 %v1536, %v2285
      %v2396 = vadd.f32 %v1537, %v2114
      %v2397 = vadd.f32 %v1538, %v2116
      %v2398 = vadd.f32 %v1539, %v2288
      %v2399 = vadd.f32 %v1540, %v2120
      %v2400 = vadd.f32 %v1541, %v2122
      %v2401 = vadd.f32 %v1542, %v2293
      %v2402 = vadd.f32 %v1543, %v2124
      %v2403 = vadd.f32 %v1544, %v2126
      %v2404 = vadd.f32 %v1545, %v2296
      %v2405 = vadd.f32 %v1546, %v2130
      %v2406 = vadd.f32 %v1547, %v2132
      %v2407 = vadd.f32 %v1548, %v2301
      %v2408 = vadd.f32 %v1549, %v2134
      %v2409 = vadd.f32 %v1550, %v2136
      %v2410 = vadd.f32 %v1551, %v2304
      %v2411 = vadd.f32 %v1552, %v2140
      %v2412 = vadd.f32 %v1553, %v2142
      %v2413 = vadd.f32 %v1554, %v2309
      %v2414 = vadd.f32 %v1555, %v2144
      %v2415 = vadd.f32 %v1556, %v2146
      %v2416 = vadd.f32 %v1557, %v2312
      %v2417 = vadd.f32 %v1558, %v2150
      %v2418 = vadd.f32 %v1559, %v2152
      %v2419 = vadd.f32 %v1560, %v2317
      %v2420 = vadd.f32 %v1561, %v2154
      %v2421 = vadd.f32 %v1562, %v2156
      %v2422 = vadd.f32 %v1563, %v2320
      %v2423 = vadd.f32 %v1564, %v2160
      %v2424 = vadd.f32 %v1565, %v2162
      %v2425 = vadd.f32 %v1566, %v2325
      %v2426 = vadd.f32 %v1567, %v2164
      %v2427 = vadd.f32 %v1568, %v2166
      %v2428 = vadd.f32 %v1569, %v2328
      %v2429 = vadd.f32 %v1570, %v2170
      %v2430 = vadd.f32 %v1571, %v2172
      %v2431 = vadd.f32 %v1572, %v2333
      %v2432 = vadd.f32 %v1573, %v2174
      %v2433 = vadd.f32 %v1574, %v2176
      %v2434 = vadd.f32 %v1575, %v2336
      %2435 = vst [vmem:[#allocation2] sm:$0xff] %v2339
      %2436 = vst [vmem:[#allocation2 + $0x8] sm:$0xff] %v2340
      %2437 = vst.msk [vmem:[#allocation2 + $0x10] sm:$0xff] %vm461, %v2341
      %2438 = vst [vmem:[#allocation2 + $0x18] sm:$0xff] %v2342
      %2439 = vst [vmem:[#allocation2 + $0x20] sm:$0xff] %v2343
      %2440 = vst.msk [vmem:[#allocation2 + $0x28] sm:$0xff] %vm461, %v2344
      %2441 = vst [vmem:[#allocation2 + $0x30] sm:$0xff] %v2345
      %2442 = vst [vmem:[#allocation2 + $0x38] sm:$0xff] %v2346
      %2443 = vst.msk [vmem:[#allocation2 + $0x40] sm:$0xff] %vm461, %v2347
      %2444 = vst [vmem:[#allocation2 + $0x48] sm:$0xff] %v2348
      %2445 = vst [vmem:[#allocation2 + $0x50] sm:$0xff] %v2349
      %2446 = vst.msk [vmem:[#allocation2 + $0x58] sm:$0xff] %vm461, %v2350
      %2447 = vst [vmem:[#allocation2 + $0x60] sm:$0xff] %v2351
      %2448 = vst [vmem:[#allocation2 + $0x68] sm:$0xff] %v2352
      %2449 = vst.msk [vmem:[#allocation2 + $0x70] sm:$0xff] %vm461, %v2353
      %2450 = vst [vmem:[#allocation2 + $0x78] sm:$0xff] %v2354
      %2451 = vst [vmem:[#allocation2 + $0x80] sm:$0xff] %v2355
      %2452 = vst.msk [vmem:[#allocation2 + $0x88] sm:$0xff] %vm461, %v2356
      %2453 = vst [vmem:[#allocation2 + $0x90] sm:$0xff] %v2357
      %2454 = vst [vmem:[#allocation2 + $0x98] sm:$0xff] %v2358
      %2455 = vst.msk [vmem:[#allocation2 + $0xa0] sm:$0xff] %vm461, %v2359
      %2456 = vst [vmem:[#allocation2 + $0xa8] sm:$0xff] %v2360
      %2457 = vst [vmem:[#allocation2 + $0xb0] sm:$0xff] %v2361
      %2458 = vst.msk [vmem:[#allocation2 + $0xb8] sm:$0xff] %vm461, %v2362
      %2459 = vst [vmem:[#allocation2 + $0xc0] sm:$0xff] %v2363
      %2460 = vst [vmem:[#allocation2 + $0xc8] sm:$0xff] %v2364
      %2461 = vst.msk [vmem:[#allocation2 + $0xd0] sm:$0xff] %vm461, %v2365
      %2462 = vst [vmem:[#allocation2 + $0xd8] sm:$0xff] %v2366
      %2463 = vst [vmem:[#allocation2 + $0xe0] sm:$0xff] %v2367
      %2464 = vst.msk [vmem:[#allocation2 + $0xe8] sm:$0xff] %vm461, %v2368
      %2465 = vst [vmem:[#allocation2 + $0xf0] sm:$0xff] %v2369
      %2466 = vst [vmem:[#allocation2 + $0xf8] sm:$0xff] %v2370
      %2467 = vst.msk [vmem:[#allocation2 + $0x100] sm:$0xff] %vm461, %v2371
      %2468 = vst [vmem:[#allocation2 + $0x108] sm:$0xff] %v2372
      %2469 = vst [vmem:[#allocation2 + $0x110] sm:$0xff] %v2373
      %2470 = vst.msk [vmem:[#allocation2 + $0x118] sm:$0xff] %vm461, %v2374
      %2471 = vst [vmem:[#allocation2 + $0x120] sm:$0xff] %v2375
      %2472 = vst [vmem:[#allocation2 + $0x128] sm:$0xff] %v2376
      %2473 = vst.msk [vmem:[#allocation2 + $0x130] sm:$0xff] %vm461, %v2377
      %2474 = vst [vmem:[#allocation2 + $0x138] sm:$0xff] %v2378
      %2475 = vst [vmem:[#allocation2 + $0x140] sm:$0xff] %v2379
      %2476 = vst.msk [vmem:[#allocation2 + $0x148] sm:$0xff] %vm461, %v2380
      %2477 = vst [vmem:[#allocation2 + $0x150] sm:$0xff] %v2381
      %2478 = vst [vmem:[#allocation2 + $0x158] sm:$0xff] %v2382
      %2479 = vst.msk [vmem:[#allocation2 + $0x160] sm:$0xff] %vm461, %v2383
      %2480 = vst [vmem:[#allocation2 + $0x168] sm:$0xff] %v2384
      %2481 = vst [vmem:[#allocation2 + $0x170] sm:$0xff] %v2385
      %2482 = vst.msk [vmem:[#allocation2 + $0x178] sm:$0xff] %vm461, %v2386
      %2483 = vst [vmem:[#allocation2 + $0x180] sm:$0xff] %v2387
      %2484 = vst [vmem:[#allocation2 + $0x188] sm:$0xff] %v2388
      %2485 = vst.msk [vmem:[#allocation2 + $0x190] sm:$0xff] %vm461, %v2389
      %2486 = vst [vmem:[#allocation2 + $0x198] sm:$0xff] %v2390
      %2487 = vst [vmem:[#allocation2 + $0x1a0] sm:$0xff] %v2391
      %2488 = vst.msk [vmem:[#allocation2 + $0x1a8] sm:$0xff] %vm461, %v2392
      %2489 = vst [vmem:[#allocation2 + $0x1b0] sm:$0xff] %v2393
      %2490 = vst [vmem:[#allocation2 + $0x1b8] sm:$0xff] %v2394
      %2491 = vst.msk [vmem:[#allocation2 + $0x1c0] sm:$0xff] %vm461, %v2395
      %2492 = vst [vmem:[#allocation2 + $0x1c8] sm:$0xff] %v2396
      %2493 = vst [vmem:[#allocation2 + $0x1d0] sm:$0xff] %v2397
      %2494 = vst.msk [vmem:[#allocation2 + $0x1d8] sm:$0xff] %vm461, %v2398
      %2495 = vst [vmem:[#allocation2 + $0x1e0] sm:$0xff] %v2399
      %2496 = vst [vmem:[#allocation2 + $0x1e8] sm:$0xff] %v2400
      %2497 = vst.msk [vmem:[#allocation2 + $0x1f0] sm:$0xff] %vm461, %v2401
      %2498 = vst [vmem:[#allocation2 + $0x1f8] sm:$0xff] %v2402
      %2499 = vst [vmem:[#allocation2 + $0x200] sm:$0xff] %v2403
      %2500 = vst.msk [vmem:[#allocation2 + $0x208] sm:$0xff] %vm461, %v2404
      %2501 = vst [vmem:[#allocation2 + $0x210] sm:$0xff] %v2405
      %2502 = vst [vmem:[#allocation2 + $0x218] sm:$0xff] %v2406
      %2503 = vst.msk [vmem:[#allocation2 + $0x220] sm:$0xff] %vm461, %v2407
      %2504 = vst [vmem:[#allocation2 + $0x228] sm:$0xff] %v2408
      %2505 = vst [vmem:[#allocation2 + $0x230] sm:$0xff] %v2409
      %2506 = vst.msk [vmem:[#allocation2 + $0x238] sm:$0xff] %vm461, %v2410
      %2507 = vst [vmem:[#allocation2 + $0x240] sm:$0xff] %v2411
      %2508 = vst [vmem:[#allocation2 + $0x248] sm:$0xff] %v2412
      %2509 = vst.msk [vmem:[#allocation2 + $0x250] sm:$0xff] %vm461, %v2413
      %2510 = vst [vmem:[#allocation2 + $0x258] sm:$0xff] %v2414
      %2511 = vst [vmem:[#allocation2 + $0x260] sm:$0xff] %v2415
      %2512 = vst.msk [vmem:[#allocation2 + $0x268] sm:$0xff] %vm461, %v2416
      %2513 = vst [vmem:[#allocation2 + $0x270] sm:$0xff] %v2417
      %2514 = vst [vmem:[#allocation2 + $0x278] sm:$0xff] %v2418
      %2515 = vst.msk [vmem:[#allocation2 + $0x280] sm:$0xff] %vm461, %v2419
      %2516 = vst [vmem:[#allocation2 + $0x288] sm:$0xff] %v2420
      %2517 = vst [vmem:[#allocation2 + $0x290] sm:$0xff] %v2421
      %2518 = vst.msk [vmem:[#allocation2 + $0x298] sm:$0xff] %vm461, %v2422
      %2519 = vst [vmem:[#allocation2 + $0x2a0] sm:$0xff] %v2423
      %2520 = vst [vmem:[#allocation2 + $0x2a8] sm:$0xff] %v2424
      %2521 = vst.msk [vmem:[#allocation2 + $0x2b0] sm:$0xff] %vm461, %v2425
      %2522 = vst [vmem:[#allocation2 + $0x2b8] sm:$0xff] %v2426
      %2523 = vst [vmem:[#allocation2 + $0x2c0] sm:$0xff] %v2427
      %2524 = vst.msk [vmem:[#allocation2 + $0x2c8] sm:$0xff] %vm461, %v2428
      %2525 = vst [vmem:[#allocation2 + $0x2d0] sm:$0xff] %v2429
      %2526 = vst [vmem:[#allocation2 + $0x2d8] sm:$0xff] %v2430
      %2527 = vst.msk [vmem:[#allocation2 + $0x2e0] sm:$0xff] %vm461, %v2431
      %2528 = vst [vmem:[#allocation2 + $0x2e8] sm:$0xf] %v2432
      %2529 = vst [vmem:[#allocation2 + $0x2f0] sm:$0xf] %v2433
      %2530 = vst.msk [vmem:[#allocation2 + $0x2f8] sm:$0xf] %vm555, %v2434
      %v2531 = vld [vmem:[#allocation2] sm:$0xff]
      %v2532 = vld [vmem:[#allocation2 + $0x8] sm:$0xff]
      %v2533 = vld [vmem:[#allocation2 + $0x10] sm:$0xff]
      %v2534 = vld [vmem:[#allocation2 + $0x18] sm:$0xff]
      %v2535 = vld [vmem:[#allocation2 + $0x20] sm:$0xff]
      %v2536 = vld [vmem:[#allocation2 + $0x28] sm:$0xff]
      %v2537 = vld [vmem:[#allocation2 + $0x30] sm:$0xff]
      %v2538 = vld [vmem:[#allocation2 + $0x38] sm:$0xff]
      %v2539 = vld [vmem:[#allocation2 + $0x40] sm:$0xff]
      %v2540 = vld [vmem:[#allocation2 + $0x48] sm:$0xff]
      %v2541 = vld [vmem:[#allocation2 + $0x50] sm:$0xff]
      %v2542 = vld [vmem:[#allocation2 + $0x58] sm:$0xff]
      %v2543 = vld [vmem:[#allocation2 + $0x60] sm:$0xff]
      %v2544 = vld [vmem:[#allocation2 + $0x68] sm:$0xff]
      %v2545 = vld [vmem:[#allocation2 + $0x70] sm:$0xff]
      %v2546 = vld [vmem:[#allocation2 + $0x78] sm:$0xff]
      %v2547 = vld [vmem:[#allocation2 + $0x80] sm:$0xff]
      %v2548 = vld [vmem:[#allocation2 + $0x88] sm:$0xff]
      %v2549 = vld [vmem:[#allocation2 + $0x90] sm:$0xff]
      %v2550 = vld [vmem:[#allocation2 + $0x98] sm:$0xff]
      %v2551 = vld [vmem:[#allocation2 + $0xa0] sm:$0xff]
      %v2552 = vld [vmem:[#allocation2 + $0xa8] sm:$0xff]
      %v2553 = vld [vmem:[#allocation2 + $0xb0] sm:$0xff]
      %v2554 = vld [vmem:[#allocation2 + $0xb8] sm:$0xff]
      %v2555 = vld [vmem:[#allocation2 + $0xc0] sm:$0xff]
      %v2556 = vld [vmem:[#allocation2 + $0xc8] sm:$0xff]
      %v2557 = vld [vmem:[#allocation2 + $0xd0] sm:$0xff]
      %v2558 = vld [vmem:[#allocation2 + $0xd8] sm:$0xff]
      %v2559 = vld [vmem:[#allocation2 + $0xe0] sm:$0xff]
      %v2560 = vld [vmem:[#allocation2 + $0xe8] sm:$0xff]
      %v2561 = vld [vmem:[#allocation2 + $0xf0] sm:$0xff]
      %v2562 = vld [vmem:[#allocation2 + $0xf8] sm:$0xff]
      %v2563 = vld [vmem:[#allocation2 + $0x100] sm:$0xff]
      %v2564 = vld [vmem:[#allocation2 + $0x108] sm:$0xff]
      %v2565 = vld [vmem:[#allocation2 + $0x110] sm:$0xff]
      %v2566 = vld [vmem:[#allocation2 + $0x118] sm:$0xff]
      %v2567 = vld [vmem:[#allocation2 + $0x120] sm:$0xff]
      %v2568 = vld [vmem:[#allocation2 + $0x128] sm:$0xff]
      %v2569 = vld [vmem:[#allocation2 + $0x130] sm:$0xff]
      %v2570 = vld [vmem:[#allocation2 + $0x138] sm:$0xff]
      %v2571 = vld [vmem:[#allocation2 + $0x140] sm:$0xff]
      %v2572 = vld [vmem:[#allocation2 + $0x148] sm:$0xff]
      %v2573 = vld [vmem:[#allocation2 + $0x150] sm:$0xff]
      %v2574 = vld [vmem:[#allocation2 + $0x158] sm:$0xff]
      %v2575 = vld [vmem:[#allocation2 + $0x160] sm:$0xff]
      %v2576 = vld [vmem:[#allocation2 + $0x168] sm:$0xff]
      %v2577 = vld [vmem:[#allocation2 + $0x170] sm:$0xff]
      %v2578 = vld [vmem:[#allocation2 + $0x178] sm:$0xff]
      %v2579 = vld [vmem:[#allocation2 + $0x180] sm:$0xff]
      %v2580 = vld [vmem:[#allocation2 + $0x188] sm:$0xff]
      %v2581 = vld [vmem:[#allocation2 + $0x190] sm:$0xff]
      %v2582 = vld [vmem:[#allocation2 + $0x198] sm:$0xff]
      %v2583 = vld [vmem:[#allocation2 + $0x1a0] sm:$0xff]
      %v2584 = vld [vmem:[#allocation2 + $0x1a8] sm:$0xff]
      %v2585 = vld [vmem:[#allocation2 + $0x1b0] sm:$0xff]
      %v2586 = vld [vmem:[#allocation2 + $0x1b8] sm:$0xff]
      %v2587 = vld [vmem:[#allocation2 + $0x1c0] sm:$0xff]
      %v2588 = vld [vmem:[#allocation2 + $0x1c8] sm:$0xff]
      %v2589 = vld [vmem:[#allocation2 + $0x1d0] sm:$0xff]
      %v2590 = vld [vmem:[#allocation2 + $0x1d8] sm:$0xff]
      %v2591 = vld [vmem:[#allocation2 + $0x1e0] sm:$0xff]
      %v2592 = vld [vmem:[#allocation2 + $0x1e8] sm:$0xff]
      %v2593 = vld [vmem:[#allocation2 + $0x1f0] sm:$0xff]
      %v2594 = vld [vmem:[#allocation2 + $0x1f8] sm:$0xff]
      %v2595 = vld [vmem:[#allocation2 + $0x200] sm:$0xff]
      %v2596 = vld [vmem:[#allocation2 + $0x208] sm:$0xff]
      %v2597 = vld [vmem:[#allocation2 + $0x210] sm:$0xff]
      %v2598 = vld [vmem:[#allocation2 + $0x218] sm:$0xff]
      %v2599 = vld [vmem:[#allocation2 + $0x220] sm:$0xff]
      %v2600 = vld [vmem:[#allocation2 + $0x228] sm:$0xff]
      %v2601 = vld [vmem:[#allocation2 + $0x230] sm:$0xff]
      %v2602 = vld [vmem:[#allocation2 + $0x238] sm:$0xff]
      %v2603 = vld [vmem:[#allocation2 + $0x240] sm:$0xff]
      %v2604 = vld [vmem:[#allocation2 + $0x248] sm:$0xff]
      %v2605 = vld [vmem:[#allocation2 + $0x250] sm:$0xff]
      %v2606 = vld [vmem:[#allocation2 + $0x258] sm:$0xff]
      %v2607 = vld [vmem:[#allocation2 + $0x260] sm:$0xff]
      %v2608 = vld [vmem:[#allocation2 + $0x268] sm:$0xff]
      %v2609 = vld [vmem:[#allocation2 + $0x270] sm:$0xff]
      %v2610 = vld [vmem:[#allocation2 + $0x278] sm:$0xff]
      %v2611 = vld [vmem:[#allocation2 + $0x280] sm:$0xff]
      %v2612 = vld [vmem:[#allocation2 + $0x288] sm:$0xff]
      %v2613 = vld [vmem:[#allocation2 + $0x290] sm:$0xff]
      %v2614 = vld [vmem:[#allocation2 + $0x298] sm:$0xff]
      %v2615 = vld [vmem:[#allocation2 + $0x2a0] sm:$0xff]
      %v2616 = vld [vmem:[#allocation2 + $0x2a8] sm:$0xff]
      %v2617 = vld [vmem:[#allocation2 + $0x2b0] sm:$0xff]
      %v2618 = vld [vmem:[#allocation2 + $0x2b8] sm:$0xff]
      %v2619 = vld [vmem:[#allocation2 + $0x2c0] sm:$0xff]
      %v2620 = vld [vmem:[#allocation2 + $0x2c8] sm:$0xff]
      %v2621 = vld [vmem:[#allocation2 + $0x2d0] sm:$0xff]
      %v2622 = vld [vmem:[#allocation2 + $0x2d8] sm:$0xff]
      %v2623 = vld [vmem:[#allocation2 + $0x2e0] sm:$0xff]
      %v2624 = vld [vmem:[#allocation2 + $0x2e8] sm:$0xf]
      %v2625 = vld [vmem:[#allocation2 + $0x2f0] sm:$0xf]
      %v2626 = vld [vmem:[#allocation2 + $0x2f8] sm:$0xf]
      %v2627 = vld [vmem:[%s435] sm:$0xe]
      %v2628 = vld [vmem:[%s435 + $0x4] sm:$0xf]
      %v2629 = vld [vmem:[%s435 + $0x8] sm:$0xf]
      %v2630 = vld [vmem:[%s435 + $0xc] sm:$0xf]
      %v2631 = vld [vmem:[%s435 + $0x10] sm:$0xf]
      %v2632 = vld [vmem:[%s435 + $0x14] sm:$0xf]
      %v2633 = vld [vmem:[%s435 + $0x18] sm:$0xf]
      %v2634 = vld [vmem:[%s435 + $0x1c] sm:$0xf]
      %v2635 = vld [vmem:[%s435 + $0x20] sm:$0xf]
      %v2636 = vld [vmem:[%s435 + $0x24] sm:$0xf]
      %v2637 = vld [vmem:[%s435 + $0x28] sm:$0xf]
      %v2638 = vld [vmem:[%s435 + $0x2c] sm:$0xf]
      %v2639 = vld [vmem:[%s435 + $0x30] sm:$0xf]
      %v2640 = vld [vmem:[%s435 + $0x34] sm:$0xf]
      %v2641 = vld [vmem:[%s435 + $0x38] sm:$0xf]
      %v2642 = vld [vmem:[%s435 + $0x3c] sm:$0xf]
      %v2643 = vld [vmem:[%s435 + $0x40] sm:$0xf]
      %v2644 = vld [vmem:[%s435 + $0x44] sm:$0xf]
      %v2645 = vld [vmem:[%s435 + $0x48] sm:$0xf]
      %v2646 = vld [vmem:[%s435 + $0x4c] sm:$0xf]
      %v2647 = vld [vmem:[%s435 + $0x50] sm:$0xf]
      %v2648 = vld [vmem:[%s435 + $0x54] sm:$0xf]
      %v2649 = vld [vmem:[%s435 + $0x58] sm:$0xf]
      %v2650 = vld [vmem:[%s435 + $0x5c] sm:$0xf]
      %v2651 = vld [vmem:[%s435 + $0x60] sm:$0xf]
      %v2652 = vld [vmem:[%s435 + $0x64] sm:$0xf]
      %v2653 = vld [vmem:[%s435 + $0x68] sm:$0xf]
      %v2654 = vld [vmem:[%s435 + $0x6c] sm:$0xf]
      %v2655 = vld [vmem:[%s435 + $0x70] sm:$0xf]
      %v2656 = vld [vmem:[%s435 + $0x74] sm:$0xf]
      %v2657 = vld [vmem:[%s435 + $0x78] sm:$0xf]
      %v2658 = vld [vmem:[%s435 + $0x7c] sm:$0x7]
      %s2659 = scalar_lea.vmem %s1, 288
      %v2660 = vld [vmem:[%s2659] sm:$0xff]
      %v2661 = vld [vmem:[%s2659 + $0x8] sm:$0xf]
      %v2662 = vld [vmem:[%s2659 + $0xc] sm:$0xff]
      %v2663 = vld [vmem:[%s2659 + $0x14] sm:$0xf]
      %v2664 = vld [vmem:[%s2659 + $0x18] sm:$0xff]
      %v2665 = vld [vmem:[%s2659 + $0x20] sm:$0xf]
      %v2666 = vld [vmem:[%s2659 + $0x24] sm:$0xff]
      %v2667 = vld [vmem:[%s2659 + $0x2c] sm:$0xf]
      %v2668 = vld [vmem:[%s2659 + $0x30] sm:$0xff]
      %v2669 = vld [vmem:[%s2659 + $0x38] sm:$0xf]
      %v2670 = vld [vmem:[%s2659 + $0x3c] sm:$0xff]
      %v2671 = vld [vmem:[%s2659 + $0x44] sm:$0xf]
      %v2672 = vld [vmem:[%s2659 + $0x48] sm:$0xff]
      %v2673 = vld [vmem:[%s2659 + $0x50] sm:$0xf]
      %v2674 = vld [vmem:[%s2659 + $0x54] sm:$0xff]
      %v2675 = vld [vmem:[%s2659 + $0x5c] sm:$0xf]
      %v2676 = vld [vmem:[%s2659 + $0x60] sm:$0xff]
      %v2677 = vld [vmem:[%s2659 + $0x68] sm:$0xf]
      %v2678 = vld [vmem:[%s2659 + $0x6c] sm:$0xff]
      %v2679 = vld [vmem:[%s2659 + $0x74] sm:$0xf]
      %v2680 = vld [vmem:[%s2659 + $0x78] sm:$0xff]
      %v2681 = vld [vmem:[%s2659 + $0x80] sm:$0xf]
      %v2682 = vld [vmem:[%s2659 + $0x84] sm:$0xff]
      %v2683 = vld [vmem:[%s2659 + $0x8c] sm:$0xf]
      %v2716 = vunpack.c.l.b16 %v2627
      %v2717 = vunpack.c.l.b16 %v2628
      %v2718 = vunpack.c.l.b16 %v2629
      %v2719 = vunpack.c.l.b16 %v2630
      %v2720 = vunpack.c.l.b16 %v2631
      %v2721 = vunpack.c.l.b16 %v2632
      %v2722 = vunpack.c.l.b16 %v2633
      %v2723 = vunpack.c.l.b16 %v2634
      %v2724 = vunpack.c.l.b16 %v2635
      %v2725 = vunpack.c.l.b16 %v2636
      %v2726 = vunpack.c.l.b16 %v2637
      %v2727 = vunpack.c.l.b16 %v2638
      %v2728 = vunpack.c.l.b16 %v2639
      %v2729 = vunpack.c.l.b16 %v2640
      %v2730 = vunpack.c.l.b16 %v2641
      %v2731 = vunpack.c.l.b16 %v2642
      %v2732 = vunpack.c.l.b16 %v2643
      %v2733 = vunpack.c.l.b16 %v2644
      %v2734 = vunpack.c.l.b16 %v2645
      %v2735 = vunpack.c.l.b16 %v2646
      %v2736 = vunpack.c.l.b16 %v2647
      %v2737 = vunpack.c.l.b16 %v2648
      %v2738 = vunpack.c.l.b16 %v2649
      %v2739 = vunpack.c.l.b16 %v2650
      %v2740 = vunpack.c.l.b16 %v2651
      %v2741 = vunpack.c.l.b16 %v2652
      %v2742 = vunpack.c.l.b16 %v2653
      %v2743 = vunpack.c.l.b16 %v2654
      %v2744 = vunpack.c.l.b16 %v2655
      %v2745 = vunpack.c.l.b16 %v2656
      %v2746 = vunpack.c.l.b16 %v2657
      %v2747 = vunpack.c.l.b16 %v2658
      %v2748 = vpack.c.b16 %v2717, %v2716
      %v2749 = vpack.c.b16 %v2719, %v2718
      %v2750 = vpack.c.b16 %v2721, %v2720
      %v2751 = vpack.c.b16 %v2723, %v2722
      %v2752 = vpack.c.b16 %v2725, %v2724
      %v2753 = vpack.c.b16 %v2727, %v2726
      %v2754 = vpack.c.b16 %v2729, %v2728
      %v2755 = vpack.c.b16 %v2731, %v2730
      %v2756 = vpack.c.b16 %v2733, %v2732
      %v2757 = vpack.c.b16 %v2735, %v2734
      %v2758 = vpack.c.b16 %v2737, %v2736
      %v2759 = vpack.c.b16 %v2739, %v2738
      %v2760 = vpack.c.b16 %v2741, %v2740
      %v2761 = vpack.c.b16 %v2743, %v2742
      %v2762 = vpack.c.b16 %v2745, %v2744
      %v2763 = vpack.c.b16 %v2747, %v2746
      %vm2764 = vcmask 1046528
      %v2765 = vrot.slane %v2748, 1
      %v2766 = vrot.slane %v2749, 1
      %v2767 = vsel %vm2764, %v2765, %v2766
      %v2768 = vrot.slane %v2750, 1
      %v2769 = vsel %vm2764, %v2766, %v2768
      %v2770 = vrot.slane %v2751, 1
      %v2771 = vsel %vm2764, %v2768, %v2770
      %v2772 = vrot.slane %v2752, 1
      %v2773 = vsel %vm2764, %v2770, %v2772
      %v2774 = vrot.slane %v2753, 1
      %v2775 = vsel %vm2764, %v2772, %v2774
      %v2776 = vrot.slane %v2754, 1
      %v2777 = vsel %vm2764, %v2774, %v2776
      %v2778 = vrot.slane %v2755, 1
      %v2779 = vsel %vm2764, %v2776, %v2778
      %v2780 = vrot.slane %v2756, 1
      %v2781 = vsel %vm2764, %v2778, %v2780
      %v2782 = vrot.slane %v2757, 1
      %v2783 = vsel %vm2764, %v2780, %v2782
      %v2784 = vrot.slane %v2758, 1
      %v2785 = vsel %vm2764, %v2782, %v2784
      %v2786 = vrot.slane %v2759, 1
      %v2787 = vsel %vm2764, %v2784, %v2786
      %v2788 = vrot.slane %v2760, 1
      %v2789 = vsel %vm2764, %v2786, %v2788
      %v2790 = vrot.slane %v2761, 1
      %v2791 = vsel %vm2764, %v2788, %v2790
      %v2792 = vrot.slane %v2762, 1
      %v2793 = vsel %vm2764, %v2790, %v2792
      %v2794 = vrot.slane %v2763, 1
      %v2795 = vsel %vm2764, %v2792, %v2794
      %v2820 = vunpack.c.l.b16 %v2660
      %v2821 = vunpack.c.h.b16 %v2660
      %v2822 = vunpack.c.l.b16 %v2661
      %v2823 = vunpack.c.l.b16 %v2662
      %v2824 = vunpack.c.h.b16 %v2662
      %v2825 = vunpack.c.l.b16 %v2663
      %v2826 = vunpack.c.l.b16 %v2664
      %v2827 = vunpack.c.h.b16 %v2664
      %v2828 = vunpack.c.l.b16 %v2665
      %v2829 = vunpack.c.l.b16 %v2666
      %v2830 = vunpack.c.h.b16 %v2666
      %v2831 = vunpack.c.l.b16 %v2667
      %v2832 = vunpack.c.l.b16 %v2668
      %v2833 = vunpack.c.h.b16 %v2668
      %v2834 = vunpack.c.l.b16 %v2669
      %v2835 = vunpack.c.l.b16 %v2670
      %v2836 = vunpack.c.h.b16 %v2670
      %v2837 = vunpack.c.l.b16 %v2671
      %v2838 = vunpack.c.l.b16 %v2672
      %v2839 = vunpack.c.h.b16 %v2672
      %v2840 = vunpack.c.l.b16 %v2673
      %v2841 = vunpack.c.l.b16 %v2674
      %v2842 = vunpack.c.h.b16 %v2674
      %v2843 = vunpack.c.l.b16 %v2675
      %v2844 = vunpack.c.l.b16 %v2676
      %v2845 = vunpack.c.h.b16 %v2676
      %v2846 = vunpack.c.l.b16 %v2677
      %v2847 = vunpack.c.l.b16 %v2678
      %v2848 = vunpack.c.h.b16 %v2678
      %v2849 = vunpack.c.l.b16 %v2679
      %v2850 = vunpack.c.l.b16 %v2680
      %v2851 = vunpack.c.h.b16 %v2680
      %v2852 = vunpack.c.l.b16 %v2681
      %v2853 = vunpack.c.l.b16 %v2682
      %v2854 = vunpack.c.h.b16 %v2682
      %v2855 = vunpack.c.l.b16 %v2683
      %v2856 = vpack.c.b16 %v2823, %v2820
      %v2857 = vpack.c.b16 %v2824, %v2821
      %v2858 = vpack.c.b16 %v2825, %v2822
      %v2859 = vpack.c.b16 %v2829, %v2826
      %v2860 = vpack.c.b16 %v2830, %v2827
      %v2861 = vpack.c.b16 %v2831, %v2828
      %v2862 = vpack.c.b16 %v2835, %v2832
      %v2863 = vpack.c.b16 %v2836, %v2833
      %v2864 = vpack.c.b16 %v2837, %v2834
      %v2865 = vpack.c.b16 %v2841, %v2838
      %v2866 = vpack.c.b16 %v2842, %v2839
      %v2867 = vpack.c.b16 %v2843, %v2840
      %v2868 = vpack.c.b16 %v2847, %v2844
      %v2869 = vpack.c.b16 %v2848, %v2845
      %v2870 = vpack.c.b16 %v2849, %v2846
      %v2871 = vpack.c.b16 %v2853, %v2850
      %v2872 = vpack.c.b16 %v2854, %v2851
      %v2873 = vpack.c.b16 %v2855, %v2852
      %v2893 = vsel %vm885, %v2767, 0
      %v2896 = vsel %vm885, %v2769, 0
      %v2899 = vsel %vm885, %v2771, 0
      %v2902 = vsel %vm885, %v2773, 0
      %v2905 = vsel %vm885, %v2775, 0
      %v2908 = vsel %vm885, %v2777, 0
      %v2911 = vsel %vm885, %v2779, 0
      %v2914 = vsel %vm885, %v2781, 0
      %v2917 = vsel %vm885, %v2783, 0
      %v2920 = vsel %vm885, %v2785, 0
      %v2923 = vsel %vm885, %v2787, 0
      %v2926 = vsel %vm885, %v2789, 0
      %v2929 = vsel %vm885, %v2791, 0
      %v2932 = vsel %vm885, %v2793, 0
      %v2935 = vsel %vm885, %v2795, 0
      %v2938 = vsel %vm885, %v2794, 0
      %2940 = vmatprep.subr.bf16.mxu0 %v2857
      %2941 = vmatpush1.bf16.msra.mxu0 %v2856
      %2942 = vmatprep.subr.bf16.mxu0 %v2860
      %2943 = vmatpush1.bf16.msra.mxu0 %v2859
      %2944 = vmatprep.subr.bf16.mxu0 %v2863
      %2945 = vmatpush1.bf16.msra.mxu0 %v2862
      %2946 = vmatprep.subr.bf16.mxu0 %v2866
      %2947 = vmatpush1.bf16.msra.mxu0 %v2865
      %2948 = vmatprep.subr.bf16.mxu0 %v2869
      %2949 = vmatpush1.bf16.msra.mxu0 %v2868
      %2950 = vmatprep.subr.bf16.mxu0 %v2872
      %2951 = vmatpush1.bf16.msra.mxu0 %v2871
      %2952 = vmatprep.subr.bf16.mxu0 0
      %2953 = vmatpush1.bf16.msra.mxu0 0
      %2954 = vmatprep.subr.bf16.mxu0 0
      %2955 = vmatpush1.bf16.msra.mxu0 0
      %2956 = vmatprep.subr.bf16.mxu0 0
      %2957 = vmatpush1.bf16.msra.mxu0 0
      %2958 = vmatprep.subr.bf16.mxu0 0
      %2959 = vmatpush1.bf16.msra.mxu0 0
      %2960 = vmatprep.subr.bf16.mxu0 0
      %2961 = vmatpush1.bf16.msra.mxu0 0
      %2962 = vmatprep.subr.bf16.mxu0 0
      %2963 = vmatpush1.bf16.msra.mxu0 0
      %2964 = vmatprep.subr.bf16.mxu0 0
      %2965 = vmatpush1.bf16.msra.mxu0 0
      %2966 = vmatprep.subr.bf16.mxu0 0
      %2967 = vmatpush1.bf16.msra.mxu0 0
      %2968 = vmatprep.subr.bf16.mxu0 0
      %2969 = vmatpush1.bf16.msra.mxu0 0
      %2970 = vmatprep.subr.bf16.mxu0 0
      %2971 = vmatpush1.bf16.msra.mxu0 0
      %2972 = vmatprep.mubr.bf16.mxu0 0
      %2973 = vmatmul.mubr.bf16.gmra.mrb[0].mxu0 %v2893
      %v2974 = vpop.f32.mrb[0].mxu0
      %v2975 = vadd.f32 0.0, %v2974
      %v2976 = vpop.f32.mrb[0].mxu0
      %v2977 = vadd.f32 0.0, %v2976
      %v2978 = vpop.f32.mrb[0].mxu0
      %v2979 = vadd.f32 0.0, %v2978
      %v2980 = vpop.f32.mrb[0].mxu0
      %v2981 = vadd.f32 0.0, %v2980
      %2982 = vmatprep.mubr.bf16.mxu0 0
      %2983 = vmatmul.mubr.bf16.gmra.mrb[0].mxu0 %v2896
      %v2984 = vpop.f32.mrb[0].mxu0
      %v2985 = vadd.f32 0.0, %v2984
      %v2986 = vpop.f32.mrb[0].mxu0
      %v2987 = vadd.f32 0.0, %v2986
      %v2988 = vpop.f32.mrb[0].mxu0
      %v2989 = vadd.f32 0.0, %v2988
      %v2990 = vpop.f32.mrb[0].mxu0
      %v2991 = vadd.f32 0.0, %v2990
      %2992 = vmatprep.mubr.bf16.mxu0 0
      %2993 = vmatmul.mubr.bf16.gmra.mrb[0].mxu0 %v2899
      %v2994 = vpop.f32.mrb[0].mxu0
      %v2995 = vadd.f32 0.0, %v2994
      %v2996 = vpop.f32.mrb[0].mxu0
      %v2997 = vadd.f32 0.0, %v2996
      %v2998 = vpop.f32.mrb[0].mxu0
      %v2999 = vadd.f32 0.0, %v2998
      %v3000 = vpop.f32.mrb[0].mxu0
      %v3001 = vadd.f32 0.0, %v3000
      %3002 = vmatprep.mubr.bf16.mxu0 0
      %3003 = vmatmul.mubr.bf16.gmra.mrb[0].mxu0 %v2902
      %v3004 = vpop.f32.mrb[0].mxu0
      %v3005 = vadd.f32 0.0, %v3004
      %v3006 = vpop.f32.mrb[0].mxu0
      %v3007 = vadd.f32 0.0, %v3006
      %v3008 = vpop.f32.mrb[0].mxu0
      %v3009 = vadd.f32 0.0, %v3008
      %v3010 = vpop.f32.mrb[0].mxu0
      %v3011 = vadd.f32 0.0, %v3010
      %3012 = vmatprep.mubr.bf16.mxu0 0
      %3013 = vmatmul.mubr.bf16.gmra.mrb[0].mxu0 %v2905
      %v3014 = vpop.f32.mrb[0].mxu0
      %v3015 = vadd.f32 0.0, %v3014
      %v3016 = vpop.f32.mrb[0].mxu0
      %v3017 = vadd.f32 0.0, %v3016
      %v3018 = vpop.f32.mrb[0].mxu0
      %v3019 = vadd.f32 0.0, %v3018
      %v3020 = vpop.f32.mrb[0].mxu0
      %v3021 = vadd.f32 0.0, %v3020
      %3022 = vmatprep.mubr.bf16.mxu0 0
      %3023 = vmatmul.mubr.bf16.gmra.mrb[0].mxu0 %v2908
      %v3024 = vpop.f32.mrb[0].mxu0
      %v3025 = vadd.f32 0.0, %v3024
      %v3026 = vpop.f32.mrb[0].mxu0
      %v3027 = vadd.f32 0.0, %v3026
      %v3028 = vpop.f32.mrb[0].mxu0
      %v3029 = vadd.f32 0.0, %v3028
      %v3030 = vpop.f32.mrb[0].mxu0
      %v3031 = vadd.f32 0.0, %v3030
      %3032 = vmatprep.mubr.bf16.mxu0 0
      %3033 = vmatmul.mubr.bf16.gmra.mrb[0].mxu0 %v2911
      %v3034 = vpop.f32.mrb[0].mxu0
      %v3035 = vadd.f32 0.0, %v3034
      %v3036 = vpop.f32.mrb[0].mxu0
      %v3037 = vadd.f32 0.0, %v3036
      %v3038 = vpop.f32.mrb[0].mxu0
      %v3039 = vadd.f32 0.0, %v3038
      %v3040 = vpop.f32.mrb[0].mxu0
      %v3041 = vadd.f32 0.0, %v3040
      %3042 = vmatprep.mubr.bf16.mxu0 0
      %3043 = vmatmul.mubr.bf16.gmra.mrb[0].mxu0 %v2914
      %v3044 = vpop.f32.mrb[0].mxu0
      %v3045 = vadd.f32 0.0, %v3044
      %v3046 = vpop.f32.mrb[0].mxu0
      %v3047 = vadd.f32 0.0, %v3046
      %v3048 = vpop.f32.mrb[0].mxu0
      %v3049 = vadd.f32 0.0, %v3048
      %v3050 = vpop.f32.mrb[0].mxu0
      %v3051 = vadd.f32 0.0, %v3050
      %3052 = vmatprep.mubr.bf16.mxu0 0
      %3053 = vmatmul.mubr.bf16.gmra.mrb[0].mxu0 %v2917
      %v3054 = vpop.f32.mrb[0].mxu0
      %v3055 = vadd.f32 0.0, %v3054
      %v3056 = vpop.f32.mrb[0].mxu0
      %v3057 = vadd.f32 0.0, %v3056
      %v3058 = vpop.f32.mrb[0].mxu0
      %v3059 = vadd.f32 0.0, %v3058
      %v3060 = vpop.f32.mrb[0].mxu0
      %v3061 = vadd.f32 0.0, %v3060
      %3062 = vmatprep.mubr.bf16.mxu0 0
      %3063 = vmatmul.mubr.bf16.gmra.mrb[0].mxu0 %v2920
      %v3064 = vpop.f32.mrb[0].mxu0
      %v3065 = vadd.f32 0.0, %v3064
      %v3066 = vpop.f32.mrb[0].mxu0
      %v3067 = vadd.f32 0.0, %v3066
      %v3068 = vpop.f32.mrb[0].mxu0
      %v3069 = vadd.f32 0.0, %v3068
      %v3070 = vpop.f32.mrb[0].mxu0
      %v3071 = vadd.f32 0.0, %v3070
      %3072 = vmatprep.mubr.bf16.mxu0 0
      %3073 = vmatmul.mubr.bf16.gmra.mrb[0].mxu0 %v2923
      %v3074 = vpop.f32.mrb[0].mxu0
      %v3075 = vadd.f32 0.0, %v3074
      %v3076 = vpop.f32.mrb[0].mxu0
      %v3077 = vadd.f32 0.0, %v3076
      %v3078 = vpop.f32.mrb[0].mxu0
      %v3079 = vadd.f32 0.0, %v3078
      %v3080 = vpop.f32.mrb[0].mxu0
      %v3081 = vadd.f32 0.0, %v3080
      %3082 = vmatprep.mubr.bf16.mxu0 0
      %3083 = vmatmul.mubr.bf16.gmra.mrb[0].mxu0 %v2926
      %v3084 = vpop.f32.mrb[0].mxu0
      %v3085 = vadd.f32 0.0, %v3084
      %v3086 = vpop.f32.mrb[0].mxu0
      %v3087 = vadd.f32 0.0, %v3086
      %v3088 = vpop.f32.mrb[0].mxu0
      %v3089 = vadd.f32 0.0, %v3088
      %v3090 = vpop.f32.mrb[0].mxu0
      %v3091 = vadd.f32 0.0, %v3090
      %3092 = vmatprep.mubr.bf16.mxu0 0
      %3093 = vmatmul.mubr.bf16.gmra.mrb[0].mxu0 %v2929
      %v3094 = vpop.f32.mrb[0].mxu0
      %v3095 = vadd.f32 0.0, %v3094
      %v3096 = vpop.f32.mrb[0].mxu0
      %v3097 = vadd.f32 0.0, %v3096
      %v3098 = vpop.f32.mrb[0].mxu0
      %v3099 = vadd.f32 0.0, %v3098
      %v3100 = vpop.f32.mrb[0].mxu0
      %v3101 = vadd.f32 0.0, %v3100
      %3102 = vmatprep.mubr.bf16.mxu0 0
      %3103 = vmatmul.mubr.bf16.gmra.mrb[0].mxu0 %v2932
      %v3104 = vpop.f32.mrb[0].mxu0
      %v3105 = vadd.f32 0.0, %v3104
      %v3106 = vpop.f32.mrb[0].mxu0
      %v3107 = vadd.f32 0.0, %v3106
      %v3108 = vpop.f32.mrb[0].mxu0
      %v3109 = vadd.f32 0.0, %v3108
      %v3110 = vpop.f32.mrb[0].mxu0
      %v3111 = vadd.f32 0.0, %v3110
      %3112 = vmatprep.mubr.bf16.mxu0 0
      %3113 = vmatmul.mubr.bf16.gmra.mrb[0].mxu0 %v2935
      %v3114 = vpop.f32.mrb[0].mxu0
      %v3115 = vadd.f32 0.0, %v3114
      %v3116 = vpop.f32.mrb[0].mxu0
      %v3117 = vadd.f32 0.0, %v3116
      %v3118 = vpop.f32.mrb[0].mxu0
      %v3119 = vadd.f32 0.0, %v3118
      %v3120 = vpop.f32.mrb[0].mxu0
      %v3121 = vadd.f32 0.0, %v3120
      %3122 = vmatprep.mubr.bf16.mxu0 0
      %3123 = vmatmul.mubr.bf16.gmra.mrb[0].mxu0 %v2938
      %v3124 = vpop.f32.mrb[0].mxu0
      %v3125 = vadd.f32 0.0, %v3124
      %v3126 = vpop.f32.mrb[0].mxu0
      %v3127 = vadd.f32 0.0, %v3126
      %v3128 = vpop.f32.mrb[0].mxu0
      %v3129 = vadd.f32 0.0, %v3128
      %v3130 = vpop.f32.mrb[0].mxu0
      %v3131 = vadd.f32 0.0, %v3130
      %3132 = vdwg.mxu0
      %3133 = vmatprep.subr.bf16.mxu0 0
      %3134 = vmatpush1.bf16.msra.mxu0 %v2858
      %3135 = vmatprep.subr.bf16.mxu0 0
      %3136 = vmatpush1.bf16.msra.mxu0 %v2861
      %3137 = vmatprep.subr.bf16.mxu0 0
      %3138 = vmatpush1.bf16.msra.mxu0 %v2864
      %3139 = vmatprep.subr.bf16.mxu0 0
      %3140 = vmatpush1.bf16.msra.mxu0 %v2867
      %3141 = vmatprep.subr.bf16.mxu0 0
      %3142 = vmatpush1.bf16.msra.mxu0 %v2870
      %3143 = vmatprep.subr.bf16.mxu0 0
      %3144 = vmatpush1.bf16.msra.mxu0 %v2873
      %3145 = vmatprep.subr.bf16.mxu0 0
      %3146 = vmatpush1.bf16.msra.mxu0 0
      %3147 = vmatprep.subr.bf16.mxu0 0
      %3148 = vmatpush1.bf16.msra.mxu0 0
      %3149 = vmatprep.subr.bf16.mxu0 0
      %3150 = vmatpush1.bf16.msra.mxu0 0
      %3151 = vmatprep.subr.bf16.mxu0 0
      %3152 = vmatpush1.bf16.msra.mxu0 0
      %3153 = vmatprep.subr.bf16.mxu0 0
      %3154 = vmatpush1.bf16.msra.mxu0 0
      %3155 = vmatprep.subr.bf16.mxu0 0
      %3156 = vmatpush1.bf16.msra.mxu0 0
      %3157 = vmatprep.subr.bf16.mxu0 0
      %3158 = vmatpush1.bf16.msra.mxu0 0
      %3159 = vmatprep.subr.bf16.mxu0 0
      %3160 = vmatpush1.bf16.msra.mxu0 0
      %3161 = vmatprep.subr.bf16.mxu0 0
      %3162 = vmatpush1.bf16.msra.mxu0 0
      %3163 = vmatprep.subr.bf16.mxu0 0
      %3164 = vmatpush1.bf16.msra.mxu0 0
      %3165 = vmatprep.mubr.bf16.mxu0 0
      %3166 = vmatmul.mubr.bf16.gmra.mrb[0].mxu0 %v2893
      %v3167 = vpop.f32.mrb[0].mxu0
      %v3168 = vadd.f32 0.0, %v3167
      %v3169 = vpop.f32.mrb[0].mxu0
      %v3170 = vpop.f32.mrb[0].mxu0
      %v3171 = vadd.f32 0.0, %v3170
      %v3172 = vpop.f32.mrb[0].mxu0
      %3173 = vmatprep.mubr.bf16.mxu0 0
      %3174 = vmatmul.mubr.bf16.gmra.mrb[0].mxu0 %v2896
      %v3175 = vpop.f32.mrb[0].mxu0
      %v3176 = vadd.f32 0.0, %v3175
      %v3177 = vpop.f32.mrb[0].mxu0
      %v3178 = vpop.f32.mrb[0].mxu0
      %v3179 = vadd.f32 0.0, %v3178
      %v3180 = vpop.f32.mrb[0].mxu0
      %3181 = vmatprep.mubr.bf16.mxu0 0
      %3182 = vmatmul.mubr.bf16.gmra.mrb[0].mxu0 %v2899
      %v3183 = vpop.f32.mrb[0].mxu0
      %v3184 = vadd.f32 0.0, %v3183
      %v3185 = vpop.f32.mrb[0].mxu0
      %v3186 = vpop.f32.mrb[0].mxu0
      %v3187 = vadd.f32 0.0, %v3186
      %v3188 = vpop.f32.mrb[0].mxu0
      %3189 = vmatprep.mubr.bf16.mxu0 0
      %3190 = vmatmul.mubr.bf16.gmra.mrb[0].mxu0 %v2902
      %v3191 = vpop.f32.mrb[0].mxu0
      %v3192 = vadd.f32 0.0, %v3191
      %v3193 = vpop.f32.mrb[0].mxu0
      %v3194 = vpop.f32.mrb[0].mxu0
      %v3195 = vadd.f32 0.0, %v3194
      %v3196 = vpop.f32.mrb[0].mxu0
      %3197 = vmatprep.mubr.bf16.mxu0 0
      %3198 = vmatmul.mubr.bf16.gmra.mrb[0].mxu0 %v2905
      %v3199 = vpop.f32.mrb[0].mxu0
      %v3200 = vadd.f32 0.0, %v3199
      %v3201 = vpop.f32.mrb[0].mxu0
      %v3202 = vpop.f32.mrb[0].mxu0
      %v3203 = vadd.f32 0.0, %v3202
      %v3204 = vpop.f32.mrb[0].mxu0
      %3205 = vmatprep.mubr.bf16.mxu0 0
      %3206 = vmatmul.mubr.bf16.gmra.mrb[0].mxu0 %v2908
      %v3207 = vpop.f32.mrb[0].mxu0
      %v3208 = vadd.f32 0.0, %v3207
      %v3209 = vpop.f32.mrb[0].mxu0
      %v3210 = vpop.f32.mrb[0].mxu0
      %v3211 = vadd.f32 0.0, %v3210
      %v3212 = vpop.f32.mrb[0].mxu0
      %3213 = vmatprep.mubr.bf16.mxu0 0
      %3214 = vmatmul.mubr.bf16.gmra.mrb[0].mxu0 %v2911
      %v3215 = vpop.f32.mrb[0].mxu0
      %v3216 = vadd.f32 0.0, %v3215
      %v3217 = vpop.f32.mrb[0].mxu0
      %v3218 = vpop.f32.mrb[0].mxu0
      %v3219 = vadd.f32 0.0, %v3218
      %v3220 = vpop.f32.mrb[0].mxu0
      %3221 = vmatprep.mubr.bf16.mxu0 0
      %3222 = vmatmul.mubr.bf16.gmra.mrb[0].mxu0 %v2914
      %v3223 = vpop.f32.mrb[0].mxu0
      %v3224 = vadd.f32 0.0, %v3223
      %v3225 = vpop.f32.mrb[0].mxu0
      %v3226 = vpop.f32.mrb[0].mxu0
      %v3227 = vadd.f32 0.0, %v3226
      %v3228 = vpop.f32.mrb[0].mxu0
      %3229 = vmatprep.mubr.bf16.mxu0 0
      %3230 = vmatmul.mubr.bf16.gmra.mrb[0].mxu0 %v2917
      %v3231 = vpop.f32.mrb[0].mxu0
      %v3232 = vadd.f32 0.0, %v3231
      %v3233 = vpop.f32.mrb[0].mxu0
      %v3234 = vpop.f32.mrb[0].mxu0
      %v3235 = vadd.f32 0.0, %v3234
      %v3236 = vpop.f32.mrb[0].mxu0
      %3237 = vmatprep.mubr.bf16.mxu0 0
      %3238 = vmatmul.mubr.bf16.gmra.mrb[0].mxu0 %v2920
      %v3239 = vpop.f32.mrb[0].mxu0
      %v3240 = vadd.f32 0.0, %v3239
      %v3241 = vpop.f32.mrb[0].mxu0
      %v3242 = vpop.f32.mrb[0].mxu0
      %v3243 = vadd.f32 0.0, %v3242
      %v3244 = vpop.f32.mrb[0].mxu0
      %3245 = vmatprep.mubr.bf16.mxu0 0
      %3246 = vmatmul.mubr.bf16.gmra.mrb[0].mxu0 %v2923
      %v3247 = vpop.f32.mrb[0].mxu0
      %v3248 = vadd.f32 0.0, %v3247
      %v3249 = vpop.f32.mrb[0].mxu0
      %v3250 = vpop.f32.mrb[0].mxu0
      %v3251 = vadd.f32 0.0, %v3250
      %v3252 = vpop.f32.mrb[0].mxu0
      %3253 = vmatprep.mubr.bf16.mxu0 0
      %3254 = vmatmul.mubr.bf16.gmra.mrb[0].mxu0 %v2926
      %v3255 = vpop.f32.mrb[0].mxu0
      %v3256 = vadd.f32 0.0, %v3255
      %v3257 = vpop.f32.mrb[0].mxu0
      %v3258 = vpop.f32.mrb[0].mxu0
      %v3259 = vadd.f32 0.0, %v3258
      %v3260 = vpop.f32.mrb[0].mxu0
      %3261 = vmatprep.mubr.bf16.mxu0 0
      %3262 = vmatmul.mubr.bf16.gmra.mrb[0].mxu0 %v2929
      %v3263 = vpop.f32.mrb[0].mxu0
      %v3264 = vadd.f32 0.0, %v3263
      %v3265 = vpop.f32.mrb[0].mxu0
      %v3266 = vpop.f32.mrb[0].mxu0
      %v3267 = vadd.f32 0.0, %v3266
      %v3268 = vpop.f32.mrb[0].mxu0
      %3269 = vmatprep.mubr.bf16.mxu0 0
      %3270 = vmatmul.mubr.bf16.gmra.mrb[0].mxu0 %v2932
      %v3271 = vpop.f32.mrb[0].mxu0
      %v3272 = vadd.f32 0.0, %v3271
      %v3273 = vpop.f32.mrb[0].mxu0
      %v3274 = vpop.f32.mrb[0].mxu0
      %v3275 = vadd.f32 0.0, %v3274
      %v3276 = vpop.f32.mrb[0].mxu0
      %3277 = vmatprep.mubr.bf16.mxu0 0
      %3278 = vmatmul.mubr.bf16.gmra.mrb[0].mxu0 %v2935
      %v3279 = vpop.f32.mrb[0].mxu0
      %v3280 = vadd.f32 0.0, %v3279
      %v3281 = vpop.f32.mrb[0].mxu0
      %v3282 = vpop.f32.mrb[0].mxu0
      %v3283 = vadd.f32 0.0, %v3282
      %v3284 = vpop.f32.mrb[0].mxu0
      %3285 = vmatprep.mubr.bf16.mxu0 0
      %3286 = vmatmul.mubr.bf16.gmra.mrb[0].mxu0 %v2938
      %v3287 = vpop.f32.mrb[0].mxu0
      %v3288 = vadd.f32 0.0, %v3287
      %v3289 = vpop.f32.mrb[0].mxu0
      %v3290 = vpop.f32.mrb[0].mxu0
      %v3291 = vadd.f32 0.0, %v3290
      %v3292 = vpop.f32.mrb[0].mxu0
      %3293 = vdwg.mxu0
      %v3294 = vadd.f32 %v2531, %v2975
      %v3295 = vadd.f32 %v2532, %v2977
      %v3296 = vadd.f32 %v2533, %v3168
      %v3297 = vadd.f32 %v2534, %v2979
      %v3298 = vadd.f32 %v2535, %v2981
      %v3299 = vadd.f32 %v2536, %v3171
      %v3300 = vadd.f32 %v2537, %v2985
      %v3301 = vadd.f32 %v2538, %v2987
      %v3302 = vadd.f32 %v2539, %v3176
      %v3303 = vadd.f32 %v2540, %v2989
      %v3304 = vadd.f32 %v2541, %v2991
      %v3305 = vadd.f32 %v2542, %v3179
      %v3306 = vadd.f32 %v2543, %v2995
      %v3307 = vadd.f32 %v2544, %v2997
      %v3308 = vadd.f32 %v2545, %v3184
      %v3309 = vadd.f32 %v2546, %v2999
      %v3310 = vadd.f32 %v2547, %v3001
      %v3311 = vadd.f32 %v2548, %v3187
      %v3312 = vadd.f32 %v2549, %v3005
      %v3313 = vadd.f32 %v2550, %v3007
      %v3314 = vadd.f32 %v2551, %v3192
      %v3315 = vadd.f32 %v2552, %v3009
      %v3316 = vadd.f32 %v2553, %v3011
      %v3317 = vadd.f32 %v2554, %v3195
      %v3318 = vadd.f32 %v2555, %v3015
      %v3319 = vadd.f32 %v2556, %v3017
      %v3320 = vadd.f32 %v2557, %v3200
      %v3321 = vadd.f32 %v2558, %v3019
      %v3322 = vadd.f32 %v2559, %v3021
      %v3323 = vadd.f32 %v2560, %v3203
      %v3324 = vadd.f32 %v2561, %v3025
      %v3325 = vadd.f32 %v2562, %v3027
      %v3326 = vadd.f32 %v2563, %v3208
      %v3327 = vadd.f32 %v2564, %v3029
      %v3328 = vadd.f32 %v2565, %v3031
      %v3329 = vadd.f32 %v2566, %v3211
      %v3330 = vadd.f32 %v2567, %v3035
      %v3331 = vadd.f32 %v2568, %v3037
      %v3332 = vadd.f32 %v2569, %v3216
      %v3333 = vadd.f32 %v2570, %v3039
      %v3334 = vadd.f32 %v2571, %v3041
      %v3335 = vadd.f32 %v2572, %v3219
      %v3336 = vadd.f32 %v2573, %v3045
      %v3337 = vadd.f32 %v2574, %v3047
      %v3338 = vadd.f32 %v2575, %v3224
      %v3339 = vadd.f32 %v2576, %v3049
      %v3340 = vadd.f32 %v2577, %v3051
      %v3341 = vadd.f32 %v2578, %v3227
      %v3342 = vadd.f32 %v2579, %v3055
      %v3343 = vadd.f32 %v2580, %v3057
      %v3344 = vadd.f32 %v2581, %v3232
      %v3345 = vadd.f32 %v2582, %v3059
      %v3346 = vadd.f32 %v2583, %v3061
      %v3347 = vadd.f32 %v2584, %v3235
      %v3348 = vadd.f32 %v2585, %v3065
      %v3349 = vadd.f32 %v2586, %v3067
      %v3350 = vadd.f32 %v2587, %v3240
      %v3351 = vadd.f32 %v2588, %v3069
      %v3352 = vadd.f32 %v2589, %v3071
      %v3353 = vadd.f32 %v2590, %v3243
      %v3354 = vadd.f32 %v2591, %v3075
      %v3355 = vadd.f32 %v2592, %v3077
      %v3356 = vadd.f32 %v2593, %v3248
      %v3357 = vadd.f32 %v2594, %v3079
      %v3358 = vadd.f32 %v2595, %v3081
      %v3359 = vadd.f32 %v2596, %v3251
      %v3360 = vadd.f32 %v2597, %v3085
      %v3361 = vadd.f32 %v2598, %v3087
      %v3362 = vadd.f32 %v2599, %v3256
      %v3363 = vadd.f32 %v2600, %v3089
      %v3364 = vadd.f32 %v2601, %v3091
      %v3365 = vadd.f32 %v2602, %v3259
      %v3366 = vadd.f32 %v2603, %v3095
      %v3367 = vadd.f32 %v2604, %v3097
      %v3368 = vadd.f32 %v2605, %v3264
      %v3369 = vadd.f32 %v2606, %v3099
      %v3370 = vadd.f32 %v2607, %v3101
      %v3371 = vadd.f32 %v2608, %v3267
      %v3372 = vadd.f32 %v2609, %v3105
      %v3373 = vadd.f32 %v2610, %v3107
      %v3374 = vadd.f32 %v2611, %v3272
      %v3375 = vadd.f32 %v2612, %v3109
      %v3376 = vadd.f32 %v2613, %v3111
      %v3377 = vadd.f32 %v2614, %v3275
      %v3378 = vadd.f32 %v2615, %v3115
      %v3379 = vadd.f32 %v2616, %v3117
      %v3380 = vadd.f32 %v2617, %v3280
      %v3381 = vadd.f32 %v2618, %v3119
      %v3382 = vadd.f32 %v2619, %v3121
      %v3383 = vadd.f32 %v2620, %v3283
      %v3384 = vadd.f32 %v2621, %v3125
      %v3385 = vadd.f32 %v2622, %v3127
      %v3386 = vadd.f32 %v2623, %v3288
      %v3387 = vadd.f32 %v2624, %v3129
      %v3388 = vadd.f32 %v2625, %v3131
      %v3389 = vadd.f32 %v2626, %v3291
      %3390 = vst [vmem:[#allocation2] sm:$0xff] %v3294
      %3391 = vst [vmem:[#allocation2 + $0x8] sm:$0xff] %v3295
      %3392 = vst.msk [vmem:[#allocation2 + $0x10] sm:$0xff] %vm461, %v3296
      %3393 = vst [vmem:[#allocation2 + $0x18] sm:$0xff] %v3297
      %3394 = vst [vmem:[#allocation2 + $0x20] sm:$0xff] %v3298
      %3395 = vst.msk [vmem:[#allocation2 + $0x28] sm:$0xff] %vm461, %v3299
      %3396 = vst [vmem:[#allocation2 + $0x30] sm:$0xff] %v3300
      %3397 = vst [vmem:[#allocation2 + $0x38] sm:$0xff] %v3301
      %3398 = vst.msk [vmem:[#allocation2 + $0x40] sm:$0xff] %vm461, %v3302
      %3399 = vst [vmem:[#allocation2 + $0x48] sm:$0xff] %v3303
      %3400 = vst [vmem:[#allocation2 + $0x50] sm:$0xff] %v3304
      %3401 = vst.msk [vmem:[#allocation2 + $0x58] sm:$0xff] %vm461, %v3305
      %3402 = vst [vmem:[#allocation2 + $0x60] sm:$0xff] %v3306
      %3403 = vst [vmem:[#allocation2 + $0x68] sm:$0xff] %v3307
      %3404 = vst.msk [vmem:[#allocation2 + $0x70] sm:$0xff] %vm461, %v3308
      %3405 = vst [vmem:[#allocation2 + $0x78] sm:$0xff] %v3309
      %3406 = vst [vmem:[#allocation2 + $0x80] sm:$0xff] %v3310
      %3407 = vst.msk [vmem:[#allocation2 + $0x88] sm:$0xff] %vm461, %v3311
      %3408 = vst [vmem:[#allocation2 + $0x90] sm:$0xff] %v3312
      %3409 = vst [vmem:[#allocation2 + $0x98] sm:$0xff] %v3313
      %3410 = vst.msk [vmem:[#allocation2 + $0xa0] sm:$0xff] %vm461, %v3314
      %3411 = vst [vmem:[#allocation2 + $0xa8] sm:$0xff] %v3315
      %3412 = vst [vmem:[#allocation2 + $0xb0] sm:$0xff] %v3316
      %3413 = vst.msk [vmem:[#allocation2 + $0xb8] sm:$0xff] %vm461, %v3317
      %3414 = vst [vmem:[#allocation2 + $0xc0] sm:$0xff] %v3318
      %3415 = vst [vmem:[#allocation2 + $0xc8] sm:$0xff] %v3319
      %3416 = vst.msk [vmem:[#allocation2 + $0xd0] sm:$0xff] %vm461, %v3320
      %3417 = vst [vmem:[#allocation2 + $0xd8] sm:$0xff] %v3321
      %3418 = vst [vmem:[#allocation2 + $0xe0] sm:$0xff] %v3322
      %3419 = vst.msk [vmem:[#allocation2 + $0xe8] sm:$0xff] %vm461, %v3323
      %3420 = vst [vmem:[#allocation2 + $0xf0] sm:$0xff] %v3324
      %3421 = vst [vmem:[#allocation2 + $0xf8] sm:$0xff] %v3325
      %3422 = vst.msk [vmem:[#allocation2 + $0x100] sm:$0xff] %vm461, %v3326
      %3423 = vst [vmem:[#allocation2 + $0x108] sm:$0xff] %v3327
      %3424 = vst [vmem:[#allocation2 + $0x110] sm:$0xff] %v3328
      %3425 = vst.msk [vmem:[#allocation2 + $0x118] sm:$0xff] %vm461, %v3329
      %3426 = vst [vmem:[#allocation2 + $0x120] sm:$0xff] %v3330
      %3427 = vst [vmem:[#allocation2 + $0x128] sm:$0xff] %v3331
      %3428 = vst.msk [vmem:[#allocation2 + $0x130] sm:$0xff] %vm461, %v3332
      %3429 = vst [vmem:[#allocation2 + $0x138] sm:$0xff] %v3333
      %3430 = vst [vmem:[#allocation2 + $0x140] sm:$0xff] %v3334
      %3431 = vst.msk [vmem:[#allocation2 + $0x148] sm:$0xff] %vm461, %v3335
      %3432 = vst [vmem:[#allocation2 + $0x150] sm:$0xff] %v3336
      %3433 = vst [vmem:[#allocation2 + $0x158] sm:$0xff] %v3337
      %3434 = vst.msk [vmem:[#allocation2 + $0x160] sm:$0xff] %vm461, %v3338
      %3435 = vst [vmem:[#allocation2 + $0x168] sm:$0xff] %v3339
      %3436 = vst [vmem:[#allocation2 + $0x170] sm:$0xff] %v3340
      %3437 = vst.msk [vmem:[#allocation2 + $0x178] sm:$0xff] %vm461, %v3341
      %3438 = vst [vmem:[#allocation2 + $0x180] sm:$0xff] %v3342
      %3439 = vst [vmem:[#allocation2 + $0x188] sm:$0xff] %v3343
      %3440 = vst.msk [vmem:[#allocation2 + $0x190] sm:$0xff] %vm461, %v3344
      %3441 = vst [vmem:[#allocation2 + $0x198] sm:$0xff] %v3345
      %3442 = vst [vmem:[#allocation2 + $0x1a0] sm:$0xff] %v3346
      %3443 = vst.msk [vmem:[#allocation2 + $0x1a8] sm:$0xff] %vm461, %v3347
      %3444 = vst [vmem:[#allocation2 + $0x1b0] sm:$0xff] %v3348
      %3445 = vst [vmem:[#allocation2 + $0x1b8] sm:$0xff] %v3349
      %3446 = vst.msk [vmem:[#allocation2 + $0x1c0] sm:$0xff] %vm461, %v3350
      %3447 = vst [vmem:[#allocation2 + $0x1c8] sm:$0xff] %v3351
      %3448 = vst [vmem:[#allocation2 + $0x1d0] sm:$0xff] %v3352
      %3449 = vst.msk [vmem:[#allocation2 + $0x1d8] sm:$0xff] %vm461, %v3353
      %3450 = vst [vmem:[#allocation2 + $0x1e0] sm:$0xff] %v3354
      %3451 = vst [vmem:[#allocation2 + $0x1e8] sm:$0xff] %v3355
      %3452 = vst.msk [vmem:[#allocation2 + $0x1f0] sm:$0xff] %vm461, %v3356
      %3453 = vst [vmem:[#allocation2 + $0x1f8] sm:$0xff] %v3357
      %3454 = vst [vmem:[#allocation2 + $0x200] sm:$0xff] %v3358
      %3455 = vst.msk [vmem:[#allocation2 + $0x208] sm:$0xff] %vm461, %v3359
      %3456 = vst [vmem:[#allocation2 + $0x210] sm:$0xff] %v3360
      %3457 = vst [vmem:[#allocation2 + $0x218] sm:$0xff] %v3361
      %3458 = vst.msk [vmem:[#allocation2 + $0x220] sm:$0xff] %vm461, %v3362
      %3459 = vst [vmem:[#allocation2 + $0x228] sm:$0xff] %v3363
      %3460 = vst [vmem:[#allocation2 + $0x230] sm:$0xff] %v3364
      %3461 = vst.msk [vmem:[#allocation2 + $0x238] sm:$0xff] %vm461, %v3365
      %3462 = vst [vmem:[#allocation2 + $0x240] sm:$0xff] %v3366
      %3463 = vst [vmem:[#allocation2 + $0x248] sm:$0xff] %v3367
      %3464 = vst.msk [vmem:[#allocation2 + $0x250] sm:$0xff] %vm461, %v3368
      %3465 = vst [vmem:[#allocation2 + $0x258] sm:$0xff] %v3369
      %3466 = vst [vmem:[#allocation2 + $0x260] sm:$0xff] %v3370
      %3467 = vst.msk [vmem:[#allocation2 + $0x268] sm:$0xff] %vm461, %v3371
      %3468 = vst [vmem:[#allocation2 + $0x270] sm:$0xff] %v3372
      %3469 = vst [vmem:[#allocation2 + $0x278] sm:$0xff] %v3373
      %3470 = vst.msk [vmem:[#allocation2 + $0x280] sm:$0xff] %vm461, %v3374
      %3471 = vst [vmem:[#allocation2 + $0x288] sm:$0xff] %v3375
      %3472 = vst [vmem:[#allocation2 + $0x290] sm:$0xff] %v3376
      %3473 = vst.msk [vmem:[#allocation2 + $0x298] sm:$0xff] %vm461, %v3377
      %3474 = vst [vmem:[#allocation2 + $0x2a0] sm:$0xff] %v3378
      %3475 = vst [vmem:[#allocation2 + $0x2a8] sm:$0xff] %v3379
      %3476 = vst.msk [vmem:[#allocation2 + $0x2b0] sm:$0xff] %vm461, %v3380
      %3477 = vst [vmem:[#allocation2 + $0x2b8] sm:$0xff] %v3381
      %3478 = vst [vmem:[#allocation2 + $0x2c0] sm:$0xff] %v3382
      %3479 = vst.msk [vmem:[#allocation2 + $0x2c8] sm:$0xff] %vm461, %v3383
      %3480 = vst [vmem:[#allocation2 + $0x2d0] sm:$0xff] %v3384
      %3481 = vst [vmem:[#allocation2 + $0x2d8] sm:$0xff] %v3385
      %3482 = vst.msk [vmem:[#allocation2 + $0x2e0] sm:$0xff] %vm461, %v3386
      %3483 = vst [vmem:[#allocation2 + $0x2e8] sm:$0xf] %v3387
      %3484 = vst [vmem:[#allocation2 + $0x2f0] sm:$0xf] %v3388
      %3485 = vst.msk [vmem:[#allocation2 + $0x2f8] sm:$0xf] %vm555, %v3389
      %v3486 = vld [vmem:[#allocation2] sm:$0xff]
      %v3487 = vld [vmem:[#allocation2 + $0x8] sm:$0xff]
      %v3488 = vld [vmem:[#allocation2 + $0x10] sm:$0xff]
      %v3489 = vld [vmem:[#allocation2 + $0x18] sm:$0xff]
      %v3490 = vld [vmem:[#allocation2 + $0x20] sm:$0xff]
      %v3491 = vld [vmem:[#allocation2 + $0x28] sm:$0xff]
      %v3492 = vld [vmem:[#allocation2 + $0x30] sm:$0xff]
      %v3493 = vld [vmem:[#allocation2 + $0x38] sm:$0xff]
      %v3494 = vld [vmem:[#allocation2 + $0x40] sm:$0xff]
      %v3495 = vld [vmem:[#allocation2 + $0x48] sm:$0xff]
      %v3496 = vld [vmem:[#allocation2 + $0x50] sm:$0xff]
      %v3497 = vld [vmem:[#allocation2 + $0x58] sm:$0xff]
      %v3498 = vld [vmem:[#allocation2 + $0x60] sm:$0xff]
      %v3499 = vld [vmem:[#allocation2 + $0x68] sm:$0xff]
      %v3500 = vld [vmem:[#allocation2 + $0x70] sm:$0xff]
      %v3501 = vld [vmem:[#allocation2 + $0x78] sm:$0xff]
      %v3502 = vld [vmem:[#allocation2 + $0x80] sm:$0xff]
      %v3503 = vld [vmem:[#allocation2 + $0x88] sm:$0xff]
      %v3504 = vld [vmem:[#allocation2 + $0x90] sm:$0xff]
      %v3505 = vld [vmem:[#allocation2 + $0x98] sm:$0xff]
      %v3506 = vld [vmem:[#allocation2 + $0xa0] sm:$0xff]
      %v3507 = vld [vmem:[#allocation2 + $0xa8] sm:$0xff]
      %v3508 = vld [vmem:[#allocation2 + $0xb0] sm:$0xff]
      %v3509 = vld [vmem:[#allocation2 + $0xb8] sm:$0xff]
      %v3510 = vld [vmem:[#allocation2 + $0xc0] sm:$0xff]
      %v3511 = vld [vmem:[#allocation2 + $0xc8] sm:$0xff]
      %v3512 = vld [vmem:[#allocation2 + $0xd0] sm:$0xff]
      %v3513 = vld [vmem:[#allocation2 + $0xd8] sm:$0xff]
      %v3514 = vld [vmem:[#allocation2 + $0xe0] sm:$0xff]
      %v3515 = vld [vmem:[#allocation2 + $0xe8] sm:$0xff]
      %v3516 = vld [vmem:[#allocation2 + $0xf0] sm:$0xff]
      %v3517 = vld [vmem:[#allocation2 + $0xf8] sm:$0xff]
      %v3518 = vld [vmem:[#allocation2 + $0x100] sm:$0xff]
      %v3519 = vld [vmem:[#allocation2 + $0x108] sm:$0xff]
      %v3520 = vld [vmem:[#allocation2 + $0x110] sm:$0xff]
      %v3521 = vld [vmem:[#allocation2 + $0x118] sm:$0xff]
      %v3522 = vld [vmem:[#allocation2 + $0x120] sm:$0xff]
      %v3523 = vld [vmem:[#allocation2 + $0x128] sm:$0xff]
      %v3524 = vld [vmem:[#allocation2 + $0x130] sm:$0xff]
      %v3525 = vld [vmem:[#allocation2 + $0x138] sm:$0xff]
      %v3526 = vld [vmem:[#allocation2 + $0x140] sm:$0xff]
      %v3527 = vld [vmem:[#allocation2 + $0x148] sm:$0xff]
      %v3528 = vld [vmem:[#allocation2 + $0x150] sm:$0xff]
      %v3529 = vld [vmem:[#allocation2 + $0x158] sm:$0xff]
      %v3530 = vld [vmem:[#allocation2 + $0x160] sm:$0xff]
      %v3531 = vld [vmem:[#allocation2 + $0x168] sm:$0xff]
      %v3532 = vld [vmem:[#allocation2 + $0x170] sm:$0xff]
      %v3533 = vld [vmem:[#allocation2 + $0x178] sm:$0xff]
      %v3534 = vld [vmem:[#allocation2 + $0x180] sm:$0xff]
      %v3535 = vld [vmem:[#allocation2 + $0x188] sm:$0xff]
      %v3536 = vld [vmem:[#allocation2 + $0x190] sm:$0xff]
      %v3537 = vld [vmem:[#allocation2 + $0x198] sm:$0xff]
      %v3538 = vld [vmem:[#allocation2 + $0x1a0] sm:$0xff]
      %v3539 = vld [vmem:[#allocation2 + $0x1a8] sm:$0xff]
      %v3540 = vld [vmem:[#allocation2 + $0x1b0] sm:$0xff]
      %v3541 = vld [vmem:[#allocation2 + $0x1b8] sm:$0xff]
      %v3542 = vld [vmem:[#allocation2 + $0x1c0] sm:$0xff]
      %v3543 = vld [vmem:[#allocation2 + $0x1c8] sm:$0xff]
      %v3544 = vld [vmem:[#allocation2 + $0x1d0] sm:$0xff]
      %v3545 = vld [vmem:[#allocation2 + $0x1d8] sm:$0xff]
      %v3546 = vld [vmem:[#allocation2 + $0x1e0] sm:$0xff]
      %v3547 = vld [vmem:[#allocation2 + $0x1e8] sm:$0xff]
      %v3548 = vld [vmem:[#allocation2 + $0x1f0] sm:$0xff]
      %v3549 = vld [vmem:[#allocation2 + $0x1f8] sm:$0xff]
      %v3550 = vld [vmem:[#allocation2 + $0x200] sm:$0xff]
      %v3551 = vld [vmem:[#allocation2 + $0x208] sm:$0xff]
      %v3552 = vld [vmem:[#allocation2 + $0x210] sm:$0xff]
      %v3553 = vld [vmem:[#allocation2 + $0x218] sm:$0xff]
      %v3554 = vld [vmem:[#allocation2 + $0x220] sm:$0xff]
      %v3555 = vld [vmem:[#allocation2 + $0x228] sm:$0xff]
      %v3556 = vld [vmem:[#allocation2 + $0x230] sm:$0xff]
      %v3557 = vld [vmem:[#allocation2 + $0x238] sm:$0xff]
      %v3558 = vld [vmem:[#allocation2 + $0x240] sm:$0xff]
      %v3559 = vld [vmem:[#allocation2 + $0x248] sm:$0xff]
      %v3560 = vld [vmem:[#allocation2 + $0x250] sm:$0xff]
      %v3561 = vld [vmem:[#allocation2 + $0x258] sm:$0xff]
      %v3562 = vld [vmem:[#allocation2 + $0x260] sm:$0xff]
      %v3563 = vld [vmem:[#allocation2 + $0x268] sm:$0xff]
      %v3564 = vld [vmem:[#allocation2 + $0x270] sm:$0xff]
      %v3565 = vld [vmem:[#allocation2 + $0x278] sm:$0xff]
      %v3566 = vld [vmem:[#allocation2 + $0x280] sm:$0xff]
      %v3567 = vld [vmem:[#allocation2 + $0x288] sm:$0xff]
      %v3568 = vld [vmem:[#allocation2 + $0x290] sm:$0xff]
      %v3569 = vld [vmem:[#allocation2 + $0x298] sm:$0xff]
      %v3570 = vld [vmem:[#allocation2 + $0x2a0] sm:$0xff]
      %v3571 = vld [vmem:[#allocation2 + $0x2a8] sm:$0xff]
      %v3572 = vld [vmem:[#allocation2 + $0x2b0] sm:$0xff]
      %v3573 = vld [vmem:[#allocation2 + $0x2b8] sm:$0xff]
      %v3574 = vld [vmem:[#allocation2 + $0x2c0] sm:$0xff]
      %v3575 = vld [vmem:[#allocation2 + $0x2c8] sm:$0xff]
      %v3576 = vld [vmem:[#allocation2 + $0x2d0] sm:$0xff]
      %v3577 = vld [vmem:[#allocation2 + $0x2d8] sm:$0xff]
      %v3578 = vld [vmem:[#allocation2 + $0x2e0] sm:$0xff]
      %v3579 = vld [vmem:[#allocation2 + $0x2e8] sm:$0xf]
      %v3580 = vld [vmem:[#allocation2 + $0x2f0] sm:$0xf]
      %v3581 = vld [vmem:[#allocation2 + $0x2f8] sm:$0xf]
      %v3582 = vld [vmem:[%s435] sm:$0xe]
      %v3583 = vld [vmem:[%s435 + $0x4] sm:$0xf]
      %v3584 = vld [vmem:[%s435 + $0x8] sm:$0xf]
      %v3585 = vld [vmem:[%s435 + $0xc] sm:$0xf]
      %v3586 = vld [vmem:[%s435 + $0x10] sm:$0xf]
      %v3587 = vld [vmem:[%s435 + $0x14] sm:$0xf]
      %v3588 = vld [vmem:[%s435 + $0x18] sm:$0xf]
      %v3589 = vld [vmem:[%s435 + $0x1c] sm:$0xf]
      %v3590 = vld [vmem:[%s435 + $0x20] sm:$0xf]
      %v3591 = vld [vmem:[%s435 + $0x24] sm:$0xf]
      %v3592 = vld [vmem:[%s435 + $0x28] sm:$0xf]
      %v3593 = vld [vmem:[%s435 + $0x2c] sm:$0xf]
      %v3594 = vld [vmem:[%s435 + $0x30] sm:$0xf]
      %v3595 = vld [vmem:[%s435 + $0x34] sm:$0xf]
      %v3596 = vld [vmem:[%s435 + $0x38] sm:$0xf]
      %v3597 = vld [vmem:[%s435 + $0x3c] sm:$0xf]
      %v3598 = vld [vmem:[%s435 + $0x40] sm:$0xf]
      %v3599 = vld [vmem:[%s435 + $0x44] sm:$0xf]
      %v3600 = vld [vmem:[%s435 + $0x48] sm:$0xf]
      %v3601 = vld [vmem:[%s435 + $0x4c] sm:$0xf]
      %v3602 = vld [vmem:[%s435 + $0x50] sm:$0xf]
      %v3603 = vld [vmem:[%s435 + $0x54] sm:$0xf]
      %v3604 = vld [vmem:[%s435 + $0x58] sm:$0xf]
      %v3605 = vld [vmem:[%s435 + $0x5c] sm:$0xf]
      %v3606 = vld [vmem:[%s435 + $0x60] sm:$0xf]
      %v3607 = vld [vmem:[%s435 + $0x64] sm:$0xf]
      %v3608 = vld [vmem:[%s435 + $0x68] sm:$0xf]
      %v3609 = vld [vmem:[%s435 + $0x6c] sm:$0xf]
      %v3610 = vld [vmem:[%s435 + $0x70] sm:$0xf]
      %v3611 = vld [vmem:[%s435 + $0x74] sm:$0xf]
      %v3612 = vld [vmem:[%s435 + $0x78] sm:$0xf]
      %v3613 = vld [vmem:[%s435 + $0x7c] sm:$0xf]
      %s3614 = scalar_lea.vmem %s1, 432
      %v3615 = vld [vmem:[%s3614] sm:$0xff]
      %v3616 = vld [vmem:[%s3614 + $0x8] sm:$0xf]
      %v3617 = vld [vmem:[%s3614 + $0xc] sm:$0xff]
      %v3618 = vld [vmem:[%s3614 + $0x14] sm:$0xf]
      %v3619 = vld [vmem:[%s3614 + $0x18] sm:$0xff]
      %v3620 = vld [vmem:[%s3614 + $0x20] sm:$0xf]
      %v3621 = vld [vmem:[%s3614 + $0x24] sm:$0xff]
      %v3622 = vld [vmem:[%s3614 + $0x2c] sm:$0xf]
      %v3623 = vld [vmem:[%s3614 + $0x30] sm:$0xff]
      %v3624 = vld [vmem:[%s3614 + $0x38] sm:$0xf]
      %v3625 = vld [vmem:[%s3614 + $0x3c] sm:$0xff]
      %v3626 = vld [vmem:[%s3614 + $0x44] sm:$0xf]
      %v3627 = vld [vmem:[%s3614 + $0x48] sm:$0xff]
      %v3628 = vld [vmem:[%s3614 + $0x50] sm:$0xf]
      %v3629 = vld [vmem:[%s3614 + $0x54] sm:$0xff]
      %v3630 = vld [vmem:[%s3614 + $0x5c] sm:$0xf]
      %v3631 = vld [vmem:[%s3614 + $0x60] sm:$0xff]
      %v3632 = vld [vmem:[%s3614 + $0x68] sm:$0xf]
      %v3633 = vld [vmem:[%s3614 + $0x6c] sm:$0xff]
      %v3634 = vld [vmem:[%s3614 + $0x74] sm:$0xf]
      %v3635 = vld [vmem:[%s3614 + $0x78] sm:$0xff]
      %v3636 = vld [vmem:[%s3614 + $0x80] sm:$0xf]
      %v3637 = vld [vmem:[%s3614 + $0x84] sm:$0xff]
      %v3638 = vld [vmem:[%s3614 + $0x8c] sm:$0xf]
      %v3671 = vunpack.c.l.b16 %v3582
      %v3672 = vunpack.c.l.b16 %v3583
      %v3673 = vunpack.c.l.b16 %v3584
      %v3674 = vunpack.c.l.b16 %v3585
      %v3675 = vunpack.c.l.b16 %v3586
      %v3676 = vunpack.c.l.b16 %v3587
      %v3677 = vunpack.c.l.b16 %v3588
      %v3678 = vunpack.c.l.b16 %v3589
      %v3679 = vunpack.c.l.b16 %v3590
      %v3680 = vunpack.c.l.b16 %v3591
      %v3681 = vunpack.c.l.b16 %v3592
      %v3682 = vunpack.c.l.b16 %v3593
      %v3683 = vunpack.c.l.b16 %v3594
      %v3684 = vunpack.c.l.b16 %v3595
      %v3685 = vunpack.c.l.b16 %v3596
      %v3686 = vunpack.c.l.b16 %v3597
      %v3687 = vunpack.c.l.b16 %v3598
      %v3688 = vunpack.c.l.b16 %v3599
      %v3689 = vunpack.c.l.b16 %v3600
      %v3690 = vunpack.c.l.b16 %v3601
      %v3691 = vunpack.c.l.b16 %v3602
      %v3692 = vunpack.c.l.b16 %v3603
      %v3693 = vunpack.c.l.b16 %v3604
      %v3694 = vunpack.c.l.b16 %v3605
      %v3695 = vunpack.c.l.b16 %v3606
      %v3696 = vunpack.c.l.b16 %v3607
      %v3697 = vunpack.c.l.b16 %v3608
      %v3698 = vunpack.c.l.b16 %v3609
      %v3699 = vunpack.c.l.b16 %v3610
      %v3700 = vunpack.c.l.b16 %v3611
      %v3701 = vunpack.c.l.b16 %v3612
      %v3702 = vunpack.c.l.b16 %v3613
      %v3703 = vpack.c.b16 %v3672, %v3671
      %v3704 = vpack.c.b16 %v3674, %v3673
      %v3705 = vpack.c.b16 %v3676, %v3675
      %v3706 = vpack.c.b16 %v3678, %v3677
      %v3707 = vpack.c.b16 %v3680, %v3679
      %v3708 = vpack.c.b16 %v3682, %v3681
      %v3709 = vpack.c.b16 %v3684, %v3683
      %v3710 = vpack.c.b16 %v3686, %v3685
      %v3711 = vpack.c.b16 %v3688, %v3687
      %v3712 = vpack.c.b16 %v3690, %v3689
      %v3713 = vpack.c.b16 %v3692, %v3691
      %v3714 = vpack.c.b16 %v3694, %v3693
      %v3715 = vpack.c.b16 %v3696, %v3695
      %v3716 = vpack.c.b16 %v3698, %v3697
      %v3717 = vpack.c.b16 %v3700, %v3699
      %v3718 = vpack.c.b16 %v3702, %v3701
      %vm3719 = vsmask.f32 6400
      %v3721 = vshrl.u32 %v3703, 16
      %v3723 = vrot.slane %v3721, 1
      %v3724 = vshll.u32 %v3703, 16
      %v3726 = vrot.slane %v3724, 2
      %v3727 = vor.u32 %v3723, %v3726
      %v3729 = vshrl.u32 %v3704, 16
      %v3731 = vrot.slane %v3729, 1
      %v3732 = vshll.u32 %v3704, 16
      %v3734 = vrot.slane %v3732, 2
      %v3735 = vor.u32 %v3731, %v3734
      %v3736 = vsel %vm3719, %v3727, %v3735
      %v3738 = vshrl.u32 %v3705, 16
      %v3740 = vrot.slane %v3738, 1
      %v3741 = vshll.u32 %v3705, 16
      %v3743 = vrot.slane %v3741, 2
      %v3744 = vor.u32 %v3740, %v3743
      %v3745 = vsel %vm3719, %v3735, %v3744
      %v3747 = vshrl.u32 %v3706, 16
      %v3749 = vrot.slane %v3747, 1
      %v3750 = vshll.u32 %v3706, 16
      %v3752 = vrot.slane %v3750, 2
      %v3753 = vor.u32 %v3749, %v3752
      %v3754 = vsel %vm3719, %v3744, %v3753
      %v3756 = vshrl.u32 %v3707, 16
      %v3758 = vrot.slane %v3756, 1
      %v3759 = vshll.u32 %v3707, 16
      %v3761 = vrot.slane %v3759, 2
      %v3762 = vor.u32 %v3758, %v3761
      %v3763 = vsel %vm3719, %v3753, %v3762
      %v3765 = vshrl.u32 %v3708, 16
      %v3767 = vrot.slane %v3765, 1
      %v3768 = vshll.u32 %v3708, 16
      %v3770 = vrot.slane %v3768, 2
      %v3771 = vor.u32 %v3767, %v3770
      %v3772 = vsel %vm3719, %v3762, %v3771
      %v3774 = vshrl.u32 %v3709, 16
      %v3776 = vrot.slane %v3774, 1
      %v3777 = vshll.u32 %v3709, 16
      %v3779 = vrot.slane %v3777, 2
      %v3780 = vor.u32 %v3776, %v3779
      %v3781 = vsel %vm3719, %v3771, %v3780
      %v3783 = vshrl.u32 %v3710, 16
      %v3785 = vrot.slane %v3783, 1
      %v3786 = vshll.u32 %v3710, 16
      %v3788 = vrot.slane %v3786, 2
      %v3789 = vor.u32 %v3785, %v3788
      %v3790 = vsel %vm3719, %v3780, %v3789
      %v3792 = vshrl.u32 %v3711, 16
      %v3794 = vrot.slane %v3792, 1
      %v3795 = vshll.u32 %v3711, 16
      %v3797 = vrot.slane %v3795, 2
      %v3798 = vor.u32 %v3794, %v3797
      %v3799 = vsel %vm3719, %v3789, %v3798
      %v3801 = vshrl.u32 %v3712, 16
      %v3803 = vrot.slane %v3801, 1
      %v3804 = vshll.u32 %v3712, 16
      %v3806 = vrot.slane %v3804, 2
      %v3807 = vor.u32 %v3803, %v3806
      %v3808 = vsel %vm3719, %v3798, %v3807
      %v3810 = vshrl.u32 %v3713, 16
      %v3812 = vrot.slane %v3810, 1
      %v3813 = vshll.u32 %v3713, 16
      %v3815 = vrot.slane %v3813, 2
      %v3816 = vor.u32 %v3812, %v3815
      %v3817 = vsel %vm3719, %v3807, %v3816
      %v3819 = vshrl.u32 %v3714, 16
      %v3821 = vrot.slane %v3819, 1
      %v3822 = vshll.u32 %v3714, 16
      %v3824 = vrot.slane %v3822, 2
      %v3825 = vor.u32 %v3821, %v3824
      %v3826 = vsel %vm3719, %v3816, %v3825
      %v3828 = vshrl.u32 %v3715, 16
      %v3830 = vrot.slane %v3828, 1
      %v3831 = vshll.u32 %v3715, 16
      %v3833 = vrot.slane %v3831, 2
      %v3834 = vor.u32 %v3830, %v3833
      %v3835 = vsel %vm3719, %v3825, %v3834
      %v3837 = vshrl.u32 %v3716, 16
      %v3839 = vrot.slane %v3837, 1
      %v3840 = vshll.u32 %v3716, 16
      %v3842 = vrot.slane %v3840, 2
      %v3843 = vor.u32 %v3839, %v3842
      %v3844 = vsel %vm3719, %v3834, %v3843
      %v3846 = vshrl.u32 %v3717, 16
      %v3848 = vrot.slane %v3846, 1
      %v3849 = vshll.u32 %v3717, 16
      %v3851 = vrot.slane %v3849, 2
      %v3852 = vor.u32 %v3848, %v3851
      %v3853 = vsel %vm3719, %v3843, %v3852
      %v3855 = vshrl.u32 %v3718, 16
      %v3857 = vrot.slane %v3855, 1
      %v3858 = vshll.u32 %v3718, 16
      %v3860 = vrot.slane %v3858, 2
      %v3861 = vor.u32 %v3857, %v3860
      %v3862 = vsel %vm3719, %v3852, %v3861
      %v3887 = vunpack.c.l.b16 %v3615
      %v3888 = vunpack.c.h.b16 %v3615
      %v3889 = vunpack.c.l.b16 %v3616
      %v3890 = vunpack.c.l.b16 %v3617
      %v3891 = vunpack.c.h.b16 %v3617
      %v3892 = vunpack.c.l.b16 %v3618
      %v3893 = vunpack.c.l.b16 %v3619
      %v3894 = vunpack.c.h.b16 %v3619
      %v3895 = vunpack.c.l.b16 %v3620
      %v3896 = vunpack.c.l.b16 %v3621
      %v3897 = vunpack.c.h.b16 %v3621
      %v3898 = vunpack.c.l.b16 %v3622
      %v3899 = vunpack.c.l.b16 %v3623
      %v3900 = vunpack.c.h.b16 %v3623
      %v3901 = vunpack.c.l.b16 %v3624
      %v3902 = vunpack.c.l.b16 %v3625
      %v3903 = vunpack.c.h.b16 %v3625
      %v3904 = vunpack.c.l.b16 %v3626
      %v3905 = vunpack.c.l.b16 %v3627
      %v3906 = vunpack.c.h.b16 %v3627
      %v3907 = vunpack.c.l.b16 %v3628
      %v3908 = vunpack.c.l.b16 %v3629
      %v3909 = vunpack.c.h.b16 %v3629
      %v3910 = vunpack.c.l.b16 %v3630
      %v3911 = vunpack.c.l.b16 %v3631
      %v3912 = vunpack.c.h.b16 %v3631
      %v3913 = vunpack.c.l.b16 %v3632
      %v3914 = vunpack.c.l.b16 %v3633
      %v3915 = vunpack.c.h.b16 %v3633
      %v3916 = vunpack.c.l.b16 %v3634
      %v3917 = vunpack.c.l.b16 %v3635
      %v3918 = vunpack.c.h.b16 %v3635
      %v3919 = vunpack.c.l.b16 %v3636
      %v3920 = vunpack.c.l.b16 %v3637
      %v3921 = vunpack.c.h.b16 %v3637
      %v3922 = vunpack.c.l.b16 %v3638
      %v3923 = vpack.c.b16 %v3890, %v3887
      %v3924 = vpack.c.b16 %v3891, %v3888
      %v3925 = vpack.c.b16 %v3892, %v3889
      %v3926 = vpack.c.b16 %v3896, %v3893
      %v3927 = vpack.c.b16 %v3897, %v3894
      %v3928 = vpack.c.b16 %v3898, %v3895
      %v3929 = vpack.c.b16 %v3902, %v3899
      %v3930 = vpack.c.b16 %v3903, %v3900
      %v3931 = vpack.c.b16 %v3904, %v3901
      %v3932 = vpack.c.b16 %v3908, %v3905
      %v3933 = vpack.c.b16 %v3909, %v3906
      %v3934 = vpack.c.b16 %v3910, %v3907
      %v3935 = vpack.c.b16 %v3914, %v3911
      %v3936 = vpack.c.b16 %v3915, %v3912
      %v3937 = vpack.c.b16 %v3916, %v3913
      %v3938 = vpack.c.b16 %v3920, %v3917
      %v3939 = vpack.c.b16 %v3921, %v3918
      %v3940 = vpack.c.b16 %v3922, %v3919
      %v3960 = vsel %vm885, %v3736, 0
      %v3963 = vsel %vm885, %v3745, 0
      %v3966 = vsel %vm885, %v3754, 0
      %v3969 = vsel %vm885, %v3763, 0
      %v3972 = vsel %vm885, %v3772, 0
      %v3975 = vsel %vm885, %v3781, 0
      %v3978 = vsel %vm885, %v3790, 0
      %v3981 = vsel %vm885, %v3799, 0
      %v3984 = vsel %vm885, %v3808, 0
      %v3987 = vsel %vm885, %v3817, 0
      %v3990 = vsel %vm885, %v3826, 0
      %v3993 = vsel %vm885, %v3835, 0
      %v3996 = vsel %vm885, %v3844, 0
      %v3999 = vsel %vm885, %v3853, 0
      %v4002 = vsel %vm885, %v3862, 0
      %v4005 = vsel %vm885, %v3861, 0
      %4007 = vmatprep.subr.bf16.mxu0 %v3924
      %4008 = vmatpush1.bf16.msra.mxu0 %v3923
      %4009 = vmatprep.subr.bf16.mxu0 %v3927
      %4010 = vmatpush1.bf16.msra.mxu0 %v3926
      %4011 = vmatprep.subr.bf16.mxu0 %v3930
      %4012 = vmatpush1.bf16.msra.mxu0 %v3929
      %4013 = vmatprep.subr.bf16.mxu0 %v3933
      %4014 = vmatpush1.bf16.msra.mxu0 %v3932
      %4015 = vmatprep.subr.bf16.mxu0 %v3936
      %4016 = vmatpush1.bf16.msra.mxu0 %v3935
      %4017 = vmatprep.subr.bf16.mxu0 %v3939
      %4018 = vmatpush1.bf16.msra.mxu0 %v3938
      %4019 = vmatprep.subr.bf16.mxu0 0
      %4020 = vmatpush1.bf16.msra.mxu0 0
      %4021 = vmatprep.subr.bf16.mxu0 0
      %4022 = vmatpush1.bf16.msra.mxu0 0
      %4023 = vmatprep.subr.bf16.mxu0 0
      %4024 = vmatpush1.bf16.msra.mxu0 0
      %4025 = vmatprep.subr.bf16.mxu0 0
      %4026 = vmatpush1.bf16.msra.mxu0 0
      %4027 = vmatprep.subr.bf16.mxu0 0
      %4028 = vmatpush1.bf16.msra.mxu0 0
      %4029 = vmatprep.subr.bf16.mxu0 0
      %4030 = vmatpush1.bf16.msra.mxu0 0
      %4031 = vmatprep.subr.bf16.mxu0 0
      %4032 = vmatpush1.bf16.msra.mxu0 0
      %4033 = vmatprep.subr.bf16.mxu0 0
      %4034 = vmatpush1.bf16.msra.mxu0 0
      %4035 = vmatprep.subr.bf16.mxu0 0
      %4036 = vmatpush1.bf16.msra.mxu0 0
      %4037 = vmatprep.subr.bf16.mxu0 0
      %4038 = vmatpush1.bf16.msra.mxu0 0
      %4039 = vmatprep.mubr.bf16.mxu0 0
      %4040 = vmatmul.mubr.bf16.gmra.mrb[0].mxu0 %v3960
      %v4041 = vpop.f32.mrb[0].mxu0
      %v4042 = vadd.f32 0.0, %v4041
      %v4043 = vpop.f32.mrb[0].mxu0
      %v4044 = vadd.f32 0.0, %v4043
      %v4045 = vpop.f32.mrb[0].mxu0
      %v4046 = vadd.f32 0.0, %v4045
      %v4047 = vpop.f32.mrb[0].mxu0
      %v4048 = vadd.f32 0.0, %v4047
      %4049 = vmatprep.mubr.bf16.mxu0 0
      %4050 = vmatmul.mubr.bf16.gmra.mrb[0].mxu0 %v3963
      %v4051 = vpop.f32.mrb[0].mxu0
      %v4052 = vadd.f32 0.0, %v4051
      %v4053 = vpop.f32.mrb[0].mxu0
      %v4054 = vadd.f32 0.0, %v4053
      %v4055 = vpop.f32.mrb[0].mxu0
      %v4056 = vadd.f32 0.0, %v4055
      %v4057 = vpop.f32.mrb[0].mxu0
      %v4058 = vadd.f32 0.0, %v4057
      %4059 = vmatprep.mubr.bf16.mxu0 0
      %4060 = vmatmul.mubr.bf16.gmra.mrb[0].mxu0 %v3966
      %v4061 = vpop.f32.mrb[0].mxu0
      %v4062 = vadd.f32 0.0, %v4061
      %v4063 = vpop.f32.mrb[0].mxu0
      %v4064 = vadd.f32 0.0, %v4063
      %v4065 = vpop.f32.mrb[0].mxu0
      %v4066 = vadd.f32 0.0, %v4065
      %v4067 = vpop.f32.mrb[0].mxu0
      %v4068 = vadd.f32 0.0, %v4067
      %4069 = vmatprep.mubr.bf16.mxu0 0
      %4070 = vmatmul.mubr.bf16.gmra.mrb[0].mxu0 %v3969
      %v4071 = vpop.f32.mrb[0].mxu0
      %v4072 = vadd.f32 0.0, %v4071
      %v4073 = vpop.f32.mrb[0].mxu0
      %v4074 = vadd.f32 0.0, %v4073
      %v4075 = vpop.f32.mrb[0].mxu0
      %v4076 = vadd.f32 0.0, %v4075
      %v4077 = vpop.f32.mrb[0].mxu0
      %v4078 = vadd.f32 0.0, %v4077
      %4079 = vmatprep.mubr.bf16.mxu0 0
      %4080 = vmatmul.mubr.bf16.gmra.mrb[0].mxu0 %v3972
      %v4081 = vpop.f32.mrb[0].mxu0
      %v4082 = vadd.f32 0.0, %v4081
      %v4083 = vpop.f32.mrb[0].mxu0
      %v4084 = vadd.f32 0.0, %v4083
      %v4085 = vpop.f32.mrb[0].mxu0
      %v4086 = vadd.f32 0.0, %v4085
      %v4087 = vpop.f32.mrb[0].mxu0
      %v4088 = vadd.f32 0.0, %v4087
      %4089 = vmatprep.mubr.bf16.mxu0 0
      %4090 = vmatmul.mubr.bf16.gmra.mrb[0].mxu0 %v3975
      %v4091 = vpop.f32.mrb[0].mxu0
      %v4092 = vadd.f32 0.0, %v4091
      %v4093 = vpop.f32.mrb[0].mxu0
      %v4094 = vadd.f32 0.0, %v4093
      %v4095 = vpop.f32.mrb[0].mxu0
      %v4096 = vadd.f32 0.0, %v4095
      %v4097 = vpop.f32.mrb[0].mxu0
      %v4098 = vadd.f32 0.0, %v4097
      %4099 = vmatprep.mubr.bf16.mxu0 0
      %4100 = vmatmul.mubr.bf16.gmra.mrb[0].mxu0 %v3978
      %v4101 = vpop.f32.mrb[0].mxu0
      %v4102 = vadd.f32 0.0, %v4101
      %v4103 = vpop.f32.mrb[0].mxu0
      %v4104 = vadd.f32 0.0, %v4103
      %v4105 = vpop.f32.mrb[0].mxu0
      %v4106 = vadd.f32 0.0, %v4105
      %v4107 = vpop.f32.mrb[0].mxu0
      %v4108 = vadd.f32 0.0, %v4107
      %4109 = vmatprep.mubr.bf16.mxu0 0
      %4110 = vmatmul.mubr.bf16.gmra.mrb[0].mxu0 %v3981
      %v4111 = vpop.f32.mrb[0].mxu0
      %v4112 = vadd.f32 0.0, %v4111
      %v4113 = vpop.f32.mrb[0].mxu0
      %v4114 = vadd.f32 0.0, %v4113
      %v4115 = vpop.f32.mrb[0].mxu0
      %v4116 = vadd.f32 0.0, %v4115
      %v4117 = vpop.f32.mrb[0].mxu0
      %v4118 = vadd.f32 0.0, %v4117
      %4119 = vmatprep.mubr.bf16.mxu0 0
      %4120 = vmatmul.mubr.bf16.gmra.mrb[0].mxu0 %v3984
      %v4121 = vpop.f32.mrb[0].mxu0
      %v4122 = vadd.f32 0.0, %v4121
      %v4123 = vpop.f32.mrb[0].mxu0
      %v4124 = vadd.f32 0.0, %v4123
      %v4125 = vpop.f32.mrb[0].mxu0
      %v4126 = vadd.f32 0.0, %v4125
      %v4127 = vpop.f32.mrb[0].mxu0
      %v4128 = vadd.f32 0.0, %v4127
      %4129 = vmatprep.mubr.bf16.mxu0 0
      %4130 = vmatmul.mubr.bf16.gmra.mrb[0].mxu0 %v3987
      %v4131 = vpop.f32.mrb[0].mxu0
      %v4132 = vadd.f32 0.0, %v4131
      %v4133 = vpop.f32.mrb[0].mxu0
      %v4134 = vadd.f32 0.0, %v4133
      %v4135 = vpop.f32.mrb[0].mxu0
      %v4136 = vadd.f32 0.0, %v4135
      %v4137 = vpop.f32.mrb[0].mxu0
      %v4138 = vadd.f32 0.0, %v4137
      %4139 = vmatprep.mubr.bf16.mxu0 0
      %4140 = vmatmul.mubr.bf16.gmra.mrb[0].mxu0 %v3990
      %v4141 = vpop.f32.mrb[0].mxu0
      %v4142 = vadd.f32 0.0, %v4141
      %v4143 = vpop.f32.mrb[0].mxu0
      %v4144 = vadd.f32 0.0, %v4143
      %v4145 = vpop.f32.mrb[0].mxu0
      %v4146 = vadd.f32 0.0, %v4145
      %v4147 = vpop.f32.mrb[0].mxu0
      %v4148 = vadd.f32 0.0, %v4147
      %4149 = vmatprep.mubr.bf16.mxu0 0
      %4150 = vmatmul.mubr.bf16.gmra.mrb[0].mxu0 %v3993
      %v4151 = vpop.f32.mrb[0].mxu0
      %v4152 = vadd.f32 0.0, %v4151
      %v4153 = vpop.f32.mrb[0].mxu0
      %v4154 = vadd.f32 0.0, %v4153
      %v4155 = vpop.f32.mrb[0].mxu0
      %v4156 = vadd.f32 0.0, %v4155
      %v4157 = vpop.f32.mrb[0].mxu0
      %v4158 = vadd.f32 0.0, %v4157
      %4159 = vmatprep.mubr.bf16.mxu0 0
      %4160 = vmatmul.mubr.bf16.gmra.mrb[0].mxu0 %v3996
      %v4161 = vpop.f32.mrb[0].mxu0
      %v4162 = vadd.f32 0.0, %v4161
      %v4163 = vpop.f32.mrb[0].mxu0
      %v4164 = vadd.f32 0.0, %v4163
      %v4165 = vpop.f32.mrb[0].mxu0
      %v4166 = vadd.f32 0.0, %v4165
      %v4167 = vpop.f32.mrb[0].mxu0
      %v4168 = vadd.f32 0.0, %v4167
      %4169 = vmatprep.mubr.bf16.mxu0 0
      %4170 = vmatmul.mubr.bf16.gmra.mrb[0].mxu0 %v3999
      %v4171 = vpop.f32.mrb[0].mxu0
      %v4172 = vadd.f32 0.0, %v4171
      %v4173 = vpop.f32.mrb[0].mxu0
      %v4174 = vadd.f32 0.0, %v4173
      %v4175 = vpop.f32.mrb[0].mxu0
      %v4176 = vadd.f32 0.0, %v4175
      %v4177 = vpop.f32.mrb[0].mxu0
      %v4178 = vadd.f32 0.0, %v4177
      %4179 = vmatprep.mubr.bf16.mxu0 0
      %4180 = vmatmul.mubr.bf16.gmra.mrb[0].mxu0 %v4002
      %v4181 = vpop.f32.mrb[0].mxu0
      %v4182 = vadd.f32 0.0, %v4181
      %v4183 = vpop.f32.mrb[0].mxu0
      %v4184 = vadd.f32 0.0, %v4183
      %v4185 = vpop.f32.mrb[0].mxu0
      %v4186 = vadd.f32 0.0, %v4185
      %v4187 = vpop.f32.mrb[0].mxu0
      %v4188 = vadd.f32 0.0, %v4187
      %4189 = vmatprep.mubr.bf16.mxu0 0
      %4190 = vmatmul.mubr.bf16.gmra.mrb[0].mxu0 %v4005
      %v4191 = vpop.f32.mrb[0].mxu0
      %v4192 = vadd.f32 0.0, %v4191
      %v4193 = vpop.f32.mrb[0].mxu0
      %v4194 = vadd.f32 0.0, %v4193
      %v4195 = vpop.f32.mrb[0].mxu0
      %v4196 = vadd.f32 0.0, %v4195
      %v4197 = vpop.f32.mrb[0].mxu0
      %v4198 = vadd.f32 0.0, %v4197
      %4199 = vdwg.mxu0
      %4200 = vmatprep.subr.bf16.mxu0 0
      %4201 = vmatpush1.bf16.msra.mxu0 %v3925
      %4202 = vmatprep.subr.bf16.mxu0 0
      %4203 = vmatpush1.bf16.msra.mxu0 %v3928
      %4204 = vmatprep.subr.bf16.mxu0 0
      %4205 = vmatpush1.bf16.msra.mxu0 %v3931
      %4206 = vmatprep.subr.bf16.mxu0 0
      %4207 = vmatpush1.bf16.msra.mxu0 %v3934
      %4208 = vmatprep.subr.bf16.mxu0 0
      %4209 = vmatpush1.bf16.msra.mxu0 %v3937
      %4210 = vmatprep.subr.bf16.mxu0 0
      %4211 = vmatpush1.bf16.msra.mxu0 %v3940
      %4212 = vmatprep.subr.bf16.mxu0 0
      %4213 = vmatpush1.bf16.msra.mxu0 0
      %4214 = vmatprep.subr.bf16.mxu0 0
      %4215 = vmatpush1.bf16.msra.mxu0 0
      %4216 = vmatprep.subr.bf16.mxu0 0
      %4217 = vmatpush1.bf16.msra.mxu0 0
      %4218 = vmatprep.subr.bf16.mxu0 0
      %4219 = vmatpush1.bf16.msra.mxu0 0
      %4220 = vmatprep.subr.bf16.mxu0 0
      %4221 = vmatpush1.bf16.msra.mxu0 0
      %4222 = vmatprep.subr.bf16.mxu0 0
      %4223 = vmatpush1.bf16.msra.mxu0 0
      %4224 = vmatprep.subr.bf16.mxu0 0
      %4225 = vmatpush1.bf16.msra.mxu0 0
      %4226 = vmatprep.subr.bf16.mxu0 0
      %4227 = vmatpush1.bf16.msra.mxu0 0
      %4228 = vmatprep.subr.bf16.mxu0 0
      %4229 = vmatpush1.bf16.msra.mxu0 0
      %4230 = vmatprep.subr.bf16.mxu0 0
      %4231 = vmatpush1.bf16.msra.mxu0 0
      %4232 = vmatprep.mubr.bf16.mxu0 0
      %4233 = vmatmul.mubr.bf16.gmra.mrb[0].mxu0 %v3960
      %v4234 = vpop.f32.mrb[0].mxu0
      %v4235 = vadd.f32 0.0, %v4234
      %v4236 = vpop.f32.mrb[0].mxu0
      %v4237 = vpop.f32.mrb[0].mxu0
      %v4238 = vadd.f32 0.0, %v4237
      %v4239 = vpop.f32.mrb[0].mxu0
      %4240 = vmatprep.mubr.bf16.mxu0 0
      %4241 = vmatmul.mubr.bf16.gmra.mrb[0].mxu0 %v3963
      %v4242 = vpop.f32.mrb[0].mxu0
      %v4243 = vadd.f32 0.0, %v4242
      %v4244 = vpop.f32.mrb[0].mxu0
      %v4245 = vpop.f32.mrb[0].mxu0
      %v4246 = vadd.f32 0.0, %v4245
      %v4247 = vpop.f32.mrb[0].mxu0
      %4248 = vmatprep.mubr.bf16.mxu0 0
      %4249 = vmatmul.mubr.bf16.gmra.mrb[0].mxu0 %v3966
      %v4250 = vpop.f32.mrb[0].mxu0
      %v4251 = vadd.f32 0.0, %v4250
      %v4252 = vpop.f32.mrb[0].mxu0
      %v4253 = vpop.f32.mrb[0].mxu0
      %v4254 = vadd.f32 0.0, %v4253
      %v4255 = vpop.f32.mrb[0].mxu0
      %4256 = vmatprep.mubr.bf16.mxu0 0
      %4257 = vmatmul.mubr.bf16.gmra.mrb[0].mxu0 %v3969
      %v4258 = vpop.f32.mrb[0].mxu0
      %v4259 = vadd.f32 0.0, %v4258
      %v4260 = vpop.f32.mrb[0].mxu0
      %v4261 = vpop.f32.mrb[0].mxu0
      %v4262 = vadd.f32 0.0, %v4261
      %v4263 = vpop.f32.mrb[0].mxu0
      %4264 = vmatprep.mubr.bf16.mxu0 0
      %4265 = vmatmul.mubr.bf16.gmra.mrb[0].mxu0 %v3972
      %v4266 = vpop.f32.mrb[0].mxu0
      %v4267 = vadd.f32 0.0, %v4266
      %v4268 = vpop.f32.mrb[0].mxu0
      %v4269 = vpop.f32.mrb[0].mxu0
      %v4270 = vadd.f32 0.0, %v4269
      %v4271 = vpop.f32.mrb[0].mxu0
      %4272 = vmatprep.mubr.bf16.mxu0 0
      %4273 = vmatmul.mubr.bf16.gmra.mrb[0].mxu0 %v3975
      %v4274 = vpop.f32.mrb[0].mxu0
      %v4275 = vadd.f32 0.0, %v4274
      %v4276 = vpop.f32.mrb[0].mxu0
      %v4277 = vpop.f32.mrb[0].mxu0
      %v4278 = vadd.f32 0.0, %v4277
      %v4279 = vpop.f32.mrb[0].mxu0
      %4280 = vmatprep.mubr.bf16.mxu0 0
      %4281 = vmatmul.mubr.bf16.gmra.mrb[0].mxu0 %v3978
      %v4282 = vpop.f32.mrb[0].mxu0
      %v4283 = vadd.f32 0.0, %v4282
      %v4284 = vpop.f32.mrb[0].mxu0
      %v4285 = vpop.f32.mrb[0].mxu0
      %v4286 = vadd.f32 0.0, %v4285
      %v4287 = vpop.f32.mrb[0].mxu0
      %4288 = vmatprep.mubr.bf16.mxu0 0
      %4289 = vmatmul.mubr.bf16.gmra.mrb[0].mxu0 %v3981
      %v4290 = vpop.f32.mrb[0].mxu0
      %v4291 = vadd.f32 0.0, %v4290
      %v4292 = vpop.f32.mrb[0].mxu0
      %v4293 = vpop.f32.mrb[0].mxu0
      %v4294 = vadd.f32 0.0, %v4293
      %v4295 = vpop.f32.mrb[0].mxu0
      %4296 = vmatprep.mubr.bf16.mxu0 0
      %4297 = vmatmul.mubr.bf16.gmra.mrb[0].mxu0 %v3984
      %v4298 = vpop.f32.mrb[0].mxu0
      %v4299 = vadd.f32 0.0, %v4298
      %v4300 = vpop.f32.mrb[0].mxu0
      %v4301 = vpop.f32.mrb[0].mxu0
      %v4302 = vadd.f32 0.0, %v4301
      %v4303 = vpop.f32.mrb[0].mxu0
      %4304 = vmatprep.mubr.bf16.mxu0 0
      %4305 = vmatmul.mubr.bf16.gmra.mrb[0].mxu0 %v3987
      %v4306 = vpop.f32.mrb[0].mxu0
      %v4307 = vadd.f32 0.0, %v4306
      %v4308 = vpop.f32.mrb[0].mxu0
      %v4309 = vpop.f32.mrb[0].mxu0
      %v4310 = vadd.f32 0.0, %v4309
      %v4311 = vpop.f32.mrb[0].mxu0
      %4312 = vmatprep.mubr.bf16.mxu0 0
      %4313 = vmatmul.mubr.bf16.gmra.mrb[0].mxu0 %v3990
      %v4314 = vpop.f32.mrb[0].mxu0
      %v4315 = vadd.f32 0.0, %v4314
      %v4316 = vpop.f32.mrb[0].mxu0
      %v4317 = vpop.f32.mrb[0].mxu0
      %v4318 = vadd.f32 0.0, %v4317
      %v4319 = vpop.f32.mrb[0].mxu0
      %4320 = vmatprep.mubr.bf16.mxu0 0
      %4321 = vmatmul.mubr.bf16.gmra.mrb[0].mxu0 %v3993
      %v4322 = vpop.f32.mrb[0].mxu0
      %v4323 = vadd.f32 0.0, %v4322
      %v4324 = vpop.f32.mrb[0].mxu0
      %v4325 = vpop.f32.mrb[0].mxu0
      %v4326 = vadd.f32 0.0, %v4325
      %v4327 = vpop.f32.mrb[0].mxu0
      %4328 = vmatprep.mubr.bf16.mxu0 0
      %4329 = vmatmul.mubr.bf16.gmra.mrb[0].mxu0 %v3996
      %v4330 = vpop.f32.mrb[0].mxu0
      %v4331 = vadd.f32 0.0, %v4330
      %v4332 = vpop.f32.mrb[0].mxu0
      %v4333 = vpop.f32.mrb[0].mxu0
      %v4334 = vadd.f32 0.0, %v4333
      %v4335 = vpop.f32.mrb[0].mxu0
      %4336 = vmatprep.mubr.bf16.mxu0 0
      %4337 = vmatmul.mubr.bf16.gmra.mrb[0].mxu0 %v3999
      %v4338 = vpop.f32.mrb[0].mxu0
      %v4339 = vadd.f32 0.0, %v4338
      %v4340 = vpop.f32.mrb[0].mxu0
      %v4341 = vpop.f32.mrb[0].mxu0
      %v4342 = vadd.f32 0.0, %v4341
      %v4343 = vpop.f32.mrb[0].mxu0
      %4344 = vmatprep.mubr.bf16.mxu0 0
      %4345 = vmatmul.mubr.bf16.gmra.mrb[0].mxu0 %v4002
      %v4346 = vpop.f32.mrb[0].mxu0
      %v4347 = vadd.f32 0.0, %v4346
      %v4348 = vpop.f32.mrb[0].mxu0
      %v4349 = vpop.f32.mrb[0].mxu0
      %v4350 = vadd.f32 0.0, %v4349
      %v4351 = vpop.f32.mrb[0].mxu0
      %4352 = vmatprep.mubr.bf16.mxu0 0
      %4353 = vmatmul.mubr.bf16.gmra.mrb[0].mxu0 %v4005
      %v4354 = vpop.f32.mrb[0].mxu0
      %v4355 = vadd.f32 0.0, %v4354
      %v4356 = vpop.f32.mrb[0].mxu0
      %v4357 = vpop.f32.mrb[0].mxu0
      %v4358 = vadd.f32 0.0, %v4357
      %v4359 = vpop.f32.mrb[0].mxu0
      %4360 = vdwg.mxu0
      %v4361 = vadd.f32 %v3486, %v4042
      %v4362 = vadd.f32 %v3487, %v4044
      %v4363 = vadd.f32 %v3488, %v4235
      %v4364 = vadd.f32 %v3489, %v4046
      %v4365 = vadd.f32 %v3490, %v4048
      %v4366 = vadd.f32 %v3491, %v4238
      %v4367 = vadd.f32 %v3492, %v4052
      %v4368 = vadd.f32 %v3493, %v4054
      %v4369 = vadd.f32 %v3494, %v4243
      %v4370 = vadd.f32 %v3495, %v4056
      %v4371 = vadd.f32 %v3496, %v4058
      %v4372 = vadd.f32 %v3497, %v4246
      %v4373 = vadd.f32 %v3498, %v4062
      %v4374 = vadd.f32 %v3499, %v4064
      %v4375 = vadd.f32 %v3500, %v4251
      %v4376 = vadd.f32 %v3501, %v4066
      %v4377 = vadd.f32 %v3502, %v4068
      %v4378 = vadd.f32 %v3503, %v4254
      %v4379 = vadd.f32 %v3504, %v4072
      %v4380 = vadd.f32 %v3505, %v4074
      %v4381 = vadd.f32 %v3506, %v4259
      %v4382 = vadd.f32 %v3507, %v4076
      %v4383 = vadd.f32 %v3508, %v4078
      %v4384 = vadd.f32 %v3509, %v4262
      %v4385 = vadd.f32 %v3510, %v4082
      %v4386 = vadd.f32 %v3511, %v4084
      %v4387 = vadd.f32 %v3512, %v4267
      %v4388 = vadd.f32 %v3513, %v4086
      %v4389 = vadd.f32 %v3514, %v4088
      %v4390 = vadd.f32 %v3515, %v4270
      %v4391 = vadd.f32 %v3516, %v4092
      %v4392 = vadd.f32 %v3517, %v4094
      %v4393 = vadd.f32 %v3518, %v4275
      %v4394 = vadd.f32 %v3519, %v4096
      %v4395 = vadd.f32 %v3520, %v4098
      %v4396 = vadd.f32 %v3521, %v4278
      %v4397 = vadd.f32 %v3522, %v4102
      %v4398 = vadd.f32 %v3523, %v4104
      %v4399 = vadd.f32 %v3524, %v4283
      %v4400 = vadd.f32 %v3525, %v4106
      %v4401 = vadd.f32 %v3526, %v4108
      %v4402 = vadd.f32 %v3527, %v4286
      %v4403 = vadd.f32 %v3528, %v4112
      %v4404 = vadd.f32 %v3529, %v4114
      %v4405 = vadd.f32 %v3530, %v4291
      %v4406 = vadd.f32 %v3531, %v4116
      %v4407 = vadd.f32 %v3532, %v4118
      %v4408 = vadd.f32 %v3533, %v4294
      %v4409 = vadd.f32 %v3534, %v4122
      %v4410 = vadd.f32 %v3535, %v4124
      %v4411 = vadd.f32 %v3536, %v4299
      %v4412 = vadd.f32 %v3537, %v4126
      %v4413 = vadd.f32 %v3538, %v4128
      %v4414 = vadd.f32 %v3539, %v4302
      %v4415 = vadd.f32 %v3540, %v4132
      %v4416 = vadd.f32 %v3541, %v4134
      %v4417 = vadd.f32 %v3542, %v4307
      %v4418 = vadd.f32 %v3543, %v4136
      %v4419 = vadd.f32 %v3544, %v4138
      %v4420 = vadd.f32 %v3545, %v4310
      %v4421 = vadd.f32 %v3546, %v4142
      %v4422 = vadd.f32 %v3547, %v4144
      %v4423 = vadd.f32 %v3548, %v4315
      %v4424 = vadd.f32 %v3549, %v4146
      %v4425 = vadd.f32 %v3550, %v4148
      %v4426 = vadd.f32 %v3551, %v4318
      %v4427 = vadd.f32 %v3552, %v4152
      %v4428 = vadd.f32 %v3553, %v4154
      %v4429 = vadd.f32 %v3554, %v4323
      %v4430 = vadd.f32 %v3555, %v4156
      %v4431 = vadd.f32 %v3556, %v4158
      %v4432 = vadd.f32 %v3557, %v4326
      %v4433 = vadd.f32 %v3558, %v4162
      %v4434 = vadd.f32 %v3559, %v4164
      %v4435 = vadd.f32 %v3560, %v4331
      %v4436 = vadd.f32 %v3561, %v4166
      %v4437 = vadd.f32 %v3562, %v4168
      %v4438 = vadd.f32 %v3563, %v4334
      %v4439 = vadd.f32 %v3564, %v4172
      %v4440 = vadd.f32 %v3565, %v4174
      %v4441 = vadd.f32 %v3566, %v4339
      %v4442 = vadd.f32 %v3567, %v4176
      %v4443 = vadd.f32 %v3568, %v4178
      %v4444 = vadd.f32 %v3569, %v4342
      %v4445 = vadd.f32 %v3570, %v4182
      %v4446 = vadd.f32 %v3571, %v4184
      %v4447 = vadd.f32 %v3572, %v4347
      %v4448 = vadd.f32 %v3573, %v4186
      %v4449 = vadd.f32 %v3574, %v4188
      %v4450 = vadd.f32 %v3575, %v4350
      %v4451 = vadd.f32 %v3576, %v4192
      %v4452 = vadd.f32 %v3577, %v4194
      %v4453 = vadd.f32 %v3578, %v4355
      %v4454 = vadd.f32 %v3579, %v4196
      %v4455 = vadd.f32 %v3580, %v4198
      %v4456 = vadd.f32 %v3581, %v4358
      %4457 = vst [vmem:[#allocation2] sm:$0xff] %v4361
      %4458 = vst [vmem:[#allocation2 + $0x8] sm:$0xff] %v4362
      %4459 = vst.msk [vmem:[#allocation2 + $0x10] sm:$0xff] %vm461, %v4363
      %4460 = vst [vmem:[#allocation2 + $0x18] sm:$0xff] %v4364
      %4461 = vst [vmem:[#allocation2 + $0x20] sm:$0xff] %v4365
      %4462 = vst.msk [vmem:[#allocation2 + $0x28] sm:$0xff] %vm461, %v4366
      %4463 = vst [vmem:[#allocation2 + $0x30] sm:$0xff] %v4367
      %4464 = vst [vmem:[#allocation2 + $0x38] sm:$0xff] %v4368
      %4465 = vst.msk [vmem:[#allocation2 + $0x40] sm:$0xff] %vm461, %v4369
      %4466 = vst [vmem:[#allocation2 + $0x48] sm:$0xff] %v4370
      %4467 = vst [vmem:[#allocation2 + $0x50] sm:$0xff] %v4371
      %4468 = vst.msk [vmem:[#allocation2 + $0x58] sm:$0xff] %vm461, %v4372
      %4469 = vst [vmem:[#allocation2 + $0x60] sm:$0xff] %v4373
      %4470 = vst [vmem:[#allocation2 + $0x68] sm:$0xff] %v4374
      %4471 = vst.msk [vmem:[#allocation2 + $0x70] sm:$0xff] %vm461, %v4375
      %4472 = vst [vmem:[#allocation2 + $0x78] sm:$0xff] %v4376
      %4473 = vst [vmem:[#allocation2 + $0x80] sm:$0xff] %v4377
      %4474 = vst.msk [vmem:[#allocation2 + $0x88] sm:$0xff] %vm461, %v4378
      %4475 = vst [vmem:[#allocation2 + $0x90] sm:$0xff] %v4379
      %4476 = vst [vmem:[#allocation2 + $0x98] sm:$0xff] %v4380
      %4477 = vst.msk [vmem:[#allocation2 + $0xa0] sm:$0xff] %vm461, %v4381
      %4478 = vst [vmem:[#allocation2 + $0xa8] sm:$0xff] %v4382
      %4479 = vst [vmem:[#allocation2 + $0xb0] sm:$0xff] %v4383
      %4480 = vst.msk [vmem:[#allocation2 + $0xb8] sm:$0xff] %vm461, %v4384
      %4481 = vst [vmem:[#allocation2 + $0xc0] sm:$0xff] %v4385
      %4482 = vst [vmem:[#allocation2 + $0xc8] sm:$0xff] %v4386
      %4483 = vst.msk [vmem:[#allocation2 + $0xd0] sm:$0xff] %vm461, %v4387
      %4484 = vst [vmem:[#allocation2 + $0xd8] sm:$0xff] %v4388
      %4485 = vst [vmem:[#allocation2 + $0xe0] sm:$0xff] %v4389
      %4486 = vst.msk [vmem:[#allocation2 + $0xe8] sm:$0xff] %vm461, %v4390
      %4487 = vst [vmem:[#allocation2 + $0xf0] sm:$0xff] %v4391
      %4488 = vst [vmem:[#allocation2 + $0xf8] sm:$0xff] %v4392
      %4489 = vst.msk [vmem:[#allocation2 + $0x100] sm:$0xff] %vm461, %v4393
      %4490 = vst [vmem:[#allocation2 + $0x108] sm:$0xff] %v4394
      %4491 = vst [vmem:[#allocation2 + $0x110] sm:$0xff] %v4395
      %4492 = vst.msk [vmem:[#allocation2 + $0x118] sm:$0xff] %vm461, %v4396
      %4493 = vst [vmem:[#allocation2 + $0x120] sm:$0xff] %v4397
      %4494 = vst [vmem:[#allocation2 + $0x128] sm:$0xff] %v4398
      %4495 = vst.msk [vmem:[#allocation2 + $0x130] sm:$0xff] %vm461, %v4399
      %4496 = vst [vmem:[#allocation2 + $0x138] sm:$0xff] %v4400
      %4497 = vst [vmem:[#allocation2 + $0x140] sm:$0xff] %v4401
      %4498 = vst.msk [vmem:[#allocation2 + $0x148] sm:$0xff] %vm461, %v4402
      %4499 = vst [vmem:[#allocation2 + $0x150] sm:$0xff] %v4403
      %4500 = vst [vmem:[#allocation2 + $0x158] sm:$0xff] %v4404
      %4501 = vst.msk [vmem:[#allocation2 + $0x160] sm:$0xff] %vm461, %v4405
      %4502 = vst [vmem:[#allocation2 + $0x168] sm:$0xff] %v4406
      %4503 = vst [vmem:[#allocation2 + $0x170] sm:$0xff] %v4407
      %4504 = vst.msk [vmem:[#allocation2 + $0x178] sm:$0xff] %vm461, %v4408
      %4505 = vst [vmem:[#allocation2 + $0x180] sm:$0xff] %v4409
      %4506 = vst [vmem:[#allocation2 + $0x188] sm:$0xff] %v4410
      %4507 = vst.msk [vmem:[#allocation2 + $0x190] sm:$0xff] %vm461, %v4411
      %4508 = vst [vmem:[#allocation2 + $0x198] sm:$0xff] %v4412
      %4509 = vst [vmem:[#allocation2 + $0x1a0] sm:$0xff] %v4413
      %4510 = vst.msk [vmem:[#allocation2 + $0x1a8] sm:$0xff] %vm461, %v4414
      %4511 = vst [vmem:[#allocation2 + $0x1b0] sm:$0xff] %v4415
      %4512 = vst [vmem:[#allocation2 + $0x1b8] sm:$0xff] %v4416
      %4513 = vst.msk [vmem:[#allocation2 + $0x1c0] sm:$0xff] %vm461, %v4417
      %4514 = vst [vmem:[#allocation2 + $0x1c8] sm:$0xff] %v4418
      %4515 = vst [vmem:[#allocation2 + $0x1d0] sm:$0xff] %v4419
      %4516 = vst.msk [vmem:[#allocation2 + $0x1d8] sm:$0xff] %vm461, %v4420
      %4517 = vst [vmem:[#allocation2 + $0x1e0] sm:$0xff] %v4421
      %4518 = vst [vmem:[#allocation2 + $0x1e8] sm:$0xff] %v4422
      %4519 = vst.msk [vmem:[#allocation2 + $0x1f0] sm:$0xff] %vm461, %v4423
      %4520 = vst [vmem:[#allocation2 + $0x1f8] sm:$0xff] %v4424
      %4521 = vst [vmem:[#allocation2 + $0x200] sm:$0xff] %v4425
      %4522 = vst.msk [vmem:[#allocation2 + $0x208] sm:$0xff] %vm461, %v4426
      %4523 = vst [vmem:[#allocation2 + $0x210] sm:$0xff] %v4427
      %4524 = vst [vmem:[#allocation2 + $0x218] sm:$0xff] %v4428
      %4525 = vst.msk [vmem:[#allocation2 + $0x220] sm:$0xff] %vm461, %v4429
      %4526 = vst [vmem:[#allocation2 + $0x228] sm:$0xff] %v4430
      %4527 = vst [vmem:[#allocation2 + $0x230] sm:$0xff] %v4431
      %4528 = vst.msk [vmem:[#allocation2 + $0x238] sm:$0xff] %vm461, %v4432
      %4529 = vst [vmem:[#allocation2 + $0x240] sm:$0xff] %v4433
      %4530 = vst [vmem:[#allocation2 + $0x248] sm:$0xff] %v4434
      %4531 = vst.msk [vmem:[#allocation2 + $0x250] sm:$0xff] %vm461, %v4435
      %4532 = vst [vmem:[#allocation2 + $0x258] sm:$0xff] %v4436
      %4533 = vst [vmem:[#allocation2 + $0x260] sm:$0xff] %v4437
      %4534 = vst.msk [vmem:[#allocation2 + $0x268] sm:$0xff] %vm461, %v4438
      %4535 = vst [vmem:[#allocation2 + $0x270] sm:$0xff] %v4439
      %4536 = vst [vmem:[#allocation2 + $0x278] sm:$0xff] %v4440
      %4537 = vst.msk [vmem:[#allocation2 + $0x280] sm:$0xff] %vm461, %v4441
      %4538 = vst [vmem:[#allocation2 + $0x288] sm:$0xff] %v4442
      %4539 = vst [vmem:[#allocation2 + $0x290] sm:$0xff] %v4443
      %4540 = vst.msk [vmem:[#allocation2 + $0x298] sm:$0xff] %vm461, %v4444
      %4541 = vst [vmem:[#allocation2 + $0x2a0] sm:$0xff] %v4445
      %4542 = vst [vmem:[#allocation2 + $0x2a8] sm:$0xff] %v4446
      %4543 = vst.msk [vmem:[#allocation2 + $0x2b0] sm:$0xff] %vm461, %v4447
      %4544 = vst [vmem:[#allocation2 + $0x2b8] sm:$0xff] %v4448
      %4545 = vst [vmem:[#allocation2 + $0x2c0] sm:$0xff] %v4449
      %4546 = vst.msk [vmem:[#allocation2 + $0x2c8] sm:$0xff] %vm461, %v4450
      %4547 = vst [vmem:[#allocation2 + $0x2d0] sm:$0xff] %v4451
      %4548 = vst [vmem:[#allocation2 + $0x2d8] sm:$0xff] %v4452
      %4549 = vst.msk [vmem:[#allocation2 + $0x2e0] sm:$0xff] %vm461, %v4453
      %4550 = vst [vmem:[#allocation2 + $0x2e8] sm:$0xf] %v4454
      %4551 = vst [vmem:[#allocation2 + $0x2f0] sm:$0xf] %v4455
      %4552 = vst.msk [vmem:[#allocation2 + $0x2f8] sm:$0xf] %vm555, %v4456
      %v4553 = vld [vmem:[#allocation2] sm:$0xff]
      %v4554 = vld [vmem:[#allocation2 + $0x8] sm:$0xff]
      %v4555 = vld [vmem:[#allocation2 + $0x10] sm:$0xff]
      %v4556 = vld [vmem:[#allocation2 + $0x18] sm:$0xff]
      %v4557 = vld [vmem:[#allocation2 + $0x20] sm:$0xff]
      %v4558 = vld [vmem:[#allocation2 + $0x28] sm:$0xff]
      %v4559 = vld [vmem:[#allocation2 + $0x30] sm:$0xff]
      %v4560 = vld [vmem:[#allocation2 + $0x38] sm:$0xff]
      %v4561 = vld [vmem:[#allocation2 + $0x40] sm:$0xff]
      %v4562 = vld [vmem:[#allocation2 + $0x48] sm:$0xff]
      %v4563 = vld [vmem:[#allocation2 + $0x50] sm:$0xff]
      %v4564 = vld [vmem:[#allocation2 + $0x58] sm:$0xff]
      %v4565 = vld [vmem:[#allocation2 + $0x60] sm:$0xff]
      %v4566 = vld [vmem:[#allocation2 + $0x68] sm:$0xff]
      %v4567 = vld [vmem:[#allocation2 + $0x70] sm:$0xff]
      %v4568 = vld [vmem:[#allocation2 + $0x78] sm:$0xff]
      %v4569 = vld [vmem:[#allocation2 + $0x80] sm:$0xff]
      %v4570 = vld [vmem:[#allocation2 + $0x88] sm:$0xff]
      %v4571 = vld [vmem:[#allocation2 + $0x90] sm:$0xff]
      %v4572 = vld [vmem:[#allocation2 + $0x98] sm:$0xff]
      %v4573 = vld [vmem:[#allocation2 + $0xa0] sm:$0xff]
      %v4574 = vld [vmem:[#allocation2 + $0xa8] sm:$0xff]
      %v4575 = vld [vmem:[#allocation2 + $0xb0] sm:$0xff]
      %v4576 = vld [vmem:[#allocation2 + $0xb8] sm:$0xff]
      %v4577 = vld [vmem:[#allocation2 + $0xc0] sm:$0xff]
      %v4578 = vld [vmem:[#allocation2 + $0xc8] sm:$0xff]
      %v4579 = vld [vmem:[#allocation2 + $0xd0] sm:$0xff]
      %v4580 = vld [vmem:[#allocation2 + $0xd8] sm:$0xff]
      %v4581 = vld [vmem:[#allocation2 + $0xe0] sm:$0xff]
      %v4582 = vld [vmem:[#allocation2 + $0xe8] sm:$0xff]
      %v4583 = vld [vmem:[#allocation2 + $0xf0] sm:$0xff]
      %v4584 = vld [vmem:[#allocation2 + $0xf8] sm:$0xff]
      %v4585 = vld [vmem:[#allocation2 + $0x100] sm:$0xff]
      %v4586 = vld [vmem:[#allocation2 + $0x108] sm:$0xff]
      %v4587 = vld [vmem:[#allocation2 + $0x110] sm:$0xff]
      %v4588 = vld [vmem:[#allocation2 + $0x118] sm:$0xff]
      %v4589 = vld [vmem:[#allocation2 + $0x120] sm:$0xff]
      %v4590 = vld [vmem:[#allocation2 + $0x128] sm:$0xff]
      %v4591 = vld [vmem:[#allocation2 + $0x130] sm:$0xff]
      %v4592 = vld [vmem:[#allocation2 + $0x138] sm:$0xff]
      %v4593 = vld [vmem:[#allocation2 + $0x140] sm:$0xff]
      %v4594 = vld [vmem:[#allocation2 + $0x148] sm:$0xff]
      %v4595 = vld [vmem:[#allocation2 + $0x150] sm:$0xff]
      %v4596 = vld [vmem:[#allocation2 + $0x158] sm:$0xff]
      %v4597 = vld [vmem:[#allocation2 + $0x160] sm:$0xff]
      %v4598 = vld [vmem:[#allocation2 + $0x168] sm:$0xff]
      %v4599 = vld [vmem:[#allocation2 + $0x170] sm:$0xff]
      %v4600 = vld [vmem:[#allocation2 + $0x178] sm:$0xff]
      %v4601 = vld [vmem:[#allocation2 + $0x180] sm:$0xff]
      %v4602 = vld [vmem:[#allocation2 + $0x188] sm:$0xff]
      %v4603 = vld [vmem:[#allocation2 + $0x190] sm:$0xff]
      %v4604 = vld [vmem:[#allocation2 + $0x198] sm:$0xff]
      %v4605 = vld [vmem:[#allocation2 + $0x1a0] sm:$0xff]
      %v4606 = vld [vmem:[#allocation2 + $0x1a8] sm:$0xff]
      %v4607 = vld [vmem:[#allocation2 + $0x1b0] sm:$0xff]
      %v4608 = vld [vmem:[#allocation2 + $0x1b8] sm:$0xff]
      %v4609 = vld [vmem:[#allocation2 + $0x1c0] sm:$0xff]
      %v4610 = vld [vmem:[#allocation2 + $0x1c8] sm:$0xff]
      %v4611 = vld [vmem:[#allocation2 + $0x1d0] sm:$0xff]
      %v4612 = vld [vmem:[#allocation2 + $0x1d8] sm:$0xff]
      %v4613 = vld [vmem:[#allocation2 + $0x1e0] sm:$0xff]
      %v4614 = vld [vmem:[#allocation2 + $0x1e8] sm:$0xff]
      %v4615 = vld [vmem:[#allocation2 + $0x1f0] sm:$0xff]
      %v4616 = vld [vmem:[#allocation2 + $0x1f8] sm:$0xff]
      %v4617 = vld [vmem:[#allocation2 + $0x200] sm:$0xff]
      %v4618 = vld [vmem:[#allocation2 + $0x208] sm:$0xff]
      %v4619 = vld [vmem:[#allocation2 + $0x210] sm:$0xff]
      %v4620 = vld [vmem:[#allocation2 + $0x218] sm:$0xff]
      %v4621 = vld [vmem:[#allocation2 + $0x220] sm:$0xff]
      %v4622 = vld [vmem:[#allocation2 + $0x228] sm:$0xff]
      %v4623 = vld [vmem:[#allocation2 + $0x230] sm:$0xff]
      %v4624 = vld [vmem:[#allocation2 + $0x238] sm:$0xff]
      %v4625 = vld [vmem:[#allocation2 + $0x240] sm:$0xff]
      %v4626 = vld [vmem:[#allocation2 + $0x248] sm:$0xff]
      %v4627 = vld [vmem:[#allocation2 + $0x250] sm:$0xff]
      %v4628 = vld [vmem:[#allocation2 + $0x258] sm:$0xff]
      %v4629 = vld [vmem:[#allocation2 + $0x260] sm:$0xff]
      %v4630 = vld [vmem:[#allocation2 + $0x268] sm:$0xff]
      %v4631 = vld [vmem:[#allocation2 + $0x270] sm:$0xff]
      %v4632 = vld [vmem:[#allocation2 + $0x278] sm:$0xff]
      %v4633 = vld [vmem:[#allocation2 + $0x280] sm:$0xff]
      %v4634 = vld [vmem:[#allocation2 + $0x288] sm:$0xff]
      %v4635 = vld [vmem:[#allocation2 + $0x290] sm:$0xff]
      %v4636 = vld [vmem:[#allocation2 + $0x298] sm:$0xff]
      %v4637 = vld [vmem:[#allocation2 + $0x2a0] sm:$0xff]
      %v4638 = vld [vmem:[#allocation2 + $0x2a8] sm:$0xff]
      %v4639 = vld [vmem:[#allocation2 + $0x2b0] sm:$0xff]
      %v4640 = vld [vmem:[#allocation2 + $0x2b8] sm:$0xff]
      %v4641 = vld [vmem:[#allocation2 + $0x2c0] sm:$0xff]
      %v4642 = vld [vmem:[#allocation2 + $0x2c8] sm:$0xff]
      %v4643 = vld [vmem:[#allocation2 + $0x2d0] sm:$0xff]
      %v4644 = vld [vmem:[#allocation2 + $0x2d8] sm:$0xff]
      %v4645 = vld [vmem:[#allocation2 + $0x2e0] sm:$0xff]
      %v4646 = vld [vmem:[#allocation2 + $0x2e8] sm:$0xf]
      %v4647 = vld [vmem:[#allocation2 + $0x2f0] sm:$0xf]
      %v4648 = vld [vmem:[#allocation2 + $0x2f8] sm:$0xf]
      %v4649 = vld [vmem:[%s435] sm:$0xc]
      %v4650 = vld [vmem:[%s435 + $0x4] sm:$0xf]
      %v4651 = vld [vmem:[%s435 + $0x8] sm:$0xf]
      %v4652 = vld [vmem:[%s435 + $0xc] sm:$0xf]
      %v4653 = vld [vmem:[%s435 + $0x10] sm:$0xf]
      %v4654 = vld [vmem:[%s435 + $0x14] sm:$0xf]
      %v4655 = vld [vmem:[%s435 + $0x18] sm:$0xf]
      %v4656 = vld [vmem:[%s435 + $0x1c] sm:$0xf]
      %v4657 = vld [vmem:[%s435 + $0x20] sm:$0xf]
      %v4658 = vld [vmem:[%s435 + $0x24] sm:$0xf]
      %v4659 = vld [vmem:[%s435 + $0x28] sm:$0xf]
      %v4660 = vld [vmem:[%s435 + $0x2c] sm:$0xf]
      %v4661 = vld [vmem:[%s435 + $0x30] sm:$0xf]
      %v4662 = vld [vmem:[%s435 + $0x34] sm:$0xf]
      %v4663 = vld [vmem:[%s435 + $0x38] sm:$0xf]
      %v4664 = vld [vmem:[%s435 + $0x3c] sm:$0xf]
      %v4665 = vld [vmem:[%s435 + $0x40] sm:$0xf]
      %v4666 = vld [vmem:[%s435 + $0x44] sm:$0xf]
      %v4667 = vld [vmem:[%s435 + $0x48] sm:$0xf]
      %v4668 = vld [vmem:[%s435 + $0x4c] sm:$0xf]
      %v4669 = vld [vmem:[%s435 + $0x50] sm:$0xf]
      %v4670 = vld [vmem:[%s435 + $0x54] sm:$0xf]
      %v4671 = vld [vmem:[%s435 + $0x58] sm:$0xf]
      %v4672 = vld [vmem:[%s435 + $0x5c] sm:$0xf]
      %v4673 = vld [vmem:[%s435 + $0x60] sm:$0xf]
      %v4674 = vld [vmem:[%s435 + $0x64] sm:$0xf]
      %v4675 = vld [vmem:[%s435 + $0x68] sm:$0xf]
      %v4676 = vld [vmem:[%s435 + $0x6c] sm:$0xf]
      %v4677 = vld [vmem:[%s435 + $0x70] sm:$0xf]
      %v4678 = vld [vmem:[%s435 + $0x74] sm:$0xf]
      %v4679 = vld [vmem:[%s435 + $0x78] sm:$0xf]
      %v4680 = vld [vmem:[%s435 + $0x7c] sm:$0xf]
      %s4681 = scalar_lea.vmem %s1, 576
      %v4682 = vld [vmem:[%s4681] sm:$0xff]
      %v4683 = vld [vmem:[%s4681 + $0x8] sm:$0xf]
      %v4684 = vld [vmem:[%s4681 + $0xc] sm:$0xff]
      %v4685 = vld [vmem:[%s4681 + $0x14] sm:$0xf]
      %v4686 = vld [vmem:[%s4681 + $0x18] sm:$0xff]
      %v4687 = vld [vmem:[%s4681 + $0x20] sm:$0xf]
      %v4688 = vld [vmem:[%s4681 + $0x24] sm:$0xff]
      %v4689 = vld [vmem:[%s4681 + $0x2c] sm:$0xf]
      %v4690 = vld [vmem:[%s4681 + $0x30] sm:$0xff]
      %v4691 = vld [vmem:[%s4681 + $0x38] sm:$0xf]
      %v4692 = vld [vmem:[%s4681 + $0x3c] sm:$0xff]
      %v4693 = vld [vmem:[%s4681 + $0x44] sm:$0xf]
      %v4694 = vld [vmem:[%s4681 + $0x48] sm:$0xff]
      %v4695 = vld [vmem:[%s4681 + $0x50] sm:$0xf]
      %v4696 = vld [vmem:[%s4681 + $0x54] sm:$0xff]
      %v4697 = vld [vmem:[%s4681 + $0x5c] sm:$0xf]
      %v4698 = vld [vmem:[%s4681 + $0x60] sm:$0xff]
      %v4699 = vld [vmem:[%s4681 + $0x68] sm:$0xf]
      %v4700 = vld [vmem:[%s4681 + $0x6c] sm:$0xff]
      %v4701 = vld [vmem:[%s4681 + $0x74] sm:$0xf]
      %v4702 = vld [vmem:[%s4681 + $0x78] sm:$0xff]
      %v4703 = vld [vmem:[%s4681 + $0x80] sm:$0xf]
      %v4704 = vld [vmem:[%s4681 + $0x84] sm:$0xff]
      %v4705 = vld [vmem:[%s4681 + $0x8c] sm:$0xf]
      %v4738 = vunpack.c.l.b16 %v4649
      %v4739 = vunpack.c.l.b16 %v4650
      %v4740 = vunpack.c.l.b16 %v4651
      %v4741 = vunpack.c.l.b16 %v4652
      %v4742 = vunpack.c.l.b16 %v4653
      %v4743 = vunpack.c.l.b16 %v4654
      %v4744 = vunpack.c.l.b16 %v4655
      %v4745 = vunpack.c.l.b16 %v4656
      %v4746 = vunpack.c.l.b16 %v4657
      %v4747 = vunpack.c.l.b16 %v4658
      %v4748 = vunpack.c.l.b16 %v4659
      %v4749 = vunpack.c.l.b16 %v4660
      %v4750 = vunpack.c.l.b16 %v4661
      %v4751 = vunpack.c.l.b16 %v4662
      %v4752 = vunpack.c.l.b16 %v4663
      %v4753 = vunpack.c.l.b16 %v4664
      %v4754 = vunpack.c.l.b16 %v4665
      %v4755 = vunpack.c.l.b16 %v4666
      %v4756 = vunpack.c.l.b16 %v4667
      %v4757 = vunpack.c.l.b16 %v4668
      %v4758 = vunpack.c.l.b16 %v4669
      %v4759 = vunpack.c.l.b16 %v4670
      %v4760 = vunpack.c.l.b16 %v4671
      %v4761 = vunpack.c.l.b16 %v4672
      %v4762 = vunpack.c.l.b16 %v4673
      %v4763 = vunpack.c.l.b16 %v4674
      %v4764 = vunpack.c.l.b16 %v4675
      %v4765 = vunpack.c.l.b16 %v4676
      %v4766 = vunpack.c.l.b16 %v4677
      %v4767 = vunpack.c.l.b16 %v4678
      %v4768 = vunpack.c.l.b16 %v4679
      %v4769 = vunpack.c.l.b16 %v4680
      %v4770 = vpack.c.b16 %v4739, %v4738
      %v4771 = vpack.c.b16 %v4741, %v4740
      %v4772 = vpack.c.b16 %v4743, %v4742
      %v4773 = vpack.c.b16 %v4745, %v4744
      %v4774 = vpack.c.b16 %v4747, %v4746
      %v4775 = vpack.c.b16 %v4749, %v4748
      %v4776 = vpack.c.b16 %v4751, %v4750
      %v4777 = vpack.c.b16 %v4753, %v4752
      %v4778 = vpack.c.b16 %v4755, %v4754
      %v4779 = vpack.c.b16 %v4757, %v4756
      %v4780 = vpack.c.b16 %v4759, %v4758
      %v4781 = vpack.c.b16 %v4761, %v4760
      %v4782 = vpack.c.b16 %v4763, %v4762
      %v4783 = vpack.c.b16 %v4765, %v4764
      %v4784 = vpack.c.b16 %v4767, %v4766
      %v4785 = vpack.c.b16 %v4769, %v4768
      %vm4786 = vcmask 1045504
      %v4787 = vrot.slane %v4770, 2
      %v4788 = vrot.slane %v4771, 2
      %v4789 = vsel %vm4786, %v4787, %v4788
      %v4790 = vrot.slane %v4772, 2
      %v4791 = vsel %vm4786, %v4788, %v4790
      %v4792 = vrot.slane %v4773, 2
      %v4793 = vsel %vm4786, %v4790, %v4792
      %v4794 = vrot.slane %v4774, 2
      %v4795 = vsel %vm4786, %v4792, %v4794
      %v4796 = vrot.slane %v4775, 2
      %v4797 = vsel %vm4786, %v4794, %v4796
      %v4798 = vrot.slane %v4776, 2
      %v4799 = vsel %vm4786, %v4796, %v4798
      %v4800 = vrot.slane %v4777, 2
      %v4801 = vsel %vm4786, %v4798, %v4800
      %v4802 = vrot.slane %v4778, 2
      %v4803 = vsel %vm4786, %v4800, %v4802
      %v4804 = vrot.slane %v4779, 2
      %v4805 = vsel %vm4786, %v4802, %v4804
      %v4806 = vrot.slane %v4780, 2
      %v4807 = vsel %vm4786, %v4804, %v4806
      %v4808 = vrot.slane %v4781, 2
      %v4809 = vsel %vm4786, %v4806, %v4808
      %v4810 = vrot.slane %v4782, 2
      %v4811 = vsel %vm4786, %v4808, %v4810
      %v4812 = vrot.slane %v4783, 2
      %v4813 = vsel %vm4786, %v4810, %v4812
      %v4814 = vrot.slane %v4784, 2
      %v4815 = vsel %vm4786, %v4812, %v4814
      %v4816 = vrot.slane %v4785, 2
      %v4817 = vsel %vm4786, %v4814, %v4816
      %v4842 = vunpack.c.l.b16 %v4682
      %v4843 = vunpack.c.h.b16 %v4682
      %v4844 = vunpack.c.l.b16 %v4683
      %v4845 = vunpack.c.l.b16 %v4684
      %v4846 = vunpack.c.h.b16 %v4684
      %v4847 = vunpack.c.l.b16 %v4685
      %v4848 = vunpack.c.l.b16 %v4686
      %v4849 = vunpack.c.h.b16 %v4686
      %v4850 = vunpack.c.l.b16 %v4687
      %v4851 = vunpack.c.l.b16 %v4688
      %v4852 = vunpack.c.h.b16 %v4688
      %v4853 = vunpack.c.l.b16 %v4689
      %v4854 = vunpack.c.l.b16 %v4690
      %v4855 = vunpack.c.h.b16 %v4690
      %v4856 = vunpack.c.l.b16 %v4691
      %v4857 = vunpack.c.l.b16 %v4692
      %v4858 = vunpack.c.h.b16 %v4692
      %v4859 = vunpack.c.l.b16 %v4693
      %v4860 = vunpack.c.l.b16 %v4694
      %v4861 = vunpack.c.h.b16 %v4694
      %v4862 = vunpack.c.l.b16 %v4695
      %v4863 = vunpack.c.l.b16 %v4696
      %v4864 = vunpack.c.h.b16 %v4696
      %v4865 = vunpack.c.l.b16 %v4697
      %v4866 = vunpack.c.l.b16 %v4698
      %v4867 = vunpack.c.h.b16 %v4698
      %v4868 = vunpack.c.l.b16 %v4699
      %v4869 = vunpack.c.l.b16 %v4700
      %v4870 = vunpack.c.h.b16 %v4700
      %v4871 = vunpack.c.l.b16 %v4701
      %v4872 = vunpack.c.l.b16 %v4702
      %v4873 = vunpack.c.h.b16 %v4702
      %v4874 = vunpack.c.l.b16 %v4703
      %v4875 = vunpack.c.l.b16 %v4704
      %v4876 = vunpack.c.h.b16 %v4704
      %v4877 = vunpack.c.l.b16 %v4705
      %v4878 = vpack.c.b16 %v4845, %v4842
      %v4879 = vpack.c.b16 %v4846, %v4843
      %v4880 = vpack.c.b16 %v4847, %v4844
      %v4881 = vpack.c.b16 %v4851, %v4848
      %v4882 = vpack.c.b16 %v4852, %v4849
      %v4883 = vpack.c.b16 %v4853, %v4850
      %v4884 = vpack.c.b16 %v4857, %v4854
      %v4885 = vpack.c.b16 %v4858, %v4855
      %v4886 = vpack.c.b16 %v4859, %v4856
      %v4887 = vpack.c.b16 %v4863, %v4860
      %v4888 = vpack.c.b16 %v4864, %v4861
      %v4889 = vpack.c.b16 %v4865, %v4862
      %v4890 = vpack.c.b16 %v4869, %v4866
      %v4891 = vpack.c.b16 %v4870, %v4867
      %v4892 = vpack.c.b16 %v4871, %v4868
      %v4893 = vpack.c.b16 %v4875, %v4872
      %v4894 = vpack.c.b16 %v4876, %v4873
      %v4895 = vpack.c.b16 %v4877, %v4874
      %v4915 = vsel %vm885, %v4789, 0
      %v4918 = vsel %vm885, %v4791, 0
      %v4921 = vsel %vm885, %v4793, 0
      %v4924 = vsel %vm885, %v4795, 0
      %v4927 = vsel %vm885, %v4797, 0
      %v4930 = vsel %vm885, %v4799, 0
      %v4933 = vsel %vm885, %v4801, 0
      %v4936 = vsel %vm885, %v4803, 0
      %v4939 = vsel %vm885, %v4805, 0
      %v4942 = vsel %vm885, %v4807, 0
      %v4945 = vsel %vm885, %v4809, 0
      %v4948 = vsel %vm885, %v4811, 0
      %v4951 = vsel %vm885, %v4813, 0
      %v4954 = vsel %vm885, %v4815, 0
      %v4957 = vsel %vm885, %v4817, 0
      %v4960 = vsel %vm885, %v4816, 0
      %4962 = vmatprep.subr.bf16.mxu0 %v4879
      %4963 = vmatpush1.bf16.msra.mxu0 %v4878
      %4964 = vmatprep.subr.bf16.mxu0 %v4882
      %4965 = vmatpush1.bf16.msra.mxu0 %v4881
      %4966 = vmatprep.subr.bf16.mxu0 %v4885
      %4967 = vmatpush1.bf16.msra.mxu0 %v4884
      %4968 = vmatprep.subr.bf16.mxu0 %v4888
      %4969 = vmatpush1.bf16.msra.mxu0 %v4887
      %4970 = vmatprep.subr.bf16.mxu0 %v4891
      %4971 = vmatpush1.bf16.msra.mxu0 %v4890
      %4972 = vmatprep.subr.bf16.mxu0 %v4894
      %4973 = vmatpush1.bf16.msra.mxu0 %v4893
      %4974 = vmatprep.subr.bf16.mxu0 0
      %4975 = vmatpush1.bf16.msra.mxu0 0
      %4976 = vmatprep.subr.bf16.mxu0 0
      %4977 = vmatpush1.bf16.msra.mxu0 0
      %4978 = vmatprep.subr.bf16.mxu0 0
      %4979 = vmatpush1.bf16.msra.mxu0 0
      %4980 = vmatprep.subr.bf16.mxu0 0
      %4981 = vmatpush1.bf16.msra.mxu0 0
      %4982 = vmatprep.subr.bf16.mxu0 0
      %4983 = vmatpush1.bf16.msra.mxu0 0
      %4984 = vmatprep.subr.bf16.mxu0 0
      %4985 = vmatpush1.bf16.msra.mxu0 0
      %4986 = vmatprep.subr.bf16.mxu0 0
      %4987 = vmatpush1.bf16.msra.mxu0 0
      %4988 = vmatprep.subr.bf16.mxu0 0
      %4989 = vmatpush1.bf16.msra.mxu0 0
      %4990 = vmatprep.subr.bf16.mxu0 0
      %4991 = vmatpush1.bf16.msra.mxu0 0
      %4992 = vmatprep.subr.bf16.mxu0 0
      %4993 = vmatpush1.bf16.msra.mxu0 0
      %4994 = vmatprep.mubr.bf16.mxu0 0
      %4995 = vmatmul.mubr.bf16.gmra.mrb[0].mxu0 %v4915
      %v4996 = vpop.f32.mrb[0].mxu0
      %v4997 = vadd.f32 0.0, %v4996
      %v4998 = vpop.f32.mrb[0].mxu0
      %v4999 = vadd.f32 0.0, %v4998
      %v5000 = vpop.f32.mrb[0].mxu0
      %v5001 = vadd.f32 0.0, %v5000
      %v5002 = vpop.f32.mrb[0].mxu0
      %v5003 = vadd.f32 0.0, %v5002
      %5004 = vmatprep.mubr.bf16.mxu0 0
      %5005 = vmatmul.mubr.bf16.gmra.mrb[0].mxu0 %v4918
      %v5006 = vpop.f32.mrb[0].mxu0
      %v5007 = vadd.f32 0.0, %v5006
      %v5008 = vpop.f32.mrb[0].mxu0
      %v5009 = vadd.f32 0.0, %v5008
      %v5010 = vpop.f32.mrb[0].mxu0
      %v5011 = vadd.f32 0.0, %v5010
      %v5012 = vpop.f32.mrb[0].mxu0
      %v5013 = vadd.f32 0.0, %v5012
      %5014 = vmatprep.mubr.bf16.mxu0 0
      %5015 = vmatmul.mubr.bf16.gmra.mrb[0].mxu0 %v4921
      %v5016 = vpop.f32.mrb[0].mxu0
      %v5017 = vadd.f32 0.0, %v5016
      %v5018 = vpop.f32.mrb[0].mxu0
      %v5019 = vadd.f32 0.0, %v5018
      %v5020 = vpop.f32.mrb[0].mxu0
      %v5021 = vadd.f32 0.0, %v5020
      %v5022 = vpop.f32.mrb[0].mxu0
      %v5023 = vadd.f32 0.0, %v5022
      %5024 = vmatprep.mubr.bf16.mxu0 0
      %5025 = vmatmul.mubr.bf16.gmra.mrb[0].mxu0 %v4924
      %v5026 = vpop.f32.mrb[0].mxu0
      %v5027 = vadd.f32 0.0, %v5026
      %v5028 = vpop.f32.mrb[0].mxu0
      %v5029 = vadd.f32 0.0, %v5028
      %v5030 = vpop.f32.mrb[0].mxu0
      %v5031 = vadd.f32 0.0, %v5030
      %v5032 = vpop.f32.mrb[0].mxu0
      %v5033 = vadd.f32 0.0, %v5032
      %5034 = vmatprep.mubr.bf16.mxu0 0
      %5035 = vmatmul.mubr.bf16.gmra.mrb[0].mxu0 %v4927
      %v5036 = vpop.f32.mrb[0].mxu0
      %v5037 = vadd.f32 0.0, %v5036
      %v5038 = vpop.f32.mrb[0].mxu0
      %v5039 = vadd.f32 0.0, %v5038
      %v5040 = vpop.f32.mrb[0].mxu0
      %v5041 = vadd.f32 0.0, %v5040
      %v5042 = vpop.f32.mrb[0].mxu0
      %v5043 = vadd.f32 0.0, %v5042
      %5044 = vmatprep.mubr.bf16.mxu0 0
      %5045 = vmatmul.mubr.bf16.gmra.mrb[0].mxu0 %v4930
      %v5046 = vpop.f32.mrb[0].mxu0
      %v5047 = vadd.f32 0.0, %v5046
      %v5048 = vpop.f32.mrb[0].mxu0
      %v5049 = vadd.f32 0.0, %v5048
      %v5050 = vpop.f32.mrb[0].mxu0
      %v5051 = vadd.f32 0.0, %v5050
      %v5052 = vpop.f32.mrb[0].mxu0
      %v5053 = vadd.f32 0.0, %v5052
      %5054 = vmatprep.mubr.bf16.mxu0 0
      %5055 = vmatmul.mubr.bf16.gmra.mrb[0].mxu0 %v4933
      %v5056 = vpop.f32.mrb[0].mxu0
      %v5057 = vadd.f32 0.0, %v5056
      %v5058 = vpop.f32.mrb[0].mxu0
      %v5059 = vadd.f32 0.0, %v5058
      %v5060 = vpop.f32.mrb[0].mxu0
      %v5061 = vadd.f32 0.0, %v5060
      %v5062 = vpop.f32.mrb[0].mxu0
      %v5063 = vadd.f32 0.0, %v5062
      %5064 = vmatprep.mubr.bf16.mxu0 0
      %5065 = vmatmul.mubr.bf16.gmra.mrb[0].mxu0 %v4936
      %v5066 = vpop.f32.mrb[0].mxu0
      %v5067 = vadd.f32 0.0, %v5066
      %v5068 = vpop.f32.mrb[0].mxu0
      %v5069 = vadd.f32 0.0, %v5068
      %v5070 = vpop.f32.mrb[0].mxu0
      %v5071 = vadd.f32 0.0, %v5070
      %v5072 = vpop.f32.mrb[0].mxu0
      %v5073 = vadd.f32 0.0, %v5072
      %5074 = vmatprep.mubr.bf16.mxu0 0
      %5075 = vmatmul.mubr.bf16.gmra.mrb[0].mxu0 %v4939
      %v5076 = vpop.f32.mrb[0].mxu0
      %v5077 = vadd.f32 0.0, %v5076
      %v5078 = vpop.f32.mrb[0].mxu0
      %v5079 = vadd.f32 0.0, %v5078
      %v5080 = vpop.f32.mrb[0].mxu0
      %v5081 = vadd.f32 0.0, %v5080
      %v5082 = vpop.f32.mrb[0].mxu0
      %v5083 = vadd.f32 0.0, %v5082
      %5084 = vmatprep.mubr.bf16.mxu0 0
      %5085 = vmatmul.mubr.bf16.gmra.mrb[0].mxu0 %v4942
      %v5086 = vpop.f32.mrb[0].mxu0
      %v5087 = vadd.f32 0.0, %v5086
      %v5088 = vpop.f32.mrb[0].mxu0
      %v5089 = vadd.f32 0.0, %v5088
      %v5090 = vpop.f32.mrb[0].mxu0
      %v5091 = vadd.f32 0.0, %v5090
      %v5092 = vpop.f32.mrb[0].mxu0
      %v5093 = vadd.f32 0.0, %v5092
      %5094 = vmatprep.mubr.bf16.mxu0 0
      %5095 = vmatmul.mubr.bf16.gmra.mrb[0].mxu0 %v4945
      %v5096 = vpop.f32.mrb[0].mxu0
      %v5097 = vadd.f32 0.0, %v5096
      %v5098 = vpop.f32.mrb[0].mxu0
      %v5099 = vadd.f32 0.0, %v5098
      %v5100 = vpop.f32.mrb[0].mxu0
      %v5101 = vadd.f32 0.0, %v5100
      %v5102 = vpop.f32.mrb[0].mxu0
      %v5103 = vadd.f32 0.0, %v5102
      %5104 = vmatprep.mubr.bf16.mxu0 0
      %5105 = vmatmul.mubr.bf16.gmra.mrb[0].mxu0 %v4948
      %v5106 = vpop.f32.mrb[0].mxu0
      %v5107 = vadd.f32 0.0, %v5106
      %v5108 = vpop.f32.mrb[0].mxu0
      %v5109 = vadd.f32 0.0, %v5108
      %v5110 = vpop.f32.mrb[0].mxu0
      %v5111 = vadd.f32 0.0, %v5110
      %v5112 = vpop.f32.mrb[0].mxu0
      %v5113 = vadd.f32 0.0, %v5112
      %5114 = vmatprep.mubr.bf16.mxu0 0
      %5115 = vmatmul.mubr.bf16.gmra.mrb[0].mxu0 %v4951
      %v5116 = vpop.f32.mrb[0].mxu0
      %v5117 = vadd.f32 0.0, %v5116
      %v5118 = vpop.f32.mrb[0].mxu0
      %v5119 = vadd.f32 0.0, %v5118
      %v5120 = vpop.f32.mrb[0].mxu0
      %v5121 = vadd.f32 0.0, %v5120
      %v5122 = vpop.f32.mrb[0].mxu0
      %v5123 = vadd.f32 0.0, %v5122
      %5124 = vmatprep.mubr.bf16.mxu0 0
      %5125 = vmatmul.mubr.bf16.gmra.mrb[0].mxu0 %v4954
      %v5126 = vpop.f32.mrb[0].mxu0
      %v5127 = vadd.f32 0.0, %v5126
      %v5128 = vpop.f32.mrb[0].mxu0
      %v5129 = vadd.f32 0.0, %v5128
      %v5130 = vpop.f32.mrb[0].mxu0
      %v5131 = vadd.f32 0.0, %v5130
      %v5132 = vpop.f32.mrb[0].mxu0
      %v5133 = vadd.f32 0.0, %v5132
      %5134 = vmatprep.mubr.bf16.mxu0 0
      %5135 = vmatmul.mubr.bf16.gmra.mrb[0].mxu0 %v4957
      %v5136 = vpop.f32.mrb[0].mxu0
      %v5137 = vadd.f32 0.0, %v5136
      %v5138 = vpop.f32.mrb[0].mxu0
      %v5139 = vadd.f32 0.0, %v5138
      %v5140 = vpop.f32.mrb[0].mxu0
      %v5141 = vadd.f32 0.0, %v5140
      %v5142 = vpop.f32.mrb[0].mxu0
      %v5143 = vadd.f32 0.0, %v5142
      %5144 = vmatprep.mubr.bf16.mxu0 0
      %5145 = vmatmul.mubr.bf16.gmra.mrb[0].mxu0 %v4960
      %v5146 = vpop.f32.mrb[0].mxu0
      %v5147 = vadd.f32 0.0, %v5146
      %v5148 = vpop.f32.mrb[0].mxu0
      %v5149 = vadd.f32 0.0, %v5148
      %v5150 = vpop.f32.mrb[0].mxu0
      %v5151 = vadd.f32 0.0, %v5150
      %v5152 = vpop.f32.mrb[0].mxu0
      %v5153 = vadd.f32 0.0, %v5152
      %5154 = vdwg.mxu0
      %5155 = vmatprep.subr.bf16.mxu0 0
      %5156 = vmatpush1.bf16.msra.mxu0 %v4880
      %5157 = vmatprep.subr.bf16.mxu0 0
      %5158 = vmatpush1.bf16.msra.mxu0 %v4883
      %5159 = vmatprep.subr.bf16.mxu0 0
      %5160 = vmatpush1.bf16.msra.mxu0 %v4886
      %5161 = vmatprep.subr.bf16.mxu0 0
      %5162 = vmatpush1.bf16.msra.mxu0 %v4889
      %5163 = vmatprep.subr.bf16.mxu0 0
      %5164 = vmatpush1.bf16.msra.mxu0 %v4892
      %5165 = vmatprep.subr.bf16.mxu0 0
      %5166 = vmatpush1.bf16.msra.mxu0 %v4895
      %5167 = vmatprep.subr.bf16.mxu0 0
      %5168 = vmatpush1.bf16.msra.mxu0 0
      %5169 = vmatprep.subr.bf16.mxu0 0
      %5170 = vmatpush1.bf16.msra.mxu0 0
      %5171 = vmatprep.subr.bf16.mxu0 0
      %5172 = vmatpush1.bf16.msra.mxu0 0
      %5173 = vmatprep.subr.bf16.mxu0 0
      %5174 = vmatpush1.bf16.msra.mxu0 0
      %5175 = vmatprep.subr.bf16.mxu0 0
      %5176 = vmatpush1.bf16.msra.mxu0 0
      %5177 = vmatprep.subr.bf16.mxu0 0
      %5178 = vmatpush1.bf16.msra.mxu0 0
      %5179 = vmatprep.subr.bf16.mxu0 0
      %5180 = vmatpush1.bf16.msra.mxu0 0
      %5181 = vmatprep.subr.bf16.mxu0 0
      %5182 = vmatpush1.bf16.msra.mxu0 0
      %5183 = vmatprep.subr.bf16.mxu0 0
      %5184 = vmatpush1.bf16.msra.mxu0 0
      %5185 = vmatprep.subr.bf16.mxu0 0
      %5186 = vmatpush1.bf16.msra.mxu0 0
      %5187 = vmatprep.mubr.bf16.mxu0 0
      %5188 = vmatmul.mubr.bf16.gmra.mrb[0].mxu0 %v4915
      %v5189 = vpop.f32.mrb[0].mxu0
      %v5190 = vadd.f32 0.0, %v5189
      %v5191 = vpop.f32.mrb[0].mxu0
      %v5192 = vpop.f32.mrb[0].mxu0
      %v5193 = vadd.f32 0.0, %v5192
      %v5194 = vpop.f32.mrb[0].mxu0
      %5195 = vmatprep.mubr.bf16.mxu0 0
      %5196 = vmatmul.mubr.bf16.gmra.mrb[0].mxu0 %v4918
      %v5197 = vpop.f32.mrb[0].mxu0
      %v5198 = vadd.f32 0.0, %v5197
      %v5199 = vpop.f32.mrb[0].mxu0
      %v5200 = vpop.f32.mrb[0].mxu0
      %v5201 = vadd.f32 0.0, %v5200
      %v5202 = vpop.f32.mrb[0].mxu0
      %5203 = vmatprep.mubr.bf16.mxu0 0
      %5204 = vmatmul.mubr.bf16.gmra.mrb[0].mxu0 %v4921
      %v5205 = vpop.f32.mrb[0].mxu0
      %v5206 = vadd.f32 0.0, %v5205
      %v5207 = vpop.f32.mrb[0].mxu0
      %v5208 = vpop.f32.mrb[0].mxu0
      %v5209 = vadd.f32 0.0, %v5208
      %v5210 = vpop.f32.mrb[0].mxu0
      %5211 = vmatprep.mubr.bf16.mxu0 0
      %5212 = vmatmul.mubr.bf16.gmra.mrb[0].mxu0 %v4924
      %v5213 = vpop.f32.mrb[0].mxu0
      %v5214 = vadd.f32 0.0, %v5213
      %v5215 = vpop.f32.mrb[0].mxu0
      %v5216 = vpop.f32.mrb[0].mxu0
      %v5217 = vadd.f32 0.0, %v5216
      %v5218 = vpop.f32.mrb[0].mxu0
      %5219 = vmatprep.mubr.bf16.mxu0 0
      %5220 = vmatmul.mubr.bf16.gmra.mrb[0].mxu0 %v4927
      %v5221 = vpop.f32.mrb[0].mxu0
      %v5222 = vadd.f32 0.0, %v5221
      %v5223 = vpop.f32.mrb[0].mxu0
      %v5224 = vpop.f32.mrb[0].mxu0
      %v5225 = vadd.f32 0.0, %v5224
      %v5226 = vpop.f32.mrb[0].mxu0
      %5227 = vmatprep.mubr.bf16.mxu0 0
      %5228 = vmatmul.mubr.bf16.gmra.mrb[0].mxu0 %v4930
      %v5229 = vpop.f32.mrb[0].mxu0
      %v5230 = vadd.f32 0.0, %v5229
      %v5231 = vpop.f32.mrb[0].mxu0
      %v5232 = vpop.f32.mrb[0].mxu0
      %v5233 = vadd.f32 0.0, %v5232
      %v5234 = vpop.f32.mrb[0].mxu0
      %5235 = vmatprep.mubr.bf16.mxu0 0
      %5236 = vmatmul.mubr.bf16.gmra.mrb[0].mxu0 %v4933
      %v5237 = vpop.f32.mrb[0].mxu0
      %v5238 = vadd.f32 0.0, %v5237
      %v5239 = vpop.f32.mrb[0].mxu0
      %v5240 = vpop.f32.mrb[0].mxu0
      %v5241 = vadd.f32 0.0, %v5240
      %v5242 = vpop.f32.mrb[0].mxu0
      %5243 = vmatprep.mubr.bf16.mxu0 0
      %5244 = vmatmul.mubr.bf16.gmra.mrb[0].mxu0 %v4936
      %v5245 = vpop.f32.mrb[0].mxu0
      %v5246 = vadd.f32 0.0, %v5245
      %v5247 = vpop.f32.mrb[0].mxu0
      %v5248 = vpop.f32.mrb[0].mxu0
      %v5249 = vadd.f32 0.0, %v5248
      %v5250 = vpop.f32.mrb[0].mxu0
      %5251 = vmatprep.mubr.bf16.mxu0 0
      %5252 = vmatmul.mubr.bf16.gmra.mrb[0].mxu0 %v4939
      %v5253 = vpop.f32.mrb[0].mxu0
      %v5254 = vadd.f32 0.0, %v5253
      %v5255 = vpop.f32.mrb[0].mxu0
      %v5256 = vpop.f32.mrb[0].mxu0
      %v5257 = vadd.f32 0.0, %v5256
      %v5258 = vpop.f32.mrb[0].mxu0
      %5259 = vmatprep.mubr.bf16.mxu0 0
      %5260 = vmatmul.mubr.bf16.gmra.mrb[0].mxu0 %v4942
      %v5261 = vpop.f32.mrb[0].mxu0
      %v5262 = vadd.f32 0.0, %v5261
      %v5263 = vpop.f32.mrb[0].mxu0
      %v5264 = vpop.f32.mrb[0].mxu0
      %v5265 = vadd.f32 0.0, %v5264
      %v5266 = vpop.f32.mrb[0].mxu0
      %5267 = vmatprep.mubr.bf16.mxu0 0
      %5268 = vmatmul.mubr.bf16.gmra.mrb[0].mxu0 %v4945
      %v5269 = vpop.f32.mrb[0].mxu0
      %v5270 = vadd.f32 0.0, %v5269
      %v5271 = vpop.f32.mrb[0].mxu0
      %v5272 = vpop.f32.mrb[0].mxu0
      %v5273 = vadd.f32 0.0, %v5272
      %v5274 = vpop.f32.mrb[0].mxu0
      %5275 = vmatprep.mubr.bf16.mxu0 0
      %5276 = vmatmul.mubr.bf16.gmra.mrb[0].mxu0 %v4948
      %v5277 = vpop.f32.mrb[0].mxu0
      %v5278 = vadd.f32 0.0, %v5277
      %v5279 = vpop.f32.mrb[0].mxu0
      %v5280 = vpop.f32.mrb[0].mxu0
      %v5281 = vadd.f32 0.0, %v5280
      %v5282 = vpop.f32.mrb[0].mxu0
      %5283 = vmatprep.mubr.bf16.mxu0 0
      %5284 = vmatmul.mubr.bf16.gmra.mrb[0].mxu0 %v4951
      %v5285 = vpop.f32.mrb[0].mxu0
      %v5286 = vadd.f32 0.0, %v5285
      %v5287 = vpop.f32.mrb[0].mxu0
      %v5288 = vpop.f32.mrb[0].mxu0
      %v5289 = vadd.f32 0.0, %v5288
      %v5290 = vpop.f32.mrb[0].mxu0
      %5291 = vmatprep.mubr.bf16.mxu0 0
      %5292 = vmatmul.mubr.bf16.gmra.mrb[0].mxu0 %v4954
      %v5293 = vpop.f32.mrb[0].mxu0
      %v5294 = vadd.f32 0.0, %v5293
      %v5295 = vpop.f32.mrb[0].mxu0
      %v5296 = vpop.f32.mrb[0].mxu0
      %v5297 = vadd.f32 0.0, %v5296
      %v5298 = vpop.f32.mrb[0].mxu0
      %5299 = vmatprep.mubr.bf16.mxu0 0
      %5300 = vmatmul.mubr.bf16.gmra.mrb[0].mxu0 %v4957
      %v5301 = vpop.f32.mrb[0].mxu0
      %v5302 = vadd.f32 0.0, %v5301
      %v5303 = vpop.f32.mrb[0].mxu0
      %v5304 = vpop.f32.mrb[0].mxu0
      %v5305 = vadd.f32 0.0, %v5304
      %v5306 = vpop.f32.mrb[0].mxu0
      %5307 = vmatprep.mubr.bf16.mxu0 0
      %5308 = vmatmul.mubr.bf16.gmra.mrb[0].mxu0 %v4960
      %v5309 = vpop.f32.mrb[0].mxu0
      %v5310 = vadd.f32 0.0, %v5309
      %v5311 = vpop.f32.mrb[0].mxu0
      %v5312 = vpop.f32.mrb[0].mxu0
      %v5313 = vadd.f32 0.0, %v5312
      %v5314 = vpop.f32.mrb[0].mxu0
      %5315 = vdwg.mxu0
      %v5316 = vadd.f32 %v4553, %v4997
      %v5317 = vadd.f32 %v4554, %v4999
      %v5318 = vadd.f32 %v4555, %v5190
      %v5319 = vadd.f32 %v4556, %v5001
      %v5320 = vadd.f32 %v4557, %v5003
      %v5321 = vadd.f32 %v4558, %v5193
      %v5322 = vadd.f32 %v4559, %v5007
      %v5323 = vadd.f32 %v4560, %v5009
      %v5324 = vadd.f32 %v4561, %v5198
      %v5325 = vadd.f32 %v4562, %v5011
      %v5326 = vadd.f32 %v4563, %v5013
      %v5327 = vadd.f32 %v4564, %v5201
      %v5328 = vadd.f32 %v4565, %v5017
      %v5329 = vadd.f32 %v4566, %v5019
      %v5330 = vadd.f32 %v4567, %v5206
      %v5331 = vadd.f32 %v4568, %v5021
      %v5332 = vadd.f32 %v4569, %v5023
      %v5333 = vadd.f32 %v4570, %v5209
      %v5334 = vadd.f32 %v4571, %v5027
      %v5335 = vadd.f32 %v4572, %v5029
      %v5336 = vadd.f32 %v4573, %v5214
      %v5337 = vadd.f32 %v4574, %v5031
      %v5338 = vadd.f32 %v4575, %v5033
      %v5339 = vadd.f32 %v4576, %v5217
      %v5340 = vadd.f32 %v4577, %v5037
      %v5341 = vadd.f32 %v4578, %v5039
      %v5342 = vadd.f32 %v4579, %v5222
      %v5343 = vadd.f32 %v4580, %v5041
      %v5344 = vadd.f32 %v4581, %v5043
      %v5345 = vadd.f32 %v4582, %v5225
      %v5346 = vadd.f32 %v4583, %v5047
      %v5347 = vadd.f32 %v4584, %v5049
      %v5348 = vadd.f32 %v4585, %v5230
      %v5349 = vadd.f32 %v4586, %v5051
      %v5350 = vadd.f32 %v4587, %v5053
      %v5351 = vadd.f32 %v4588, %v5233
      %v5352 = vadd.f32 %v4589, %v5057
      %v5353 = vadd.f32 %v4590, %v5059
      %v5354 = vadd.f32 %v4591, %v5238
      %v5355 = vadd.f32 %v4592, %v5061
      %v5356 = vadd.f32 %v4593, %v5063
      %v5357 = vadd.f32 %v4594, %v5241
      %v5358 = vadd.f32 %v4595, %v5067
      %v5359 = vadd.f32 %v4596, %v5069
      %v5360 = vadd.f32 %v4597, %v5246
      %v5361 = vadd.f32 %v4598, %v5071
      %v5362 = vadd.f32 %v4599, %v5073
      %v5363 = vadd.f32 %v4600, %v5249
      %v5364 = vadd.f32 %v4601, %v5077
      %v5365 = vadd.f32 %v4602, %v5079
      %v5366 = vadd.f32 %v4603, %v5254
      %v5367 = vadd.f32 %v4604, %v5081
      %v5368 = vadd.f32 %v4605, %v5083
      %v5369 = vadd.f32 %v4606, %v5257
      %v5370 = vadd.f32 %v4607, %v5087
      %v5371 = vadd.f32 %v4608, %v5089
      %v5372 = vadd.f32 %v4609, %v5262
      %v5373 = vadd.f32 %v4610, %v5091
      %v5374 = vadd.f32 %v4611, %v5093
      %v5375 = vadd.f32 %v4612, %v5265
      %v5376 = vadd.f32 %v4613, %v5097
      %v5377 = vadd.f32 %v4614, %v5099
      %v5378 = vadd.f32 %v4615, %v5270
      %v5379 = vadd.f32 %v4616, %v5101
      %v5380 = vadd.f32 %v4617, %v5103
      %v5381 = vadd.f32 %v4618, %v5273
      %v5382 = vadd.f32 %v4619, %v5107
      %v5383 = vadd.f32 %v4620, %v5109
      %v5384 = vadd.f32 %v4621, %v5278
      %v5385 = vadd.f32 %v4622, %v5111
      %v5386 = vadd.f32 %v4623, %v5113
      %v5387 = vadd.f32 %v4624, %v5281
      %v5388 = vadd.f32 %v4625, %v5117
      %v5389 = vadd.f32 %v4626, %v5119
      %v5390 = vadd.f32 %v4627, %v5286
      %v5391 = vadd.f32 %v4628, %v5121
      %v5392 = vadd.f32 %v4629, %v5123
      %v5393 = vadd.f32 %v4630, %v5289
      %v5394 = vadd.f32 %v4631, %v5127
      %v5395 = vadd.f32 %v4632, %v5129
      %v5396 = vadd.f32 %v4633, %v5294
      %v5397 = vadd.f32 %v4634, %v5131
      %v5398 = vadd.f32 %v4635, %v5133
      %v5399 = vadd.f32 %v4636, %v5297
      %v5400 = vadd.f32 %v4637, %v5137
      %v5401 = vadd.f32 %v4638, %v5139
      %v5402 = vadd.f32 %v4639, %v5302
      %v5403 = vadd.f32 %v4640, %v5141
      %v5404 = vadd.f32 %v4641, %v5143
      %v5405 = vadd.f32 %v4642, %v5305
      %v5406 = vadd.f32 %v4643, %v5147
      %v5407 = vadd.f32 %v4644, %v5149
      %v5408 = vadd.f32 %v4645, %v5310
      %v5409 = vadd.f32 %v4646, %v5151
      %v5410 = vadd.f32 %v4647, %v5153
      %v5411 = vadd.f32 %v4648, %v5313
      %5412 = vst [vmem:[#allocation2] sm:$0xff] %v5316
      %5413 = vst [vmem:[#allocation2 + $0x8] sm:$0xff] %v5317
      %5414 = vst.msk [vmem:[#allocation2 + $0x10] sm:$0xff] %vm461, %v5318
      %5415 = vst [vmem:[#allocation2 + $0x18] sm:$0xff] %v5319
      %5416 = vst [vmem:[#allocation2 + $0x20] sm:$0xff] %v5320
      %5417 = vst.msk [vmem:[#allocation2 + $0x28] sm:$0xff] %vm461, %v5321
      %5418 = vst [vmem:[#allocation2 + $0x30] sm:$0xff] %v5322
      %5419 = vst [vmem:[#allocation2 + $0x38] sm:$0xff] %v5323
      %5420 = vst.msk [vmem:[#allocation2 + $0x40] sm:$0xff] %vm461, %v5324
      %5421 = vst [vmem:[#allocation2 + $0x48] sm:$0xff] %v5325
      %5422 = vst [vmem:[#allocation2 + $0x50] sm:$0xff] %v5326
      %5423 = vst.msk [vmem:[#allocation2 + $0x58] sm:$0xff] %vm461, %v5327
      %5424 = vst [vmem:[#allocation2 + $0x60] sm:$0xff] %v5328
      %5425 = vst [vmem:[#allocation2 + $0x68] sm:$0xff] %v5329
      %5426 = vst.msk [vmem:[#allocation2 + $0x70] sm:$0xff] %vm461, %v5330
      %5427 = vst [vmem:[#allocation2 + $0x78] sm:$0xff] %v5331
      %5428 = vst [vmem:[#allocation2 + $0x80] sm:$0xff] %v5332
      %5429 = vst.msk [vmem:[#allocation2 + $0x88] sm:$0xff] %vm461, %v5333
      %5430 = vst [vmem:[#allocation2 + $0x90] sm:$0xff] %v5334
      %5431 = vst [vmem:[#allocation2 + $0x98] sm:$0xff] %v5335
      %5432 = vst.msk [vmem:[#allocation2 + $0xa0] sm:$0xff] %vm461, %v5336
      %5433 = vst [vmem:[#allocation2 + $0xa8] sm:$0xff] %v5337
      %5434 = vst [vmem:[#allocation2 + $0xb0] sm:$0xff] %v5338
      %5435 = vst.msk [vmem:[#allocation2 + $0xb8] sm:$0xff] %vm461, %v5339
      %5436 = vst [vmem:[#allocation2 + $0xc0] sm:$0xff] %v5340
      %5437 = vst [vmem:[#allocation2 + $0xc8] sm:$0xff] %v5341
      %5438 = vst.msk [vmem:[#allocation2 + $0xd0] sm:$0xff] %vm461, %v5342
      %5439 = vst [vmem:[#allocation2 + $0xd8] sm:$0xff] %v5343
      %5440 = vst [vmem:[#allocation2 + $0xe0] sm:$0xff] %v5344
      %5441 = vst.msk [vmem:[#allocation2 + $0xe8] sm:$0xff] %vm461, %v5345
      %5442 = vst [vmem:[#allocation2 + $0xf0] sm:$0xff] %v5346
      %5443 = vst [vmem:[#allocation2 + $0xf8] sm:$0xff] %v5347
      %5444 = vst.msk [vmem:[#allocation2 + $0x100] sm:$0xff] %vm461, %v5348
      %5445 = vst [vmem:[#allocation2 + $0x108] sm:$0xff] %v5349
      %5446 = vst [vmem:[#allocation2 + $0x110] sm:$0xff] %v5350
      %5447 = vst.msk [vmem:[#allocation2 + $0x118] sm:$0xff] %vm461, %v5351
      %5448 = vst [vmem:[#allocation2 + $0x120] sm:$0xff] %v5352
      %5449 = vst [vmem:[#allocation2 + $0x128] sm:$0xff] %v5353
      %5450 = vst.msk [vmem:[#allocation2 + $0x130] sm:$0xff] %vm461, %v5354
      %5451 = vst [vmem:[#allocation2 + $0x138] sm:$0xff] %v5355
      %5452 = vst [vmem:[#allocation2 + $0x140] sm:$0xff] %v5356
      %5453 = vst.msk [vmem:[#allocation2 + $0x148] sm:$0xff] %vm461, %v5357
      %5454 = vst [vmem:[#allocation2 + $0x150] sm:$0xff] %v5358
      %5455 = vst [vmem:[#allocation2 + $0x158] sm:$0xff] %v5359
      %5456 = vst.msk [vmem:[#allocation2 + $0x160] sm:$0xff] %vm461, %v5360
      %5457 = vst [vmem:[#allocation2 + $0x168] sm:$0xff] %v5361
      %5458 = vst [vmem:[#allocation2 + $0x170] sm:$0xff] %v5362
      %5459 = vst.msk [vmem:[#allocation2 + $0x178] sm:$0xff] %vm461, %v5363
      %5460 = vst [vmem:[#allocation2 + $0x180] sm:$0xff] %v5364
      %5461 = vst [vmem:[#allocation2 + $0x188] sm:$0xff] %v5365
      %5462 = vst.msk [vmem:[#allocation2 + $0x190] sm:$0xff] %vm461, %v5366
      %5463 = vst [vmem:[#allocation2 + $0x198] sm:$0xff] %v5367
      %5464 = vst [vmem:[#allocation2 + $0x1a0] sm:$0xff] %v5368
      %5465 = vst.msk [vmem:[#allocation2 + $0x1a8] sm:$0xff] %vm461, %v5369
      %5466 = vst [vmem:[#allocation2 + $0x1b0] sm:$0xff] %v5370
      %5467 = vst [vmem:[#allocation2 + $0x1b8] sm:$0xff] %v5371
      %5468 = vst.msk [vmem:[#allocation2 + $0x1c0] sm:$0xff] %vm461, %v5372
      %5469 = vst [vmem:[#allocation2 + $0x1c8] sm:$0xff] %v5373
      %5470 = vst [vmem:[#allocation2 + $0x1d0] sm:$0xff] %v5374
      %5471 = vst.msk [vmem:[#allocation2 + $0x1d8] sm:$0xff] %vm461, %v5375
      %5472 = vst [vmem:[#allocation2 + $0x1e0] sm:$0xff] %v5376
      %5473 = vst [vmem:[#allocation2 + $0x1e8] sm:$0xff] %v5377
      %5474 = vst.msk [vmem:[#allocation2 + $0x1f0] sm:$0xff] %vm461, %v5378
      %5475 = vst [vmem:[#allocation2 + $0x1f8] sm:$0xff] %v5379
      %5476 = vst [vmem:[#allocation2 + $0x200] sm:$0xff] %v5380
      %5477 = vst.msk [vmem:[#allocation2 + $0x208] sm:$0xff] %vm461, %v5381
      %5478 = vst [vmem:[#allocation2 + $0x210] sm:$0xff] %v5382
      %5479 = vst [vmem:[#allocation2 + $0x218] sm:$0xff] %v5383
      %5480 = vst.msk [vmem:[#allocation2 + $0x220] sm:$0xff] %vm461, %v5384
      %5481 = vst [vmem:[#allocation2 + $0x228] sm:$0xff] %v5385
      %5482 = vst [vmem:[#allocation2 + $0x230] sm:$0xff] %v5386
      %5483 = vst.msk [vmem:[#allocation2 + $0x238] sm:$0xff] %vm461, %v5387
      %5484 = vst [vmem:[#allocation2 + $0x240] sm:$0xff] %v5388
      %5485 = vst [vmem:[#allocation2 + $0x248] sm:$0xff] %v5389
      %5486 = vst.msk [vmem:[#allocation2 + $0x250] sm:$0xff] %vm461, %v5390
      %5487 = vst [vmem:[#allocation2 + $0x258] sm:$0xff] %v5391
      %5488 = vst [vmem:[#allocation2 + $0x260] sm:$0xff] %v5392
      %5489 = vst.msk [vmem:[#allocation2 + $0x268] sm:$0xff] %vm461, %v5393
      %5490 = vst [vmem:[#allocation2 + $0x270] sm:$0xff] %v5394
      %5491 = vst [vmem:[#allocation2 + $0x278] sm:$0xff] %v5395
      %5492 = vst.msk [vmem:[#allocation2 + $0x280] sm:$0xff] %vm461, %v5396
      %5493 = vst [vmem:[#allocation2 + $0x288] sm:$0xff] %v5397
      %5494 = vst [vmem:[#allocation2 + $0x290] sm:$0xff] %v5398
      %5495 = vst.msk [vmem:[#allocation2 + $0x298] sm:$0xff] %vm461, %v5399
      %5496 = vst [vmem:[#allocation2 + $0x2a0] sm:$0xff] %v5400
      %5497 = vst [vmem:[#allocation2 + $0x2a8] sm:$0xff] %v5401
      %5498 = vst.msk [vmem:[#allocation2 + $0x2b0] sm:$0xff] %vm461, %v5402
      %5499 = vst [vmem:[#allocation2 + $0x2b8] sm:$0xff] %v5403
      %5500 = vst [vmem:[#allocation2 + $0x2c0] sm:$0xff] %v5404
      %5501 = vst.msk [vmem:[#allocation2 + $0x2c8] sm:$0xff] %vm461, %v5405
      %5502 = vst [vmem:[#allocation2 + $0x2d0] sm:$0xff] %v5406
      %5503 = vst [vmem:[#allocation2 + $0x2d8] sm:$0xff] %v5407
      %5504 = vst.msk [vmem:[#allocation2 + $0x2e0] sm:$0xff] %vm461, %v5408
      %5505 = vst [vmem:[#allocation2 + $0x2e8] sm:$0xf] %v5409
      %5506 = vst [vmem:[#allocation2 + $0x2f0] sm:$0xf] %v5410
      %5507 = vst.msk [vmem:[#allocation2 + $0x2f8] sm:$0xf] %vm555, %v5411
      %v5508 = vld [vmem:[#allocation2] sm:$0xff]
      %v5509 = vld [vmem:[#allocation2 + $0x8] sm:$0xff]
      %v5510 = vld [vmem:[#allocation2 + $0x10] sm:$0xff]
      %v5511 = vld [vmem:[#allocation2 + $0x18] sm:$0xff]
      %v5512 = vld [vmem:[#allocation2 + $0x20] sm:$0xff]
      %v5513 = vld [vmem:[#allocation2 + $0x28] sm:$0xff]
      %v5514 = vld [vmem:[#allocation2 + $0x30] sm:$0xff]
      %v5515 = vld [vmem:[#allocation2 + $0x38] sm:$0xff]
      %v5516 = vld [vmem:[#allocation2 + $0x40] sm:$0xff]
      %v5517 = vld [vmem:[#allocation2 + $0x48] sm:$0xff]
      %v5518 = vld [vmem:[#allocation2 + $0x50] sm:$0xff]
      %v5519 = vld [vmem:[#allocation2 + $0x58] sm:$0xff]
      %v5520 = vld [vmem:[#allocation2 + $0x60] sm:$0xff]
      %v5521 = vld [vmem:[#allocation2 + $0x68] sm:$0xff]
      %v5522 = vld [vmem:[#allocation2 + $0x70] sm:$0xff]
      %v5523 = vld [vmem:[#allocation2 + $0x78] sm:$0xff]
      %v5524 = vld [vmem:[#allocation2 + $0x80] sm:$0xff]
      %v5525 = vld [vmem:[#allocation2 + $0x88] sm:$0xff]
      %v5526 = vld [vmem:[#allocation2 + $0x90] sm:$0xff]
      %v5527 = vld [vmem:[#allocation2 + $0x98] sm:$0xff]
      %v5528 = vld [vmem:[#allocation2 + $0xa0] sm:$0xff]
      %v5529 = vld [vmem:[#allocation2 + $0xa8] sm:$0xff]
      %v5530 = vld [vmem:[#allocation2 + $0xb0] sm:$0xff]
      %v5531 = vld [vmem:[#allocation2 + $0xb8] sm:$0xff]
      %v5532 = vld [vmem:[#allocation2 + $0xc0] sm:$0xff]
      %v5533 = vld [vmem:[#allocation2 + $0xc8] sm:$0xff]
      %v5534 = vld [vmem:[#allocation2 + $0xd0] sm:$0xff]
      %v5535 = vld [vmem:[#allocation2 + $0xd8] sm:$0xff]
      %v5536 = vld [vmem:[#allocation2 + $0xe0] sm:$0xff]
      %v5537 = vld [vmem:[#allocation2 + $0xe8] sm:$0xff]
      %v5538 = vld [vmem:[#allocation2 + $0xf0] sm:$0xff]
      %v5539 = vld [vmem:[#allocation2 + $0xf8] sm:$0xff]
      %v5540 = vld [vmem:[#allocation2 + $0x100] sm:$0xff]
      %v5541 = vld [vmem:[#allocation2 + $0x108] sm:$0xff]
      %v5542 = vld [vmem:[#allocation2 + $0x110] sm:$0xff]
      %v5543 = vld [vmem:[#allocation2 + $0x118] sm:$0xff]
      %v5544 = vld [vmem:[#allocation2 + $0x120] sm:$0xff]
      %v5545 = vld [vmem:[#allocation2 + $0x128] sm:$0xff]
      %v5546 = vld [vmem:[#allocation2 + $0x130] sm:$0xff]
      %v5547 = vld [vmem:[#allocation2 + $0x138] sm:$0xff]
      %v5548 = vld [vmem:[#allocation2 + $0x140] sm:$0xff]
      %v5549 = vld [vmem:[#allocation2 + $0x148] sm:$0xff]
      %v5550 = vld [vmem:[#allocation2 + $0x150] sm:$0xff]
      %v5551 = vld [vmem:[#allocation2 + $0x158] sm:$0xff]
      %v5552 = vld [vmem:[#allocation2 + $0x160] sm:$0xff]
      %v5553 = vld [vmem:[#allocation2 + $0x168] sm:$0xff]
      %v5554 = vld [vmem:[#allocation2 + $0x170] sm:$0xff]
      %v5555 = vld [vmem:[#allocation2 + $0x178] sm:$0xff]
      %v5556 = vld [vmem:[#allocation2 + $0x180] sm:$0xff]
      %v5557 = vld [vmem:[#allocation2 + $0x188] sm:$0xff]
      %v5558 = vld [vmem:[#allocation2 + $0x190] sm:$0xff]
      %v5559 = vld [vmem:[#allocation2 + $0x198] sm:$0xff]
      %v5560 = vld [vmem:[#allocation2 + $0x1a0] sm:$0xff]
      %v5561 = vld [vmem:[#allocation2 + $0x1a8] sm:$0xff]
      %v5562 = vld [vmem:[#allocation2 + $0x1b0] sm:$0xff]
      %v5563 = vld [vmem:[#allocation2 + $0x1b8] sm:$0xff]
      %v5564 = vld [vmem:[#allocation2 + $0x1c0] sm:$0xff]
      %v5565 = vld [vmem:[#allocation2 + $0x1c8] sm:$0xff]
      %v5566 = vld [vmem:[#allocation2 + $0x1d0] sm:$0xff]
      %v5567 = vld [vmem:[#allocation2 + $0x1d8] sm:$0xff]
      %v5568 = vld [vmem:[#allocation2 + $0x1e0] sm:$0xff]
      %v5569 = vld [vmem:[#allocation2 + $0x1e8] sm:$0xff]
      %v5570 = vld [vmem:[#allocation2 + $0x1f0] sm:$0xff]
      %v5571 = vld [vmem:[#allocation2 + $0x1f8] sm:$0xff]
      %v5572 = vld [vmem:[#allocation2 + $0x200] sm:$0xff]
      %v5573 = vld [vmem:[#allocation2 + $0x208] sm:$0xff]
      %v5574 = vld [vmem:[#allocation2 + $0x210] sm:$0xff]
      %v5575 = vld [vmem:[#allocation2 + $0x218] sm:$0xff]
      %v5576 = vld [vmem:[#allocation2 + $0x220] sm:$0xff]
      %v5577 = vld [vmem:[#allocation2 + $0x228] sm:$0xff]
      %v5578 = vld [vmem:[#allocation2 + $0x230] sm:$0xff]
      %v5579 = vld [vmem:[#allocation2 + $0x238] sm:$0xff]
      %v5580 = vld [vmem:[#allocation2 + $0x240] sm:$0xff]
      %v5581 = vld [vmem:[#allocation2 + $0x248] sm:$0xff]
      %v5582 = vld [vmem:[#allocation2 + $0x250] sm:$0xff]
      %v5583 = vld [vmem:[#allocation2 + $0x258] sm:$0xff]
      %v5584 = vld [vmem:[#allocation2 + $0x260] sm:$0xff]
      %v5585 = vld [vmem:[#allocation2 + $0x268] sm:$0xff]
      %v5586 = vld [vmem:[#allocation2 + $0x270] sm:$0xff]
      %v5587 = vld [vmem:[#allocation2 + $0x278] sm:$0xff]
      %v5588 = vld [vmem:[#allocation2 + $0x280] sm:$0xff]
      %v5589 = vld [vmem:[#allocation2 + $0x288] sm:$0xff]
      %v5590 = vld [vmem:[#allocation2 + $0x290] sm:$0xff]
      %v5591 = vld [vmem:[#allocation2 + $0x298] sm:$0xff]
      %v5592 = vld [vmem:[#allocation2 + $0x2a0] sm:$0xff]
      %v5593 = vld [vmem:[#allocation2 + $0x2a8] sm:$0xff]
      %v5594 = vld [vmem:[#allocation2 + $0x2b0] sm:$0xff]
      %v5595 = vld [vmem:[#allocation2 + $0x2b8] sm:$0xff]
      %v5596 = vld [vmem:[#allocation2 + $0x2c0] sm:$0xff]
      %v5597 = vld [vmem:[#allocation2 + $0x2c8] sm:$0xff]
      %v5598 = vld [vmem:[#allocation2 + $0x2d0] sm:$0xff]
      %v5599 = vld [vmem:[#allocation2 + $0x2d8] sm:$0xff]
      %v5600 = vld [vmem:[#allocation2 + $0x2e0] sm:$0xff]
      %v5601 = vld [vmem:[#allocation2 + $0x2e8] sm:$0xf]
      %v5602 = vld [vmem:[#allocation2 + $0x2f0] sm:$0xf]
      %v5603 = vld [vmem:[#allocation2 + $0x2f8] sm:$0xf]
      %v5604 = vpack.c.bf16 %v5511, %v5508
      %v5605 = vpack.c.bf16 %v5512, %v5509
      %v5606 = vpack.c.bf16 %v5513, %v5510
      %v5607 = vpack.c.bf16 %v5517, %v5514
      %v5608 = vpack.c.bf16 %v5518, %v5515
      %v5609 = vpack.c.bf16 %v5519, %v5516
      %v5610 = vpack.c.bf16 %v5523, %v5520
      %v5611 = vpack.c.bf16 %v5524, %v5521
      %v5612 = vpack.c.bf16 %v5525, %v5522
      %v5613 = vpack.c.bf16 %v5529, %v5526
      %v5614 = vpack.c.bf16 %v5530, %v5527
      %v5615 = vpack.c.bf16 %v5531, %v5528
      %v5616 = vpack.c.bf16 %v5535, %v5532
      %v5617 = vpack.c.bf16 %v5536, %v5533
      %v5618 = vpack.c.bf16 %v5537, %v5534
      %v5619 = vpack.c.bf16 %v5541, %v5538
      %v5620 = vpack.c.bf16 %v5542, %v5539
      %v5621 = vpack.c.bf16 %v5543, %v5540
      %v5622 = vpack.c.bf16 %v5547, %v5544
      %v5623 = vpack.c.bf16 %v5548, %v5545
      %v5624 = vpack.c.bf16 %v5549, %v5546
      %v5625 = vpack.c.bf16 %v5553, %v5550
      %v5626 = vpack.c.bf16 %v5554, %v5551
      %v5627 = vpack.c.bf16 %v5555, %v5552
      %v5628 = vpack.c.bf16 %v5559, %v5556
      %v5629 = vpack.c.bf16 %v5560, %v5557
      %v5630 = vpack.c.bf16 %v5561, %v5558
      %v5631 = vpack.c.bf16 %v5565, %v5562
      %v5632 = vpack.c.bf16 %v5566, %v5563
      %v5633 = vpack.c.bf16 %v5567, %v5564
      %v5634 = vpack.c.bf16 %v5571, %v5568
      %v5635 = vpack.c.bf16 %v5572, %v5569
      %v5636 = vpack.c.bf16 %v5573, %v5570
      %v5637 = vpack.c.bf16 %v5577, %v5574
      %v5638 = vpack.c.bf16 %v5578, %v5575
      %v5639 = vpack.c.bf16 %v5579, %v5576
      %v5640 = vpack.c.bf16 %v5583, %v5580
      %v5641 = vpack.c.bf16 %v5584, %v5581
      %v5642 = vpack.c.bf16 %v5585, %v5582
      %v5643 = vpack.c.bf16 %v5589, %v5586
      %v5644 = vpack.c.bf16 %v5590, %v5587
      %v5645 = vpack.c.bf16 %v5591, %v5588
      %v5646 = vpack.c.bf16 %v5595, %v5592
      %v5647 = vpack.c.bf16 %v5596, %v5593
      %v5648 = vpack.c.bf16 %v5597, %v5594
      %v5649 = vpack.c.bf16 %v5601, %v5598
      %v5650 = vpack.c.bf16 %v5602, %v5599
      %v5651 = vpack.c.bf16 %v5603, %v5600
      %v5652 = vld [vmem:[%s3] sm:$0xff]
      %v5653 = vld [vmem:[%s3 + $0x8] sm:$0xff]
      %v5654 = vld [vmem:[%s3 + $0x10] sm:$0xff]
      %v5655 = vld [vmem:[%s3 + $0x18] sm:$0xff]
      %v5656 = vld [vmem:[%s3 + $0x20] sm:$0xff]
      %v5657 = vld [vmem:[%s3 + $0x28] sm:$0xff]
      %v5658 = vld [vmem:[%s3 + $0x30] sm:$0xff]
      %v5659 = vld [vmem:[%s3 + $0x38] sm:$0xff]
      %v5660 = vld [vmem:[%s3 + $0x40] sm:$0xff]
      %v5661 = vld [vmem:[%s3 + $0x48] sm:$0xff]
      %v5662 = vld [vmem:[%s3 + $0x50] sm:$0xff]
      %v5663 = vld [vmem:[%s3 + $0x58] sm:$0xff]
      %v5664 = vld [vmem:[%s3 + $0x60] sm:$0xff]
      %v5665 = vld [vmem:[%s3 + $0x68] sm:$0xff]
      %v5666 = vld [vmem:[%s3 + $0x70] sm:$0xff]
      %v5667 = vld [vmem:[%s3 + $0x78] sm:$0xff]
      %v5684 = vunpack.c.l.b16 %v5652
      %v5685 = vunpack.c.h.b16 %v5652
      %v5686 = vunpack.c.l.b16 %v5653
      %v5687 = vunpack.c.h.b16 %v5653
      %v5688 = vunpack.c.l.b16 %v5654
      %v5689 = vunpack.c.h.b16 %v5654
      %v5690 = vunpack.c.l.b16 %v5655
      %v5691 = vunpack.c.h.b16 %v5655
      %v5692 = vunpack.c.l.b16 %v5656
      %v5693 = vunpack.c.h.b16 %v5656
      %v5694 = vunpack.c.l.b16 %v5657
      %v5695 = vunpack.c.h.b16 %v5657
      %v5696 = vunpack.c.l.b16 %v5658
      %v5697 = vunpack.c.h.b16 %v5658
      %v5698 = vunpack.c.l.b16 %v5659
      %v5699 = vunpack.c.h.b16 %v5659
      %v5700 = vunpack.c.l.b16 %v5660
      %v5701 = vunpack.c.h.b16 %v5660
      %v5702 = vunpack.c.l.b16 %v5661
      %v5703 = vunpack.c.h.b16 %v5661
      %v5704 = vunpack.c.l.b16 %v5662
      %v5705 = vunpack.c.h.b16 %v5662
      %v5706 = vunpack.c.l.b16 %v5663
      %v5707 = vunpack.c.h.b16 %v5663
      %v5708 = vunpack.c.l.b16 %v5664
      %v5709 = vunpack.c.h.b16 %v5664
      %v5710 = vunpack.c.l.b16 %v5665
      %v5711 = vunpack.c.h.b16 %v5665
      %v5712 = vunpack.c.l.b16 %v5666
      %v5713 = vunpack.c.h.b16 %v5666
      %v5714 = vunpack.c.l.b16 %v5667
      %v5715 = vunpack.c.h.b16 %v5667
      %v5716 = vpack.c.b16 %v5686, %v5684
      %v5717 = vpack.c.b16 %v5687, %v5685
      %v5718 = vpack.c.b16 %v5690, %v5688
      %v5719 = vpack.c.b16 %v5691, %v5689
      %v5720 = vpack.c.b16 %v5694, %v5692
      %v5721 = vpack.c.b16 %v5695, %v5693
      %v5722 = vpack.c.b16 %v5698, %v5696
      %v5723 = vpack.c.b16 %v5699, %v5697
      %v5724 = vpack.c.b16 %v5702, %v5700
      %v5725 = vpack.c.b16 %v5703, %v5701
      %v5726 = vpack.c.b16 %v5706, %v5704
      %v5727 = vpack.c.b16 %v5707, %v5705
      %v5728 = vpack.c.b16 %v5710, %v5708
      %v5729 = vpack.c.b16 %v5711, %v5709
      %v5730 = vpack.c.b16 %v5714, %v5712
      %v5731 = vpack.c.b16 %v5715, %v5713
      %vm5740 = vcmask 1014784
      %v5742 = vsel %vm5740, %v5717, 0
      %v5745 = vsel %vm5740, %v5719, 0
      %v5748 = vsel %vm5740, %v5721, 0
      %v5751 = vsel %vm5740, %v5723, 0
      %v5754 = vsel %vm5740, %v5725, 0
      %v5757 = vsel %vm5740, %v5727, 0
      %v5760 = vsel %vm5740, %v5729, 0
      %v5763 = vsel %vm5740, %v5731, 0
      %vm5765 = vcmask 1045504
      %v5767 = vsel %vm5765, %v5649, 0
      %v5770 = vsel %vm5765, %v5650, 0
      %v5773 = vsel %vm5765, %v5651, 0
      %5775 = vmatprep.subr.bf16.mxu0 %v5605
      %5776 = vmatpush1.bf16.msra.mxu0 %v5604
      %5777 = vmatprep.subr.bf16.mxu0 %v5608
      %5778 = vmatpush1.bf16.msra.mxu0 %v5607
      %5779 = vmatprep.subr.bf16.mxu0 %v5611
      %5780 = vmatpush1.bf16.msra.mxu0 %v5610
      %5781 = vmatprep.subr.bf16.mxu0 %v5614
      %5782 = vmatpush1.bf16.msra.mxu0 %v5613
      %5783 = vmatprep.subr.bf16.mxu0 %v5617
      %5784 = vmatpush1.bf16.msra.mxu0 %v5616
      %5785 = vmatprep.subr.bf16.mxu0 %v5620
      %5786 = vmatpush1.bf16.msra.mxu0 %v5619
      %5787 = vmatprep.subr.bf16.mxu0 %v5623
      %5788 = vmatpush1.bf16.msra.mxu0 %v5622
      %5789 = vmatprep.subr.bf16.mxu0 %v5626
      %5790 = vmatpush1.bf16.msra.mxu0 %v5625
      %5791 = vmatprep.subr.bf16.mxu0 %v5629
      %5792 = vmatpush1.bf16.msra.mxu0 %v5628
      %5793 = vmatprep.subr.bf16.mxu0 %v5632
      %5794 = vmatpush1.bf16.msra.mxu0 %v5631
      %5795 = vmatprep.subr.bf16.mxu0 %v5635
      %5796 = vmatpush1.bf16.msra.mxu0 %v5634
      %5797 = vmatprep.subr.bf16.mxu0 %v5638
      %5798 = vmatpush1.bf16.msra.mxu0 %v5637
      %5799 = vmatprep.subr.bf16.mxu0 %v5641
      %5800 = vmatpush1.bf16.msra.mxu0 %v5640
      %5801 = vmatprep.subr.bf16.mxu0 %v5644
      %5802 = vmatpush1.bf16.msra.mxu0 %v5643
      %5803 = vmatprep.subr.bf16.mxu0 %v5647
      %5804 = vmatpush1.bf16.msra.mxu0 %v5646
      %5805 = vmatprep.subr.bf16.mxu0 %v5770
      %5806 = vmatpush1.bf16.msra.mxu0 %v5767
      %5807 = vmatprep.mubr.bf16.mxu0 %v5742
      %5808 = vmatmul.mubr.bf16.gmra.mrb[0].mxu0 %v5716
      %v5809 = vpop.f32.mrb[0].mxu0
      %v5810 = vadd.f32 0.0, %v5809
      %v5811 = vpop.f32.mrb[0].mxu0
      %v5812 = vadd.f32 0.0, %v5811
      %v5813 = vpop.f32.mrb[0].mxu0
      %v5814 = vadd.f32 0.0, %v5813
      %v5815 = vpop.f32.mrb[0].mxu0
      %v5816 = vadd.f32 0.0, %v5815
      %5817 = vmatprep.mubr.bf16.mxu0 %v5745
      %5818 = vmatmul.mubr.bf16.gmra.mrb[0].mxu0 %v5718
      %v5819 = vpop.f32.mrb[0].mxu0
      %v5820 = vadd.f32 0.0, %v5819
      %v5821 = vpop.f32.mrb[0].mxu0
      %v5822 = vadd.f32 0.0, %v5821
      %v5823 = vpop.f32.mrb[0].mxu0
      %v5824 = vadd.f32 0.0, %v5823
      %v5825 = vpop.f32.mrb[0].mxu0
      %v5826 = vadd.f32 0.0, %v5825
      %5827 = vmatprep.mubr.bf16.mxu0 %v5748
      %5828 = vmatmul.mubr.bf16.gmra.mrb[0].mxu0 %v5720
      %v5829 = vpop.f32.mrb[0].mxu0
      %v5830 = vadd.f32 0.0, %v5829
      %v5831 = vpop.f32.mrb[0].mxu0
      %v5832 = vadd.f32 0.0, %v5831
      %v5833 = vpop.f32.mrb[0].mxu0
      %v5834 = vadd.f32 0.0, %v5833
      %v5835 = vpop.f32.mrb[0].mxu0
      %v5836 = vadd.f32 0.0, %v5835
      %5837 = vmatprep.mubr.bf16.mxu0 %v5751
      %5838 = vmatmul.mubr.bf16.gmra.mrb[0].mxu0 %v5722
      %v5839 = vpop.f32.mrb[0].mxu0
      %v5840 = vadd.f32 0.0, %v5839
      %v5841 = vpop.f32.mrb[0].mxu0
      %v5842 = vadd.f32 0.0, %v5841
      %v5843 = vpop.f32.mrb[0].mxu0
      %v5844 = vadd.f32 0.0, %v5843
      %v5845 = vpop.f32.mrb[0].mxu0
      %v5846 = vadd.f32 0.0, %v5845
      %5847 = vmatprep.mubr.bf16.mxu0 %v5754
      %5848 = vmatmul.mubr.bf16.gmra.mrb[0].mxu0 %v5724
      %v5849 = vpop.f32.mrb[0].mxu0
      %v5850 = vadd.f32 0.0, %v5849
      %v5851 = vpop.f32.mrb[0].mxu0
      %v5852 = vadd.f32 0.0, %v5851
      %v5853 = vpop.f32.mrb[0].mxu0
      %v5854 = vadd.f32 0.0, %v5853
      %v5855 = vpop.f32.mrb[0].mxu0
      %v5856 = vadd.f32 0.0, %v5855
      %5857 = vmatprep.mubr.bf16.mxu0 %v5757
      %5858 = vmatmul.mubr.bf16.gmra.mrb[0].mxu0 %v5726
      %v5859 = vpop.f32.mrb[0].mxu0
      %v5860 = vadd.f32 0.0, %v5859
      %v5861 = vpop.f32.mrb[0].mxu0
      %v5862 = vadd.f32 0.0, %v5861
      %v5863 = vpop.f32.mrb[0].mxu0
      %v5864 = vadd.f32 0.0, %v5863
      %v5865 = vpop.f32.mrb[0].mxu0
      %v5866 = vadd.f32 0.0, %v5865
      %5867 = vmatprep.mubr.bf16.mxu0 %v5760
      %5868 = vmatmul.mubr.bf16.gmra.mrb[0].mxu0 %v5728
      %v5869 = vpop.f32.mrb[0].mxu0
      %v5870 = vadd.f32 0.0, %v5869
      %v5871 = vpop.f32.mrb[0].mxu0
      %v5872 = vadd.f32 0.0, %v5871
      %v5873 = vpop.f32.mrb[0].mxu0
      %v5874 = vadd.f32 0.0, %v5873
      %v5875 = vpop.f32.mrb[0].mxu0
      %v5876 = vadd.f32 0.0, %v5875
      %5877 = vmatprep.mubr.bf16.mxu0 %v5763
      %5878 = vmatmul.mubr.bf16.gmra.mrb[0].mxu0 %v5730
      %v5879 = vpop.f32.mrb[0].mxu0
      %v5880 = vadd.f32 0.0, %v5879
      %v5881 = vpop.f32.mrb[0].mxu0
      %v5882 = vadd.f32 0.0, %v5881
      %v5883 = vpop.f32.mrb[0].mxu0
      %v5884 = vadd.f32 0.0, %v5883
      %v5885 = vpop.f32.mrb[0].mxu0
      %v5886 = vadd.f32 0.0, %v5885
      %5887 = vdwg.mxu0
      %5888 = vmatprep.subr.bf16.mxu0 0
      %5889 = vmatpush1.bf16.msra.mxu0 %v5606
      %5890 = vmatprep.subr.bf16.mxu0 0
      %5891 = vmatpush1.bf16.msra.mxu0 %v5609
      %5892 = vmatprep.subr.bf16.mxu0 0
      %5893 = vmatpush1.bf16.msra.mxu0 %v5612
      %5894 = vmatprep.subr.bf16.mxu0 0
      %5895 = vmatpush1.bf16.msra.mxu0 %v5615
      %5896 = vmatprep.subr.bf16.mxu0 0
      %5897 = vmatpush1.bf16.msra.mxu0 %v5618
      %5898 = vmatprep.subr.bf16.mxu0 0
      %5899 = vmatpush1.bf16.msra.mxu0 %v5621
      %5900 = vmatprep.subr.bf16.mxu0 0
      %5901 = vmatpush1.bf16.msra.mxu0 %v5624
      %5902 = vmatprep.subr.bf16.mxu0 0
      %5903 = vmatpush1.bf16.msra.mxu0 %v5627
      %5904 = vmatprep.subr.bf16.mxu0 0
      %5905 = vmatpush1.bf16.msra.mxu0 %v5630
      %5906 = vmatprep.subr.bf16.mxu0 0
      %5907 = vmatpush1.bf16.msra.mxu0 %v5633
      %5908 = vmatprep.subr.bf16.mxu0 0
      %5909 = vmatpush1.bf16.msra.mxu0 %v5636
      %5910 = vmatprep.subr.bf16.mxu0 0
      %5911 = vmatpush1.bf16.msra.mxu0 %v5639
      %5912 = vmatprep.subr.bf16.mxu0 0
      %5913 = vmatpush1.bf16.msra.mxu0 %v5642
      %5914 = vmatprep.subr.bf16.mxu0 0
      %5915 = vmatpush1.bf16.msra.mxu0 %v5645
      %5916 = vmatprep.subr.bf16.mxu0 0
      %5917 = vmatpush1.bf16.msra.mxu0 %v5648
      %5918 = vmatprep.subr.bf16.mxu0 0
      %5919 = vmatpush1.bf16.msra.mxu0 %v5773
      %5920 = vmatprep.mubr.bf16.mxu0 %v5742
      %5921 = vmatmul.mubr.bf16.gmra.mrb[0].mxu0 %v5716
      %v5922 = vpop.f32.mrb[0].mxu0
      %v5923 = vadd.f32 0.0, %v5922
      %v5924 = vpop.f32.mrb[0].mxu0
      %v5925 = vpop.f32.mrb[0].mxu0
      %v5926 = vadd.f32 0.0, %v5925
      %v5927 = vpop.f32.mrb[0].mxu0
      %5928 = vmatprep.mubr.bf16.mxu0 %v5745
      %5929 = vmatmul.mubr.bf16.gmra.mrb[0].mxu0 %v5718
      %v5930 = vpop.f32.mrb[0].mxu0
      %v5931 = vadd.f32 0.0, %v5930
      %v5932 = vpop.f32.mrb[0].mxu0
      %v5933 = vpop.f32.mrb[0].mxu0
      %v5934 = vadd.f32 0.0, %v5933
      %v5935 = vpop.f32.mrb[0].mxu0
      %5936 = vmatprep.mubr.bf16.mxu0 %v5748
      %5937 = vmatmul.mubr.bf16.gmra.mrb[0].mxu0 %v5720
      %v5938 = vpop.f32.mrb[0].mxu0
      %v5939 = vadd.f32 0.0, %v5938
      %v5940 = vpop.f32.mrb[0].mxu0
      %v5941 = vpop.f32.mrb[0].mxu0
      %v5942 = vadd.f32 0.0, %v5941
      %v5943 = vpop.f32.mrb[0].mxu0
      %5944 = vmatprep.mubr.bf16.mxu0 %v5751
      %5945 = vmatmul.mubr.bf16.gmra.mrb[0].mxu0 %v5722
      %v5946 = vpop.f32.mrb[0].mxu0
      %v5947 = vadd.f32 0.0, %v5946
      %v5948 = vpop.f32.mrb[0].mxu0
      %v5949 = vpop.f32.mrb[0].mxu0
      %v5950 = vadd.f32 0.0, %v5949
      %v5951 = vpop.f32.mrb[0].mxu0
      %5952 = vmatprep.mubr.bf16.mxu0 %v5754
      %5953 = vmatmul.mubr.bf16.gmra.mrb[0].mxu0 %v5724
      %v5954 = vpop.f32.mrb[0].mxu0
      %v5955 = vadd.f32 0.0, %v5954
      %v5956 = vpop.f32.mrb[0].mxu0
      %v5957 = vpop.f32.mrb[0].mxu0
      %v5958 = vadd.f32 0.0, %v5957
      %v5959 = vpop.f32.mrb[0].mxu0
      %5960 = vmatprep.mubr.bf16.mxu0 %v5757
      %5961 = vmatmul.mubr.bf16.gmra.mrb[0].mxu0 %v5726
      %v5962 = vpop.f32.mrb[0].mxu0
      %v5963 = vadd.f32 0.0, %v5962
      %v5964 = vpop.f32.mrb[0].mxu0
      %v5965 = vpop.f32.mrb[0].mxu0
      %v5966 = vadd.f32 0.0, %v5965
      %v5967 = vpop.f32.mrb[0].mxu0
      %5968 = vmatprep.mubr.bf16.mxu0 %v5760
      %5969 = vmatmul.mubr.bf16.gmra.mrb[0].mxu0 %v5728
      %v5970 = vpop.f32.mrb[0].mxu0
      %v5971 = vadd.f32 0.0, %v5970
      %v5972 = vpop.f32.mrb[0].mxu0
      %v5973 = vpop.f32.mrb[0].mxu0
      %v5974 = vadd.f32 0.0, %v5973
      %v5975 = vpop.f32.mrb[0].mxu0
      %5976 = vmatprep.mubr.bf16.mxu0 %v5763
      %5977 = vmatmul.mubr.bf16.gmra.mrb[0].mxu0 %v5730
      %v5978 = vpop.f32.mrb[0].mxu0
      %v5979 = vadd.f32 0.0, %v5978
      %v5980 = vpop.f32.mrb[0].mxu0
      %v5981 = vpop.f32.mrb[0].mxu0
      %v5982 = vadd.f32 0.0, %v5981
      %v5983 = vpop.f32.mrb[0].mxu0
      %5984 = vdwg.mxu0
      %s5985 = scalar_lea.vmem %s3, 128
      %v5986 = vld [vmem:[%s5985] sm:$0xff]
      %v5987 = vld [vmem:[%s5985 + $0x8] sm:$0xff]
      %v5988 = vld [vmem:[%s5985 + $0x10] sm:$0xff]
      %v5989 = vld [vmem:[%s5985 + $0x18] sm:$0xff]
      %v5990 = vld [vmem:[%s5985 + $0x20] sm:$0xff]
      %v5991 = vld [vmem:[%s5985 + $0x28] sm:$0xff]
      %v5992 = vld [vmem:[%s5985 + $0x30] sm:$0xff]
      %v5993 = vld [vmem:[%s5985 + $0x38] sm:$0xff]
      %v5994 = vld [vmem:[%s5985 + $0x40] sm:$0xff]
      %v5995 = vld [vmem:[%s5985 + $0x48] sm:$0xff]
      %v5996 = vld [vmem:[%s5985 + $0x50] sm:$0xff]
      %v5997 = vld [vmem:[%s5985 + $0x58] sm:$0xff]
      %v5998 = vld [vmem:[%s5985 + $0x60] sm:$0xff]
      %v5999 = vld [vmem:[%s5985 + $0x68] sm:$0xff]
      %v6000 = vld [vmem:[%s5985 + $0x70] sm:$0xff]
      %v6001 = vld [vmem:[%s5985 + $0x78] sm:$0xff]
      %v6018 = vunpack.c.l.b16 %v5986
      %v6019 = vunpack.c.h.b16 %v5986
      %v6020 = vunpack.c.l.b16 %v5987
      %v6021 = vunpack.c.h.b16 %v5987
      %v6022 = vunpack.c.l.b16 %v5988
      %v6023 = vunpack.c.h.b16 %v5988
      %v6024 = vunpack.c.l.b16 %v5989
      %v6025 = vunpack.c.h.b16 %v5989
      %v6026 = vunpack.c.l.b16 %v5990
      %v6027 = vunpack.c.h.b16 %v5990
      %v6028 = vunpack.c.l.b16 %v5991
      %v6029 = vunpack.c.h.b16 %v5991
      %v6030 = vunpack.c.l.b16 %v5992
      %v6031 = vunpack.c.h.b16 %v5992
      %v6032 = vunpack.c.l.b16 %v5993
      %v6033 = vunpack.c.h.b16 %v5993
      %v6034 = vunpack.c.l.b16 %v5994
      %v6035 = vunpack.c.h.b16 %v5994
      %v6036 = vunpack.c.l.b16 %v5995
      %v6037 = vunpack.c.h.b16 %v5995
      %v6038 = vunpack.c.l.b16 %v5996
      %v6039 = vunpack.c.h.b16 %v5996
      %v6040 = vunpack.c.l.b16 %v5997
      %v6041 = vunpack.c.h.b16 %v5997
      %v6042 = vunpack.c.l.b16 %v5998
      %v6043 = vunpack.c.h.b16 %v5998
      %v6044 = vunpack.c.l.b16 %v5999
      %v6045 = vunpack.c.h.b16 %v5999
      %v6046 = vunpack.c.l.b16 %v6000
      %v6047 = vunpack.c.h.b16 %v6000
      %v6048 = vunpack.c.l.b16 %v6001
      %v6049 = vunpack.c.h.b16 %v6001
      %v6050 = vpack.c.b16 %v6020, %v6018
      %v6051 = vpack.c.b16 %v6021, %v6019
      %v6052 = vpack.c.b16 %v6024, %v6022
      %v6053 = vpack.c.b16 %v6025, %v6023
      %v6054 = vpack.c.b16 %v6028, %v6026
      %v6055 = vpack.c.b16 %v6029, %v6027
      %v6056 = vpack.c.b16 %v6032, %v6030
      %v6057 = vpack.c.b16 %v6033, %v6031
      %v6058 = vpack.c.b16 %v6036, %v6034
      %v6059 = vpack.c.b16 %v6037, %v6035
      %v6060 = vpack.c.b16 %v6040, %v6038
      %v6061 = vpack.c.b16 %v6041, %v6039
      %v6062 = vpack.c.b16 %v6044, %v6042
      %v6063 = vpack.c.b16 %v6045, %v6043
      %v6064 = vpack.c.b16 %v6048, %v6046
      %v6065 = vpack.c.b16 %v6049, %v6047
      %v6075 = vsel %vm5740, %v6051, 0
      %v6078 = vsel %vm5740, %v6053, 0
      %v6081 = vsel %vm5740, %v6055, 0
      %v6084 = vsel %vm5740, %v6057, 0
      %v6087 = vsel %vm5740, %v6059, 0
      %v6090 = vsel %vm5740, %v6061, 0
      %v6093 = vsel %vm5740, %v6063, 0
      %v6096 = vsel %vm5740, %v6065, 0
      %6098 = vmatprep.subr.bf16.mxu0 %v5605
      %6099 = vmatpush1.bf16.msra.mxu0 %v5604
      %6100 = vmatprep.subr.bf16.mxu0 %v5608
      %6101 = vmatpush1.bf16.msra.mxu0 %v5607
      %6102 = vmatprep.subr.bf16.mxu0 %v5611
      %6103 = vmatpush1.bf16.msra.mxu0 %v5610
      %6104 = vmatprep.subr.bf16.mxu0 %v5614
      %6105 = vmatpush1.bf16.msra.mxu0 %v5613
      %6106 = vmatprep.subr.bf16.mxu0 %v5617
      %6107 = vmatpush1.bf16.msra.mxu0 %v5616
      %6108 = vmatprep.subr.bf16.mxu0 %v5620
      %6109 = vmatpush1.bf16.msra.mxu0 %v5619
      %6110 = vmatprep.subr.bf16.mxu0 %v5623
      %6111 = vmatpush1.bf16.msra.mxu0 %v5622
      %6112 = vmatprep.subr.bf16.mxu0 %v5626
      %6113 = vmatpush1.bf16.msra.mxu0 %v5625
      %6114 = vmatprep.subr.bf16.mxu0 %v5629
      %6115 = vmatpush1.bf16.msra.mxu0 %v5628
      %6116 = vmatprep.subr.bf16.mxu0 %v5632
      %6117 = vmatpush1.bf16.msra.mxu0 %v5631
      %6118 = vmatprep.subr.bf16.mxu0 %v5635
      %6119 = vmatpush1.bf16.msra.mxu0 %v5634
      %6120 = vmatprep.subr.bf16.mxu0 %v5638
      %6121 = vmatpush1.bf16.msra.mxu0 %v5637
      %6122 = vmatprep.subr.bf16.mxu0 %v5641
      %6123 = vmatpush1.bf16.msra.mxu0 %v5640
      %6124 = vmatprep.subr.bf16.mxu0 %v5644
      %6125 = vmatpush1.bf16.msra.mxu0 %v5643
      %6126 = vmatprep.subr.bf16.mxu0 %v5647
      %6127 = vmatpush1.bf16.msra.mxu0 %v5646
      %6128 = vmatprep.subr.bf16.mxu0 %v5770
      %6129 = vmatpush1.bf16.msra.mxu0 %v5767
      %6130 = vmatprep.mubr.bf16.mxu0 %v6075
      %6131 = vmatmul.mubr.bf16.gmra.mrb[0].mxu0 %v6050
      %v6132 = vpop.f32.mrb[0].mxu0
      %v6133 = vadd.f32 0.0, %v6132
      %v6134 = vpop.f32.mrb[0].mxu0
      %v6135 = vadd.f32 0.0, %v6134
      %v6136 = vpop.f32.mrb[0].mxu0
      %v6137 = vadd.f32 0.0, %v6136
      %v6138 = vpop.f32.mrb[0].mxu0
      %v6139 = vadd.f32 0.0, %v6138
      %6140 = vmatprep.mubr.bf16.mxu0 %v6078
      %6141 = vmatmul.mubr.bf16.gmra.mrb[0].mxu0 %v6052
      %v6142 = vpop.f32.mrb[0].mxu0
      %v6143 = vadd.f32 0.0, %v6142
      %v6144 = vpop.f32.mrb[0].mxu0
      %v6145 = vadd.f32 0.0, %v6144
      %v6146 = vpop.f32.mrb[0].mxu0
      %v6147 = vadd.f32 0.0, %v6146
      %v6148 = vpop.f32.mrb[0].mxu0
      %v6149 = vadd.f32 0.0, %v6148
      %6150 = vmatprep.mubr.bf16.mxu0 %v6081
      %6151 = vmatmul.mubr.bf16.gmra.mrb[0].mxu0 %v6054
      %v6152 = vpop.f32.mrb[0].mxu0
      %v6153 = vadd.f32 0.0, %v6152
      %v6154 = vpop.f32.mrb[0].mxu0
      %v6155 = vadd.f32 0.0, %v6154
      %v6156 = vpop.f32.mrb[0].mxu0
      %v6157 = vadd.f32 0.0, %v6156
      %v6158 = vpop.f32.mrb[0].mxu0
      %v6159 = vadd.f32 0.0, %v6158
      %6160 = vmatprep.mubr.bf16.mxu0 %v6084
      %6161 = vmatmul.mubr.bf16.gmra.mrb[0].mxu0 %v6056
      %v6162 = vpop.f32.mrb[0].mxu0
      %v6163 = vadd.f32 0.0, %v6162
      %v6164 = vpop.f32.mrb[0].mxu0
      %v6165 = vadd.f32 0.0, %v6164
      %v6166 = vpop.f32.mrb[0].mxu0
      %v6167 = vadd.f32 0.0, %v6166
      %v6168 = vpop.f32.mrb[0].mxu0
      %v6169 = vadd.f32 0.0, %v6168
      %6170 = vmatprep.mubr.bf16.mxu0 %v6087
      %6171 = vmatmul.mubr.bf16.gmra.mrb[0].mxu0 %v6058
      %v6172 = vpop.f32.mrb[0].mxu0
      %v6173 = vadd.f32 0.0, %v6172
      %v6174 = vpop.f32.mrb[0].mxu0
      %v6175 = vadd.f32 0.0, %v6174
      %v6176 = vpop.f32.mrb[0].mxu0
      %v6177 = vadd.f32 0.0, %v6176
      %v6178 = vpop.f32.mrb[0].mxu0
      %v6179 = vadd.f32 0.0, %v6178
      %6180 = vmatprep.mubr.bf16.mxu0 %v6090
      %6181 = vmatmul.mubr.bf16.gmra.mrb[0].mxu0 %v6060
      %v6182 = vpop.f32.mrb[0].mxu0
      %v6183 = vadd.f32 0.0, %v6182
      %v6184 = vpop.f32.mrb[0].mxu0
      %v6185 = vadd.f32 0.0, %v6184
      %v6186 = vpop.f32.mrb[0].mxu0
      %v6187 = vadd.f32 0.0, %v6186
      %v6188 = vpop.f32.mrb[0].mxu0
      %v6189 = vadd.f32 0.0, %v6188
      %6190 = vmatprep.mubr.bf16.mxu0 %v6093
      %6191 = vmatmul.mubr.bf16.gmra.mrb[0].mxu0 %v6062
      %v6192 = vpop.f32.mrb[0].mxu0
      %v6193 = vadd.f32 0.0, %v6192
      %v6194 = vpop.f32.mrb[0].mxu0
      %v6195 = vadd.f32 0.0, %v6194
      %v6196 = vpop.f32.mrb[0].mxu0
      %v6197 = vadd.f32 0.0, %v6196
      %v6198 = vpop.f32.mrb[0].mxu0
      %v6199 = vadd.f32 0.0, %v6198
      %6200 = vmatprep.mubr.bf16.mxu0 %v6096
      %6201 = vmatmul.mubr.bf16.gmra.mrb[0].mxu0 %v6064
      %v6202 = vpop.f32.mrb[0].mxu0
      %v6203 = vadd.f32 0.0, %v6202
      %v6204 = vpop.f32.mrb[0].mxu0
      %v6205 = vadd.f32 0.0, %v6204
      %v6206 = vpop.f32.mrb[0].mxu0
      %v6207 = vadd.f32 0.0, %v6206
      %v6208 = vpop.f32.mrb[0].mxu0
      %v6209 = vadd.f32 0.0, %v6208
      %6210 = vdwg.mxu0
      %6211 = vmatprep.subr.bf16.mxu0 0
      %6212 = vmatpush1.bf16.msra.mxu0 %v5606
      %6213 = vmatprep.subr.bf16.mxu0 0
      %6214 = vmatpush1.bf16.msra.mxu0 %v5609
      %6215 = vmatprep.subr.bf16.mxu0 0
      %6216 = vmatpush1.bf16.msra.mxu0 %v5612
      %6217 = vmatprep.subr.bf16.mxu0 0
      %6218 = vmatpush1.bf16.msra.mxu0 %v5615
      %6219 = vmatprep.subr.bf16.mxu0 0
      %6220 = vmatpush1.bf16.msra.mxu0 %v5618
      %6221 = vmatprep.subr.bf16.mxu0 0
      %6222 = vmatpush1.bf16.msra.mxu0 %v5621
      %6223 = vmatprep.subr.bf16.mxu0 0
      %6224 = vmatpush1.bf16.msra.mxu0 %v5624
      %6225 = vmatprep.subr.bf16.mxu0 0
      %6226 = vmatpush1.bf16.msra.mxu0 %v5627
      %6227 = vmatprep.subr.bf16.mxu0 0
      %6228 = vmatpush1.bf16.msra.mxu0 %v5630
      %6229 = vmatprep.subr.bf16.mxu0 0
      %6230 = vmatpush1.bf16.msra.mxu0 %v5633
      %6231 = vmatprep.subr.bf16.mxu0 0
      %6232 = vmatpush1.bf16.msra.mxu0 %v5636
      %6233 = vmatprep.subr.bf16.mxu0 0
      %6234 = vmatpush1.bf16.msra.mxu0 %v5639
      %6235 = vmatprep.subr.bf16.mxu0 0
      %6236 = vmatpush1.bf16.msra.mxu0 %v5642
      %6237 = vmatprep.subr.bf16.mxu0 0
      %6238 = vmatpush1.bf16.msra.mxu0 %v5645
      %6239 = vmatprep.subr.bf16.mxu0 0
      %6240 = vmatpush1.bf16.msra.mxu0 %v5648
      %6241 = vmatprep.subr.bf16.mxu0 0
      %6242 = vmatpush1.bf16.msra.mxu0 %v5773
      %6243 = vmatprep.mubr.bf16.mxu0 %v6075
      %6244 = vmatmul.mubr.bf16.gmra.mrb[0].mxu0 %v6050
      %v6245 = vpop.f32.mrb[0].mxu0
      %v6246 = vadd.f32 0.0, %v6245
      %v6247 = vpop.f32.mrb[0].mxu0
      %v6248 = vpop.f32.mrb[0].mxu0
      %v6249 = vadd.f32 0.0, %v6248
      %v6250 = vpop.f32.mrb[0].mxu0
      %6251 = vmatprep.mubr.bf16.mxu0 %v6078
      %6252 = vmatmul.mubr.bf16.gmra.mrb[0].mxu0 %v6052
      %v6253 = vpop.f32.mrb[0].mxu0
      %v6254 = vadd.f32 0.0, %v6253
      %v6255 = vpop.f32.mrb[0].mxu0
      %v6256 = vpop.f32.mrb[0].mxu0
      %v6257 = vadd.f32 0.0, %v6256
      %v6258 = vpop.f32.mrb[0].mxu0
      %6259 = vmatprep.mubr.bf16.mxu0 %v6081
      %6260 = vmatmul.mubr.bf16.gmra.mrb[0].mxu0 %v6054
      %v6261 = vpop.f32.mrb[0].mxu0
      %v6262 = vadd.f32 0.0, %v6261
      %v6263 = vpop.f32.mrb[0].mxu0
      %v6264 = vpop.f32.mrb[0].mxu0
      %v6265 = vadd.f32 0.0, %v6264
      %v6266 = vpop.f32.mrb[0].mxu0
      %6267 = vmatprep.mubr.bf16.mxu0 %v6084
      %6268 = vmatmul.mubr.bf16.gmra.mrb[0].mxu0 %v6056
      %v6269 = vpop.f32.mrb[0].mxu0
      %v6270 = vadd.f32 0.0, %v6269
      %v6271 = vpop.f32.mrb[0].mxu0
      %v6272 = vpop.f32.mrb[0].mxu0
      %v6273 = vadd.f32 0.0, %v6272
      %v6274 = vpop.f32.mrb[0].mxu0
      %6275 = vmatprep.mubr.bf16.mxu0 %v6087
      %6276 = vmatmul.mubr.bf16.gmra.mrb[0].mxu0 %v6058
      %v6277 = vpop.f32.mrb[0].mxu0
      %v6278 = vadd.f32 0.0, %v6277
      %v6279 = vpop.f32.mrb[0].mxu0
      %v6280 = vpop.f32.mrb[0].mxu0
      %v6281 = vadd.f32 0.0, %v6280
      %v6282 = vpop.f32.mrb[0].mxu0
      %6283 = vmatprep.mubr.bf16.mxu0 %v6090
      %6284 = vmatmul.mubr.bf16.gmra.mrb[0].mxu0 %v6060
      %v6285 = vpop.f32.mrb[0].mxu0
      %v6286 = vadd.f32 0.0, %v6285
      %v6287 = vpop.f32.mrb[0].mxu0
      %v6288 = vpop.f32.mrb[0].mxu0
      %v6289 = vadd.f32 0.0, %v6288
      %v6290 = vpop.f32.mrb[0].mxu0
      %6291 = vmatprep.mubr.bf16.mxu0 %v6093
      %6292 = vmatmul.mubr.bf16.gmra.mrb[0].mxu0 %v6062
      %v6293 = vpop.f32.mrb[0].mxu0
      %v6294 = vadd.f32 0.0, %v6293
      %v6295 = vpop.f32.mrb[0].mxu0
      %v6296 = vpop.f32.mrb[0].mxu0
      %v6297 = vadd.f32 0.0, %v6296
      %v6298 = vpop.f32.mrb[0].mxu0
      %6299 = vmatprep.mubr.bf16.mxu0 %v6096
      %6300 = vmatmul.mubr.bf16.gmra.mrb[0].mxu0 %v6064
      %v6301 = vpop.f32.mrb[0].mxu0
      %v6302 = vadd.f32 0.0, %v6301
      %v6303 = vpop.f32.mrb[0].mxu0
      %v6304 = vpop.f32.mrb[0].mxu0
      %v6305 = vadd.f32 0.0, %v6304
      %v6306 = vpop.f32.mrb[0].mxu0
      %6307 = vdwg.mxu0
      %v6308 = vmax.f32 %v5810, %v6133
      %v6309 = vmax.f32 %v5812, %v6135
      %v6310 = vmax.f32 %v5923, %v6246
      %v6311 = vmax.f32 %v5814, %v6137
      %v6312 = vmax.f32 %v5816, %v6139
      %v6313 = vmax.f32 %v5926, %v6249
      %v6314 = vmax.f32 %v5820, %v6143
      %v6315 = vmax.f32 %v5822, %v6145
      %v6316 = vmax.f32 %v5931, %v6254
      %v6317 = vmax.f32 %v5824, %v6147
      %v6318 = vmax.f32 %v5826, %v6149
      %v6319 = vmax.f32 %v5934, %v6257
      %v6320 = vmax.f32 %v5830, %v6153
      %v6321 = vmax.f32 %v5832, %v6155
      %v6322 = vmax.f32 %v5939, %v6262
      %v6323 = vmax.f32 %v5834, %v6157
      %v6324 = vmax.f32 %v5836, %v6159
      %v6325 = vmax.f32 %v5942, %v6265
      %v6326 = vmax.f32 %v5840, %v6163
      %v6327 = vmax.f32 %v5842, %v6165
      %v6328 = vmax.f32 %v5947, %v6270
      %v6329 = vmax.f32 %v5844, %v6167
      %v6330 = vmax.f32 %v5846, %v6169
      %v6331 = vmax.f32 %v5950, %v6273
      %v6332 = vmax.f32 %v5850, %v6173
      %v6333 = vmax.f32 %v5852, %v6175
      %v6334 = vmax.f32 %v5955, %v6278
      %v6335 = vmax.f32 %v5854, %v6177
      %v6336 = vmax.f32 %v5856, %v6179
      %v6337 = vmax.f32 %v5958, %v6281
      %v6338 = vmax.f32 %v5860, %v6183
      %v6339 = vmax.f32 %v5862, %v6185
      %v6340 = vmax.f32 %v5963, %v6286
      %v6341 = vmax.f32 %v5864, %v6187
      %v6342 = vmax.f32 %v5866, %v6189
      %v6343 = vmax.f32 %v5966, %v6289
      %v6344 = vmax.f32 %v5870, %v6193
      %v6345 = vmax.f32 %v5872, %v6195
      %v6346 = vmax.f32 %v5971, %v6294
      %v6347 = vmax.f32 %v5874, %v6197
      %v6348 = vmax.f32 %v5876, %v6199
      %v6349 = vmax.f32 %v5974, %v6297
      %v6350 = vmax.f32 %v5880, %v6203
      %v6351 = vmax.f32 %v5882, %v6205
      %v6352 = vmax.f32 %v5979, %v6302
      %v6353 = vmax.f32 %v5884, %v6207
      %v6354 = vmax.f32 %v5886, %v6209
      %v6355 = vmax.f32 %v5982, %v6305
      %v6356 = vpack.c.bf16 %v6311, %v6308
      %v6357 = vpack.c.bf16 %v6312, %v6309
      %v6358 = vpack.c.bf16 %v6313, %v6310
      %v6359 = vpack.c.bf16 %v6317, %v6314
      %v6360 = vpack.c.bf16 %v6318, %v6315
      %v6361 = vpack.c.bf16 %v6319, %v6316
      %v6362 = vpack.c.bf16 %v6323, %v6320
      %v6363 = vpack.c.bf16 %v6324, %v6321
      %v6364 = vpack.c.bf16 %v6325, %v6322
      %v6365 = vpack.c.bf16 %v6329, %v6326
      %v6366 = vpack.c.bf16 %v6330, %v6327
      %v6367 = vpack.c.bf16 %v6331, %v6328
      %v6368 = vpack.c.bf16 %v6335, %v6332
      %v6369 = vpack.c.bf16 %v6336, %v6333
      %v6370 = vpack.c.bf16 %v6337, %v6334
      %v6371 = vpack.c.bf16 %v6341, %v6338
      %v6372 = vpack.c.bf16 %v6342, %v6339
      %v6373 = vpack.c.bf16 %v6343, %v6340
      %v6374 = vpack.c.bf16 %v6347, %v6344
      %v6375 = vpack.c.bf16 %v6348, %v6345
      %v6376 = vpack.c.bf16 %v6349, %v6346
      %v6377 = vpack.c.bf16 %v6353, %v6350
      %v6378 = vpack.c.bf16 %v6354, %v6351
      %v6379 = vpack.c.bf16 %v6355, %v6352
      %v6380 = vld [vmem:[%s4] sm:$0xff]
      %v6381 = vld [vmem:[%s4 + $0x8] sm:$0xff]
      %v6382 = vld [vmem:[%s4 + $0x10] sm:$0xff]
      %v6383 = vld [vmem:[%s4 + $0x18] sm:$0xff]
      %v6384 = vld [vmem:[%s4 + $0x20] sm:$0xff]
      %v6385 = vld [vmem:[%s4 + $0x28] sm:$0xff]
      %v6386 = vld [vmem:[%s4 + $0x30] sm:$0xff]
      %v6387 = vld [vmem:[%s4 + $0x38] sm:$0xff]
      %v6388 = vld [vmem:[%s4 + $0x40] sm:$0xff]
      %v6389 = vld [vmem:[%s4 + $0x48] sm:$0xff]
      %v6390 = vld [vmem:[%s4 + $0x50] sm:$0xff]
      %v6391 = vld [vmem:[%s4 + $0x58] sm:$0xff]
      %v6392 = vld [vmem:[%s4 + $0x60] sm:$0xff]
      %v6393 = vld [vmem:[%s4 + $0x68] sm:$0xff]
      %v6394 = vld [vmem:[%s4 + $0x70] sm:$0xff]
      %v6395 = vld [vmem:[%s4 + $0x78] sm:$0xff]
      %v6396 = vld [vmem:[%s4 + $0x80] sm:$0xff]
      %v6397 = vld [vmem:[%s4 + $0x88] sm:$0xff]
      %v6398 = vld [vmem:[%s4 + $0x90] sm:$0xff]
      %v6399 = vld [vmem:[%s4 + $0x98] sm:$0xff]
      %v6400 = vld [vmem:[%s4 + $0xa0] sm:$0xff]
      %v6401 = vld [vmem:[%s4 + $0xa8] sm:$0xff]
      %v6402 = vld [vmem:[%s4 + $0xb0] sm:$0xff]
      %v6403 = vld [vmem:[%s4 + $0xb8] sm:$0xff]
      %v6404 = vld [vmem:[%s4 + $0xc0] sm:$0xff]
      %v6405 = vld [vmem:[%s4 + $0xc8] sm:$0xff]
      %v6406 = vld [vmem:[%s4 + $0xd0] sm:$0xff]
      %v6407 = vld [vmem:[%s4 + $0xd8] sm:$0xff]
      %v6408 = vld [vmem:[%s4 + $0xe0] sm:$0xff]
      %v6409 = vld [vmem:[%s4 + $0xe8] sm:$0xff]
      %v6410 = vld [vmem:[%s4 + $0xf0] sm:$0xff]
      %v6411 = vld [vmem:[%s4 + $0xf8] sm:$0xff]
      %v6412 = vld [vmem:[%s4 + $0x100] sm:$0xff]
      %v6413 = vld [vmem:[%s4 + $0x108] sm:$0xff]
      %v6414 = vld [vmem:[%s4 + $0x110] sm:$0xff]
      %v6450 = vunpack.c.l.b16 %v6380
      %v6451 = vunpack.c.h.b16 %v6380
      %v6452 = vunpack.c.l.b16 %v6381
      %v6453 = vunpack.c.h.b16 %v6381
      %v6454 = vunpack.c.l.b16 %v6382
      %v6455 = vunpack.c.h.b16 %v6382
      %v6456 = vunpack.c.l.b16 %v6383
      %v6457 = vunpack.c.h.b16 %v6383
      %v6458 = vunpack.c.l.b16 %v6384
      %v6459 = vunpack.c.h.b16 %v6384
      %v6460 = vunpack.c.l.b16 %v6385
      %v6461 = vunpack.c.h.b16 %v6385
      %v6462 = vunpack.c.l.b16 %v6386
      %v6463 = vunpack.c.h.b16 %v6386
      %v6464 = vunpack.c.l.b16 %v6387
      %v6465 = vunpack.c.h.b16 %v6387
      %v6466 = vunpack.c.l.b16 %v6388
      %v6467 = vunpack.c.h.b16 %v6388
      %v6468 = vunpack.c.l.b16 %v6389
      %v6469 = vunpack.c.h.b16 %v6389
      %v6470 = vunpack.c.l.b16 %v6390
      %v6471 = vunpack.c.h.b16 %v6390
      %v6472 = vunpack.c.l.b16 %v6391
      %v6473 = vunpack.c.h.b16 %v6391
      %v6474 = vunpack.c.l.b16 %v6392
      %v6475 = vunpack.c.h.b16 %v6392
      %v6476 = vunpack.c.l.b16 %v6393
      %v6477 = vunpack.c.h.b16 %v6393
      %v6478 = vunpack.c.l.b16 %v6394
      %v6479 = vunpack.c.h.b16 %v6394
      %v6480 = vunpack.c.l.b16 %v6395
      %v6481 = vunpack.c.h.b16 %v6395
      %v6482 = vunpack.c.l.b16 %v6396
      %v6483 = vunpack.c.h.b16 %v6396
      %v6484 = vunpack.c.l.b16 %v6397
      %v6485 = vunpack.c.h.b16 %v6397
      %v6486 = vunpack.c.l.b16 %v6398
      %v6487 = vunpack.c.h.b16 %v6398
      %v6488 = vunpack.c.l.b16 %v6399
      %v6489 = vunpack.c.h.b16 %v6399
      %v6490 = vunpack.c.l.b16 %v6400
      %v6491 = vunpack.c.h.b16 %v6400
      %v6492 = vunpack.c.l.b16 %v6401
      %v6493 = vunpack.c.h.b16 %v6401
      %v6494 = vunpack.c.l.b16 %v6402
      %v6495 = vunpack.c.h.b16 %v6402
      %v6496 = vunpack.c.l.b16 %v6403
      %v6497 = vunpack.c.h.b16 %v6403
      %v6498 = vunpack.c.l.b16 %v6404
      %v6499 = vunpack.c.h.b16 %v6404
      %v6500 = vunpack.c.l.b16 %v6405
      %v6501 = vunpack.c.h.b16 %v6405
      %v6502 = vunpack.c.l.b16 %v6406
      %v6503 = vunpack.c.h.b16 %v6406
      %v6504 = vunpack.c.l.b16 %v6407
      %v6505 = vunpack.c.h.b16 %v6407
      %v6506 = vunpack.c.l.b16 %v6408
      %v6507 = vunpack.c.h.b16 %v6408
      %v6508 = vunpack.c.l.b16 %v6409
      %v6509 = vunpack.c.h.b16 %v6409
      %v6510 = vunpack.c.l.b16 %v6410
      %v6511 = vunpack.c.h.b16 %v6410
      %v6512 = vunpack.c.l.b16 %v6411
      %v6513 = vunpack.c.h.b16 %v6411
      %v6514 = vunpack.c.l.b16 %v6412
      %v6515 = vunpack.c.h.b16 %v6412
      %v6516 = vunpack.c.l.b16 %v6413
      %v6517 = vunpack.c.h.b16 %v6413
      %v6518 = vunpack.c.l.b16 %v6414
      %v6519 = vunpack.c.h.b16 %v6414
      %v6520 = vpack.c.b16 %v6452, %v6450
      %v6521 = vpack.c.b16 %v6453, %v6451
      %v6522 = vpack.c.b16 %v6456, %v6454
      %v6523 = vpack.c.b16 %v6457, %v6455
      %v6524 = vpack.c.b16 %v6460, %v6458
      %v6525 = vpack.c.b16 %v6461, %v6459
      %v6526 = vpack.c.b16 %v6464, %v6462
      %v6527 = vpack.c.b16 %v6465, %v6463
      %v6528 = vpack.c.b16 %v6468, %v6466
      %v6529 = vpack.c.b16 %v6469, %v6467
      %v6530 = vpack.c.b16 %v6472, %v6470
      %v6531 = vpack.c.b16 %v6473, %v6471
      %v6532 = vpack.c.b16 %v6476, %v6474
      %v6533 = vpack.c.b16 %v6477, %v6475
      %v6534 = vpack.c.b16 %v6480, %v6478
      %v6535 = vpack.c.b16 %v6481, %v6479
      %v6536 = vpack.c.b16 %v6484, %v6482
      %v6537 = vpack.c.b16 %v6485, %v6483
      %v6538 = vpack.c.b16 %v6488, %v6486
      %v6539 = vpack.c.b16 %v6489, %v6487
      %v6540 = vpack.c.b16 %v6492, %v6490
      %v6541 = vpack.c.b16 %v6493, %v6491
      %v6542 = vpack.c.b16 %v6496, %v6494
      %v6543 = vpack.c.b16 %v6497, %v6495
      %v6544 = vpack.c.b16 %v6500, %v6498
      %v6545 = vpack.c.b16 %v6501, %v6499
      %v6546 = vpack.c.b16 %v6504, %v6502
      %v6547 = vpack.c.b16 %v6505, %v6503
      %v6548 = vpack.c.b16 %v6508, %v6506
      %v6549 = vpack.c.b16 %v6509, %v6507
      %v6550 = vpack.c.b16 %v6512, %v6510
      %v6551 = vpack.c.b16 %v6513, %v6511
      %v6552 = vpack.c.b16 %v6516, %v6514
      %v6553 = vpack.c.b16 %v6517, %v6515
      %v6554 = vpack.c.b16 %v6518, %v6518
      %v6555 = vpack.c.b16 %v6519, %v6519
      %v6591 = vsel %vm461, %v6358, 0
      %v6594 = vsel %vm461, %v6361, 0
      %v6597 = vsel %vm461, %v6364, 0
      %v6600 = vsel %vm461, %v6367, 0
      %v6603 = vsel %vm461, %v6370, 0
      %v6606 = vsel %vm461, %v6373, 0
      %v6609 = vsel %vm461, %v6376, 0
      %v6612 = vsel %vm461, %v6379, 0
      %vm6614 = vcmask 1043456
      %v6616 = vsel %vm6614, %v6554, 0
      %v6619 = vsel %vm6614, %v6555, 0
      %6621 = vmatprep.subr.bf16.mxu0 %v6521
      %6622 = vmatpush1.bf16.msra.mxu0 %v6520
      %6623 = vmatprep.subr.bf16.mxu0 %v6523
      %6624 = vmatpush1.bf16.msra.mxu0 %v6522
      %6625 = vmatprep.subr.bf16.mxu0 %v6525
      %6626 = vmatpush1.bf16.msra.mxu0 %v6524
      %6627 = vmatprep.subr.bf16.mxu0 %v6527
      %6628 = vmatpush1.bf16.msra.mxu0 %v6526
      %6629 = vmatprep.subr.bf16.mxu0 %v6529
      %6630 = vmatpush1.bf16.msra.mxu0 %v6528
      %6631 = vmatprep.subr.bf16.mxu0 %v6531
      %6632 = vmatpush1.bf16.msra.mxu0 %v6530
      %6633 = vmatprep.subr.bf16.mxu0 %v6533
      %6634 = vmatpush1.bf16.msra.mxu0 %v6532
      %6635 = vmatprep.subr.bf16.mxu0 %v6535
      %6636 = vmatpush1.bf16.msra.mxu0 %v6534
      %6637 = vmatprep.subr.bf16.mxu0 %v6537
      %6638 = vmatpush1.bf16.msra.mxu0 %v6536
      %6639 = vmatprep.subr.bf16.mxu0 %v6539
      %6640 = vmatpush1.bf16.msra.mxu0 %v6538
      %6641 = vmatprep.subr.bf16.mxu0 %v6541
      %6642 = vmatpush1.bf16.msra.mxu0 %v6540
      %6643 = vmatprep.subr.bf16.mxu0 %v6543
      %6644 = vmatpush1.bf16.msra.mxu0 %v6542
      %6645 = vmatprep.subr.bf16.mxu0 %v6545
      %6646 = vmatpush1.bf16.msra.mxu0 %v6544
      %6647 = vmatprep.subr.bf16.mxu0 %v6547
      %6648 = vmatpush1.bf16.msra.mxu0 %v6546
      %6649 = vmatprep.subr.bf16.mxu0 %v6549
      %6650 = vmatpush1.bf16.msra.mxu0 %v6548
      %6651 = vmatprep.subr.bf16.mxu0 %v6551
      %6652 = vmatpush1.bf16.msra.mxu0 %v6550
      %6653 = vmatprep.mubr.bf16.mxu0 %v6357
      %6654 = vmatmul.mubr.bf16.gmra.mrb[0].mxu0 %v6356
      %v6655 = vpop.f32.mrb[0].mxu0
      %v6656 = vadd.f32 0.0, %v6655
      %v6657 = vpop.f32.mrb[0].mxu0
      %v6658 = vadd.f32 0.0, %v6657
      %v6659 = vpop.f32.mrb[0].mxu0
      %v6660 = vadd.f32 0.0, %v6659
      %v6661 = vpop.f32.mrb[0].mxu0
      %v6662 = vadd.f32 0.0, %v6661
      %6663 = vmatprep.mubr.bf16.mxu0 %v6360
      %6664 = vmatmul.mubr.bf16.gmra.mrb[0].mxu0 %v6359
      %v6665 = vpop.f32.mrb[0].mxu0
      %v6666 = vadd.f32 0.0, %v6665
      %v6667 = vpop.f32.mrb[0].mxu0
      %v6668 = vadd.f32 0.0, %v6667
      %v6669 = vpop.f32.mrb[0].mxu0
      %v6670 = vadd.f32 0.0, %v6669
      %v6671 = vpop.f32.mrb[0].mxu0
      %v6672 = vadd.f32 0.0, %v6671
      %6673 = vmatprep.mubr.bf16.mxu0 %v6363
      %6674 = vmatmul.mubr.bf16.gmra.mrb[0].mxu0 %v6362
      %v6675 = vpop.f32.mrb[0].mxu0
      %v6676 = vadd.f32 0.0, %v6675
      %v6677 = vpop.f32.mrb[0].mxu0
      %v6678 = vadd.f32 0.0, %v6677
      %v6679 = vpop.f32.mrb[0].mxu0
      %v6680 = vadd.f32 0.0, %v6679
      %v6681 = vpop.f32.mrb[0].mxu0
      %v6682 = vadd.f32 0.0, %v6681
      %6683 = vmatprep.mubr.bf16.mxu0 %v6366
      %6684 = vmatmul.mubr.bf16.gmra.mrb[0].mxu0 %v6365
      %v6685 = vpop.f32.mrb[0].mxu0
      %v6686 = vadd.f32 0.0, %v6685
      %v6687 = vpop.f32.mrb[0].mxu0
      %v6688 = vadd.f32 0.0, %v6687
      %v6689 = vpop.f32.mrb[0].mxu0
      %v6690 = vadd.f32 0.0, %v6689
      %v6691 = vpop.f32.mrb[0].mxu0
      %v6692 = vadd.f32 0.0, %v6691
      %6693 = vmatprep.mubr.bf16.mxu0 %v6369
      %6694 = vmatmul.mubr.bf16.gmra.mrb[0].mxu0 %v6368
      %v6695 = vpop.f32.mrb[0].mxu0
      %v6696 = vadd.f32 0.0, %v6695
      %v6697 = vpop.f32.mrb[0].mxu0
      %v6698 = vadd.f32 0.0, %v6697
      %v6699 = vpop.f32.mrb[0].mxu0
      %v6700 = vadd.f32 0.0, %v6699
      %v6701 = vpop.f32.mrb[0].mxu0
      %v6702 = vadd.f32 0.0, %v6701
      %6703 = vmatprep.mubr.bf16.mxu0 %v6372
      %6704 = vmatmul.mubr.bf16.gmra.mrb[0].mxu0 %v6371
      %v6705 = vpop.f32.mrb[0].mxu0
      %v6706 = vadd.f32 0.0, %v6705
      %v6707 = vpop.f32.mrb[0].mxu0
      %v6708 = vadd.f32 0.0, %v6707
      %v6709 = vpop.f32.mrb[0].mxu0
      %v6710 = vadd.f32 0.0, %v6709
      %v6711 = vpop.f32.mrb[0].mxu0
      %v6712 = vadd.f32 0.0, %v6711
      %6713 = vmatprep.mubr.bf16.mxu0 %v6375
      %6714 = vmatmul.mubr.bf16.gmra.mrb[0].mxu0 %v6374
      %v6715 = vpop.f32.mrb[0].mxu0
      %v6716 = vadd.f32 0.0, %v6715
      %v6717 = vpop.f32.mrb[0].mxu0
      %v6718 = vadd.f32 0.0, %v6717
      %v6719 = vpop.f32.mrb[0].mxu0
      %v6720 = vadd.f32 0.0, %v6719
      %v6721 = vpop.f32.mrb[0].mxu0
      %v6722 = vadd.f32 0.0, %v6721
      %6723 = vmatprep.mubr.bf16.mxu0 %v6378
      %6724 = vmatmul.mubr.bf16.gmra.mrb[0].mxu0 %v6377
      %v6725 = vpop.f32.mrb[0].mxu0
      %v6726 = vadd.f32 0.0, %v6725
      %v6727 = vpop.f32.mrb[0].mxu0
      %v6728 = vadd.f32 0.0, %v6727
      %v6729 = vpop.f32.mrb[0].mxu0
      %v6730 = vadd.f32 0.0, %v6729
      %v6731 = vpop.f32.mrb[0].mxu0
      %v6732 = vadd.f32 0.0, %v6731
      %6733 = vdwg.mxu0
      %6734 = vmatprep.subr.bf16.mxu0 %v6553
      %6735 = vmatpush1.bf16.msra.mxu0 %v6552
      %6736 = vmatprep.subr.bf16.mxu0 %v6619
      %6737 = vmatpush1.bf16.msra.mxu0 %v6616
      %6738 = vmatprep.subr.bf16.mxu0 0
      %6739 = vmatpush1.bf16.msra.mxu0 0
      %6740 = vmatprep.subr.bf16.mxu0 0
      %6741 = vmatpush1.bf16.msra.mxu0 0
      %6742 = vmatprep.subr.bf16.mxu0 0
      %6743 = vmatpush1.bf16.msra.mxu0 0
      %6744 = vmatprep.subr.bf16.mxu0 0
      %6745 = vmatpush1.bf16.msra.mxu0 0
      %6746 = vmatprep.subr.bf16.mxu0 0
      %6747 = vmatpush1.bf16.msra.mxu0 0
      %6748 = vmatprep.subr.bf16.mxu0 0
      %6749 = vmatpush1.bf16.msra.mxu0 0
      %6750 = vmatprep.subr.bf16.mxu0 0
      %6751 = vmatpush1.bf16.msra.mxu0 0
      %6752 = vmatprep.subr.bf16.mxu0 0
      %6753 = vmatpush1.bf16.msra.mxu0 0
      %6754 = vmatprep.subr.bf16.mxu0 0
      %6755 = vmatpush1.bf16.msra.mxu0 0
      %6756 = vmatprep.subr.bf16.mxu0 0
      %6757 = vmatpush1.bf16.msra.mxu0 0
      %6758 = vmatprep.subr.bf16.mxu0 0
      %6759 = vmatpush1.bf16.msra.mxu0 0
      %6760 = vmatprep.subr.bf16.mxu0 0
      %6761 = vmatpush1.bf16.msra.mxu0 0
      %6762 = vmatprep.subr.bf16.mxu0 0
      %6763 = vmatpush1.bf16.msra.mxu0 0
      %6764 = vmatprep.subr.bf16.mxu0 0
      %6765 = vmatpush1.bf16.msra.mxu0 0
      %6766 = vmatprep.mubr.bf16.mxu0 0
      %6767 = vmatmul.mubr.bf16.gmra.mrb[0].mxu0 %v6591
      %v6768 = vpop.f32.mrb[0].mxu0
      %v6769 = vadd.f32 %v6656, %v6768
      %v6770 = vpop.f32.mrb[0].mxu0
      %v6771 = vadd.f32 %v6658, %v6770
      %v6772 = vpop.f32.mrb[0].mxu0
      %v6773 = vadd.f32 %v6660, %v6772
      %v6774 = vpop.f32.mrb[0].mxu0
      %v6775 = vadd.f32 %v6662, %v6774
      %6776 = vmatprep.mubr.bf16.mxu0 0
      %6777 = vmatmul.mubr.bf16.gmra.mrb[0].mxu0 %v6594
      %v6778 = vpop.f32.mrb[0].mxu0
      %v6779 = vadd.f32 %v6666, %v6778
      %v6780 = vpop.f32.mrb[0].mxu0
      %v6781 = vadd.f32 %v6668, %v6780
      %v6782 = vpop.f32.mrb[0].mxu0
      %v6783 = vadd.f32 %v6670, %v6782
      %v6784 = vpop.f32.mrb[0].mxu0
      %v6785 = vadd.f32 %v6672, %v6784
      %6786 = vmatprep.mubr.bf16.mxu0 0
      %6787 = vmatmul.mubr.bf16.gmra.mrb[0].mxu0 %v6597
      %v6788 = vpop.f32.mrb[0].mxu0
      %v6789 = vadd.f32 %v6676, %v6788
      %v6790 = vpop.f32.mrb[0].mxu0
      %v6791 = vadd.f32 %v6678, %v6790
      %v6792 = vpop.f32.mrb[0].mxu0
      %v6793 = vadd.f32 %v6680, %v6792
      %v6794 = vpop.f32.mrb[0].mxu0
      %v6795 = vadd.f32 %v6682, %v6794
      %6796 = vmatprep.mubr.bf16.mxu0 0
      %6797 = vmatmul.mubr.bf16.gmra.mrb[0].mxu0 %v6600
      %v6798 = vpop.f32.mrb[0].mxu0
      %v6799 = vadd.f32 %v6686, %v6798
      %v6800 = vpop.f32.mrb[0].mxu0
      %v6801 = vadd.f32 %v6688, %v6800
      %v6802 = vpop.f32.mrb[0].mxu0
      %v6803 = vadd.f32 %v6690, %v6802
      %v6804 = vpop.f32.mrb[0].mxu0
      %v6805 = vadd.f32 %v6692, %v6804
      %6806 = vmatprep.mubr.bf16.mxu0 0
      %6807 = vmatmul.mubr.bf16.gmra.mrb[0].mxu0 %v6603
      %v6808 = vpop.f32.mrb[0].mxu0
      %v6809 = vadd.f32 %v6696, %v6808
      %v6810 = vpop.f32.mrb[0].mxu0
      %v6811 = vadd.f32 %v6698, %v6810
      %v6812 = vpop.f32.mrb[0].mxu0
      %v6813 = vadd.f32 %v6700, %v6812
      %v6814 = vpop.f32.mrb[0].mxu0
      %v6815 = vadd.f32 %v6702, %v6814
      %6816 = vmatprep.mubr.bf16.mxu0 0
      %6817 = vmatmul.mubr.bf16.gmra.mrb[0].mxu0 %v6606
      %v6818 = vpop.f32.mrb[0].mxu0
      %v6819 = vadd.f32 %v6706, %v6818
      %v6820 = vpop.f32.mrb[0].mxu0
      %v6821 = vadd.f32 %v6708, %v6820
      %v6822 = vpop.f32.mrb[0].mxu0
      %v6823 = vadd.f32 %v6710, %v6822
      %v6824 = vpop.f32.mrb[0].mxu0
      %v6825 = vadd.f32 %v6712, %v6824
      %6826 = vmatprep.mubr.bf16.mxu0 0
      %6827 = vmatmul.mubr.bf16.gmra.mrb[0].mxu0 %v6609
      %v6828 = vpop.f32.mrb[0].mxu0
      %v6829 = vadd.f32 %v6716, %v6828
      %v6830 = vpop.f32.mrb[0].mxu0
      %v6831 = vadd.f32 %v6718, %v6830
      %v6832 = vpop.f32.mrb[0].mxu0
      %v6833 = vadd.f32 %v6720, %v6832
      %v6834 = vpop.f32.mrb[0].mxu0
      %v6835 = vadd.f32 %v6722, %v6834
      %6836 = vmatprep.mubr.bf16.mxu0 0
      %6837 = vmatmul.mubr.bf16.gmra.mrb[0].mxu0 %v6612
      %v6838 = vpop.f32.mrb[0].mxu0
      %v6839 = vadd.f32 %v6726, %v6838
      %v6840 = vpop.f32.mrb[0].mxu0
      %v6841 = vadd.f32 %v6728, %v6840
      %v6842 = vpop.f32.mrb[0].mxu0
      %v6843 = vadd.f32 %v6730, %v6842
      %v6844 = vpop.f32.mrb[0].mxu0
      %v6845 = vadd.f32 %v6732, %v6844
      %6846 = vdwg.mxu0
      %s6847 = scalar_lea.vmem %s4, 280
      %v6848 = vld [vmem:[%s6847] sm:$0xff]
      %v6849 = vld [vmem:[%s6847 + $0x8] sm:$0xff]
      %v6850 = vld [vmem:[%s6847 + $0x10] sm:$0xff]
      %v6851 = vld [vmem:[%s6847 + $0x18] sm:$0xff]
      %v6852 = vld [vmem:[%s6847 + $0x20] sm:$0xff]
      %v6853 = vld [vmem:[%s6847 + $0x28] sm:$0xff]
      %v6854 = vld [vmem:[%s6847 + $0x30] sm:$0xff]
      %v6855 = vld [vmem:[%s6847 + $0x38] sm:$0xff]
      %v6856 = vld [vmem:[%s6847 + $0x40] sm:$0xff]
      %v6857 = vld [vmem:[%s6847 + $0x48] sm:$0xff]
      %v6858 = vld [vmem:[%s6847 + $0x50] sm:$0xff]
      %v6859 = vld [vmem:[%s6847 + $0x58] sm:$0xff]
      %v6860 = vld [vmem:[%s6847 + $0x60] sm:$0xff]
      %v6861 = vld [vmem:[%s6847 + $0x68] sm:$0xff]
      %v6862 = vld [vmem:[%s6847 + $0x70] sm:$0xff]
      %v6863 = vld [vmem:[%s6847 + $0x78] sm:$0xff]
      %v6864 = vld [vmem:[%s6847 + $0x80] sm:$0xff]
      %v6865 = vld [vmem:[%s6847 + $0x88] sm:$0xff]
      %v6866 = vld [vmem:[%s6847 + $0x90] sm:$0xff]
      %v6867 = vld [vmem:[%s6847 + $0x98] sm:$0xff]
      %v6868 = vld [vmem:[%s6847 + $0xa0] sm:$0xff]
      %v6869 = vld [vmem:[%s6847 + $0xa8] sm:$0xff]
      %v6870 = vld [vmem:[%s6847 + $0xb0] sm:$0xff]
      %v6871 = vld [vmem:[%s6847 + $0xb8] sm:$0xff]
      %v6872 = vld [vmem:[%s6847 + $0xc0] sm:$0xff]
      %v6873 = vld [vmem:[%s6847 + $0xc8] sm:$0xff]
      %v6874 = vld [vmem:[%s6847 + $0xd0] sm:$0xff]
      %v6875 = vld [vmem:[%s6847 + $0xd8] sm:$0xff]
      %v6876 = vld [vmem:[%s6847 + $0xe0] sm:$0xff]
      %v6877 = vld [vmem:[%s6847 + $0xe8] sm:$0xff]
      %v6878 = vld [vmem:[%s6847 + $0xf0] sm:$0xff]
      %v6879 = vld [vmem:[%s6847 + $0xf8] sm:$0xff]
      %v6880 = vld [vmem:[%s6847 + $0x100] sm:$0xff]
      %v6881 = vld [vmem:[%s6847 + $0x108] sm:$0xff]
      %v6882 = vld [vmem:[%s6847 + $0x110] sm:$0xff]
      %v6918 = vunpack.c.l.b16 %v6848
      %v6919 = vunpack.c.h.b16 %v6848
      %v6920 = vunpack.c.l.b16 %v6849
      %v6921 = vunpack.c.h.b16 %v6849
      %v6922 = vunpack.c.l.b16 %v6850
      %v6923 = vunpack.c.h.b16 %v6850
      %v6924 = vunpack.c.l.b16 %v6851
      %v6925 = vunpack.c.h.b16 %v6851
      %v6926 = vunpack.c.l.b16 %v6852
      %v6927 = vunpack.c.h.b16 %v6852
      %v6928 = vunpack.c.l.b16 %v6853
      %v6929 = vunpack.c.h.b16 %v6853
      %v6930 = vunpack.c.l.b16 %v6854
      %v6931 = vunpack.c.h.b16 %v6854
      %v6932 = vunpack.c.l.b16 %v6855
      %v6933 = vunpack.c.h.b16 %v6855
      %v6934 = vunpack.c.l.b16 %v6856
      %v6935 = vunpack.c.h.b16 %v6856
      %v6936 = vunpack.c.l.b16 %v6857
      %v6937 = vunpack.c.h.b16 %v6857
      %v6938 = vunpack.c.l.b16 %v6858
      %v6939 = vunpack.c.h.b16 %v6858
      %v6940 = vunpack.c.l.b16 %v6859
      %v6941 = vunpack.c.h.b16 %v6859
      %v6942 = vunpack.c.l.b16 %v6860
      %v6943 = vunpack.c.h.b16 %v6860
      %v6944 = vunpack.c.l.b16 %v6861
      %v6945 = vunpack.c.h.b16 %v6861
      %v6946 = vunpack.c.l.b16 %v6862
      %v6947 = vunpack.c.h.b16 %v6862
      %v6948 = vunpack.c.l.b16 %v6863
      %v6949 = vunpack.c.h.b16 %v6863
      %v6950 = vunpack.c.l.b16 %v6864
      %v6951 = vunpack.c.h.b16 %v6864
      %v6952 = vunpack.c.l.b16 %v6865
      %v6953 = vunpack.c.h.b16 %v6865
      %v6954 = vunpack.c.l.b16 %v6866
      %v6955 = vunpack.c.h.b16 %v6866
      %v6956 = vunpack.c.l.b16 %v6867
      %v6957 = vunpack.c.h.b16 %v6867
      %v6958 = vunpack.c.l.b16 %v6868
      %v6959 = vunpack.c.h.b16 %v6868
      %v6960 = vunpack.c.l.b16 %v6869
      %v6961 = vunpack.c.h.b16 %v6869
      %v6962 = vunpack.c.l.b16 %v6870
      %v6963 = vunpack.c.h.b16 %v6870
      %v6964 = vunpack.c.l.b16 %v6871
      %v6965 = vunpack.c.h.b16 %v6871
      %v6966 = vunpack.c.l.b16 %v6872
      %v6967 = vunpack.c.h.b16 %v6872
      %v6968 = vunpack.c.l.b16 %v6873
      %v6969 = vunpack.c.h.b16 %v6873
      %v6970 = vunpack.c.l.b16 %v6874
      %v6971 = vunpack.c.h.b16 %v6874
      %v6972 = vunpack.c.l.b16 %v6875
      %v6973 = vunpack.c.h.b16 %v6875
      %v6974 = vunpack.c.l.b16 %v6876
      %v6975 = vunpack.c.h.b16 %v6876
      %v6976 = vunpack.c.l.b16 %v6877
      %v6977 = vunpack.c.h.b16 %v6877
      %v6978 = vunpack.c.l.b16 %v6878
      %v6979 = vunpack.c.h.b16 %v6878
      %v6980 = vunpack.c.l.b16 %v6879
      %v6981 = vunpack.c.h.b16 %v6879
      %v6982 = vunpack.c.l.b16 %v6880
      %v6983 = vunpack.c.h.b16 %v6880
      %v6984 = vunpack.c.l.b16 %v6881
      %v6985 = vunpack.c.h.b16 %v6881
      %v6986 = vunpack.c.l.b16 %v6882
      %v6987 = vunpack.c.h.b16 %v6882
      %v6988 = vpack.c.b16 %v6920, %v6918
      %v6989 = vpack.c.b16 %v6921, %v6919
      %v6990 = vpack.c.b16 %v6924, %v6922
      %v6991 = vpack.c.b16 %v6925, %v6923
      %v6992 = vpack.c.b16 %v6928, %v6926
      %v6993 = vpack.c.b16 %v6929, %v6927
      %v6994 = vpack.c.b16 %v6932, %v6930
      %v6995 = vpack.c.b16 %v6933, %v6931
      %v6996 = vpack.c.b16 %v6936, %v6934
      %v6997 = vpack.c.b16 %v6937, %v6935
      %v6998 = vpack.c.b16 %v6940, %v6938
      %v6999 = vpack.c.b16 %v6941, %v6939
      %v7000 = vpack.c.b16 %v6944, %v6942
      %v7001 = vpack.c.b16 %v6945, %v6943
      %v7002 = vpack.c.b16 %v6948, %v6946
      %v7003 = vpack.c.b16 %v6949, %v6947
      %v7004 = vpack.c.b16 %v6952, %v6950
      %v7005 = vpack.c.b16 %v6953, %v6951
      %v7006 = vpack.c.b16 %v6956, %v6954
      %v7007 = vpack.c.b16 %v6957, %v6955
      %v7008 = vpack.c.b16 %v6960, %v6958
      %v7009 = vpack.c.b16 %v6961, %v6959
      %v7010 = vpack.c.b16 %v6964, %v6962
      %v7011 = vpack.c.b16 %v6965, %v6963
      %v7012 = vpack.c.b16 %v6968, %v6966
      %v7013 = vpack.c.b16 %v6969, %v6967
      %v7014 = vpack.c.b16 %v6972, %v6970
      %v7015 = vpack.c.b16 %v6973, %v6971
      %v7016 = vpack.c.b16 %v6976, %v6974
      %v7017 = vpack.c.b16 %v6977, %v6975
      %v7018 = vpack.c.b16 %v6980, %v6978
      %v7019 = vpack.c.b16 %v6981, %v6979
      %v7020 = vpack.c.b16 %v6984, %v6982
      %v7021 = vpack.c.b16 %v6985, %v6983
      %v7022 = vpack.c.b16 %v6986, %v6986
      %v7023 = vpack.c.b16 %v6987, %v6987
      %v7059 = vsel %vm6614, %v7022, 0
      %v7062 = vsel %vm6614, %v7023, 0
      %7064 = vmatprep.subr.bf16.mxu0 %v6989
      %7065 = vmatpush1.bf16.msra.mxu0 %v6988
      %7066 = vmatprep.subr.bf16.mxu0 %v6991
      %7067 = vmatpush1.bf16.msra.mxu0 %v6990
      %7068 = vmatprep.subr.bf16.mxu0 %v6993
      %7069 = vmatpush1.bf16.msra.mxu0 %v6992
      %7070 = vmatprep.subr.bf16.mxu0 %v6995
      %7071 = vmatpush1.bf16.msra.mxu0 %v6994
      %7072 = vmatprep.subr.bf16.mxu0 %v6997
      %7073 = vmatpush1.bf16.msra.mxu0 %v6996
      %7074 = vmatprep.subr.bf16.mxu0 %v6999
      %7075 = vmatpush1.bf16.msra.mxu0 %v6998
      %7076 = vmatprep.subr.bf16.mxu0 %v7001
      %7077 = vmatpush1.bf16.msra.mxu0 %v7000
      %7078 = vmatprep.subr.bf16.mxu0 %v7003
      %7079 = vmatpush1.bf16.msra.mxu0 %v7002
      %7080 = vmatprep.subr.bf16.mxu0 %v7005
      %7081 = vmatpush1.bf16.msra.mxu0 %v7004
      %7082 = vmatprep.subr.bf16.mxu0 %v7007
      %7083 = vmatpush1.bf16.msra.mxu0 %v7006
      %7084 = vmatprep.subr.bf16.mxu0 %v7009
      %7085 = vmatpush1.bf16.msra.mxu0 %v7008
      %7086 = vmatprep.subr.bf16.mxu0 %v7011
      %7087 = vmatpush1.bf16.msra.mxu0 %v7010
      %7088 = vmatprep.subr.bf16.mxu0 %v7013
      %7089 = vmatpush1.bf16.msra.mxu0 %v7012
      %7090 = vmatprep.subr.bf16.mxu0 %v7015
      %7091 = vmatpush1.bf16.msra.mxu0 %v7014
      %7092 = vmatprep.subr.bf16.mxu0 %v7017
      %7093 = vmatpush1.bf16.msra.mxu0 %v7016
      %7094 = vmatprep.subr.bf16.mxu0 %v7019
      %7095 = vmatpush1.bf16.msra.mxu0 %v7018
      %7096 = vmatprep.mubr.bf16.mxu0 %v6357
      %7097 = vmatmul.mubr.bf16.gmra.mrb[0].mxu0 %v6356
      %v7098 = vpop.f32.mrb[0].mxu0
      %v7099 = vadd.f32 0.0, %v7098
      %v7100 = vpop.f32.mrb[0].mxu0
      %v7101 = vadd.f32 0.0, %v7100
      %v7102 = vpop.f32.mrb[0].mxu0
      %v7103 = vadd.f32 0.0, %v7102
      %v7104 = vpop.f32.mrb[0].mxu0
      %v7105 = vadd.f32 0.0, %v7104
      %7106 = vmatprep.mubr.bf16.mxu0 %v6360
      %7107 = vmatmul.mubr.bf16.gmra.mrb[0].mxu0 %v6359
      %v7108 = vpop.f32.mrb[0].mxu0
      %v7109 = vadd.f32 0.0, %v7108
      %v7110 = vpop.f32.mrb[0].mxu0
      %v7111 = vadd.f32 0.0, %v7110
      %v7112 = vpop.f32.mrb[0].mxu0
      %v7113 = vadd.f32 0.0, %v7112
      %v7114 = vpop.f32.mrb[0].mxu0
      %v7115 = vadd.f32 0.0, %v7114
      %7116 = vmatprep.mubr.bf16.mxu0 %v6363
      %7117 = vmatmul.mubr.bf16.gmra.mrb[0].mxu0 %v6362
      %v7118 = vpop.f32.mrb[0].mxu0
      %v7119 = vadd.f32 0.0, %v7118
      %v7120 = vpop.f32.mrb[0].mxu0
      %v7121 = vadd.f32 0.0, %v7120
      %v7122 = vpop.f32.mrb[0].mxu0
      %v7123 = vadd.f32 0.0, %v7122
      %v7124 = vpop.f32.mrb[0].mxu0
      %v7125 = vadd.f32 0.0, %v7124
      %7126 = vmatprep.mubr.bf16.mxu0 %v6366
      %7127 = vmatmul.mubr.bf16.gmra.mrb[0].mxu0 %v6365
      %v7128 = vpop.f32.mrb[0].mxu0
      %v7129 = vadd.f32 0.0, %v7128
      %v7130 = vpop.f32.mrb[0].mxu0
      %v7131 = vadd.f32 0.0, %v7130
      %v7132 = vpop.f32.mrb[0].mxu0
      %v7133 = vadd.f32 0.0, %v7132
      %v7134 = vpop.f32.mrb[0].mxu0
      %v7135 = vadd.f32 0.0, %v7134
      %7136 = vmatprep.mubr.bf16.mxu0 %v6369
      %7137 = vmatmul.mubr.bf16.gmra.mrb[0].mxu0 %v6368
      %v7138 = vpop.f32.mrb[0].mxu0
      %v7139 = vadd.f32 0.0, %v7138
      %v7140 = vpop.f32.mrb[0].mxu0
      %v7141 = vadd.f32 0.0, %v7140
      %v7142 = vpop.f32.mrb[0].mxu0
      %v7143 = vadd.f32 0.0, %v7142
      %v7144 = vpop.f32.mrb[0].mxu0
      %v7145 = vadd.f32 0.0, %v7144
      %7146 = vmatprep.mubr.bf16.mxu0 %v6372
      %7147 = vmatmul.mubr.bf16.gmra.mrb[0].mxu0 %v6371
      %v7148 = vpop.f32.mrb[0].mxu0
      %v7149 = vadd.f32 0.0, %v7148
      %v7150 = vpop.f32.mrb[0].mxu0
      %v7151 = vadd.f32 0.0, %v7150
      %v7152 = vpop.f32.mrb[0].mxu0
      %v7153 = vadd.f32 0.0, %v7152
      %v7154 = vpop.f32.mrb[0].mxu0
      %v7155 = vadd.f32 0.0, %v7154
      %7156 = vmatprep.mubr.bf16.mxu0 %v6375
      %7157 = vmatmul.mubr.bf16.gmra.mrb[0].mxu0 %v6374
      %v7158 = vpop.f32.mrb[0].mxu0
      %v7159 = vadd.f32 0.0, %v7158
      %v7160 = vpop.f32.mrb[0].mxu0
      %v7161 = vadd.f32 0.0, %v7160
      %v7162 = vpop.f32.mrb[0].mxu0
      %v7163 = vadd.f32 0.0, %v7162
      %v7164 = vpop.f32.mrb[0].mxu0
      %v7165 = vadd.f32 0.0, %v7164
      %7166 = vmatprep.mubr.bf16.mxu0 %v6378
      %7167 = vmatmul.mubr.bf16.gmra.mrb[0].mxu0 %v6377
      %v7168 = vpop.f32.mrb[0].mxu0
      %v7169 = vadd.f32 0.0, %v7168
      %v7170 = vpop.f32.mrb[0].mxu0
      %v7171 = vadd.f32 0.0, %v7170
      %v7172 = vpop.f32.mrb[0].mxu0
      %v7173 = vadd.f32 0.0, %v7172
      %v7174 = vpop.f32.mrb[0].mxu0
      %v7175 = vadd.f32 0.0, %v7174
      %7176 = vdwg.mxu0
      %7177 = vmatprep.subr.bf16.mxu0 %v7021
      %7178 = vmatpush1.bf16.msra.mxu0 %v7020
      %7179 = vmatprep.subr.bf16.mxu0 %v7062
      %7180 = vmatpush1.bf16.msra.mxu0 %v7059
      %7181 = vmatprep.subr.bf16.mxu0 0
      %7182 = vmatpush1.bf16.msra.mxu0 0
      %7183 = vmatprep.subr.bf16.mxu0 0
      %7184 = vmatpush1.bf16.msra.mxu0 0
      %7185 = vmatprep.subr.bf16.mxu0 0
      %7186 = vmatpush1.bf16.msra.mxu0 0
      %7187 = vmatprep.subr.bf16.mxu0 0
      %7188 = vmatpush1.bf16.msra.mxu0 0
      %7189 = vmatprep.subr.bf16.mxu0 0
      %7190 = vmatpush1.bf16.msra.mxu0 0
      %7191 = vmatprep.subr.bf16.mxu0 0
      %7192 = vmatpush1.bf16.msra.mxu0 0
      %7193 = vmatprep.subr.bf16.mxu0 0
      %7194 = vmatpush1.bf16.msra.mxu0 0
      %7195 = vmatprep.subr.bf16.mxu0 0
      %7196 = vmatpush1.bf16.msra.mxu0 0
      %7197 = vmatprep.subr.bf16.mxu0 0
      %7198 = vmatpush1.bf16.msra.mxu0 0
      %7199 = vmatprep.subr.bf16.mxu0 0
      %7200 = vmatpush1.bf16.msra.mxu0 0
      %7201 = vmatprep.subr.bf16.mxu0 0
      %7202 = vmatpush1.bf16.msra.mxu0 0
      %7203 = vmatprep.subr.bf16.mxu0 0
      %7204 = vmatpush1.bf16.msra.mxu0 0
      %7205 = vmatprep.subr.bf16.mxu0 0
      %7206 = vmatpush1.bf16.msra.mxu0 0
      %7207 = vmatprep.subr.bf16.mxu0 0
      %7208 = vmatpush1.bf16.msra.mxu0 0
      %7209 = vmatprep.mubr.bf16.mxu0 0
      %7210 = vmatmul.mubr.bf16.gmra.mrb[0].mxu0 %v6591
      %v7211 = vpop.f32.mrb[0].mxu0
      %v7212 = vadd.f32 %v7099, %v7211
      %v7213 = vpop.f32.mrb[0].mxu0
      %v7214 = vadd.f32 %v7101, %v7213
      %v7215 = vpop.f32.mrb[0].mxu0
      %v7216 = vadd.f32 %v7103, %v7215
      %v7217 = vpop.f32.mrb[0].mxu0
      %v7218 = vadd.f32 %v7105, %v7217
      %7219 = vmatprep.mubr.bf16.mxu0 0
      %7220 = vmatmul.mubr.bf16.gmra.mrb[0].mxu0 %v6594
      %v7221 = vpop.f32.mrb[0].mxu0
      %v7222 = vadd.f32 %v7109, %v7221
      %v7223 = vpop.f32.mrb[0].mxu0
      %v7224 = vadd.f32 %v7111, %v7223
      %v7225 = vpop.f32.mrb[0].mxu0
      %v7226 = vadd.f32 %v7113, %v7225
      %v7227 = vpop.f32.mrb[0].mxu0
      %v7228 = vadd.f32 %v7115, %v7227
      %7229 = vmatprep.mubr.bf16.mxu0 0
      %7230 = vmatmul.mubr.bf16.gmra.mrb[0].mxu0 %v6597
      %v7231 = vpop.f32.mrb[0].mxu0
      %v7232 = vadd.f32 %v7119, %v7231
      %v7233 = vpop.f32.mrb[0].mxu0
      %v7234 = vadd.f32 %v7121, %v7233
      %v7235 = vpop.f32.mrb[0].mxu0
      %v7236 = vadd.f32 %v7123, %v7235
      %v7237 = vpop.f32.mrb[0].mxu0
      %v7238 = vadd.f32 %v7125, %v7237
      %7239 = vmatprep.mubr.bf16.mxu0 0
      %7240 = vmatmul.mubr.bf16.gmra.mrb[0].mxu0 %v6600
      %v7241 = vpop.f32.mrb[0].mxu0
      %v7242 = vadd.f32 %v7129, %v7241
      %v7243 = vpop.f32.mrb[0].mxu0
      %v7244 = vadd.f32 %v7131, %v7243
      %v7245 = vpop.f32.mrb[0].mxu0
      %v7246 = vadd.f32 %v7133, %v7245
      %v7247 = vpop.f32.mrb[0].mxu0
      %v7248 = vadd.f32 %v7135, %v7247
      %7249 = vmatprep.mubr.bf16.mxu0 0
      %7250 = vmatmul.mubr.bf16.gmra.mrb[0].mxu0 %v6603
      %v7251 = vpop.f32.mrb[0].mxu0
      %v7252 = vadd.f32 %v7139, %v7251
      %v7253 = vpop.f32.mrb[0].mxu0
      %v7254 = vadd.f32 %v7141, %v7253
      %v7255 = vpop.f32.mrb[0].mxu0
      %v7256 = vadd.f32 %v7143, %v7255
      %v7257 = vpop.f32.mrb[0].mxu0
      %v7258 = vadd.f32 %v7145, %v7257
      %7259 = vmatprep.mubr.bf16.mxu0 0
      %7260 = vmatmul.mubr.bf16.gmra.mrb[0].mxu0 %v6606
      %v7261 = vpop.f32.mrb[0].mxu0
      %v7262 = vadd.f32 %v7149, %v7261
      %v7263 = vpop.f32.mrb[0].mxu0
      %v7264 = vadd.f32 %v7151, %v7263
      %v7265 = vpop.f32.mrb[0].mxu0
      %v7266 = vadd.f32 %v7153, %v7265
      %v7267 = vpop.f32.mrb[0].mxu0
      %v7268 = vadd.f32 %v7155, %v7267
      %7269 = vmatprep.mubr.bf16.mxu0 0
      %7270 = vmatmul.mubr.bf16.gmra.mrb[0].mxu0 %v6609
      %v7271 = vpop.f32.mrb[0].mxu0
      %v7272 = vadd.f32 %v7159, %v7271
      %v7273 = vpop.f32.mrb[0].mxu0
      %v7274 = vadd.f32 %v7161, %v7273
      %v7275 = vpop.f32.mrb[0].mxu0
      %v7276 = vadd.f32 %v7163, %v7275
      %v7277 = vpop.f32.mrb[0].mxu0
      %v7278 = vadd.f32 %v7165, %v7277
      %7279 = vmatprep.mubr.bf16.mxu0 0
      %7280 = vmatmul.mubr.bf16.gmra.mrb[0].mxu0 %v6612
      %v7281 = vpop.f32.mrb[0].mxu0
      %v7282 = vadd.f32 %v7169, %v7281
      %v7283 = vpop.f32.mrb[0].mxu0
      %v7284 = vadd.f32 %v7171, %v7283
      %v7285 = vpop.f32.mrb[0].mxu0
      %v7286 = vadd.f32 %v7173, %v7285
      %v7287 = vpop.f32.mrb[0].mxu0
      %v7288 = vadd.f32 %v7175, %v7287
      %7289 = vdwg.mxu0
      %v7290 = vmax.f32 %v6769, %v7212
      %v7291 = vmax.f32 %v6771, %v7214
      %v7292 = vmax.f32 %v6773, %v7216
      %v7293 = vmax.f32 %v6775, %v7218
      %v7294 = vmax.f32 %v6779, %v7222
      %v7295 = vmax.f32 %v6781, %v7224
      %v7296 = vmax.f32 %v6783, %v7226
      %v7297 = vmax.f32 %v6785, %v7228
      %v7298 = vmax.f32 %v6789, %v7232
      %v7299 = vmax.f32 %v6791, %v7234
      %v7300 = vmax.f32 %v6793, %v7236
      %v7301 = vmax.f32 %v6795, %v7238
      %v7302 = vmax.f32 %v6799, %v7242
      %v7303 = vmax.f32 %v6801, %v7244
      %v7304 = vmax.f32 %v6803, %v7246
      %v7305 = vmax.f32 %v6805, %v7248
      %v7306 = vmax.f32 %v6809, %v7252
      %v7307 = vmax.f32 %v6811, %v7254
      %v7308 = vmax.f32 %v6813, %v7256
      %v7309 = vmax.f32 %v6815, %v7258
      %v7310 = vmax.f32 %v6819, %v7262
      %v7311 = vmax.f32 %v6821, %v7264
      %v7312 = vmax.f32 %v6823, %v7266
      %v7313 = vmax.f32 %v6825, %v7268
      %v7314 = vmax.f32 %v6829, %v7272
      %v7315 = vmax.f32 %v6831, %v7274
      %v7316 = vmax.f32 %v6833, %v7276
      %v7317 = vmax.f32 %v6835, %v7278
      %v7318 = vmax.f32 %v6839, %v7282
      %v7319 = vmax.f32 %v6841, %v7284
      %v7320 = vmax.f32 %v6843, %v7286
      %v7321 = vmax.f32 %v6845, %v7288
      %v7322 = vmax.f32 %v7290, 0.0
      %v7323 = vmax.f32 %v7291, 0.0
      %v7324 = vmax.f32 %v7292, 0.0
      %v7325 = vmax.f32 %v7293, 0.0
      %v7326 = vmax.f32 %v7294, 0.0
      %v7327 = vmax.f32 %v7295, 0.0
      %v7328 = vmax.f32 %v7296, 0.0
      %v7329 = vmax.f32 %v7297, 0.0
      %v7330 = vmax.f32 %v7298, 0.0
      %v7331 = vmax.f32 %v7299, 0.0
      %v7332 = vmax.f32 %v7300, 0.0
      %v7333 = vmax.f32 %v7301, 0.0
      %v7334 = vmax.f32 %v7302, 0.0
      %v7335 = vmax.f32 %v7303, 0.0
      %v7336 = vmax.f32 %v7304, 0.0
      %v7337 = vmax.f32 %v7305, 0.0
      %v7338 = vmax.f32 %v7306, 0.0
      %v7339 = vmax.f32 %v7307, 0.0
      %v7340 = vmax.f32 %v7308, 0.0
      %v7341 = vmax.f32 %v7309, 0.0
      %v7342 = vmax.f32 %v7310, 0.0
      %v7343 = vmax.f32 %v7311, 0.0
      %v7344 = vmax.f32 %v7312, 0.0
      %v7345 = vmax.f32 %v7313, 0.0
      %v7346 = vmax.f32 %v7314, 0.0
      %v7347 = vmax.f32 %v7315, 0.0
      %v7348 = vmax.f32 %v7316, 0.0
      %v7349 = vmax.f32 %v7317, 0.0
      %v7350 = vmax.f32 %v7318, 0.0
      %v7351 = vmax.f32 %v7319, 0.0
      %v7352 = vmax.f32 %v7320, 0.0
      %v7353 = vmax.f32 %v7321, 0.0
      %v7354 = vpack.c.bf16 %v7324, %v7322
      %v7355 = vpack.c.bf16 %v7325, %v7323
      %v7356 = vpack.c.bf16 %v7328, %v7326
      %v7357 = vpack.c.bf16 %v7329, %v7327
      %v7358 = vpack.c.bf16 %v7332, %v7330
      %v7359 = vpack.c.bf16 %v7333, %v7331
      %v7360 = vpack.c.bf16 %v7336, %v7334
      %v7361 = vpack.c.bf16 %v7337, %v7335
      %v7362 = vpack.c.bf16 %v7340, %v7338
      %v7363 = vpack.c.bf16 %v7341, %v7339
      %v7364 = vpack.c.bf16 %v7344, %v7342
      %v7365 = vpack.c.bf16 %v7345, %v7343
      %v7366 = vpack.c.bf16 %v7348, %v7346
      %v7367 = vpack.c.bf16 %v7349, %v7347
      %v7368 = vpack.c.bf16 %v7352, %v7350
      %v7369 = vpack.c.bf16 %v7353, %v7351
      %v7370 = vld [vmem:[%s6] sm:$0x3]
      %v7372 = vlaneseq
      %v7373 = vshrl.u32 %v7372, 7
      %v7374 = vsub.s32 0, %v7373
      %v7375 = vrot.slane %v7370, %v7374
      %v7376 = vlaneseq
      %v7377 = vshrl.u32 %v7376, 7
      %v7378 = vsub.s32 1, %v7377
      %v7379 = vrot.slane %v7370, %v7378
      %7382 = vst [vmem:[#allocation3] sm:$0xff] %v7375
      %vm7383 = vcmask 588800
      %7384 = vst.msk [vmem:[#allocation3 + $0x8] sm:$0xff] %vm7383, %v7379
      %7385 = vst [vmem:[#allocation3 + $0x10] sm:$0xff] %v7375
      %7386 = vst.msk [vmem:[#allocation3 + $0x18] sm:$0xff] %vm7383, %v7379
      %7387 = vst [vmem:[#allocation3 + $0x20] sm:$0xff] %v7375
      %7388 = vst.msk [vmem:[#allocation3 + $0x28] sm:$0xff] %vm7383, %v7379
      %7389 = vst [vmem:[#allocation3 + $0x30] sm:$0xff] %v7375
      %7390 = vst.msk [vmem:[#allocation3 + $0x38] sm:$0xff] %vm7383, %v7379
      %7391 = vst [vmem:[#allocation3 + $0x40] sm:$0xff] %v7375
      %7392 = vst.msk [vmem:[#allocation3 + $0x48] sm:$0xff] %vm7383, %v7379
      %7393 = vst [vmem:[#allocation3 + $0x50] sm:$0xff] %v7375
      %7394 = vst.msk [vmem:[#allocation3 + $0x58] sm:$0xff] %vm7383, %v7379
      %7395 = vst [vmem:[#allocation3 + $0x60] sm:$0xff] %v7375
      %7396 = vst.msk [vmem:[#allocation3 + $0x68] sm:$0xff] %vm7383, %v7379
      %7397 = vst [vmem:[#allocation3 + $0x70] sm:$0xff] %v7375
      %7398 = vst.msk [vmem:[#allocation3 + $0x78] sm:$0xff] %vm7383, %v7379
      %7399 = vst [vmem:[#allocation3 + $0x80] sm:$0xff] %v7375
      %7400 = vst.msk [vmem:[#allocation3 + $0x88] sm:$0xff] %vm7383, %v7379
      %7401 = vst [vmem:[#allocation3 + $0x90] sm:$0xff] %v7375
      %7402 = vst.msk [vmem:[#allocation3 + $0x98] sm:$0xff] %vm7383, %v7379
      %7403 = vst [vmem:[#allocation3 + $0xa0] sm:$0xff] %v7375
      %7404 = vst.msk [vmem:[#allocation3 + $0xa8] sm:$0xff] %vm7383, %v7379
      %7405 = vst [vmem:[#allocation3 + $0xb0] sm:$0xff] %v7375
      %7406 = vst.msk [vmem:[#allocation3 + $0xb8] sm:$0xff] %vm7383, %v7379
      %7407 = vst [vmem:[#allocation3 + $0xc0] sm:$0xff] %v7375
      %7408 = vst.msk [vmem:[#allocation3 + $0xc8] sm:$0xff] %vm7383, %v7379
      %7409 = vst [vmem:[#allocation3 + $0xd0] sm:$0xff] %v7375
      %7410 = vst.msk [vmem:[#allocation3 + $0xd8] sm:$0xff] %vm7383, %v7379
      %7411 = vst [vmem:[#allocation3 + $0xe0] sm:$0xff] %v7375
      %7412 = vst.msk [vmem:[#allocation3 + $0xe8] sm:$0xff] %vm7383, %v7379
      %7413 = vst [vmem:[#allocation3 + $0xf0] sm:$0xf] %v7375
      %vm7414 = vcmask 584704
      %7415 = vst.msk [vmem:[#allocation3 + $0xf8] sm:$0xf] %vm7414, %v7379
      %v7416 = vld [vmem:[#allocation3] sm:$0xff]
      %v7417 = vld [vmem:[#allocation3 + $0x8] sm:$0xff]
      %v7418 = vld [vmem:[#allocation3 + $0x10] sm:$0xff]
      %v7419 = vld [vmem:[#allocation3 + $0x18] sm:$0xff]
      %v7420 = vld [vmem:[#allocation3 + $0x20] sm:$0xff]
      %v7421 = vld [vmem:[#allocation3 + $0x28] sm:$0xff]
      %v7422 = vld [vmem:[#allocation3 + $0x30] sm:$0xff]
      %v7423 = vld [vmem:[#allocation3 + $0x38] sm:$0xff]
      %v7424 = vld [vmem:[#allocation3 + $0x40] sm:$0xff]
      %v7425 = vld [vmem:[#allocation3 + $0x48] sm:$0xff]
      %v7426 = vld [vmem:[#allocation3 + $0x50] sm:$0xff]
      %v7427 = vld [vmem:[#allocation3 + $0x58] sm:$0xff]
      %v7428 = vld [vmem:[#allocation3 + $0x60] sm:$0xff]
      %v7429 = vld [vmem:[#allocation3 + $0x68] sm:$0xff]
      %v7430 = vld [vmem:[#allocation3 + $0x70] sm:$0xff]
      %v7431 = vld [vmem:[#allocation3 + $0x78] sm:$0xff]
      %v7432 = vld [vmem:[#allocation3 + $0x80] sm:$0xff]
      %v7433 = vld [vmem:[#allocation3 + $0x88] sm:$0xff]
      %v7434 = vld [vmem:[#allocation3 + $0x90] sm:$0xff]
      %v7435 = vld [vmem:[#allocation3 + $0x98] sm:$0xff]
      %v7436 = vld [vmem:[#allocation3 + $0xa0] sm:$0xff]
      %v7437 = vld [vmem:[#allocation3 + $0xa8] sm:$0xff]
      %v7438 = vld [vmem:[#allocation3 + $0xb0] sm:$0xff]
      %v7439 = vld [vmem:[#allocation3 + $0xb8] sm:$0xff]
      %v7440 = vld [vmem:[#allocation3 + $0xc0] sm:$0xff]
      %v7441 = vld [vmem:[#allocation3 + $0xc8] sm:$0xff]
      %v7442 = vld [vmem:[#allocation3 + $0xd0] sm:$0xff]
      %v7443 = vld [vmem:[#allocation3 + $0xd8] sm:$0xff]
      %v7444 = vld [vmem:[#allocation3 + $0xe0] sm:$0xff]
      %v7445 = vld [vmem:[#allocation3 + $0xe8] sm:$0xff]
      %v7446 = vld [vmem:[#allocation3 + $0xf0] sm:$0xf]
      %v7447 = vld [vmem:[#allocation3 + $0xf8] sm:$0xf]
      %v7448 = vld [vmem:[%s5] sm:$0xff]
      %v7449 = vld [vmem:[%s5 + $0x8] sm:$0xff]
      %v7450 = vld [vmem:[%s5 + $0x10] sm:$0xff]
      %v7451 = vld [vmem:[%s5 + $0x18] sm:$0xff]
      %v7452 = vld [vmem:[%s5 + $0x20] sm:$0xff]
      %v7453 = vld [vmem:[%s5 + $0x28] sm:$0xff]
      %v7454 = vld [vmem:[%s5 + $0x30] sm:$0xff]
      %v7455 = vld [vmem:[%s5 + $0x38] sm:$0xff]
      %v7456 = vld [vmem:[%s5 + $0x40] sm:$0xff]
      %v7457 = vld [vmem:[%s5 + $0x48] sm:$0xff]
      %v7458 = vld [vmem:[%s5 + $0x50] sm:$0xff]
      %v7459 = vld [vmem:[%s5 + $0x58] sm:$0xff]
      %v7460 = vld [vmem:[%s5 + $0x60] sm:$0xff]
      %v7461 = vld [vmem:[%s5 + $0x68] sm:$0xff]
      %v7462 = vld [vmem:[%s5 + $0x70] sm:$0xff]
      %v7463 = vld [vmem:[%s5 + $0x78] sm:$0xff]
      %v7464 = vld [vmem:[%s5 + $0x80] sm:$0xff]
      %v7465 = vld [vmem:[%s5 + $0x88] sm:$0x33]
      %v7484 = vunpack.c.l.b16 %v7448
      %v7485 = vunpack.c.h.b16 %v7448
      %v7486 = vunpack.c.l.b16 %v7449
      %v7487 = vunpack.c.h.b16 %v7449
      %v7488 = vunpack.c.l.b16 %v7450
      %v7489 = vunpack.c.h.b16 %v7450
      %v7490 = vunpack.c.l.b16 %v7451
      %v7491 = vunpack.c.h.b16 %v7451
      %v7492 = vunpack.c.l.b16 %v7452
      %v7493 = vunpack.c.h.b16 %v7452
      %v7494 = vunpack.c.l.b16 %v7453
      %v7495 = vunpack.c.h.b16 %v7453
      %v7496 = vunpack.c.l.b16 %v7454
      %v7497 = vunpack.c.h.b16 %v7454
      %v7498 = vunpack.c.l.b16 %v7455
      %v7499 = vunpack.c.h.b16 %v7455
      %v7500 = vunpack.c.l.b16 %v7456
      %v7501 = vunpack.c.h.b16 %v7456
      %v7502 = vunpack.c.l.b16 %v7457
      %v7503 = vunpack.c.h.b16 %v7457
      %v7504 = vunpack.c.l.b16 %v7458
      %v7505 = vunpack.c.h.b16 %v7458
      %v7506 = vunpack.c.l.b16 %v7459
      %v7507 = vunpack.c.h.b16 %v7459
      %v7508 = vunpack.c.l.b16 %v7460
      %v7509 = vunpack.c.h.b16 %v7460
      %v7510 = vunpack.c.l.b16 %v7461
      %v7511 = vunpack.c.h.b16 %v7461
      %v7512 = vunpack.c.l.b16 %v7462
      %v7513 = vunpack.c.h.b16 %v7462
      %v7514 = vunpack.c.l.b16 %v7463
      %v7515 = vunpack.c.h.b16 %v7463
      %v7516 = vunpack.c.l.b16 %v7464
      %v7517 = vunpack.c.h.b16 %v7464
      %v7518 = vunpack.c.l.b16 %v7465
      %v7519 = vunpack.c.h.b16 %v7465
      %v7520 = vpack.c.b16 %v7486, %v7484
      %v7521 = vpack.c.b16 %v7487, %v7485
      %v7522 = vpack.c.b16 %v7490, %v7488
      %v7523 = vpack.c.b16 %v7491, %v7489
      %v7524 = vpack.c.b16 %v7494, %v7492
      %v7525 = vpack.c.b16 %v7495, %v7493
      %v7526 = vpack.c.b16 %v7498, %v7496
      %v7527 = vpack.c.b16 %v7499, %v7497
      %v7528 = vpack.c.b16 %v7502, %v7500
      %v7529 = vpack.c.b16 %v7503, %v7501
      %v7530 = vpack.c.b16 %v7506, %v7504
      %v7531 = vpack.c.b16 %v7507, %v7505
      %v7532 = vpack.c.b16 %v7510, %v7508
      %v7533 = vpack.c.b16 %v7511, %v7509
      %v7534 = vpack.c.b16 %v7514, %v7512
      %v7535 = vpack.c.b16 %v7515, %v7513
      %v7536 = vpack.c.b16 %v7518, %v7516
      %v7537 = vpack.c.b16 %v7519, %v7517
      %vm7554 = vcmask 97280
      %v7556 = vsel %vm7554, %v7355, 0
      %v7559 = vsel %vm7554, %v7357, 0
      %v7562 = vsel %vm7554, %v7359, 0
      %v7565 = vsel %vm7554, %v7361, 0
      %v7568 = vsel %vm7554, %v7363, 0
      %v7571 = vsel %vm7554, %v7365, 0
      %v7574 = vsel %vm7554, %v7367, 0
      %v7577 = vsel %vm7554, %v7369, 0
      %v7580 = vsel %vm5765, %v7536, 0
      %v7583 = vsel %vm5765, %v7537, 0
      %7585 = vmatprep.subr.bf16.mxu0 %v7521
      %7586 = vmatpush1.bf16.msra.mxu0 %v7520
      %7587 = vmatprep.subr.bf16.mxu0 %v7523
      %7588 = vmatpush1.bf16.msra.mxu0 %v7522
      %7589 = vmatprep.subr.bf16.mxu0 %v7525
      %7590 = vmatpush1.bf16.msra.mxu0 %v7524
      %7591 = vmatprep.subr.bf16.mxu0 %v7527
      %7592 = vmatpush1.bf16.msra.mxu0 %v7526
      %7593 = vmatprep.subr.bf16.mxu0 %v7529
      %7594 = vmatpush1.bf16.msra.mxu0 %v7528
      %7595 = vmatprep.subr.bf16.mxu0 %v7531
      %7596 = vmatpush1.bf16.msra.mxu0 %v7530
      %7597 = vmatprep.subr.bf16.mxu0 %v7533
      %7598 = vmatpush1.bf16.msra.mxu0 %v7532
      %7599 = vmatprep.subr.bf16.mxu0 %v7535
      %7600 = vmatpush1.bf16.msra.mxu0 %v7534
      %7601 = vmatprep.subr.bf16.mxu0 %v7583
      %7602 = vmatpush1.bf16.msra.mxu0 %v7580
      %7603 = vmatprep.subr.bf16.mxu0 0
      %7604 = vmatpush1.bf16.msra.mxu0 0
      %7605 = vmatprep.subr.bf16.mxu0 0
      %7606 = vmatpush1.bf16.msra.mxu0 0
      %7607 = vmatprep.subr.bf16.mxu0 0
      %7608 = vmatpush1.bf16.msra.mxu0 0
      %7609 = vmatprep.subr.bf16.mxu0 0
      %7610 = vmatpush1.bf16.msra.mxu0 0
      %7611 = vmatprep.subr.bf16.mxu0 0
      %7612 = vmatpush1.bf16.msra.mxu0 0
      %7613 = vmatprep.subr.bf16.mxu0 0
      %7614 = vmatpush1.bf16.msra.mxu0 0
      %7615 = vmatprep.subr.bf16.mxu0 0
      %7616 = vmatpush1.bf16.msra.mxu0 0
      %7617 = vmatprep.mubr.bf16.mxu0 %v7556
      %7618 = vmatmul.mubr.bf16.gmra.mrb[0].mxu0 %v7354
      %v7619 = vpop.f32.mrb[0].mxu0
      %v7620 = vadd.f32 0.0, %v7619
      %v7621 = vpop.f32.mrb[0].mxu0
      %v7622 = vadd.f32 0.0, %v7621
      %v7623 = vpop.f32.mrb[0].mxu0
      %v7624 = vadd.f32 0.0, %v7623
      %v7625 = vpop.f32.mrb[0].mxu0
      %v7626 = vadd.f32 0.0, %v7625
      %7627 = vmatprep.mubr.bf16.mxu0 %v7559
      %7628 = vmatmul.mubr.bf16.gmra.mrb[0].mxu0 %v7356
      %v7629 = vpop.f32.mrb[0].mxu0
      %v7630 = vadd.f32 0.0, %v7629
      %v7631 = vpop.f32.mrb[0].mxu0
      %v7632 = vadd.f32 0.0, %v7631
      %v7633 = vpop.f32.mrb[0].mxu0
      %v7634 = vadd.f32 0.0, %v7633
      %v7635 = vpop.f32.mrb[0].mxu0
      %v7636 = vadd.f32 0.0, %v7635
      %7637 = vmatprep.mubr.bf16.mxu0 %v7562
      %7638 = vmatmul.mubr.bf16.gmra.mrb[0].mxu0 %v7358
      %v7639 = vpop.f32.mrb[0].mxu0
      %v7640 = vadd.f32 0.0, %v7639
      %v7641 = vpop.f32.mrb[0].mxu0
      %v7642 = vadd.f32 0.0, %v7641
      %v7643 = vpop.f32.mrb[0].mxu0
      %v7644 = vadd.f32 0.0, %v7643
      %v7645 = vpop.f32.mrb[0].mxu0
      %v7646 = vadd.f32 0.0, %v7645
      %7647 = vmatprep.mubr.bf16.mxu0 %v7565
      %7648 = vmatmul.mubr.bf16.gmra.mrb[0].mxu0 %v7360
      %v7649 = vpop.f32.mrb[0].mxu0
      %v7650 = vadd.f32 0.0, %v7649
      %v7651 = vpop.f32.mrb[0].mxu0
      %v7652 = vadd.f32 0.0, %v7651
      %v7653 = vpop.f32.mrb[0].mxu0
      %v7654 = vadd.f32 0.0, %v7653
      %v7655 = vpop.f32.mrb[0].mxu0
      %v7656 = vadd.f32 0.0, %v7655
      %7657 = vmatprep.mubr.bf16.mxu0 %v7568
      %7658 = vmatmul.mubr.bf16.gmra.mrb[0].mxu0 %v7362
      %v7659 = vpop.f32.mrb[0].mxu0
      %v7660 = vadd.f32 0.0, %v7659
      %v7661 = vpop.f32.mrb[0].mxu0
      %v7662 = vadd.f32 0.0, %v7661
      %v7663 = vpop.f32.mrb[0].mxu0
      %v7664 = vadd.f32 0.0, %v7663
      %v7665 = vpop.f32.mrb[0].mxu0
      %v7666 = vadd.f32 0.0, %v7665
      %7667 = vmatprep.mubr.bf16.mxu0 %v7571
      %7668 = vmatmul.mubr.bf16.gmra.mrb[0].mxu0 %v7364
      %v7669 = vpop.f32.mrb[0].mxu0
      %v7670 = vadd.f32 0.0, %v7669
      %v7671 = vpop.f32.mrb[0].mxu0
      %v7672 = vadd.f32 0.0, %v7671
      %v7673 = vpop.f32.mrb[0].mxu0
      %v7674 = vadd.f32 0.0, %v7673
      %v7675 = vpop.f32.mrb[0].mxu0
      %v7676 = vadd.f32 0.0, %v7675
      %7677 = vmatprep.mubr.bf16.mxu0 %v7574
      %7678 = vmatmul.mubr.bf16.gmra.mrb[0].mxu0 %v7366
      %v7679 = vpop.f32.mrb[0].mxu0
      %v7680 = vadd.f32 0.0, %v7679
      %v7681 = vpop.f32.mrb[0].mxu0
      %v7682 = vadd.f32 0.0, %v7681
      %v7683 = vpop.f32.mrb[0].mxu0
      %v7684 = vadd.f32 0.0, %v7683
      %v7685 = vpop.f32.mrb[0].mxu0
      %v7686 = vadd.f32 0.0, %v7685
      %7687 = vmatprep.mubr.bf16.mxu0 %v7577
      %7688 = vmatmul.mubr.bf16.gmra.mrb[0].mxu0 %v7368
      %v7689 = vpop.f32.mrb[0].mxu0
      %v7690 = vadd.f32 0.0, %v7689
      %v7691 = vpop.f32.mrb[0].mxu0
      %v7692 = vadd.f32 0.0, %v7691
      %v7693 = vpop.f32.mrb[0].mxu0
      %v7694 = vadd.f32 0.0, %v7693
      %v7695 = vpop.f32.mrb[0].mxu0
      %v7696 = vadd.f32 0.0, %v7695
      %7697 = vdwg.mxu0
      %v7698 = vadd.f32 %v7416, %v7620
      %v7699 = vadd.f32 %v7417, %v7622
      %v7700 = vadd.f32 %v7418, %v7624
      %v7701 = vadd.f32 %v7419, %v7626
      %v7702 = vadd.f32 %v7420, %v7630
      %v7703 = vadd.f32 %v7421, %v7632
      %v7704 = vadd.f32 %v7422, %v7634
      %v7705 = vadd.f32 %v7423, %v7636
      %v7706 = vadd.f32 %v7424, %v7640
      %v7707 = vadd.f32 %v7425, %v7642
      %v7708 = vadd.f32 %v7426, %v7644
      %v7709 = vadd.f32 %v7427, %v7646
      %v7710 = vadd.f32 %v7428, %v7650
      %v7711 = vadd.f32 %v7429, %v7652
      %v7712 = vadd.f32 %v7430, %v7654
      %v7713 = vadd.f32 %v7431, %v7656
      %v7714 = vadd.f32 %v7432, %v7660
      %v7715 = vadd.f32 %v7433, %v7662
      %v7716 = vadd.f32 %v7434, %v7664
      %v7717 = vadd.f32 %v7435, %v7666
      %v7718 = vadd.f32 %v7436, %v7670
      %v7719 = vadd.f32 %v7437, %v7672
      %v7720 = vadd.f32 %v7438, %v7674
      %v7721 = vadd.f32 %v7439, %v7676
      %v7722 = vadd.f32 %v7440, %v7680
      %v7723 = vadd.f32 %v7441, %v7682
      %v7724 = vadd.f32 %v7442, %v7684
      %v7725 = vadd.f32 %v7443, %v7686
      %v7726 = vadd.f32 %v7444, %v7690
      %v7727 = vadd.f32 %v7445, %v7692
      %v7728 = vadd.f32 %v7446, %v7694
      %v7729 = vadd.f32 %v7447, %v7696
      %7730 = vst [vmem:[#allocation3] sm:$0xff] %v7698
      %7731 = vst.msk [vmem:[#allocation3 + $0x8] sm:$0xff] %vm7383, %v7699
      %7732 = vst [vmem:[#allocation3 + $0x10] sm:$0xff] %v7700
      %7733 = vst.msk [vmem:[#allocation3 + $0x18] sm:$0xff] %vm7383, %v7701
      %7734 = vst [vmem:[#allocation3 + $0x20] sm:$0xff] %v7702
      %7735 = vst.msk [vmem:[#allocation3 + $0x28] sm:$0xff] %vm7383, %v7703
      %7736 = vst [vmem:[#allocation3 + $0x30] sm:$0xff] %v7704
      %7737 = vst.msk [vmem:[#allocation3 + $0x38] sm:$0xff] %vm7383, %v7705
      %7738 = vst [vmem:[#allocation3 + $0x40] sm:$0xff] %v7706
      %7739 = vst.msk [vmem:[#allocation3 + $0x48] sm:$0xff] %vm7383, %v7707
      %7740 = vst [vmem:[#allocation3 + $0x50] sm:$0xff] %v7708
      %7741 = vst.msk [vmem:[#allocation3 + $0x58] sm:$0xff] %vm7383, %v7709
      %7742 = vst [vmem:[#allocation3 + $0x60] sm:$0xff] %v7710
      %7743 = vst.msk [vmem:[#allocation3 + $0x68] sm:$0xff] %vm7383, %v7711
      %7744 = vst [vmem:[#allocation3 + $0x70] sm:$0xff] %v7712
      %7745 = vst.msk [vmem:[#allocation3 + $0x78] sm:$0xff] %vm7383, %v7713
      %7746 = vst [vmem:[#allocation3 + $0x80] sm:$0xff] %v7714
      %7747 = vst.msk [vmem:[#allocation3 + $0x88] sm:$0xff] %vm7383, %v7715
      %7748 = vst [vmem:[#allocation3 + $0x90] sm:$0xff] %v7716
      %7749 = vst.msk [vmem:[#allocation3 + $0x98] sm:$0xff] %vm7383, %v7717
      %7750 = vst [vmem:[#allocation3 + $0xa0] sm:$0xff] %v7718
      %7751 = vst.msk [vmem:[#allocation3 + $0xa8] sm:$0xff] %vm7383, %v7719
      %7752 = vst [vmem:[#allocation3 + $0xb0] sm:$0xff] %v7720
      %7753 = vst.msk [vmem:[#allocation3 + $0xb8] sm:$0xff] %vm7383, %v7721
      %7754 = vst [vmem:[#allocation3 + $0xc0] sm:$0xff] %v7722
      %7755 = vst.msk [vmem:[#allocation3 + $0xc8] sm:$0xff] %vm7383, %v7723
      %7756 = vst [vmem:[#allocation3 + $0xd0] sm:$0xff] %v7724
      %7757 = vst.msk [vmem:[#allocation3 + $0xd8] sm:$0xff] %vm7383, %v7725
      %7758 = vst [vmem:[#allocation3 + $0xe0] sm:$0xff] %v7726
      %7759 = vst.msk [vmem:[#allocation3 + $0xe8] sm:$0xff] %vm7383, %v7727
      %7760 = vst [vmem:[#allocation3 + $0xf0] sm:$0xf] %v7728
      %7761 = vst.msk [vmem:[#allocation3 + $0xf8] sm:$0xf] %vm7414, %v7729
      %v7762 = vld [vmem:[#allocation3] sm:$0xff]
      %v7763 = vld [vmem:[#allocation3 + $0x8] sm:$0xff]
      %v7764 = vld [vmem:[#allocation3 + $0x10] sm:$0xff]
      %v7765 = vld [vmem:[#allocation3 + $0x18] sm:$0xff]
      %v7766 = vld [vmem:[#allocation3 + $0x20] sm:$0xff]
      %v7767 = vld [vmem:[#allocation3 + $0x28] sm:$0xff]
      %v7768 = vld [vmem:[#allocation3 + $0x30] sm:$0xff]
      %v7769 = vld [vmem:[#allocation3 + $0x38] sm:$0xff]
      %v7770 = vld [vmem:[#allocation3 + $0x40] sm:$0xff]
      %v7771 = vld [vmem:[#allocation3 + $0x48] sm:$0xff]
      %v7772 = vld [vmem:[#allocation3 + $0x50] sm:$0xff]
      %v7773 = vld [vmem:[#allocation3 + $0x58] sm:$0xff]
      %v7774 = vld [vmem:[#allocation3 + $0x60] sm:$0xff]
      %v7775 = vld [vmem:[#allocation3 + $0x68] sm:$0xff]
      %v7776 = vld [vmem:[#allocation3 + $0x70] sm:$0xff]
      %v7777 = vld [vmem:[#allocation3 + $0x78] sm:$0xff]
      %v7778 = vld [vmem:[#allocation3 + $0x80] sm:$0xff]
      %v7779 = vld [vmem:[#allocation3 + $0x88] sm:$0xff]
      %v7780 = vld [vmem:[#allocation3 + $0x90] sm:$0xff]
      %v7781 = vld [vmem:[#allocation3 + $0x98] sm:$0xff]
      %v7782 = vld [vmem:[#allocation3 + $0xa0] sm:$0xff]
      %v7783 = vld [vmem:[#allocation3 + $0xa8] sm:$0xff]
      %v7784 = vld [vmem:[#allocation3 + $0xb0] sm:$0xff]
      %v7785 = vld [vmem:[#allocation3 + $0xb8] sm:$0xff]
      %v7786 = vld [vmem:[#allocation3 + $0xc0] sm:$0xff]
      %v7787 = vld [vmem:[#allocation3 + $0xc8] sm:$0xff]
      %v7788 = vld [vmem:[#allocation3 + $0xd0] sm:$0xff]
      %v7789 = vld [vmem:[#allocation3 + $0xd8] sm:$0xff]
      %v7790 = vld [vmem:[#allocation3 + $0xe0] sm:$0xff]
      %v7791 = vld [vmem:[#allocation3 + $0xe8] sm:$0xff]
      %v7792 = vld [vmem:[#allocation3 + $0xf0] sm:$0xf]
      %v7793 = vld [vmem:[#allocation3 + $0xf8] sm:$0xf]
      %s7794 = scalar_lea.vmem %s5, 144
      %v7795 = vld [vmem:[%s7794] sm:$0xff]
      %v7796 = vld [vmem:[%s7794 + $0x8] sm:$0xff]
      %v7797 = vld [vmem:[%s7794 + $0x10] sm:$0xff]
      %v7798 = vld [vmem:[%s7794 + $0x18] sm:$0xff]
      %v7799 = vld [vmem:[%s7794 + $0x20] sm:$0xff]
      %v7800 = vld [vmem:[%s7794 + $0x28] sm:$0xff]
      %v7801 = vld [vmem:[%s7794 + $0x30] sm:$0xff]
      %v7802 = vld [vmem:[%s7794 + $0x38] sm:$0xff]
      %v7803 = vld [vmem:[%s7794 + $0x40] sm:$0xff]
      %v7804 = vld [vmem:[%s7794 + $0x48] sm:$0xff]
      %v7805 = vld [vmem:[%s7794 + $0x50] sm:$0xff]
      %v7806 = vld [vmem:[%s7794 + $0x58] sm:$0xff]
      %v7807 = vld [vmem:[%s7794 + $0x60] sm:$0xff]
      %v7808 = vld [vmem:[%s7794 + $0x68] sm:$0xff]
      %v7809 = vld [vmem:[%s7794 + $0x70] sm:$0xff]
      %v7810 = vld [vmem:[%s7794 + $0x78] sm:$0xff]
      %v7811 = vld [vmem:[%s7794 + $0x80] sm:$0xff]
      %v7812 = vld [vmem:[%s7794 + $0x88] sm:$0x33]
      %v7814 = vshrl.u32 %v7354, 16
      %v7816 = vshll.u32 %v7354, 16
      %v7818 = vrot.slane %v7816, 1
      %v7819 = vor.u32 %v7814, %v7818
      %v7821 = vshll.u32 %v7356, 16
      %v7823 = vrot.slane %v7821, 1
      %v7824 = vsel %vm1713, %v7819, %v7823
      %v7825 = vshrl.u32 %v7355, 16
      %v7827 = vshll.u32 %v7355, 16
      %v7829 = vrot.slane %v7827, 1
      %v7830 = vor.u32 %v7825, %v7829
      %v7831 = vshll.u32 %v7357, 16
      %v7833 = vrot.slane %v7831, 1
      %v7834 = vsel %vm1713, %v7830, %v7833
      %v7835 = vshrl.u32 %v7356, 16
      %v7837 = vor.u32 %v7835, %v7823
      %v7839 = vshll.u32 %v7358, 16
      %v7841 = vrot.slane %v7839, 1
      %v7842 = vsel %vm1713, %v7837, %v7841
      %v7843 = vshrl.u32 %v7357, 16
      %v7845 = vor.u32 %v7843, %v7833
      %v7846 = vshll.u32 %v7359, 16
      %v7848 = vrot.slane %v7846, 1
      %v7849 = vsel %vm1713, %v7845, %v7848
      %v7850 = vshrl.u32 %v7358, 16
      %v7852 = vor.u32 %v7850, %v7841
      %v7854 = vshll.u32 %v7360, 16
      %v7856 = vrot.slane %v7854, 1
      %v7857 = vsel %vm1713, %v7852, %v7856
      %v7858 = vshrl.u32 %v7359, 16
      %v7860 = vor.u32 %v7858, %v7848
      %v7861 = vshll.u32 %v7361, 16
      %v7863 = vrot.slane %v7861, 1
      %v7864 = vsel %vm1713, %v7860, %v7863
      %v7865 = vshrl.u32 %v7360, 16
      %v7867 = vor.u32 %v7865, %v7856
      %v7869 = vshll.u32 %v7362, 16
      %v7871 = vrot.slane %v7869, 1
      %v7872 = vsel %vm1713, %v7867, %v7871
      %v7873 = vshrl.u32 %v7361, 16
      %v7875 = vor.u32 %v7873, %v7863
      %v7876 = vshll.u32 %v7363, 16
      %v7878 = vrot.slane %v7876, 1
      %v7879 = vsel %vm1713, %v7875, %v7878
      %v7880 = vshrl.u32 %v7362, 16
      %v7882 = vor.u32 %v7880, %v7871
      %v7884 = vshll.u32 %v7364, 16
      %v7886 = vrot.slane %v7884, 1
      %v7887 = vsel %vm1713, %v7882, %v7886
      %v7888 = vshrl.u32 %v7363, 16
      %v7890 = vor.u32 %v7888, %v7878
      %v7891 = vshll.u32 %v7365, 16
      %v7893 = vrot.slane %v7891, 1
      %v7894 = vsel %vm1713, %v7890, %v7893
      %v7895 = vshrl.u32 %v7364, 16
      %v7897 = vor.u32 %v7895, %v7886
      %v7899 = vshll.u32 %v7366, 16
      %v7901 = vrot.slane %v7899, 1
      %v7902 = vsel %vm1713, %v7897, %v7901
      %v7903 = vshrl.u32 %v7365, 16
      %v7905 = vor.u32 %v7903, %v7893
      %v7906 = vshll.u32 %v7367, 16
      %v7908 = vrot.slane %v7906, 1
      %v7909 = vsel %vm1713, %v7905, %v7908
      %v7910 = vshrl.u32 %v7366, 16
      %v7912 = vor.u32 %v7910, %v7901
      %v7914 = vshll.u32 %v7368, 16
      %v7916 = vrot.slane %v7914, 1
      %v7917 = vsel %vm1713, %v7912, %v7916
      %v7918 = vshrl.u32 %v7367, 16
      %v7920 = vor.u32 %v7918, %v7908
      %v7921 = vshll.u32 %v7369, 16
      %v7923 = vrot.slane %v7921, 1
      %v7924 = vsel %vm1713, %v7920, %v7923
      %v7925 = vshrl.u32 %v7368, 16
      %v7927 = vor.u32 %v7925, %v7916
      %v7928 = vshrl.u32 %v7369, 16
      %v7930 = vor.u32 %v7928, %v7923
      %v7957 = vunpack.c.l.b16 %v7795
      %v7958 = vunpack.c.h.b16 %v7795
      %v7959 = vunpack.c.l.b16 %v7796
      %v7960 = vunpack.c.h.b16 %v7796
      %v7961 = vunpack.c.l.b16 %v7797
      %v7962 = vunpack.c.h.b16 %v7797
      %v7963 = vunpack.c.l.b16 %v7798
      %v7964 = vunpack.c.h.b16 %v7798
      %v7965 = vunpack.c.l.b16 %v7799
      %v7966 = vunpack.c.h.b16 %v7799
      %v7967 = vunpack.c.l.b16 %v7800
      %v7968 = vunpack.c.h.b16 %v7800
      %v7969 = vunpack.c.l.b16 %v7801
      %v7970 = vunpack.c.h.b16 %v7801
      %v7971 = vunpack.c.l.b16 %v7802
      %v7972 = vunpack.c.h.b16 %v7802
      %v7973 = vunpack.c.l.b16 %v7803
      %v7974 = vunpack.c.h.b16 %v7803
      %v7975 = vunpack.c.l.b16 %v7804
      %v7976 = vunpack.c.h.b16 %v7804
      %v7977 = vunpack.c.l.b16 %v7805
      %v7978 = vunpack.c.h.b16 %v7805
      %v7979 = vunpack.c.l.b16 %v7806
      %v7980 = vunpack.c.h.b16 %v7806
      %v7981 = vunpack.c.l.b16 %v7807
      %v7982 = vunpack.c.h.b16 %v7807
      %v7983 = vunpack.c.l.b16 %v7808
      %v7984 = vunpack.c.h.b16 %v7808
      %v7985 = vunpack.c.l.b16 %v7809
      %v7986 = vunpack.c.h.b16 %v7809
      %v7987 = vunpack.c.l.b16 %v7810
      %v7988 = vunpack.c.h.b16 %v7810
      %v7989 = vunpack.c.l.b16 %v7811
      %v7990 = vunpack.c.h.b16 %v7811
      %v7991 = vunpack.c.l.b16 %v7812
      %v7992 = vunpack.c.h.b16 %v7812
      %v7993 = vpack.c.b16 %v7959, %v7957
      %v7994 = vpack.c.b16 %v7960, %v7958
      %v7995 = vpack.c.b16 %v7963, %v7961
      %v7996 = vpack.c.b16 %v7964, %v7962
      %v7997 = vpack.c.b16 %v7967, %v7965
      %v7998 = vpack.c.b16 %v7968, %v7966
      %v7999 = vpack.c.b16 %v7971, %v7969
      %v8000 = vpack.c.b16 %v7972, %v7970
      %v8001 = vpack.c.b16 %v7975, %v7973
      %v8002 = vpack.c.b16 %v7976, %v7974
      %v8003 = vpack.c.b16 %v7979, %v7977
      %v8004 = vpack.c.b16 %v7980, %v7978
      %v8005 = vpack.c.b16 %v7983, %v7981
      %v8006 = vpack.c.b16 %v7984, %v7982
      %v8007 = vpack.c.b16 %v7987, %v7985
      %v8008 = vpack.c.b16 %v7988, %v7986
      %v8009 = vpack.c.b16 %v7991, %v7989
      %v8010 = vpack.c.b16 %v7992, %v7990
      %v8028 = vsel %vm7554, %v7834, 0
      %v8031 = vsel %vm7554, %v7849, 0
      %v8034 = vsel %vm7554, %v7864, 0
      %v8037 = vsel %vm7554, %v7879, 0
      %v8040 = vsel %vm7554, %v7894, 0
      %v8043 = vsel %vm7554, %v7909, 0
      %v8046 = vsel %vm7554, %v7924, 0
      %v8049 = vsel %vm7554, %v7930, 0
      %v8052 = vsel %vm5765, %v8009, 0
      %v8055 = vsel %vm5765, %v8010, 0
      %8057 = vmatprep.subr.bf16.mxu0 %v7994
      %8058 = vmatpush1.bf16.msra.mxu0 %v7993
      %8059 = vmatprep.subr.bf16.mxu0 %v7996
      %8060 = vmatpush1.bf16.msra.mxu0 %v7995
      %8061 = vmatprep.subr.bf16.mxu0 %v7998
      %8062 = vmatpush1.bf16.msra.mxu0 %v7997
      %8063 = vmatprep.subr.bf16.mxu0 %v8000
      %8064 = vmatpush1.bf16.msra.mxu0 %v7999
      %8065 = vmatprep.subr.bf16.mxu0 %v8002
      %8066 = vmatpush1.bf16.msra.mxu0 %v8001
      %8067 = vmatprep.subr.bf16.mxu0 %v8004
      %8068 = vmatpush1.bf16.msra.mxu0 %v8003
      %8069 = vmatprep.subr.bf16.mxu0 %v8006
      %8070 = vmatpush1.bf16.msra.mxu0 %v8005
      %8071 = vmatprep.subr.bf16.mxu0 %v8008
      %8072 = vmatpush1.bf16.msra.mxu0 %v8007
      %8073 = vmatprep.subr.bf16.mxu0 %v8055
      %8074 = vmatpush1.bf16.msra.mxu0 %v8052
      %8075 = vmatprep.subr.bf16.mxu0 0
      %8076 = vmatpush1.bf16.msra.mxu0 0
      %8077 = vmatprep.subr.bf16.mxu0 0
      %8078 = vmatpush1.bf16.msra.mxu0 0
      %8079 = vmatprep.subr.bf16.mxu0 0
      %8080 = vmatpush1.bf16.msra.mxu0 0
      %8081 = vmatprep.subr.bf16.mxu0 0
      %8082 = vmatpush1.bf16.msra.mxu0 0
      %8083 = vmatprep.subr.bf16.mxu0 0
      %8084 = vmatpush1.bf16.msra.mxu0 0
      %8085 = vmatprep.subr.bf16.mxu0 0
      %8086 = vmatpush1.bf16.msra.mxu0 0
      %8087 = vmatprep.subr.bf16.mxu0 0
      %8088 = vmatpush1.bf16.msra.mxu0 0
      %8089 = vmatprep.mubr.bf16.mxu0 %v8028
      %8090 = vmatmul.mubr.bf16.gmra.mrb[0].mxu0 %v7824
      %v8091 = vpop.f32.mrb[0].mxu0
      %v8092 = vadd.f32 0.0, %v8091
      %v8093 = vpop.f32.mrb[0].mxu0
      %v8094 = vadd.f32 0.0, %v8093
      %v8095 = vpop.f32.mrb[0].mxu0
      %v8096 = vadd.f32 0.0, %v8095
      %v8097 = vpop.f32.mrb[0].mxu0
      %v8098 = vadd.f32 0.0, %v8097
      %8099 = vmatprep.mubr.bf16.mxu0 %v8031
      %8100 = vmatmul.mubr.bf16.gmra.mrb[0].mxu0 %v7842
      %v8101 = vpop.f32.mrb[0].mxu0
      %v8102 = vadd.f32 0.0, %v8101
      %v8103 = vpop.f32.mrb[0].mxu0
      %v8104 = vadd.f32 0.0, %v8103
      %v8105 = vpop.f32.mrb[0].mxu0
      %v8106 = vadd.f32 0.0, %v8105
      %v8107 = vpop.f32.mrb[0].mxu0
      %v8108 = vadd.f32 0.0, %v8107
      %8109 = vmatprep.mubr.bf16.mxu0 %v8034
      %8110 = vmatmul.mubr.bf16.gmra.mrb[0].mxu0 %v7857
      %v8111 = vpop.f32.mrb[0].mxu0
      %v8112 = vadd.f32 0.0, %v8111
      %v8113 = vpop.f32.mrb[0].mxu0
      %v8114 = vadd.f32 0.0, %v8113
      %v8115 = vpop.f32.mrb[0].mxu0
      %v8116 = vadd.f32 0.0, %v8115
      %v8117 = vpop.f32.mrb[0].mxu0
      %v8118 = vadd.f32 0.0, %v8117
      %8119 = vmatprep.mubr.bf16.mxu0 %v8037
      %8120 = vmatmul.mubr.bf16.gmra.mrb[0].mxu0 %v7872
      %v8121 = vpop.f32.mrb[0].mxu0
      %v8122 = vadd.f32 0.0, %v8121
      %v8123 = vpop.f32.mrb[0].mxu0
      %v8124 = vadd.f32 0.0, %v8123
      %v8125 = vpop.f32.mrb[0].mxu0
      %v8126 = vadd.f32 0.0, %v8125
      %v8127 = vpop.f32.mrb[0].mxu0
      %v8128 = vadd.f32 0.0, %v8127
      %8129 = vmatprep.mubr.bf16.mxu0 %v8040
      %8130 = vmatmul.mubr.bf16.gmra.mrb[0].mxu0 %v7887
      %v8131 = vpop.f32.mrb[0].mxu0
      %v8132 = vadd.f32 0.0, %v8131
      %v8133 = vpop.f32.mrb[0].mxu0
      %v8134 = vadd.f32 0.0, %v8133
      %v8135 = vpop.f32.mrb[0].mxu0
      %v8136 = vadd.f32 0.0, %v8135
      %v8137 = vpop.f32.mrb[0].mxu0
      %v8138 = vadd.f32 0.0, %v8137
      %8139 = vmatprep.mubr.bf16.mxu0 %v8043
      %8140 = vmatmul.mubr.bf16.gmra.mrb[0].mxu0 %v7902
      %v8141 = vpop.f32.mrb[0].mxu0
      %v8142 = vadd.f32 0.0, %v8141
      %v8143 = vpop.f32.mrb[0].mxu0
      %v8144 = vadd.f32 0.0, %v8143
      %v8145 = vpop.f32.mrb[0].mxu0
      %v8146 = vadd.f32 0.0, %v8145
      %v8147 = vpop.f32.mrb[0].mxu0
      %v8148 = vadd.f32 0.0, %v8147
      %8149 = vmatprep.mubr.bf16.mxu0 %v8046
      %8150 = vmatmul.mubr.bf16.gmra.mrb[0].mxu0 %v7917
      %v8151 = vpop.f32.mrb[0].mxu0
      %v8152 = vadd.f32 0.0, %v8151
      %v8153 = vpop.f32.mrb[0].mxu0
      %v8154 = vadd.f32 0.0, %v8153
      %v8155 = vpop.f32.mrb[0].mxu0
      %v8156 = vadd.f32 0.0, %v8155
      %v8157 = vpop.f32.mrb[0].mxu0
      %v8158 = vadd.f32 0.0, %v8157
      %8159 = vmatprep.mubr.bf16.mxu0 %v8049
      %8160 = vmatmul.mubr.bf16.gmra.mrb[0].mxu0 %v7927
      %v8161 = vpop.f32.mrb[0].mxu0
      %v8162 = vadd.f32 0.0, %v8161
      %v8163 = vpop.f32.mrb[0].mxu0
      %v8164 = vadd.f32 0.0, %v8163
      %v8165 = vpop.f32.mrb[0].mxu0
      %v8166 = vadd.f32 0.0, %v8165
      %v8167 = vpop.f32.mrb[0].mxu0
      %v8168 = vadd.f32 0.0, %v8167
      %8169 = vdwg.mxu0
      %v8170 = vadd.f32 %v7762, %v8092
      %v8171 = vadd.f32 %v7763, %v8094
      %v8172 = vadd.f32 %v7764, %v8096
      %v8173 = vadd.f32 %v7765, %v8098
      %v8174 = vadd.f32 %v7766, %v8102
      %v8175 = vadd.f32 %v7767, %v8104
      %v8176 = vadd.f32 %v7768, %v8106
      %v8177 = vadd.f32 %v7769, %v8108
      %v8178 = vadd.f32 %v7770, %v8112
      %v8179 = vadd.f32 %v7771, %v8114
      %v8180 = vadd.f32 %v7772, %v8116
      %v8181 = vadd.f32 %v7773, %v8118
      %v8182 = vadd.f32 %v7774, %v8122
      %v8183 = vadd.f32 %v7775, %v8124
      %v8184 = vadd.f32 %v7776, %v8126
      %v8185 = vadd.f32 %v7777, %v8128
      %v8186 = vadd.f32 %v7778, %v8132
      %v8187 = vadd.f32 %v7779, %v8134
      %v8188 = vadd.f32 %v7780, %v8136
      %v8189 = vadd.f32 %v7781, %v8138
      %v8190 = vadd.f32 %v7782, %v8142
      %v8191 = vadd.f32 %v7783, %v8144
      %v8192 = vadd.f32 %v7784, %v8146
      %v8193 = vadd.f32 %v7785, %v8148
      %v8194 = vadd.f32 %v7786, %v8152
      %v8195 = vadd.f32 %v7787, %v8154
      %v8196 = vadd.f32 %v7788, %v8156
      %v8197 = vadd.f32 %v7789, %v8158
      %v8198 = vadd.f32 %v7790, %v8162
      %v8199 = vadd.f32 %v7791, %v8164
      %v8200 = vadd.f32 %v7792, %v8166
      %v8201 = vadd.f32 %v7793, %v8168
      %8202 = vst [vmem:[#allocation3] sm:$0xff] %v8170
      %8203 = vst.msk [vmem:[#allocation3 + $0x8] sm:$0xff] %vm7383, %v8171
      %8204 = vst [vmem:[#allocation3 + $0x10] sm:$0xff] %v8172
      %8205 = vst.msk [vmem:[#allocation3 + $0x18] sm:$0xff] %vm7383, %v8173
      %8206 = vst [vmem:[#allocation3 + $0x20] sm:$0xff] %v8174
      %8207 = vst.msk [vmem:[#allocation3 + $0x28] sm:$0xff] %vm7383, %v8175
      %8208 = vst [vmem:[#allocation3 + $0x30] sm:$0xff] %v8176
      %8209 = vst.msk [vmem:[#allocation3 + $0x38] sm:$0xff] %vm7383, %v8177
      %8210 = vst [vmem:[#allocation3 + $0x40] sm:$0xff] %v8178
      %8211 = vst.msk [vmem:[#allocation3 + $0x48] sm:$0xff] %vm7383, %v8179
      %8212 = vst [vmem:[#allocation3 + $0x50] sm:$0xff] %v8180
      %8213 = vst.msk [vmem:[#allocation3 + $0x58] sm:$0xff] %vm7383, %v8181
      %8214 = vst [vmem:[#allocation3 + $0x60] sm:$0xff] %v8182
      %8215 = vst.msk [vmem:[#allocation3 + $0x68] sm:$0xff] %vm7383, %v8183
      %8216 = vst [vmem:[#allocation3 + $0x70] sm:$0xff] %v8184
      %8217 = vst.msk [vmem:[#allocation3 + $0x78] sm:$0xff] %vm7383, %v8185
      %8218 = vst [vmem:[#allocation3 + $0x80] sm:$0xff] %v8186
      %8219 = vst.msk [vmem:[#allocation3 + $0x88] sm:$0xff] %vm7383, %v8187
      %8220 = vst [vmem:[#allocation3 + $0x90] sm:$0xff] %v8188
      %8221 = vst.msk [vmem:[#allocation3 + $0x98] sm:$0xff] %vm7383, %v8189
      %8222 = vst [vmem:[#allocation3 + $0xa0] sm:$0xff] %v8190
      %8223 = vst.msk [vmem:[#allocation3 + $0xa8] sm:$0xff] %vm7383, %v8191
      %8224 = vst [vmem:[#allocation3 + $0xb0] sm:$0xff] %v8192
      %8225 = vst.msk [vmem:[#allocation3 + $0xb8] sm:$0xff] %vm7383, %v8193
      %8226 = vst [vmem:[#allocation3 + $0xc0] sm:$0xff] %v8194
      %8227 = vst.msk [vmem:[#allocation3 + $0xc8] sm:$0xff] %vm7383, %v8195
      %8228 = vst [vmem:[#allocation3 + $0xd0] sm:$0xff] %v8196
      %8229 = vst.msk [vmem:[#allocation3 + $0xd8] sm:$0xff] %vm7383, %v8197
      %8230 = vst [vmem:[#allocation3 + $0xe0] sm:$0xff] %v8198
      %8231 = vst.msk [vmem:[#allocation3 + $0xe8] sm:$0xff] %vm7383, %v8199
      %8232 = vst [vmem:[#allocation3 + $0xf0] sm:$0xf] %v8200
      %8233 = vst.msk [vmem:[#allocation3 + $0xf8] sm:$0xf] %vm7414, %v8201
      %v8234 = vld [vmem:[#allocation3] sm:$0xff]
      %v8235 = vld [vmem:[#allocation3 + $0x8] sm:$0xff]
      %v8236 = vld [vmem:[#allocation3 + $0x10] sm:$0xff]
      %v8237 = vld [vmem:[#allocation3 + $0x18] sm:$0xff]
      %v8238 = vld [vmem:[#allocation3 + $0x20] sm:$0xff]
      %v8239 = vld [vmem:[#allocation3 + $0x28] sm:$0xff]
      %v8240 = vld [vmem:[#allocation3 + $0x30] sm:$0xff]
      %v8241 = vld [vmem:[#allocation3 + $0x38] sm:$0xff]
      %v8242 = vld [vmem:[#allocation3 + $0x40] sm:$0xff]
      %v8243 = vld [vmem:[#allocation3 + $0x48] sm:$0xff]
      %v8244 = vld [vmem:[#allocation3 + $0x50] sm:$0xff]
      %v8245 = vld [vmem:[#allocation3 + $0x58] sm:$0xff]
      %v8246 = vld [vmem:[#allocation3 + $0x60] sm:$0xff]
      %v8247 = vld [vmem:[#allocation3 + $0x68] sm:$0xff]
      %v8248 = vld [vmem:[#allocation3 + $0x70] sm:$0xff]
      %v8249 = vld [vmem:[#allocation3 + $0x78] sm:$0xff]
      %v8250 = vld [vmem:[#allocation3 + $0x80] sm:$0xff]
      %v8251 = vld [vmem:[#allocation3 + $0x88] sm:$0xff]
      %v8252 = vld [vmem:[#allocation3 + $0x90] sm:$0xff]
      %v8253 = vld [vmem:[#allocation3 + $0x98] sm:$0xff]
      %v8254 = vld [vmem:[#allocation3 + $0xa0] sm:$0xff]
      %v8255 = vld [vmem:[#allocation3 + $0xa8] sm:$0xff]
      %v8256 = vld [vmem:[#allocation3 + $0xb0] sm:$0xff]
      %v8257 = vld [vmem:[#allocation3 + $0xb8] sm:$0xff]
      %v8258 = vld [vmem:[#allocation3 + $0xc0] sm:$0xff]
      %v8259 = vld [vmem:[#allocation3 + $0xc8] sm:$0xff]
      %v8260 = vld [vmem:[#allocation3 + $0xd0] sm:$0xff]
      %v8261 = vld [vmem:[#allocation3 + $0xd8] sm:$0xff]
      %v8262 = vld [vmem:[#allocation3 + $0xe0] sm:$0xff]
      %v8263 = vld [vmem:[#allocation3 + $0xe8] sm:$0xff]
      %v8264 = vld [vmem:[#allocation3 + $0xf0] sm:$0xf]
      %v8265 = vld [vmem:[#allocation3 + $0xf8] sm:$0xf]
      %s8266 = scalar_lea.vmem %s5, 288
      %v8267 = vld [vmem:[%s8266] sm:$0xff]
      %v8268 = vld [vmem:[%s8266 + $0x8] sm:$0xff]
      %v8269 = vld [vmem:[%s8266 + $0x10] sm:$0xff]
      %v8270 = vld [vmem:[%s8266 + $0x18] sm:$0xff]
      %v8271 = vld [vmem:[%s8266 + $0x20] sm:$0xff]
      %v8272 = vld [vmem:[%s8266 + $0x28] sm:$0xff]
      %v8273 = vld [vmem:[%s8266 + $0x30] sm:$0xff]
      %v8274 = vld [vmem:[%s8266 + $0x38] sm:$0xff]
      %v8275 = vld [vmem:[%s8266 + $0x40] sm:$0xff]
      %v8276 = vld [vmem:[%s8266 + $0x48] sm:$0xff]
      %v8277 = vld [vmem:[%s8266 + $0x50] sm:$0xff]
      %v8278 = vld [vmem:[%s8266 + $0x58] sm:$0xff]
      %v8279 = vld [vmem:[%s8266 + $0x60] sm:$0xff]
      %v8280 = vld [vmem:[%s8266 + $0x68] sm:$0xff]
      %v8281 = vld [vmem:[%s8266 + $0x70] sm:$0xff]
      %v8282 = vld [vmem:[%s8266 + $0x78] sm:$0xff]
      %v8283 = vld [vmem:[%s8266 + $0x80] sm:$0xff]
      %v8284 = vld [vmem:[%s8266 + $0x88] sm:$0x33]
      %v8301 = vrot.slane %v7354, 1
      %v8302 = vrot.slane %v7356, 1
      %v8303 = vsel %vm2764, %v8301, %v8302
      %v8304 = vrot.slane %v7355, 1
      %v8305 = vrot.slane %v7357, 1
      %v8306 = vsel %vm2764, %v8304, %v8305
      %v8307 = vrot.slane %v7358, 1
      %v8308 = vsel %vm2764, %v8302, %v8307
      %v8309 = vrot.slane %v7359, 1
      %v8310 = vsel %vm2764, %v8305, %v8309
      %v8311 = vrot.slane %v7360, 1
      %v8312 = vsel %vm2764, %v8307, %v8311
      %v8313 = vrot.slane %v7361, 1
      %v8314 = vsel %vm2764, %v8309, %v8313
      %v8315 = vrot.slane %v7362, 1
      %v8316 = vsel %vm2764, %v8311, %v8315
      %v8317 = vrot.slane %v7363, 1
      %v8318 = vsel %vm2764, %v8313, %v8317
      %v8319 = vrot.slane %v7364, 1
      %v8320 = vsel %vm2764, %v8315, %v8319
      %v8321 = vrot.slane %v7365, 1
      %v8322 = vsel %vm2764, %v8317, %v8321
      %v8323 = vrot.slane %v7366, 1
      %v8324 = vsel %vm2764, %v8319, %v8323
      %v8325 = vrot.slane %v7367, 1
      %v8326 = vsel %vm2764, %v8321, %v8325
      %v8327 = vrot.slane %v7368, 1
      %v8328 = vsel %vm2764, %v8323, %v8327
      %v8329 = vrot.slane %v7369, 1
      %v8330 = vsel %vm2764, %v8325, %v8329
      %v8357 = vunpack.c.l.b16 %v8267
      %v8358 = vunpack.c.h.b16 %v8267
      %v8359 = vunpack.c.l.b16 %v8268
      %v8360 = vunpack.c.h.b16 %v8268
      %v8361 = vunpack.c.l.b16 %v8269
      %v8362 = vunpack.c.h.b16 %v8269
      %v8363 = vunpack.c.l.b16 %v8270
      %v8364 = vunpack.c.h.b16 %v8270
      %v8365 = vunpack.c.l.b16 %v8271
      %v8366 = vunpack.c.h.b16 %v8271
      %v8367 = vunpack.c.l.b16 %v8272
      %v8368 = vunpack.c.h.b16 %v8272
      %v8369 = vunpack.c.l.b16 %v8273
      %v8370 = vunpack.c.h.b16 %v8273
      %v8371 = vunpack.c.l.b16 %v8274
      %v8372 = vunpack.c.h.b16 %v8274
      %v8373 = vunpack.c.l.b16 %v8275
      %v8374 = vunpack.c.h.b16 %v8275
      %v8375 = vunpack.c.l.b16 %v8276
      %v8376 = vunpack.c.h.b16 %v8276
      %v8377 = vunpack.c.l.b16 %v8277
      %v8378 = vunpack.c.h.b16 %v8277
      %v8379 = vunpack.c.l.b16 %v8278
      %v8380 = vunpack.c.h.b16 %v8278
      %v8381 = vunpack.c.l.b16 %v8279
      %v8382 = vunpack.c.h.b16 %v8279
      %v8383 = vunpack.c.l.b16 %v8280
      %v8384 = vunpack.c.h.b16 %v8280
      %v8385 = vunpack.c.l.b16 %v8281
      %v8386 = vunpack.c.h.b16 %v8281
      %v8387 = vunpack.c.l.b16 %v8282
      %v8388 = vunpack.c.h.b16 %v8282
      %v8389 = vunpack.c.l.b16 %v8283
      %v8390 = vunpack.c.h.b16 %v8283
      %v8391 = vunpack.c.l.b16 %v8284
      %v8392 = vunpack.c.h.b16 %v8284
      %v8393 = vpack.c.b16 %v8359, %v8357
      %v8394 = vpack.c.b16 %v8360, %v8358
      %v8395 = vpack.c.b16 %v8363, %v8361
      %v8396 = vpack.c.b16 %v8364, %v8362
      %v8397 = vpack.c.b16 %v8367, %v8365
      %v8398 = vpack.c.b16 %v8368, %v8366
      %v8399 = vpack.c.b16 %v8371, %v8369
      %v8400 = vpack.c.b16 %v8372, %v8370
      %v8401 = vpack.c.b16 %v8375, %v8373
      %v8402 = vpack.c.b16 %v8376, %v8374
      %v8403 = vpack.c.b16 %v8379, %v8377
      %v8404 = vpack.c.b16 %v8380, %v8378
      %v8405 = vpack.c.b16 %v8383, %v8381
      %v8406 = vpack.c.b16 %v8384, %v8382
      %v8407 = vpack.c.b16 %v8387, %v8385
      %v8408 = vpack.c.b16 %v8388, %v8386
      %v8409 = vpack.c.b16 %v8391, %v8389
      %v8410 = vpack.c.b16 %v8392, %v8390
      %v8428 = vsel %vm7554, %v8306, 0
      %v8431 = vsel %vm7554, %v8310, 0
      %v8434 = vsel %vm7554, %v8314, 0
      %v8437 = vsel %vm7554, %v8318, 0
      %v8440 = vsel %vm7554, %v8322, 0
      %v8443 = vsel %vm7554, %v8326, 0
      %v8446 = vsel %vm7554, %v8330, 0
      %v8449 = vsel %vm7554, %v8329, 0
      %v8452 = vsel %vm5765, %v8409, 0
      %v8455 = vsel %vm5765, %v8410, 0
      %8457 = vmatprep.subr.bf16.mxu0 %v8394
      %8458 = vmatpush1.bf16.msra.mxu0 %v8393
      %8459 = vmatprep.subr.bf16.mxu0 %v8396
      %8460 = vmatpush1.bf16.msra.mxu0 %v8395
      %8461 = vmatprep.subr.bf16.mxu0 %v8398
      %8462 = vmatpush1.bf16.msra.mxu0 %v8397
      %8463 = vmatprep.subr.bf16.mxu0 %v8400
      %8464 = vmatpush1.bf16.msra.mxu0 %v8399
      %8465 = vmatprep.subr.bf16.mxu0 %v8402
      %8466 = vmatpush1.bf16.msra.mxu0 %v8401
      %8467 = vmatprep.subr.bf16.mxu0 %v8404
      %8468 = vmatpush1.bf16.msra.mxu0 %v8403
      %8469 = vmatprep.subr.bf16.mxu0 %v8406
      %8470 = vmatpush1.bf16.msra.mxu0 %v8405
      %8471 = vmatprep.subr.bf16.mxu0 %v8408
      %8472 = vmatpush1.bf16.msra.mxu0 %v8407
      %8473 = vmatprep.subr.bf16.mxu0 %v8455
      %8474 = vmatpush1.bf16.msra.mxu0 %v8452
      %8475 = vmatprep.subr.bf16.mxu0 0
      %8476 = vmatpush1.bf16.msra.mxu0 0
      %8477 = vmatprep.subr.bf16.mxu0 0
      %8478 = vmatpush1.bf16.msra.mxu0 0
      %8479 = vmatprep.subr.bf16.mxu0 0
      %8480 = vmatpush1.bf16.msra.mxu0 0
      %8481 = vmatprep.subr.bf16.mxu0 0
      %8482 = vmatpush1.bf16.msra.mxu0 0
      %8483 = vmatprep.subr.bf16.mxu0 0
      %8484 = vmatpush1.bf16.msra.mxu0 0
      %8485 = vmatprep.subr.bf16.mxu0 0
      %8486 = vmatpush1.bf16.msra.mxu0 0
      %8487 = vmatprep.subr.bf16.mxu0 0
      %8488 = vmatpush1.bf16.msra.mxu0 0
      %8489 = vmatprep.mubr.bf16.mxu0 %v8428
      %8490 = vmatmul.mubr.bf16.gmra.mrb[0].mxu0 %v8303
      %v8491 = vpop.f32.mrb[0].mxu0
      %v8492 = vadd.f32 0.0, %v8491
      %v8493 = vpop.f32.mrb[0].mxu0
      %v8494 = vadd.f32 0.0, %v8493
      %v8495 = vpop.f32.mrb[0].mxu0
      %v8496 = vadd.f32 0.0, %v8495
      %v8497 = vpop.f32.mrb[0].mxu0
      %v8498 = vadd.f32 0.0, %v8497
      %8499 = vmatprep.mubr.bf16.mxu0 %v8431
      %8500 = vmatmul.mubr.bf16.gmra.mrb[0].mxu0 %v8308
      %v8501 = vpop.f32.mrb[0].mxu0
      %v8502 = vadd.f32 0.0, %v8501
      %v8503 = vpop.f32.mrb[0].mxu0
      %v8504 = vadd.f32 0.0, %v8503
      %v8505 = vpop.f32.mrb[0].mxu0
      %v8506 = vadd.f32 0.0, %v8505
      %v8507 = vpop.f32.mrb[0].mxu0
      %v8508 = vadd.f32 0.0, %v8507
      %8509 = vmatprep.mubr.bf16.mxu0 %v8434
      %8510 = vmatmul.mubr.bf16.gmra.mrb[0].mxu0 %v8312
      %v8511 = vpop.f32.mrb[0].mxu0
      %v8512 = vadd.f32 0.0, %v8511
      %v8513 = vpop.f32.mrb[0].mxu0
      %v8514 = vadd.f32 0.0, %v8513
      %v8515 = vpop.f32.mrb[0].mxu0
      %v8516 = vadd.f32 0.0, %v8515
      %v8517 = vpop.f32.mrb[0].mxu0
      %v8518 = vadd.f32 0.0, %v8517
      %8519 = vmatprep.mubr.bf16.mxu0 %v8437
      %8520 = vmatmul.mubr.bf16.gmra.mrb[0].mxu0 %v8316
      %v8521 = vpop.f32.mrb[0].mxu0
      %v8522 = vadd.f32 0.0, %v8521
      %v8523 = vpop.f32.mrb[0].mxu0
      %v8524 = vadd.f32 0.0, %v8523
      %v8525 = vpop.f32.mrb[0].mxu0
      %v8526 = vadd.f32 0.0, %v8525
      %v8527 = vpop.f32.mrb[0].mxu0
      %v8528 = vadd.f32 0.0, %v8527
      %8529 = vmatprep.mubr.bf16.mxu0 %v8440
      %8530 = vmatmul.mubr.bf16.gmra.mrb[0].mxu0 %v8320
      %v8531 = vpop.f32.mrb[0].mxu0
      %v8532 = vadd.f32 0.0, %v8531
      %v8533 = vpop.f32.mrb[0].mxu0
      %v8534 = vadd.f32 0.0, %v8533
      %v8535 = vpop.f32.mrb[0].mxu0
      %v8536 = vadd.f32 0.0, %v8535
      %v8537 = vpop.f32.mrb[0].mxu0
      %v8538 = vadd.f32 0.0, %v8537
      %8539 = vmatprep.mubr.bf16.mxu0 %v8443
      %8540 = vmatmul.mubr.bf16.gmra.mrb[0].mxu0 %v8324
      %v8541 = vpop.f32.mrb[0].mxu0
      %v8542 = vadd.f32 0.0, %v8541
      %v8543 = vpop.f32.mrb[0].mxu0
      %v8544 = vadd.f32 0.0, %v8543
      %v8545 = vpop.f32.mrb[0].mxu0
      %v8546 = vadd.f32 0.0, %v8545
      %v8547 = vpop.f32.mrb[0].mxu0
      %v8548 = vadd.f32 0.0, %v8547
      %8549 = vmatprep.mubr.bf16.mxu0 %v8446
      %8550 = vmatmul.mubr.bf16.gmra.mrb[0].mxu0 %v8328
      %v8551 = vpop.f32.mrb[0].mxu0
      %v8552 = vadd.f32 0.0, %v8551
      %v8553 = vpop.f32.mrb[0].mxu0
      %v8554 = vadd.f32 0.0, %v8553
      %v8555 = vpop.f32.mrb[0].mxu0
      %v8556 = vadd.f32 0.0, %v8555
      %v8557 = vpop.f32.mrb[0].mxu0
      %v8558 = vadd.f32 0.0, %v8557
      %8559 = vmatprep.mubr.bf16.mxu0 %v8449
      %8560 = vmatmul.mubr.bf16.gmra.mrb[0].mxu0 %v8327
      %v8561 = vpop.f32.mrb[0].mxu0
      %v8562 = vadd.f32 0.0, %v8561
      %v8563 = vpop.f32.mrb[0].mxu0
      %v8564 = vadd.f32 0.0, %v8563
      %v8565 = vpop.f32.mrb[0].mxu0
      %v8566 = vadd.f32 0.0, %v8565
      %v8567 = vpop.f32.mrb[0].mxu0
      %v8568 = vadd.f32 0.0, %v8567
      %8569 = vdwg.mxu0
      %v8570 = vadd.f32 %v8234, %v8492
      %v8571 = vadd.f32 %v8235, %v8494
      %v8572 = vadd.f32 %v8236, %v8496
      %v8573 = vadd.f32 %v8237, %v8498
      %v8574 = vadd.f32 %v8238, %v8502
      %v8575 = vadd.f32 %v8239, %v8504
      %v8576 = vadd.f32 %v8240, %v8506
      %v8577 = vadd.f32 %v8241, %v8508
      %v8578 = vadd.f32 %v8242, %v8512
      %v8579 = vadd.f32 %v8243, %v8514
      %v8580 = vadd.f32 %v8244, %v8516
      %v8581 = vadd.f32 %v8245, %v8518
      %v8582 = vadd.f32 %v8246, %v8522
      %v8583 = vadd.f32 %v8247, %v8524
      %v8584 = vadd.f32 %v8248, %v8526
      %v8585 = vadd.f32 %v8249, %v8528
      %v8586 = vadd.f32 %v8250, %v8532
      %v8587 = vadd.f32 %v8251, %v8534
      %v8588 = vadd.f32 %v8252, %v8536
      %v8589 = vadd.f32 %v8253, %v8538
      %v8590 = vadd.f32 %v8254, %v8542
      %v8591 = vadd.f32 %v8255, %v8544
      %v8592 = vadd.f32 %v8256, %v8546
      %v8593 = vadd.f32 %v8257, %v8548
      %v8594 = vadd.f32 %v8258, %v8552
      %v8595 = vadd.f32 %v8259, %v8554
      %v8596 = vadd.f32 %v8260, %v8556
      %v8597 = vadd.f32 %v8261, %v8558
      %v8598 = vadd.f32 %v8262, %v8562
      %v8599 = vadd.f32 %v8263, %v8564
      %v8600 = vadd.f32 %v8264, %v8566
      %v8601 = vadd.f32 %v8265, %v8568
      %8602 = vst [vmem:[#allocation3] sm:$0xff] %v8570
      %8603 = vst.msk [vmem:[#allocation3 + $0x8] sm:$0xff] %vm7383, %v8571
      %8604 = vst [vmem:[#allocation3 + $0x10] sm:$0xff] %v8572
      %8605 = vst.msk [vmem:[#allocation3 + $0x18] sm:$0xff] %vm7383, %v8573
      %8606 = vst [vmem:[#allocation3 + $0x20] sm:$0xff] %v8574
      %8607 = vst.msk [vmem:[#allocation3 + $0x28] sm:$0xff] %vm7383, %v8575
      %8608 = vst [vmem:[#allocation3 + $0x30] sm:$0xff] %v8576
      %8609 = vst.msk [vmem:[#allocation3 + $0x38] sm:$0xff] %vm7383, %v8577
      %8610 = vst [vmem:[#allocation3 + $0x40] sm:$0xff] %v8578
      %8611 = vst.msk [vmem:[#allocation3 + $0x48] sm:$0xff] %vm7383, %v8579
      %8612 = vst [vmem:[#allocation3 + $0x50] sm:$0xff] %v8580
      %8613 = vst.msk [vmem:[#allocation3 + $0x58] sm:$0xff] %vm7383, %v8581
      %8614 = vst [vmem:[#allocation3 + $0x60] sm:$0xff] %v8582
      %8615 = vst.msk [vmem:[#allocation3 + $0x68] sm:$0xff] %vm7383, %v8583
      %8616 = vst [vmem:[#allocation3 + $0x70] sm:$0xff] %v8584
      %8617 = vst.msk [vmem:[#allocation3 + $0x78] sm:$0xff] %vm7383, %v8585
      %8618 = vst [vmem:[#allocation3 + $0x80] sm:$0xff] %v8586
      %8619 = vst.msk [vmem:[#allocation3 + $0x88] sm:$0xff] %vm7383, %v8587
      %8620 = vst [vmem:[#allocation3 + $0x90] sm:$0xff] %v8588
      %8621 = vst.msk [vmem:[#allocation3 + $0x98] sm:$0xff] %vm7383, %v8589
      %8622 = vst [vmem:[#allocation3 + $0xa0] sm:$0xff] %v8590
      %8623 = vst.msk [vmem:[#allocation3 + $0xa8] sm:$0xff] %vm7383, %v8591
      %8624 = vst [vmem:[#allocation3 + $0xb0] sm:$0xff] %v8592
      %8625 = vst.msk [vmem:[#allocation3 + $0xb8] sm:$0xff] %vm7383, %v8593
      %8626 = vst [vmem:[#allocation3 + $0xc0] sm:$0xff] %v8594
      %8627 = vst.msk [vmem:[#allocation3 + $0xc8] sm:$0xff] %vm7383, %v8595
      %8628 = vst [vmem:[#allocation3 + $0xd0] sm:$0xff] %v8596
      %8629 = vst.msk [vmem:[#allocation3 + $0xd8] sm:$0xff] %vm7383, %v8597
      %8630 = vst [vmem:[#allocation3 + $0xe0] sm:$0xff] %v8598
      %8631 = vst.msk [vmem:[#allocation3 + $0xe8] sm:$0xff] %vm7383, %v8599
      %8632 = vst [vmem:[#allocation3 + $0xf0] sm:$0xf] %v8600
      %8633 = vst.msk [vmem:[#allocation3 + $0xf8] sm:$0xf] %vm7414, %v8601
      %v8634 = vld [vmem:[#allocation3] sm:$0xff]
      %v8635 = vld [vmem:[#allocation3 + $0x8] sm:$0xff]
      %v8636 = vld [vmem:[#allocation3 + $0x10] sm:$0xff]
      %v8637 = vld [vmem:[#allocation3 + $0x18] sm:$0xff]
      %v8638 = vld [vmem:[#allocation3 + $0x20] sm:$0xff]
      %v8639 = vld [vmem:[#allocation3 + $0x28] sm:$0xff]
      %v8640 = vld [vmem:[#allocation3 + $0x30] sm:$0xff]
      %v8641 = vld [vmem:[#allocation3 + $0x38] sm:$0xff]
      %v8642 = vld [vmem:[#allocation3 + $0x40] sm:$0xff]
      %v8643 = vld [vmem:[#allocation3 + $0x48] sm:$0xff]
      %v8644 = vld [vmem:[#allocation3 + $0x50] sm:$0xff]
      %v8645 = vld [vmem:[#allocation3 + $0x58] sm:$0xff]
      %v8646 = vld [vmem:[#allocation3 + $0x60] sm:$0xff]
      %v8647 = vld [vmem:[#allocation3 + $0x68] sm:$0xff]
      %v8648 = vld [vmem:[#allocation3 + $0x70] sm:$0xff]
      %v8649 = vld [vmem:[#allocation3 + $0x78] sm:$0xff]
      %v8650 = vld [vmem:[#allocation3 + $0x80] sm:$0xff]
      %v8651 = vld [vmem:[#allocation3 + $0x88] sm:$0xff]
      %v8652 = vld [vmem:[#allocation3 + $0x90] sm:$0xff]
      %v8653 = vld [vmem:[#allocation3 + $0x98] sm:$0xff]
      %v8654 = vld [vmem:[#allocation3 + $0xa0] sm:$0xff]
      %v8655 = vld [vmem:[#allocation3 + $0xa8] sm:$0xff]
      %v8656 = vld [vmem:[#allocation3 + $0xb0] sm:$0xff]
      %v8657 = vld [vmem:[#allocation3 + $0xb8] sm:$0xff]
      %v8658 = vld [vmem:[#allocation3 + $0xc0] sm:$0xff]
      %v8659 = vld [vmem:[#allocation3 + $0xc8] sm:$0xff]
      %v8660 = vld [vmem:[#allocation3 + $0xd0] sm:$0xff]
      %v8661 = vld [vmem:[#allocation3 + $0xd8] sm:$0xff]
      %v8662 = vld [vmem:[#allocation3 + $0xe0] sm:$0xff]
      %v8663 = vld [vmem:[#allocation3 + $0xe8] sm:$0xff]
      %v8664 = vld [vmem:[#allocation3 + $0xf0] sm:$0xf]
      %v8665 = vld [vmem:[#allocation3 + $0xf8] sm:$0xf]
      %s8666 = scalar_lea.vmem %s5, 432
      %v8667 = vld [vmem:[%s8666] sm:$0xff]
      %v8668 = vld [vmem:[%s8666 + $0x8] sm:$0xff]
      %v8669 = vld [vmem:[%s8666 + $0x10] sm:$0xff]
      %v8670 = vld [vmem:[%s8666 + $0x18] sm:$0xff]
      %v8671 = vld [vmem:[%s8666 + $0x20] sm:$0xff]
      %v8672 = vld [vmem:[%s8666 + $0x28] sm:$0xff]
      %v8673 = vld [vmem:[%s8666 + $0x30] sm:$0xff]
      %v8674 = vld [vmem:[%s8666 + $0x38] sm:$0xff]
      %v8675 = vld [vmem:[%s8666 + $0x40] sm:$0xff]
      %v8676 = vld [vmem:[%s8666 + $0x48] sm:$0xff]
      %v8677 = vld [vmem:[%s8666 + $0x50] sm:$0xff]
      %v8678 = vld [vmem:[%s8666 + $0x58] sm:$0xff]
      %v8679 = vld [vmem:[%s8666 + $0x60] sm:$0xff]
      %v8680 = vld [vmem:[%s8666 + $0x68] sm:$0xff]
      %v8681 = vld [vmem:[%s8666 + $0x70] sm:$0xff]
      %v8682 = vld [vmem:[%s8666 + $0x78] sm:$0xff]
      %v8683 = vld [vmem:[%s8666 + $0x80] sm:$0xff]
      %v8684 = vld [vmem:[%s8666 + $0x88] sm:$0x33]
      %v8685 = vrot.slane %v7814, 1
      %v8686 = vrot.slane %v7816, 2
      %v8687 = vor.u32 %v8685, %v8686
      %v8688 = vrot.slane %v7835, 1
      %v8689 = vrot.slane %v7821, 2
      %v8690 = vor.u32 %v8688, %v8689
      %v8691 = vsel %vm3719, %v8687, %v8690
      %v8692 = vrot.slane %v7825, 1
      %v8693 = vrot.slane %v7827, 2
      %v8694 = vor.u32 %v8692, %v8693
      %v8695 = vrot.slane %v7843, 1
      %v8696 = vrot.slane %v7831, 2
      %v8697 = vor.u32 %v8695, %v8696
      %v8698 = vsel %vm3719, %v8694, %v8697
      %v8699 = vrot.slane %v7850, 1
      %v8700 = vrot.slane %v7839, 2
      %v8701 = vor.u32 %v8699, %v8700
      %v8702 = vsel %vm3719, %v8690, %v8701
      %v8703 = vrot.slane %v7858, 1
      %v8704 = vrot.slane %v7846, 2
      %v8705 = vor.u32 %v8703, %v8704
      %v8706 = vsel %vm3719, %v8697, %v8705
      %v8707 = vrot.slane %v7865, 1
      %v8708 = vrot.slane %v7854, 2
      %v8709 = vor.u32 %v8707, %v8708
      %v8710 = vsel %vm3719, %v8701, %v8709
      %v8711 = vrot.slane %v7873, 1
      %v8712 = vrot.slane %v7861, 2
      %v8713 = vor.u32 %v8711, %v8712
      %v8714 = vsel %vm3719, %v8705, %v8713
      %v8715 = vrot.slane %v7880, 1
      %v8716 = vrot.slane %v7869, 2
      %v8717 = vor.u32 %v8715, %v8716
      %v8718 = vsel %vm3719, %v8709, %v8717
      %v8719 = vrot.slane %v7888, 1
      %v8720 = vrot.slane %v7876, 2
      %v8721 = vor.u32 %v8719, %v8720
      %v8722 = vsel %vm3719, %v8713, %v8721
      %v8723 = vrot.slane %v7895, 1
      %v8724 = vrot.slane %v7884, 2
      %v8725 = vor.u32 %v8723, %v8724
      %v8726 = vsel %vm3719, %v8717, %v8725
      %v8727 = vrot.slane %v7903, 1
      %v8728 = vrot.slane %v7891, 2
      %v8729 = vor.u32 %v8727, %v8728
      %v8730 = vsel %vm3719, %v8721, %v8729
      %v8731 = vrot.slane %v7910, 1
      %v8732 = vrot.slane %v7899, 2
      %v8733 = vor.u32 %v8731, %v8732
      %v8734 = vsel %vm3719, %v8725, %v8733
      %v8735 = vrot.slane %v7918, 1
      %v8736 = vrot.slane %v7906, 2
      %v8737 = vor.u32 %v8735, %v8736
      %v8738 = vsel %vm3719, %v8729, %v8737
      %v8739 = vrot.slane %v7925, 1
      %v8740 = vrot.slane %v7914, 2
      %v8741 = vor.u32 %v8739, %v8740
      %v8742 = vsel %vm3719, %v8733, %v8741
      %v8743 = vrot.slane %v7928, 1
      %v8744 = vrot.slane %v7921, 2
      %v8745 = vor.u32 %v8743, %v8744
      %v8746 = vsel %vm3719, %v8737, %v8745
      %v8773 = vunpack.c.l.b16 %v8667
      %v8774 = vunpack.c.h.b16 %v8667
      %v8775 = vunpack.c.l.b16 %v8668
      %v8776 = vunpack.c.h.b16 %v8668
      %v8777 = vunpack.c.l.b16 %v8669
      %v8778 = vunpack.c.h.b16 %v8669
      %v8779 = vunpack.c.l.b16 %v8670
      %v8780 = vunpack.c.h.b16 %v8670
      %v8781 = vunpack.c.l.b16 %v8671
      %v8782 = vunpack.c.h.b16 %v8671
      %v8783 = vunpack.c.l.b16 %v8672
      %v8784 = vunpack.c.h.b16 %v8672
      %v8785 = vunpack.c.l.b16 %v8673
      %v8786 = vunpack.c.h.b16 %v8673
      %v8787 = vunpack.c.l.b16 %v8674
      %v8788 = vunpack.c.h.b16 %v8674
      %v8789 = vunpack.c.l.b16 %v8675
      %v8790 = vunpack.c.h.b16 %v8675
      %v8791 = vunpack.c.l.b16 %v8676
      %v8792 = vunpack.c.h.b16 %v8676
      %v8793 = vunpack.c.l.b16 %v8677
      %v8794 = vunpack.c.h.b16 %v8677
      %v8795 = vunpack.c.l.b16 %v8678
      %v8796 = vunpack.c.h.b16 %v8678
      %v8797 = vunpack.c.l.b16 %v8679
      %v8798 = vunpack.c.h.b16 %v8679
      %v8799 = vunpack.c.l.b16 %v8680
      %v8800 = vunpack.c.h.b16 %v8680
      %v8801 = vunpack.c.l.b16 %v8681
      %v8802 = vunpack.c.h.b16 %v8681
      %v8803 = vunpack.c.l.b16 %v8682
      %v8804 = vunpack.c.h.b16 %v8682
      %v8805 = vunpack.c.l.b16 %v8683
      %v8806 = vunpack.c.h.b16 %v8683
      %v8807 = vunpack.c.l.b16 %v8684
      %v8808 = vunpack.c.h.b16 %v8684
      %v8809 = vpack.c.b16 %v8775, %v8773
      %v8810 = vpack.c.b16 %v8776, %v8774
      %v8811 = vpack.c.b16 %v8779, %v8777
      %v8812 = vpack.c.b16 %v8780, %v8778
      %v8813 = vpack.c.b16 %v8783, %v8781
      %v8814 = vpack.c.b16 %v8784, %v8782
      %v8815 = vpack.c.b16 %v8787, %v8785
      %v8816 = vpack.c.b16 %v8788, %v8786
      %v8817 = vpack.c.b16 %v8791, %v8789
      %v8818 = vpack.c.b16 %v8792, %v8790
      %v8819 = vpack.c.b16 %v8795, %v8793
      %v8820 = vpack.c.b16 %v8796, %v8794
      %v8821 = vpack.c.b16 %v8799, %v8797
      %v8822 = vpack.c.b16 %v8800, %v8798
      %v8823 = vpack.c.b16 %v8803, %v8801
      %v8824 = vpack.c.b16 %v8804, %v8802
      %v8825 = vpack.c.b16 %v8807, %v8805
      %v8826 = vpack.c.b16 %v8808, %v8806
      %v8844 = vsel %vm7554, %v8698, 0
      %v8847 = vsel %vm7554, %v8706, 0
      %v8850 = vsel %vm7554, %v8714, 0
      %v8853 = vsel %vm7554, %v8722, 0
      %v8856 = vsel %vm7554, %v8730, 0
      %v8859 = vsel %vm7554, %v8738, 0
      %v8862 = vsel %vm7554, %v8746, 0
      %v8865 = vsel %vm7554, %v8745, 0
      %v8868 = vsel %vm5765, %v8825, 0
      %v8871 = vsel %vm5765, %v8826, 0
      %8873 = vmatprep.subr.bf16.mxu0 %v8810
      %8874 = vmatpush1.bf16.msra.mxu0 %v8809
      %8875 = vmatprep.subr.bf16.mxu0 %v8812
      %8876 = vmatpush1.bf16.msra.mxu0 %v8811
      %8877 = vmatprep.subr.bf16.mxu0 %v8814
      %8878 = vmatpush1.bf16.msra.mxu0 %v8813
      %8879 = vmatprep.subr.bf16.mxu0 %v8816
      %8880 = vmatpush1.bf16.msra.mxu0 %v8815
      %8881 = vmatprep.subr.bf16.mxu0 %v8818
      %8882 = vmatpush1.bf16.msra.mxu0 %v8817
      %8883 = vmatprep.subr.bf16.mxu0 %v8820
      %8884 = vmatpush1.bf16.msra.mxu0 %v8819
      %8885 = vmatprep.subr.bf16.mxu0 %v8822
      %8886 = vmatpush1.bf16.msra.mxu0 %v8821
      %8887 = vmatprep.subr.bf16.mxu0 %v8824
      %8888 = vmatpush1.bf16.msra.mxu0 %v8823
      %8889 = vmatprep.subr.bf16.mxu0 %v8871
      %8890 = vmatpush1.bf16.msra.mxu0 %v8868
      %8891 = vmatprep.subr.bf16.mxu0 0
      %8892 = vmatpush1.bf16.msra.mxu0 0
      %8893 = vmatprep.subr.bf16.mxu0 0
      %8894 = vmatpush1.bf16.msra.mxu0 0
      %8895 = vmatprep.subr.bf16.mxu0 0
      %8896 = vmatpush1.bf16.msra.mxu0 0
      %8897 = vmatprep.subr.bf16.mxu0 0
      %8898 = vmatpush1.bf16.msra.mxu0 0
      %8899 = vmatprep.subr.bf16.mxu0 0
      %8900 = vmatpush1.bf16.msra.mxu0 0
      %8901 = vmatprep.subr.bf16.mxu0 0
      %8902 = vmatpush1.bf16.msra.mxu0 0
      %8903 = vmatprep.subr.bf16.mxu0 0
      %8904 = vmatpush1.bf16.msra.mxu0 0
      %8905 = vmatprep.mubr.bf16.mxu0 %v8844
      %8906 = vmatmul.mubr.bf16.gmra.mrb[0].mxu0 %v8691
      %v8907 = vpop.f32.mrb[0].mxu0
      %v8908 = vadd.f32 0.0, %v8907
      %v8909 = vpop.f32.mrb[0].mxu0
      %v8910 = vadd.f32 0.0, %v8909
      %v8911 = vpop.f32.mrb[0].mxu0
      %v8912 = vadd.f32 0.0, %v8911
      %v8913 = vpop.f32.mrb[0].mxu0
      %v8914 = vadd.f32 0.0, %v8913
      %8915 = vmatprep.mubr.bf16.mxu0 %v8847
      %8916 = vmatmul.mubr.bf16.gmra.mrb[0].mxu0 %v8702
      %v8917 = vpop.f32.mrb[0].mxu0
      %v8918 = vadd.f32 0.0, %v8917
      %v8919 = vpop.f32.mrb[0].mxu0
      %v8920 = vadd.f32 0.0, %v8919
      %v8921 = vpop.f32.mrb[0].mxu0
      %v8922 = vadd.f32 0.0, %v8921
      %v8923 = vpop.f32.mrb[0].mxu0
      %v8924 = vadd.f32 0.0, %v8923
      %8925 = vmatprep.mubr.bf16.mxu0 %v8850
      %8926 = vmatmul.mubr.bf16.gmra.mrb[0].mxu0 %v8710
      %v8927 = vpop.f32.mrb[0].mxu0
      %v8928 = vadd.f32 0.0, %v8927
      %v8929 = vpop.f32.mrb[0].mxu0
      %v8930 = vadd.f32 0.0, %v8929
      %v8931 = vpop.f32.mrb[0].mxu0
      %v8932 = vadd.f32 0.0, %v8931
      %v8933 = vpop.f32.mrb[0].mxu0
      %v8934 = vadd.f32 0.0, %v8933
      %8935 = vmatprep.mubr.bf16.mxu0 %v8853
      %8936 = vmatmul.mubr.bf16.gmra.mrb[0].mxu0 %v8718
      %v8937 = vpop.f32.mrb[0].mxu0
      %v8938 = vadd.f32 0.0, %v8937
      %v8939 = vpop.f32.mrb[0].mxu0
      %v8940 = vadd.f32 0.0, %v8939
      %v8941 = vpop.f32.mrb[0].mxu0
      %v8942 = vadd.f32 0.0, %v8941
      %v8943 = vpop.f32.mrb[0].mxu0
      %v8944 = vadd.f32 0.0, %v8943
      %8945 = vmatprep.mubr.bf16.mxu0 %v8856
      %8946 = vmatmul.mubr.bf16.gmra.mrb[0].mxu0 %v8726
      %v8947 = vpop.f32.mrb[0].mxu0
      %v8948 = vadd.f32 0.0, %v8947
      %v8949 = vpop.f32.mrb[0].mxu0
      %v8950 = vadd.f32 0.0, %v8949
      %v8951 = vpop.f32.mrb[0].mxu0
      %v8952 = vadd.f32 0.0, %v8951
      %v8953 = vpop.f32.mrb[0].mxu0
      %v8954 = vadd.f32 0.0, %v8953
      %8955 = vmatprep.mubr.bf16.mxu0 %v8859
      %8956 = vmatmul.mubr.bf16.gmra.mrb[0].mxu0 %v8734
      %v8957 = vpop.f32.mrb[0].mxu0
      %v8958 = vadd.f32 0.0, %v8957
      %v8959 = vpop.f32.mrb[0].mxu0
      %v8960 = vadd.f32 0.0, %v8959
      %v8961 = vpop.f32.mrb[0].mxu0
      %v8962 = vadd.f32 0.0, %v8961
      %v8963 = vpop.f32.mrb[0].mxu0
      %v8964 = vadd.f32 0.0, %v8963
      %8965 = vmatprep.mubr.bf16.mxu0 %v8862
      %8966 = vmatmul.mubr.bf16.gmra.mrb[0].mxu0 %v8742
      %v8967 = vpop.f32.mrb[0].mxu0
      %v8968 = vadd.f32 0.0, %v8967
      %v8969 = vpop.f32.mrb[0].mxu0
      %v8970 = vadd.f32 0.0, %v8969
      %v8971 = vpop.f32.mrb[0].mxu0
      %v8972 = vadd.f32 0.0, %v8971
      %v8973 = vpop.f32.mrb[0].mxu0
      %v8974 = vadd.f32 0.0, %v8973
      %8975 = vmatprep.mubr.bf16.mxu0 %v8865
      %8976 = vmatmul.mubr.bf16.gmra.mrb[0].mxu0 %v8741
      %v8977 = vpop.f32.mrb[0].mxu0
      %v8978 = vadd.f32 0.0, %v8977
      %v8979 = vpop.f32.mrb[0].mxu0
      %v8980 = vadd.f32 0.0, %v8979
      %v8981 = vpop.f32.mrb[0].mxu0
      %v8982 = vadd.f32 0.0, %v8981
      %v8983 = vpop.f32.mrb[0].mxu0
      %v8984 = vadd.f32 0.0, %v8983
      %8985 = vdwg.mxu0
      %v8986 = vadd.f32 %v8634, %v8908
      %v8987 = vadd.f32 %v8635, %v8910
      %v8988 = vadd.f32 %v8636, %v8912
      %v8989 = vadd.f32 %v8637, %v8914
      %v8990 = vadd.f32 %v8638, %v8918
      %v8991 = vadd.f32 %v8639, %v8920
      %v8992 = vadd.f32 %v8640, %v8922
      %v8993 = vadd.f32 %v8641, %v8924
      %v8994 = vadd.f32 %v8642, %v8928
      %v8995 = vadd.f32 %v8643, %v8930
      %v8996 = vadd.f32 %v8644, %v8932
      %v8997 = vadd.f32 %v8645, %v8934
      %v8998 = vadd.f32 %v8646, %v8938
      %v8999 = vadd.f32 %v8647, %v8940
      %v9000 = vadd.f32 %v8648, %v8942
      %v9001 = vadd.f32 %v8649, %v8944
      %v9002 = vadd.f32 %v8650, %v8948
      %v9003 = vadd.f32 %v8651, %v8950
      %v9004 = vadd.f32 %v8652, %v8952
      %v9005 = vadd.f32 %v8653, %v8954
      %v9006 = vadd.f32 %v8654, %v8958
      %v9007 = vadd.f32 %v8655, %v8960
      %v9008 = vadd.f32 %v8656, %v8962
      %v9009 = vadd.f32 %v8657, %v8964
      %v9010 = vadd.f32 %v8658, %v8968
      %v9011 = vadd.f32 %v8659, %v8970
      %v9012 = vadd.f32 %v8660, %v8972
      %v9013 = vadd.f32 %v8661, %v8974
      %v9014 = vadd.f32 %v8662, %v8978
      %v9015 = vadd.f32 %v8663, %v8980
      %v9016 = vadd.f32 %v8664, %v8982
      %v9017 = vadd.f32 %v8665, %v8984
      %9018 = vst [vmem:[#allocation3] sm:$0xff] %v8986
      %9019 = vst.msk [vmem:[#allocation3 + $0x8] sm:$0xff] %vm7383, %v8987
      %9020 = vst [vmem:[#allocation3 + $0x10] sm:$0xff] %v8988
      %9021 = vst.msk [vmem:[#allocation3 + $0x18] sm:$0xff] %vm7383, %v8989
      %9022 = vst [vmem:[#allocation3 + $0x20] sm:$0xff] %v8990
      %9023 = vst.msk [vmem:[#allocation3 + $0x28] sm:$0xff] %vm7383, %v8991
      %9024 = vst [vmem:[#allocation3 + $0x30] sm:$0xff] %v8992
      %9025 = vst.msk [vmem:[#allocation3 + $0x38] sm:$0xff] %vm7383, %v8993
      %9026 = vst [vmem:[#allocation3 + $0x40] sm:$0xff] %v8994
      %9027 = vst.msk [vmem:[#allocation3 + $0x48] sm:$0xff] %vm7383, %v8995
      %9028 = vst [vmem:[#allocation3 + $0x50] sm:$0xff] %v8996
      %9029 = vst.msk [vmem:[#allocation3 + $0x58] sm:$0xff] %vm7383, %v8997
      %9030 = vst [vmem:[#allocation3 + $0x60] sm:$0xff] %v8998
      %9031 = vst.msk [vmem:[#allocation3 + $0x68] sm:$0xff] %vm7383, %v8999
      %9032 = vst [vmem:[#allocation3 + $0x70] sm:$0xff] %v9000
      %9033 = vst.msk [vmem:[#allocation3 + $0x78] sm:$0xff] %vm7383, %v9001
      %9034 = vst [vmem:[#allocation3 + $0x80] sm:$0xff] %v9002
      %9035 = vst.msk [vmem:[#allocation3 + $0x88] sm:$0xff] %vm7383, %v9003
      %9036 = vst [vmem:[#allocation3 + $0x90] sm:$0xff] %v9004
      %9037 = vst.msk [vmem:[#allocation3 + $0x98] sm:$0xff] %vm7383, %v9005
      %9038 = vst [vmem:[#allocation3 + $0xa0] sm:$0xff] %v9006
      %9039 = vst.msk [vmem:[#allocation3 + $0xa8] sm:$0xff] %vm7383, %v9007
      %9040 = vst [vmem:[#allocation3 + $0xb0] sm:$0xff] %v9008
      %9041 = vst.msk [vmem:[#allocation3 + $0xb8] sm:$0xff] %vm7383, %v9009
      %9042 = vst [vmem:[#allocation3 + $0xc0] sm:$0xff] %v9010
      %9043 = vst.msk [vmem:[#allocation3 + $0xc8] sm:$0xff] %vm7383, %v9011
      %9044 = vst [vmem:[#allocation3 + $0xd0] sm:$0xff] %v9012
      %9045 = vst.msk [vmem:[#allocation3 + $0xd8] sm:$0xff] %vm7383, %v9013
      %9046 = vst [vmem:[#allocation3 + $0xe0] sm:$0xff] %v9014
      %9047 = vst.msk [vmem:[#allocation3 + $0xe8] sm:$0xff] %vm7383, %v9015
      %9048 = vst [vmem:[#allocation3 + $0xf0] sm:$0xf] %v9016
      %9049 = vst.msk [vmem:[#allocation3 + $0xf8] sm:$0xf] %vm7414, %v9017
      %v9050 = vld [vmem:[#allocation3] sm:$0xff]
      %v9051 = vld [vmem:[#allocation3 + $0x8] sm:$0xff]
      %v9052 = vld [vmem:[#allocation3 + $0x10] sm:$0xff]
      %v9053 = vld [vmem:[#allocation3 + $0x18] sm:$0xff]
      %v9054 = vld [vmem:[#allocation3 + $0x20] sm:$0xff]
      %v9055 = vld [vmem:[#allocation3 + $0x28] sm:$0xff]
      %v9056 = vld [vmem:[#allocation3 + $0x30] sm:$0xff]
      %v9057 = vld [vmem:[#allocation3 + $0x38] sm:$0xff]
      %v9058 = vld [vmem:[#allocation3 + $0x40] sm:$0xff]
      %v9059 = vld [vmem:[#allocation3 + $0x48] sm:$0xff]
      %v9060 = vld [vmem:[#allocation3 + $0x50] sm:$0xff]
      %v9061 = vld [vmem:[#allocation3 + $0x58] sm:$0xff]
      %v9062 = vld [vmem:[#allocation3 + $0x60] sm:$0xff]
      %v9063 = vld [vmem:[#allocation3 + $0x68] sm:$0xff]
      %v9064 = vld [vmem:[#allocation3 + $0x70] sm:$0xff]
      %v9065 = vld [vmem:[#allocation3 + $0x78] sm:$0xff]
      %v9066 = vld [vmem:[#allocation3 + $0x80] sm:$0xff]
      %v9067 = vld [vmem:[#allocation3 + $0x88] sm:$0xff]
      %v9068 = vld [vmem:[#allocation3 + $0x90] sm:$0xff]
      %v9069 = vld [vmem:[#allocation3 + $0x98] sm:$0xff]
      %v9070 = vld [vmem:[#allocation3 + $0xa0] sm:$0xff]
      %v9071 = vld [vmem:[#allocation3 + $0xa8] sm:$0xff]
      %v9072 = vld [vmem:[#allocation3 + $0xb0] sm:$0xff]
      %v9073 = vld [vmem:[#allocation3 + $0xb8] sm:$0xff]
      %v9074 = vld [vmem:[#allocation3 + $0xc0] sm:$0xff]
      %v9075 = vld [vmem:[#allocation3 + $0xc8] sm:$0xff]
      %v9076 = vld [vmem:[#allocation3 + $0xd0] sm:$0xff]
      %v9077 = vld [vmem:[#allocation3 + $0xd8] sm:$0xff]
      %v9078 = vld [vmem:[#allocation3 + $0xe0] sm:$0xff]
      %v9079 = vld [vmem:[#allocation3 + $0xe8] sm:$0xff]
      %v9080 = vld [vmem:[#allocation3 + $0xf0] sm:$0xf]
      %v9081 = vld [vmem:[#allocation3 + $0xf8] sm:$0xf]
      %s9082 = scalar_lea.vmem %s5, 576
      %v9083 = vld [vmem:[%s9082] sm:$0xff]
      %v9084 = vld [vmem:[%s9082 + $0x8] sm:$0xff]
      %v9085 = vld [vmem:[%s9082 + $0x10] sm:$0xff]
      %v9086 = vld [vmem:[%s9082 + $0x18] sm:$0xff]
      %v9087 = vld [vmem:[%s9082 + $0x20] sm:$0xff]
      %v9088 = vld [vmem:[%s9082 + $0x28] sm:$0xff]
      %v9089 = vld [vmem:[%s9082 + $0x30] sm:$0xff]
      %v9090 = vld [vmem:[%s9082 + $0x38] sm:$0xff]
      %v9091 = vld [vmem:[%s9082 + $0x40] sm:$0xff]
      %v9092 = vld [vmem:[%s9082 + $0x48] sm:$0xff]
      %v9093 = vld [vmem:[%s9082 + $0x50] sm:$0xff]
      %v9094 = vld [vmem:[%s9082 + $0x58] sm:$0xff]
      %v9095 = vld [vmem:[%s9082 + $0x60] sm:$0xff]
      %v9096 = vld [vmem:[%s9082 + $0x68] sm:$0xff]
      %v9097 = vld [vmem:[%s9082 + $0x70] sm:$0xff]
      %v9098 = vld [vmem:[%s9082 + $0x78] sm:$0xff]
      %v9099 = vld [vmem:[%s9082 + $0x80] sm:$0xff]
      %v9100 = vld [vmem:[%s9082 + $0x88] sm:$0x33]
      %v9101 = vrot.slane %v7354, 2
      %v9102 = vrot.slane %v7356, 2
      %v9103 = vsel %vm4786, %v9101, %v9102
      %v9104 = vrot.slane %v7355, 2
      %v9105 = vrot.slane %v7357, 2
      %v9106 = vsel %vm4786, %v9104, %v9105
      %v9107 = vrot.slane %v7358, 2
      %v9108 = vsel %vm4786, %v9102, %v9107
      %v9109 = vrot.slane %v7359, 2
      %v9110 = vsel %vm4786, %v9105, %v9109
      %v9111 = vrot.slane %v7360, 2
      %v9112 = vsel %vm4786, %v9107, %v9111
      %v9113 = vrot.slane %v7361, 2
      %v9114 = vsel %vm4786, %v9109, %v9113
      %v9115 = vrot.slane %v7362, 2
      %v9116 = vsel %vm4786, %v9111, %v9115
      %v9117 = vrot.slane %v7363, 2
      %v9118 = vsel %vm4786, %v9113, %v9117
      %v9119 = vrot.slane %v7364, 2
      %v9120 = vsel %vm4786, %v9115, %v9119
      %v9121 = vrot.slane %v7365, 2
      %v9122 = vsel %vm4786, %v9117, %v9121
      %v9123 = vrot.slane %v7366, 2
      %v9124 = vsel %vm4786, %v9119, %v9123
      %v9125 = vrot.slane %v7367, 2
      %v9126 = vsel %vm4786, %v9121, %v9125
      %v9127 = vrot.slane %v7368, 2
      %v9128 = vsel %vm4786, %v9123, %v9127
      %v9129 = vrot.slane %v7369, 2
      %v9130 = vsel %vm4786, %v9125, %v9129
      %v9157 = vunpack.c.l.b16 %v9083
      %v9158 = vunpack.c.h.b16 %v9083
      %v9159 = vunpack.c.l.b16 %v9084
      %v9160 = vunpack.c.h.b16 %v9084
      %v9161 = vunpack.c.l.b16 %v9085
      %v9162 = vunpack.c.h.b16 %v9085
      %v9163 = vunpack.c.l.b16 %v9086
      %v9164 = vunpack.c.h.b16 %v9086
      %v9165 = vunpack.c.l.b16 %v9087
      %v9166 = vunpack.c.h.b16 %v9087
      %v9167 = vunpack.c.l.b16 %v9088
      %v9168 = vunpack.c.h.b16 %v9088
      %v9169 = vunpack.c.l.b16 %v9089
      %v9170 = vunpack.c.h.b16 %v9089
      %v9171 = vunpack.c.l.b16 %v9090
      %v9172 = vunpack.c.h.b16 %v9090
      %v9173 = vunpack.c.l.b16 %v9091
      %v9174 = vunpack.c.h.b16 %v9091
      %v9175 = vunpack.c.l.b16 %v9092
      %v9176 = vunpack.c.h.b16 %v9092
      %v9177 = vunpack.c.l.b16 %v9093
      %v9178 = vunpack.c.h.b16 %v9093
      %v9179 = vunpack.c.l.b16 %v9094
      %v9180 = vunpack.c.h.b16 %v9094
      %v9181 = vunpack.c.l.b16 %v9095
      %v9182 = vunpack.c.h.b16 %v9095
      %v9183 = vunpack.c.l.b16 %v9096
      %v9184 = vunpack.c.h.b16 %v9096
      %v9185 = vunpack.c.l.b16 %v9097
      %v9186 = vunpack.c.h.b16 %v9097
      %v9187 = vunpack.c.l.b16 %v9098
      %v9188 = vunpack.c.h.b16 %v9098
      %v9189 = vunpack.c.l.b16 %v9099
      %v9190 = vunpack.c.h.b16 %v9099
      %v9191 = vunpack.c.l.b16 %v9100
      %v9192 = vunpack.c.h.b16 %v9100
      %v9193 = vpack.c.b16 %v9159, %v9157
      %v9194 = vpack.c.b16 %v9160, %v9158
      %v9195 = vpack.c.b16 %v9163, %v9161
      %v9196 = vpack.c.b16 %v9164, %v9162
      %v9197 = vpack.c.b16 %v9167, %v9165
      %v9198 = vpack.c.b16 %v9168, %v9166
      %v9199 = vpack.c.b16 %v9171, %v9169
      %v9200 = vpack.c.b16 %v9172, %v9170
      %v9201 = vpack.c.b16 %v9175, %v9173
      %v9202 = vpack.c.b16 %v9176, %v9174
      %v9203 = vpack.c.b16 %v9179, %v9177
      %v9204 = vpack.c.b16 %v9180, %v9178
      %v9205 = vpack.c.b16 %v9183, %v9181
      %v9206 = vpack.c.b16 %v9184, %v9182
      %v9207 = vpack.c.b16 %v9187, %v9185
      %v9208 = vpack.c.b16 %v9188, %v9186
      %v9209 = vpack.c.b16 %v9191, %v9189
      %v9210 = vpack.c.b16 %v9192, %v9190
      %v9228 = vsel %vm7554, %v9106, 0
      %v9231 = vsel %vm7554, %v9110, 0
      %v9234 = vsel %vm7554, %v9114, 0
      %v9237 = vsel %vm7554, %v9118, 0
      %v9240 = vsel %vm7554, %v9122, 0
      %v9243 = vsel %vm7554, %v9126, 0
      %v9246 = vsel %vm7554, %v9130, 0
      %v9249 = vsel %vm7554, %v9129, 0
      %v9252 = vsel %vm5765, %v9209, 0
      %v9255 = vsel %vm5765, %v9210, 0
      %9257 = vmatprep.subr.bf16.mxu0 %v9194
      %9258 = vmatpush1.bf16.msra.mxu0 %v9193
      %9259 = vmatprep.subr.bf16.mxu0 %v9196
      %9260 = vmatpush1.bf16.msra.mxu0 %v9195
      %9261 = vmatprep.subr.bf16.mxu0 %v9198
      %9262 = vmatpush1.bf16.msra.mxu0 %v9197
      %9263 = vmatprep.subr.bf16.mxu0 %v9200
      %9264 = vmatpush1.bf16.msra.mxu0 %v9199
      %9265 = vmatprep.subr.bf16.mxu0 %v9202
      %9266 = vmatpush1.bf16.msra.mxu0 %v9201
      %9267 = vmatprep.subr.bf16.mxu0 %v9204
      %9268 = vmatpush1.bf16.msra.mxu0 %v9203
      %9269 = vmatprep.subr.bf16.mxu0 %v9206
      %9270 = vmatpush1.bf16.msra.mxu0 %v9205
      %9271 = vmatprep.subr.bf16.mxu0 %v9208
      %9272 = vmatpush1.bf16.msra.mxu0 %v9207
      %9273 = vmatprep.subr.bf16.mxu0 %v9255
      %9274 = vmatpush1.bf16.msra.mxu0 %v9252
      %9275 = vmatprep.subr.bf16.mxu0 0
      %9276 = vmatpush1.bf16.msra.mxu0 0
      %9277 = vmatprep.subr.bf16.mxu0 0
      %9278 = vmatpush1.bf16.msra.mxu0 0
      %9279 = vmatprep.subr.bf16.mxu0 0
      %9280 = vmatpush1.bf16.msra.mxu0 0
      %9281 = vmatprep.subr.bf16.mxu0 0
      %9282 = vmatpush1.bf16.msra.mxu0 0
      %9283 = vmatprep.subr.bf16.mxu0 0
      %9284 = vmatpush1.bf16.msra.mxu0 0
      %9285 = vmatprep.subr.bf16.mxu0 0
      %9286 = vmatpush1.bf16.msra.mxu0 0
      %9287 = vmatprep.subr.bf16.mxu0 0
      %9288 = vmatpush1.bf16.msra.mxu0 0
      %9289 = vmatprep.mubr.bf16.mxu0 %v9228
      %9290 = vmatmul.mubr.bf16.gmra.mrb[0].mxu0 %v9103
      %v9291 = vpop.f32.mrb[0].mxu0
      %v9292 = vadd.f32 0.0, %v9291
      %v9293 = vpop.f32.mrb[0].mxu0
      %v9294 = vadd.f32 0.0, %v9293
      %v9295 = vpop.f32.mrb[0].mxu0
      %v9296 = vadd.f32 0.0, %v9295
      %v9297 = vpop.f32.mrb[0].mxu0
      %v9298 = vadd.f32 0.0, %v9297
      %9299 = vmatprep.mubr.bf16.mxu0 %v9231
      %9300 = vmatmul.mubr.bf16.gmra.mrb[0].mxu0 %v9108
      %v9301 = vpop.f32.mrb[0].mxu0
      %v9302 = vadd.f32 0.0, %v9301
      %v9303 = vpop.f32.mrb[0].mxu0
      %v9304 = vadd.f32 0.0, %v9303
      %v9305 = vpop.f32.mrb[0].mxu0
      %v9306 = vadd.f32 0.0, %v9305
      %v9307 = vpop.f32.mrb[0].mxu0
      %v9308 = vadd.f32 0.0, %v9307
      %9309 = vmatprep.mubr.bf16.mxu0 %v9234
      %9310 = vmatmul.mubr.bf16.gmra.mrb[0].mxu0 %v9112
      %v9311 = vpop.f32.mrb[0].mxu0
      %v9312 = vadd.f32 0.0, %v9311
      %v9313 = vpop.f32.mrb[0].mxu0
      %v9314 = vadd.f32 0.0, %v9313
      %v9315 = vpop.f32.mrb[0].mxu0
      %v9316 = vadd.f32 0.0, %v9315
      %v9317 = vpop.f32.mrb[0].mxu0
      %v9318 = vadd.f32 0.0, %v9317
      %9319 = vmatprep.mubr.bf16.mxu0 %v9237
      %9320 = vmatmul.mubr.bf16.gmra.mrb[0].mxu0 %v9116
      %v9321 = vpop.f32.mrb[0].mxu0
      %v9322 = vadd.f32 0.0, %v9321
      %v9323 = vpop.f32.mrb[0].mxu0
      %v9324 = vadd.f32 0.0, %v9323
      %v9325 = vpop.f32.mrb[0].mxu0
      %v9326 = vadd.f32 0.0, %v9325
      %v9327 = vpop.f32.mrb[0].mxu0
      %v9328 = vadd.f32 0.0, %v9327
      %9329 = vmatprep.mubr.bf16.mxu0 %v9240
      %9330 = vmatmul.mubr.bf16.gmra.mrb[0].mxu0 %v9120
      %v9331 = vpop.f32.mrb[0].mxu0
      %v9332 = vadd.f32 0.0, %v9331
      %v9333 = vpop.f32.mrb[0].mxu0
      %v9334 = vadd.f32 0.0, %v9333
      %v9335 = vpop.f32.mrb[0].mxu0
      %v9336 = vadd.f32 0.0, %v9335
      %v9337 = vpop.f32.mrb[0].mxu0
      %v9338 = vadd.f32 0.0, %v9337
      %9339 = vmatprep.mubr.bf16.mxu0 %v9243
      %9340 = vmatmul.mubr.bf16.gmra.mrb[0].mxu0 %v9124
      %v9341 = vpop.f32.mrb[0].mxu0
      %v9342 = vadd.f32 0.0, %v9341
      %v9343 = vpop.f32.mrb[0].mxu0
      %v9344 = vadd.f32 0.0, %v9343
      %v9345 = vpop.f32.mrb[0].mxu0
      %v9346 = vadd.f32 0.0, %v9345
      %v9347 = vpop.f32.mrb[0].mxu0
      %v9348 = vadd.f32 0.0, %v9347
      %9349 = vmatprep.mubr.bf16.mxu0 %v9246
      %9350 = vmatmul.mubr.bf16.gmra.mrb[0].mxu0 %v9128
      %v9351 = vpop.f32.mrb[0].mxu0
      %v9352 = vadd.f32 0.0, %v9351
      %v9353 = vpop.f32.mrb[0].mxu0
      %v9354 = vadd.f32 0.0, %v9353
      %v9355 = vpop.f32.mrb[0].mxu0
      %v9356 = vadd.f32 0.0, %v9355
      %v9357 = vpop.f32.mrb[0].mxu0
      %v9358 = vadd.f32 0.0, %v9357
      %9359 = vmatprep.mubr.bf16.mxu0 %v9249
      %9360 = vmatmul.mubr.bf16.gmra.mrb[0].mxu0 %v9127
      %v9361 = vpop.f32.mrb[0].mxu0
      %v9362 = vadd.f32 0.0, %v9361
      %v9363 = vpop.f32.mrb[0].mxu0
      %v9364 = vadd.f32 0.0, %v9363
      %v9365 = vpop.f32.mrb[0].mxu0
      %v9366 = vadd.f32 0.0, %v9365
      %v9367 = vpop.f32.mrb[0].mxu0
      %v9368 = vadd.f32 0.0, %v9367
      %9369 = vdwg.mxu0
      %v9370 = vadd.f32 %v9050, %v9292
      %v9371 = vadd.f32 %v9051, %v9294
      %v9372 = vadd.f32 %v9052, %v9296
      %v9373 = vadd.f32 %v9053, %v9298
      %v9374 = vadd.f32 %v9054, %v9302
      %v9375 = vadd.f32 %v9055, %v9304
      %v9376 = vadd.f32 %v9056, %v9306
      %v9377 = vadd.f32 %v9057, %v9308
      %v9378 = vadd.f32 %v9058, %v9312
      %v9379 = vadd.f32 %v9059, %v9314
      %v9380 = vadd.f32 %v9060, %v9316
      %v9381 = vadd.f32 %v9061, %v9318
      %v9382 = vadd.f32 %v9062, %v9322
      %v9383 = vadd.f32 %v9063, %v9324
      %v9384 = vadd.f32 %v9064, %v9326
      %v9385 = vadd.f32 %v9065, %v9328
      %v9386 = vadd.f32 %v9066, %v9332
      %v9387 = vadd.f32 %v9067, %v9334
      %v9388 = vadd.f32 %v9068, %v9336
      %v9389 = vadd.f32 %v9069, %v9338
      %v9390 = vadd.f32 %v9070, %v9342
      %v9391 = vadd.f32 %v9071, %v9344
      %v9392 = vadd.f32 %v9072, %v9346
      %v9393 = vadd.f32 %v9073, %v9348
      %v9394 = vadd.f32 %v9074, %v9352
      %v9395 = vadd.f32 %v9075, %v9354
      %v9396 = vadd.f32 %v9076, %v9356
      %v9397 = vadd.f32 %v9077, %v9358
      %v9398 = vadd.f32 %v9078, %v9362
      %v9399 = vadd.f32 %v9079, %v9364
      %v9400 = vadd.f32 %v9080, %v9366
      %v9401 = vadd.f32 %v9081, %v9368
      %9402 = vst [vmem:[#allocation3] sm:$0xff] %v9370
      %9403 = vst.msk [vmem:[#allocation3 + $0x8] sm:$0xff] %vm7383, %v9371
      %9404 = vst [vmem:[#allocation3 + $0x10] sm:$0xff] %v9372
      %9405 = vst.msk [vmem:[#allocation3 + $0x18] sm:$0xff] %vm7383, %v9373
      %9406 = vst [vmem:[#allocation3 + $0x20] sm:$0xff] %v9374
      %9407 = vst.msk [vmem:[#allocation3 + $0x28] sm:$0xff] %vm7383, %v9375
      %9408 = vst [vmem:[#allocation3 + $0x30] sm:$0xff] %v9376
      %9409 = vst.msk [vmem:[#allocation3 + $0x38] sm:$0xff] %vm7383, %v9377
      %9410 = vst [vmem:[#allocation3 + $0x40] sm:$0xff] %v9378
      %9411 = vst.msk [vmem:[#allocation3 + $0x48] sm:$0xff] %vm7383, %v9379
      %9412 = vst [vmem:[#allocation3 + $0x50] sm:$0xff] %v9380
      %9413 = vst.msk [vmem:[#allocation3 + $0x58] sm:$0xff] %vm7383, %v9381
      %9414 = vst [vmem:[#allocation3 + $0x60] sm:$0xff] %v9382
      %9415 = vst.msk [vmem:[#allocation3 + $0x68] sm:$0xff] %vm7383, %v9383
      %9416 = vst [vmem:[#allocation3 + $0x70] sm:$0xff] %v9384
      %9417 = vst.msk [vmem:[#allocation3 + $0x78] sm:$0xff] %vm7383, %v9385
      %9418 = vst [vmem:[#allocation3 + $0x80] sm:$0xff] %v9386
      %9419 = vst.msk [vmem:[#allocation3 + $0x88] sm:$0xff] %vm7383, %v9387
      %9420 = vst [vmem:[#allocation3 + $0x90] sm:$0xff] %v9388
      %9421 = vst.msk [vmem:[#allocation3 + $0x98] sm:$0xff] %vm7383, %v9389
      %9422 = vst [vmem:[#allocation3 + $0xa0] sm:$0xff] %v9390
      %9423 = vst.msk [vmem:[#allocation3 + $0xa8] sm:$0xff] %vm7383, %v9391
      %9424 = vst [vmem:[#allocation3 + $0xb0] sm:$0xff] %v9392
      %9425 = vst.msk [vmem:[#allocation3 + $0xb8] sm:$0xff] %vm7383, %v9393
      %9426 = vst [vmem:[#allocation3 + $0xc0] sm:$0xff] %v9394
      %9427 = vst.msk [vmem:[#allocation3 + $0xc8] sm:$0xff] %vm7383, %v9395
      %9428 = vst [vmem:[#allocation3 + $0xd0] sm:$0xff] %v9396
      %9429 = vst.msk [vmem:[#allocation3 + $0xd8] sm:$0xff] %vm7383, %v9397
      %9430 = vst [vmem:[#allocation3 + $0xe0] sm:$0xff] %v9398
      %9431 = vst.msk [vmem:[#allocation3 + $0xe8] sm:$0xff] %vm7383, %v9399
      %9432 = vst [vmem:[#allocation3 + $0xf0] sm:$0xf] %v9400
      %9433 = vst.msk [vmem:[#allocation3 + $0xf8] sm:$0xf] %vm7414, %v9401
      %v9434 = vld [vmem:[#allocation3] sm:$0xff]
      %v9435 = vld [vmem:[#allocation3 + $0x8] sm:$0xff]
      %v9436 = vld [vmem:[#allocation3 + $0x10] sm:$0xff]
      %v9437 = vld [vmem:[#allocation3 + $0x18] sm:$0xff]
      %v9438 = vld [vmem:[#allocation3 + $0x20] sm:$0xff]
      %v9439 = vld [vmem:[#allocation3 + $0x28] sm:$0xff]
      %v9440 = vld [vmem:[#allocation3 + $0x30] sm:$0xff]
      %v9441 = vld [vmem:[#allocation3 + $0x38] sm:$0xff]
      %v9442 = vld [vmem:[#allocation3 + $0x40] sm:$0xff]
      %v9443 = vld [vmem:[#allocation3 + $0x48] sm:$0xff]
      %v9444 = vld [vmem:[#allocation3 + $0x50] sm:$0xff]
      %v9445 = vld [vmem:[#allocation3 + $0x58] sm:$0xff]
      %v9446 = vld [vmem:[#allocation3 + $0x60] sm:$0xff]
      %v9447 = vld [vmem:[#allocation3 + $0x68] sm:$0xff]
      %v9448 = vld [vmem:[#allocation3 + $0x70] sm:$0xff]
      %v9449 = vld [vmem:[#allocation3 + $0x78] sm:$0xff]
      %v9450 = vld [vmem:[#allocation3 + $0x80] sm:$0xff]
      %v9451 = vld [vmem:[#allocation3 + $0x88] sm:$0xff]
      %v9452 = vld [vmem:[#allocation3 + $0x90] sm:$0xff]
      %v9453 = vld [vmem:[#allocation3 + $0x98] sm:$0xff]
      %v9454 = vld [vmem:[#allocation3 + $0xa0] sm:$0xff]
      %v9455 = vld [vmem:[#allocation3 + $0xa8] sm:$0xff]
      %v9456 = vld [vmem:[#allocation3 + $0xb0] sm:$0xff]
      %v9457 = vld [vmem:[#allocation3 + $0xb8] sm:$0xff]
      %v9458 = vld [vmem:[#allocation3 + $0xc0] sm:$0xff]
      %v9459 = vld [vmem:[#allocation3 + $0xc8] sm:$0xff]
      %v9460 = vld [vmem:[#allocation3 + $0xd0] sm:$0xff]
      %v9461 = vld [vmem:[#allocation3 + $0xd8] sm:$0xff]
      %v9462 = vld [vmem:[#allocation3 + $0xe0] sm:$0xff]
      %v9463 = vld [vmem:[#allocation3 + $0xe8] sm:$0xff]
      %v9464 = vld [vmem:[#allocation3 + $0xf0] sm:$0xf]
      %v9465 = vld [vmem:[#allocation3 + $0xf8] sm:$0xf]
      %v9466 = vpack.c.bf16 %v9436, %v9434
      %v9467 = vpack.c.bf16 %v9437, %v9435
      %v9468 = vpack.c.bf16 %v9440, %v9438
      %v9469 = vpack.c.bf16 %v9441, %v9439
      %v9470 = vpack.c.bf16 %v9444, %v9442
      %v9471 = vpack.c.bf16 %v9445, %v9443
      %v9472 = vpack.c.bf16 %v9448, %v9446
      %v9473 = vpack.c.bf16 %v9449, %v9447
      %v9474 = vpack.c.bf16 %v9452, %v9450
      %v9475 = vpack.c.bf16 %v9453, %v9451
      %v9476 = vpack.c.bf16 %v9456, %v9454
      %v9477 = vpack.c.bf16 %v9457, %v9455
      %v9478 = vpack.c.bf16 %v9460, %v9458
      %v9479 = vpack.c.bf16 %v9461, %v9459
      %v9480 = vpack.c.bf16 %v9464, %v9462
      %v9481 = vpack.c.bf16 %v9465, %v9463
      %v9482 = vld [vmem:[%s7] sm:$0xf]
      %v9483 = vld [vmem:[%s7 + $0x4] sm:$0xf]
      %v9484 = vld [vmem:[%s7 + $0x8] sm:$0xf]
      %v9485 = vld [vmem:[%s7 + $0xc] sm:$0xf]
      %v9486 = vld [vmem:[%s7 + $0x10] sm:$0xf]
      %v9492 = vunpack.c.l.b16 %v9482
      %v9493 = vunpack.c.l.b16 %v9483
      %v9494 = vunpack.c.l.b16 %v9484
      %v9495 = vunpack.c.l.b16 %v9485
      %v9496 = vunpack.c.l.b16 %v9486
      %v9497 = vpack.c.b16 %v9493, %v9492
      %v9498 = vpack.c.b16 %v9495, %v9494
      %v9499 = vpack.c.b16 %v9496, %v9496
      %v9501 = vsel %vm5740, %v9497, 0
      %v9504 = vsel %vm5740, %v9498, 0
      %v9507 = vsel %vm5740, %v9499, 0
      %v9510 = vsel %vm5765, %v9480, 0
      %v9513 = vsel %vm5765, %v9481, 0
      %9515 = vmatprep.subr.bf16.mxu0 %v9467
      %9516 = vmatpush1.bf16.msra.mxu0 %v9466
      %9517 = vmatprep.subr.bf16.mxu0 %v9469
      %9518 = vmatpush1.bf16.msra.mxu0 %v9468
      %9519 = vmatprep.subr.bf16.mxu0 %v9471
      %9520 = vmatpush1.bf16.msra.mxu0 %v9470
      %9521 = vmatprep.subr.bf16.mxu0 %v9473
      %9522 = vmatpush1.bf16.msra.mxu0 %v9472
      %9523 = vmatprep.subr.bf16.mxu0 %v9475
      %9524 = vmatpush1.bf16.msra.mxu0 %v9474
      %9525 = vmatprep.subr.bf16.mxu0 %v9477
      %9526 = vmatpush1.bf16.msra.mxu0 %v9476
      %9527 = vmatprep.subr.bf16.mxu0 %v9479
      %9528 = vmatpush1.bf16.msra.mxu0 %v9478
      %9529 = vmatprep.subr.bf16.mxu0 %v9513
      %9530 = vmatpush1.bf16.msra.mxu0 %v9510
      %9531 = vmatprep.subr.bf16.mxu0 0
      %9532 = vmatpush1.bf16.msra.mxu0 0
      %9533 = vmatprep.subr.bf16.mxu0 0
      %9534 = vmatpush1.bf16.msra.mxu0 0
      %9535 = vmatprep.subr.bf16.mxu0 0
      %9536 = vmatpush1.bf16.msra.mxu0 0
      %9537 = vmatprep.subr.bf16.mxu0 0
      %9538 = vmatpush1.bf16.msra.mxu0 0
      %9539 = vmatprep.subr.bf16.mxu0 0
      %9540 = vmatpush1.bf16.msra.mxu0 0
      %9541 = vmatprep.subr.bf16.mxu0 0
      %9542 = vmatpush1.bf16.msra.mxu0 0
      %9543 = vmatprep.subr.bf16.mxu0 0
      %9544 = vmatpush1.bf16.msra.mxu0 0
      %9545 = vmatprep.subr.bf16.mxu0 0
      %9546 = vmatpush1.bf16.msra.mxu0 0
      %9547 = vmatprep.mubr.bf16.mxu0 0
      %9548 = vmatmul.mubr.bf16.gmra.mrb[0].mxu0 %v9501
      %v9549 = vpop.f32.mrb[0].mxu0
      %v9550 = vadd.f32 0.0, %v9549
      %v9551 = vpop.f32.mrb[0].mxu0
      %v9552 = vadd.f32 0.0, %v9551
      %v9553 = vpop.f32.mrb[0].mxu0
      %v9554 = vadd.f32 0.0, %v9553
      %v9555 = vpop.f32.mrb[0].mxu0
      %v9556 = vadd.f32 0.0, %v9555
      %9557 = vmatprep.mubr.bf16.mxu0 0
      %9558 = vmatmul.mubr.bf16.gmra.mrb[0].mxu0 %v9504
      %v9559 = vpop.f32.mrb[0].mxu0
      %v9560 = vadd.f32 0.0, %v9559
      %v9561 = vpop.f32.mrb[0].mxu0
      %v9562 = vadd.f32 0.0, %v9561
      %v9563 = vpop.f32.mrb[0].mxu0
      %v9564 = vadd.f32 0.0, %v9563
      %v9565 = vpop.f32.mrb[0].mxu0
      %v9566 = vadd.f32 0.0, %v9565
      %9567 = vmatprep.mubr.bf16.mxu0 0
      %9568 = vmatmul.mubr.bf16.gmra.mrb[0].mxu0 %v9507
      %v9569 = vpop.f32.mrb[0].mxu0
      %v9570 = vadd.f32 0.0, %v9569
      %v9571 = vpop.f32.mrb[0].mxu0
      %v9572 = vadd.f32 0.0, %v9571
      %v9573 = vpop.f32.mrb[0].mxu0
      %v9574 = vpop.f32.mrb[0].mxu0
      %9575 = vdwg.mxu0
      %s9576 = scalar_lea.vmem %s7, 20
      %v9577 = vld [vmem:[%s9576] sm:$0xf]
      %v9578 = vld [vmem:[%s9576 + $0x4] sm:$0xf]
      %v9579 = vld [vmem:[%s9576 + $0x8] sm:$0xf]
      %v9580 = vld [vmem:[%s9576 + $0xc] sm:$0xf]
      %v9581 = vld [vmem:[%s9576 + $0x10] sm:$0xf]
      %v9587 = vunpack.c.l.b16 %v9577
      %v9588 = vunpack.c.l.b16 %v9578
      %v9589 = vunpack.c.l.b16 %v9579
      %v9590 = vunpack.c.l.b16 %v9580
      %v9591 = vunpack.c.l.b16 %v9581
      %v9592 = vpack.c.b16 %v9588, %v9587
      %v9593 = vpack.c.b16 %v9590, %v9589
      %v9594 = vpack.c.b16 %v9591, %v9591
      %v9596 = vsel %vm5740, %v9592, 0
      %v9599 = vsel %vm5740, %v9593, 0
      %v9602 = vsel %vm5740, %v9594, 0
      %9604 = vmatprep.subr.bf16.mxu0 %v9467
      %9605 = vmatpush1.bf16.msra.mxu0 %v9466
      %9606 = vmatprep.subr.bf16.mxu0 %v9469
      %9607 = vmatpush1.bf16.msra.mxu0 %v9468
      %9608 = vmatprep.subr.bf16.mxu0 %v9471
      %9609 = vmatpush1.bf16.msra.mxu0 %v9470
      %9610 = vmatprep.subr.bf16.mxu0 %v9473
      %9611 = vmatpush1.bf16.msra.mxu0 %v9472
      %9612 = vmatprep.subr.bf16.mxu0 %v9475
      %9613 = vmatpush1.bf16.msra.mxu0 %v9474
      %9614 = vmatprep.subr.bf16.mxu0 %v9477
      %9615 = vmatpush1.bf16.msra.mxu0 %v9476
      %9616 = vmatprep.subr.bf16.mxu0 %v9479
      %9617 = vmatpush1.bf16.msra.mxu0 %v9478
      %9618 = vmatprep.subr.bf16.mxu0 %v9513
      %9619 = vmatpush1.bf16.msra.mxu0 %v9510
      %9620 = vmatprep.subr.bf16.mxu0 0
      %9621 = vmatpush1.bf16.msra.mxu0 0
      %9622 = vmatprep.subr.bf16.mxu0 0
      %9623 = vmatpush1.bf16.msra.mxu0 0
      %9624 = vmatprep.subr.bf16.mxu0 0
      %9625 = vmatpush1.bf16.msra.mxu0 0
      %9626 = vmatprep.subr.bf16.mxu0 0
      %9627 = vmatpush1.bf16.msra.mxu0 0
      %9628 = vmatprep.subr.bf16.mxu0 0
      %9629 = vmatpush1.bf16.msra.mxu0 0
      %9630 = vmatprep.subr.bf16.mxu0 0
      %9631 = vmatpush1.bf16.msra.mxu0 0
      %9632 = vmatprep.subr.bf16.mxu0 0
      %9633 = vmatpush1.bf16.msra.mxu0 0
      %9634 = vmatprep.subr.bf16.mxu0 0
      %9635 = vmatpush1.bf16.msra.mxu0 0
      %9636 = vmatprep.mubr.bf16.mxu0 0
      %9637 = vmatmul.mubr.bf16.gmra.mrb[0].mxu0 %v9596
      %v9638 = vpop.f32.mrb[0].mxu0
      %v9639 = vadd.f32 0.0, %v9638
      %v9640 = vpop.f32.mrb[0].mxu0
      %v9641 = vadd.f32 0.0, %v9640
      %v9642 = vpop.f32.mrb[0].mxu0
      %v9643 = vadd.f32 0.0, %v9642
      %v9644 = vpop.f32.mrb[0].mxu0
      %v9645 = vadd.f32 0.0, %v9644
      %9646 = vmatprep.mubr.bf16.mxu0 0
      %9647 = vmatmul.mubr.bf16.gmra.mrb[0].mxu0 %v9599
      %v9648 = vpop.f32.mrb[0].mxu0
      %v9649 = vadd.f32 0.0, %v9648
      %v9650 = vpop.f32.mrb[0].mxu0
      %v9651 = vadd.f32 0.0, %v9650
      %v9652 = vpop.f32.mrb[0].mxu0
      %v9653 = vadd.f32 0.0, %v9652
      %v9654 = vpop.f32.mrb[0].mxu0
      %v9655 = vadd.f32 0.0, %v9654
      %9656 = vmatprep.mubr.bf16.mxu0 0
      %9657 = vmatmul.mubr.bf16.gmra.mrb[0].mxu0 %v9602
      %v9658 = vpop.f32.mrb[0].mxu0
      %v9659 = vadd.f32 0.0, %v9658
      %v9660 = vpop.f32.mrb[0].mxu0
      %v9661 = vadd.f32 0.0, %v9660
      %v9662 = vpop.f32.mrb[0].mxu0
      %v9663 = vpop.f32.mrb[0].mxu0
      %9664 = vdwg.mxu0
      %v9665 = vmax.f32 %v9550, %v9639
      %v9666 = vmax.f32 %v9552, %v9641
      %v9667 = vmax.f32 %v9554, %v9643
      %v9668 = vmax.f32 %v9556, %v9645
      %v9669 = vmax.f32 %v9560, %v9649
      %v9670 = vmax.f32 %v9562, %v9651
      %v9671 = vmax.f32 %v9564, %v9653
      %v9672 = vmax.f32 %v9566, %v9655
      %v9673 = vmax.f32 %v9570, %v9659
      %v9674 = vmax.f32 %v9572, %v9661
      %v9675 = vpack.c.bf16 %v9667, %v9665
      %v9676 = vpack.c.bf16 %v9668, %v9666
      %v9677 = vpack.c.bf16 %v9671, %v9669
      %v9678 = vpack.c.bf16 %v9672, %v9670
      %v9679 = vpack.c.bf16 %v9673, %v9673
      %v9680 = vpack.c.bf16 %v9674, %v9674
      %v9681 = vld [vmem:[%s8] sm:$0xf]
      %v9682 = vld [vmem:[%s8 + $0x4] sm:$0xf]
      %v9683 = vld [vmem:[%s8 + $0x8] sm:$0xf]
      %v9684 = vld [vmem:[%s8 + $0xc] sm:$0xf]
      %v9685 = vld [vmem:[%s8 + $0x10] sm:$0xf]
      %v9686 = vld [vmem:[%s8 + $0x14] sm:$0xf]
      %v9687 = vld [vmem:[%s8 + $0x18] sm:$0xf]
      %v9688 = vld [vmem:[%s8 + $0x1c] sm:$0xf]
      %v9689 = vld [vmem:[%s8 + $0x20] sm:$0xf]
      %v9690 = vld [vmem:[%s8 + $0x24] sm:$0xf]
      %v9691 = vld [vmem:[%s8 + $0x28] sm:$0xf]
      %v9692 = vld [vmem:[%s8 + $0x2c] sm:$0xf]
      %v9693 = vld [vmem:[%s8 + $0x30] sm:$0xf]
      %v9694 = vld [vmem:[%s8 + $0x34] sm:$0xf]
      %v9695 = vld [vmem:[%s8 + $0x38] sm:$0xf]
      %v9696 = vld [vmem:[%s8 + $0x3c] sm:$0xf]
      %v9697 = vld [vmem:[%s8 + $0x40] sm:$0xf]
      %v9698 = vld [vmem:[%s8 + $0x44] sm:$0xf]
      %v9699 = vld [vmem:[%s8 + $0x48] sm:$0xf]
      %v9700 = vld [vmem:[%s8 + $0x4c] sm:$0xf]
      %v9701 = vld [vmem:[%s8 + $0x50] sm:$0xf]
      %v9702 = vld [vmem:[%s8 + $0x54] sm:$0xf]
      %v9703 = vld [vmem:[%s8 + $0x58] sm:$0xf]
      %v9704 = vld [vmem:[%s8 + $0x5c] sm:$0xf]
      %v9705 = vld [vmem:[%s8 + $0x60] sm:$0xf]
      %v9731 = vunpack.c.l.b16 %v9681
      %v9732 = vunpack.c.l.b16 %v9682
      %v9733 = vunpack.c.l.b16 %v9683
      %v9734 = vunpack.c.l.b16 %v9684
      %v9735 = vunpack.c.l.b16 %v9685
      %v9736 = vunpack.c.l.b16 %v9686
      %v9737 = vunpack.c.l.b16 %v9687
      %v9738 = vunpack.c.l.b16 %v9688
      %v9739 = vunpack.c.l.b16 %v9689
      %v9740 = vunpack.c.l.b16 %v9690
      %v9741 = vunpack.c.l.b16 %v9691
      %v9742 = vunpack.c.l.b16 %v9692
      %v9743 = vunpack.c.l.b16 %v9693
      %v9744 = vunpack.c.l.b16 %v9694
      %v9745 = vunpack.c.l.b16 %v9695
      %v9746 = vunpack.c.l.b16 %v9696
      %v9747 = vunpack.c.l.b16 %v9697
      %v9748 = vunpack.c.l.b16 %v9698
      %v9749 = vunpack.c.l.b16 %v9699
      %v9750 = vunpack.c.l.b16 %v9700
      %v9751 = vunpack.c.l.b16 %v9701
      %v9752 = vunpack.c.l.b16 %v9702
      %v9753 = vunpack.c.l.b16 %v9703
      %v9754 = vunpack.c.l.b16 %v9704
      %v9755 = vunpack.c.l.b16 %v9705
      %v9756 = vpack.c.b16 %v9732, %v9731
      %v9757 = vpack.c.b16 %v9734, %v9733
      %v9758 = vpack.c.b16 %v9736, %v9735
      %v9759 = vpack.c.b16 %v9738, %v9737
      %v9760 = vpack.c.b16 %v9740, %v9739
      %v9761 = vpack.c.b16 %v9742, %v9741
      %v9762 = vpack.c.b16 %v9744, %v9743
      %v9763 = vpack.c.b16 %v9746, %v9745
      %v9764 = vpack.c.b16 %v9748, %v9747
      %v9765 = vpack.c.b16 %v9750, %v9749
      %v9766 = vpack.c.b16 %v9752, %v9751
      %v9767 = vpack.c.b16 %v9754, %v9753
      %v9768 = vpack.c.b16 %v9755, %v9755
      %v9782 = vsel %vm7383, %v9676, 0
      %v9785 = vsel %vm7383, %v9678, 0
      %v9788 = vsel %vm7383, %v9680, 0
      %v9791 = vsel %vm6614, %v9768, 0
      %9793 = vmatprep.subr.bf16.mxu0 0
      %9794 = vmatpush1.bf16.msra.mxu0 %v9756
      %9795 = vmatprep.subr.bf16.mxu0 0
      %9796 = vmatpush1.bf16.msra.mxu0 %v9757
      %9797 = vmatprep.subr.bf16.mxu0 0
      %9798 = vmatpush1.bf16.msra.mxu0 %v9758
      %9799 = vmatprep.subr.bf16.mxu0 0
      %9800 = vmatpush1.bf16.msra.mxu0 %v9759
      %9801 = vmatprep.subr.bf16.mxu0 0
      %9802 = vmatpush1.bf16.msra.mxu0 %v9760
      %9803 = vmatprep.subr.bf16.mxu0 0
      %9804 = vmatpush1.bf16.msra.mxu0 %v9761
      %9805 = vmatprep.subr.bf16.mxu0 0
      %9806 = vmatpush1.bf16.msra.mxu0 %v9762
      %9807 = vmatprep.subr.bf16.mxu0 0
      %9808 = vmatpush1.bf16.msra.mxu0 %v9763
      %9809 = vmatprep.subr.bf16.mxu0 0
      %9810 = vmatpush1.bf16.msra.mxu0 %v9764
      %9811 = vmatprep.subr.bf16.mxu0 0
      %9812 = vmatpush1.bf16.msra.mxu0 %v9765
      %9813 = vmatprep.subr.bf16.mxu0 0
      %9814 = vmatpush1.bf16.msra.mxu0 %v9766
      %9815 = vmatprep.subr.bf16.mxu0 0
      %9816 = vmatpush1.bf16.msra.mxu0 %v9767
      %9817 = vmatprep.subr.bf16.mxu0 0
      %9818 = vmatpush1.bf16.msra.mxu0 %v9791
      %9819 = vmatprep.subr.bf16.mxu0 0
      %9820 = vmatpush1.bf16.msra.mxu0 0
      %9821 = vmatprep.subr.bf16.mxu0 0
      %9822 = vmatpush1.bf16.msra.mxu0 0
      %9823 = vmatprep.subr.bf16.mxu0 0
      %9824 = vmatpush1.bf16.msra.mxu0 0
      %9825 = vmatprep.mubr.bf16.mxu0 %v9782
      %9826 = vmatmul.mubr.bf16.gmra.mrb[0].mxu0 %v9675
      %v9827 = vpop.f32.mrb[0].mxu0
      %v9828 = vadd.f32 0.0, %v9827
      %v9829 = vpop.f32.mrb[0].mxu0
      %v9830 = vpop.f32.mrb[0].mxu0
      %v9831 = vadd.f32 0.0, %v9830
      %v9832 = vpop.f32.mrb[0].mxu0
      %9833 = vmatprep.mubr.bf16.mxu0 %v9785
      %9834 = vmatmul.mubr.bf16.gmra.mrb[0].mxu0 %v9677
      %v9835 = vpop.f32.mrb[0].mxu0
      %v9836 = vadd.f32 0.0, %v9835
      %v9837 = vpop.f32.mrb[0].mxu0
      %v9838 = vpop.f32.mrb[0].mxu0
      %v9839 = vadd.f32 0.0, %v9838
      %v9840 = vpop.f32.mrb[0].mxu0
      %9841 = vmatprep.mubr.bf16.mxu0 %v9788
      %9842 = vmatmul.mubr.bf16.gmra.mrb[0].mxu0 %v9679
      %v9843 = vpop.f32.mrb[0].mxu0
      %v9844 = vadd.f32 0.0, %v9843
      %v9845 = vpop.f32.mrb[0].mxu0
      %v9846 = vpop.f32.mrb[0].mxu0
      %v9847 = vpop.f32.mrb[0].mxu0
      %9848 = vdwg.mxu0
      %s9849 = scalar_lea.vmem %s8, 100
      %v9850 = vld [vmem:[%s9849] sm:$0xf]
      %v9851 = vld [vmem:[%s9849 + $0x4] sm:$0xf]
      %v9852 = vld [vmem:[%s9849 + $0x8] sm:$0xf]
      %v9853 = vld [vmem:[%s9849 + $0xc] sm:$0xf]
      %v9854 = vld [vmem:[%s9849 + $0x10] sm:$0xf]
      %v9855 = vld [vmem:[%s9849 + $0x14] sm:$0xf]
      %v9856 = vld [vmem:[%s9849 + $0x18] sm:$0xf]
      %v9857 = vld [vmem:[%s9849 + $0x1c] sm:$0xf]
      %v9858 = vld [vmem:[%s9849 + $0x20] sm:$0xf]
      %v9859 = vld [vmem:[%s9849 + $0x24] sm:$0xf]
      %v9860 = vld [vmem:[%s9849 + $0x28] sm:$0xf]
      %v9861 = vld [vmem:[%s9849 + $0x2c] sm:$0xf]
      %v9862 = vld [vmem:[%s9849 + $0x30] sm:$0xf]
      %v9863 = vld [vmem:[%s9849 + $0x34] sm:$0xf]
      %v9864 = vld [vmem:[%s9849 + $0x38] sm:$0xf]
      %v9865 = vld [vmem:[%s9849 + $0x3c] sm:$0xf]
      %v9866 = vld [vmem:[%s9849 + $0x40] sm:$0xf]
      %v9867 = vld [vmem:[%s9849 + $0x44] sm:$0xf]
      %v9868 = vld [vmem:[%s9849 + $0x48] sm:$0xf]
      %v9869 = vld [vmem:[%s9849 + $0x4c] sm:$0xf]
      %v9870 = vld [vmem:[%s9849 + $0x50] sm:$0xf]
      %v9871 = vld [vmem:[%s9849 + $0x54] sm:$0xf]
      %v9872 = vld [vmem:[%s9849 + $0x58] sm:$0xf]
      %v9873 = vld [vmem:[%s9849 + $0x5c] sm:$0xf]
      %v9874 = vld [vmem:[%s9849 + $0x60] sm:$0xf]
      %v9900 = vunpack.c.l.b16 %v9850
      %v9901 = vunpack.c.l.b16 %v9851
      %v9902 = vunpack.c.l.b16 %v9852
      %v9903 = vunpack.c.l.b16 %v9853
      %v9904 = vunpack.c.l.b16 %v9854
      %v9905 = vunpack.c.l.b16 %v9855
      %v9906 = vunpack.c.l.b16 %v9856
      %v9907 = vunpack.c.l.b16 %v9857
      %v9908 = vunpack.c.l.b16 %v9858
      %v9909 = vunpack.c.l.b16 %v9859
      %v9910 = vunpack.c.l.b16 %v9860
      %v9911 = vunpack.c.l.b16 %v9861
      %v9912 = vunpack.c.l.b16 %v9862
      %v9913 = vunpack.c.l.b16 %v9863
      %v9914 = vunpack.c.l.b16 %v9864
      %v9915 = vunpack.c.l.b16 %v9865
      %v9916 = vunpack.c.l.b16 %v9866
      %v9917 = vunpack.c.l.b16 %v9867
      %v9918 = vunpack.c.l.b16 %v9868
      %v9919 = vunpack.c.l.b16 %v9869
      %v9920 = vunpack.c.l.b16 %v9870
      %v9921 = vunpack.c.l.b16 %v9871
      %v9922 = vunpack.c.l.b16 %v9872
      %v9923 = vunpack.c.l.b16 %v9873
      %v9924 = vunpack.c.l.b16 %v9874
      %v9925 = vpack.c.b16 %v9901, %v9900
      %v9926 = vpack.c.b16 %v9903, %v9902
      %v9927 = vpack.c.b16 %v9905, %v9904
      %v9928 = vpack.c.b16 %v9907, %v9906
      %v9929 = vpack.c.b16 %v9909, %v9908
      %v9930 = vpack.c.b16 %v9911, %v9910
      %v9931 = vpack.c.b16 %v9913, %v9912
      %v9932 = vpack.c.b16 %v9915, %v9914
      %v9933 = vpack.c.b16 %v9917, %v9916
      %v9934 = vpack.c.b16 %v9919, %v9918
      %v9935 = vpack.c.b16 %v9921, %v9920
      %v9936 = vpack.c.b16 %v9923, %v9922
      %v9937 = vpack.c.b16 %v9924, %v9924
      %v9951 = vsel %vm6614, %v9937, 0
      %9953 = vmatprep.subr.bf16.mxu0 0
      %9954 = vmatpush1.bf16.msra.mxu0 %v9925
      %9955 = vmatprep.subr.bf16.mxu0 0
      %9956 = vmatpush1.bf16.msra.mxu0 %v9926
      %9957 = vmatprep.subr.bf16.mxu0 0
      %9958 = vmatpush1.bf16.msra.mxu0 %v9927
      %9959 = vmatprep.subr.bf16.mxu0 0
      %9960 = vmatpush1.bf16.msra.mxu0 %v9928
      %9961 = vmatprep.subr.bf16.mxu0 0
      %9962 = vmatpush1.bf16.msra.mxu0 %v9929
      %9963 = vmatprep.subr.bf16.mxu0 0
      %9964 = vmatpush1.bf16.msra.mxu0 %v9930
      %9965 = vmatprep.subr.bf16.mxu0 0
      %9966 = vmatpush1.bf16.msra.mxu0 %v9931
      %9967 = vmatprep.subr.bf16.mxu0 0
      %9968 = vmatpush1.bf16.msra.mxu0 %v9932
      %9969 = vmatprep.subr.bf16.mxu0 0
      %9970 = vmatpush1.bf16.msra.mxu0 %v9933
      %9971 = vmatprep.subr.bf16.mxu0 0
      %9972 = vmatpush1.bf16.msra.mxu0 %v9934
      %9973 = vmatprep.subr.bf16.mxu0 0
      %9974 = vmatpush1.bf16.msra.mxu0 %v9935
      %9975 = vmatprep.subr.bf16.mxu0 0
      %9976 = vmatpush1.bf16.msra.mxu0 %v9936
      %9977 = vmatprep.subr.bf16.mxu0 0
      %9978 = vmatpush1.bf16.msra.mxu0 %v9951
      %9979 = vmatprep.subr.bf16.mxu0 0
      %9980 = vmatpush1.bf16.msra.mxu0 0
      %9981 = vmatprep.subr.bf16.mxu0 0
      %9982 = vmatpush1.bf16.msra.mxu0 0
      %9983 = vmatprep.subr.bf16.mxu0 0
      %9984 = vmatpush1.bf16.msra.mxu0 0
      %9985 = vmatprep.mubr.bf16.mxu0 %v9782
      %9986 = vmatmul.mubr.bf16.gmra.mrb[0].mxu0 %v9675
      %v9987 = vpop.f32.mrb[0].mxu0
      %v9988 = vadd.f32 0.0, %v9987
      %v9989 = vpop.f32.mrb[0].mxu0
      %v9990 = vpop.f32.mrb[0].mxu0
      %v9991 = vadd.f32 0.0, %v9990
      %v9992 = vpop.f32.mrb[0].mxu0
      %9993 = vmatprep.mubr.bf16.mxu0 %v9785
      %9994 = vmatmul.mubr.bf16.gmra.mrb[0].mxu0 %v9677
      %v9995 = vpop.f32.mrb[0].mxu0
      %v9996 = vadd.f32 0.0, %v9995
      %v9997 = vpop.f32.mrb[0].mxu0
      %v9998 = vpop.f32.mrb[0].mxu0
      %v9999 = vadd.f32 0.0, %v9998
      %v10000 = vpop.f32.mrb[0].mxu0
      %10001 = vmatprep.mubr.bf16.mxu0 %v9788
      %10002 = vmatmul.mubr.bf16.gmra.mrb[0].mxu0 %v9679
      %v10003 = vpop.f32.mrb[0].mxu0
      %v10004 = vadd.f32 0.0, %v10003
      %v10005 = vpop.f32.mrb[0].mxu0
      %v10006 = vpop.f32.mrb[0].mxu0
      %v10007 = vpop.f32.mrb[0].mxu0
      %10008 = vdwg.mxu0
      %v10009 = vmax.f32 %v9828, %v9988
      %v10010 = vmax.f32 %v9831, %v9991
      %v10011 = vmax.f32 %v9836, %v9996
      %v10012 = vmax.f32 %v9839, %v9999
      %v10013 = vmax.f32 %v9844, %v10004
      %v10014 = vmax.f32 %v10009, 0.0
      %v10015 = vmax.f32 %v10010, 0.0
      %v10016 = vmax.f32 %v10011, 0.0
      %v10017 = vmax.f32 %v10012, 0.0
      %v10018 = vmax.f32 %v10013, 0.0
      %v10019 = vld [vmem:[%s10] sm:$0x1]
      %v10021 = vlaneseq
      %v10022 = vshrl.u32 %v10021, 7
      %v10023 = vsub.s32 0, %v10022
      %v10024 = vrot.slane %v10019, %v10023
      %v10026 = vpack.c.bf16 %v10014, %v10014
      %v10027 = vld [vmem:[%s9] sm:$0xf]
      %v10028 = vld [vmem:[%s9 + $0x4] sm:$0xf]
      %v10029 = vld [vmem:[%s9 + $0x8] sm:$0xf]
      %v10030 = vld [vmem:[%s9 + $0xc] sm:$0xf]
      %v10031 = vld [vmem:[%s9 + $0x10] sm:$0xf]
      %v10032 = vld [vmem:[%s9 + $0x14] sm:$0xf]
      %v10033 = vld [vmem:[%s9 + $0x18] sm:$0xf]
      %v10034 = vld [vmem:[%s9 + $0x1c] sm:$0xf]
      %v10035 = vld [vmem:[%s9 + $0x20] sm:$0xf]
      %v10036 = vld [vmem:[%s9 + $0x24] sm:$0xf]
      %v10037 = vld [vmem:[%s9 + $0x28] sm:$0xf]
      %v10038 = vld [vmem:[%s9 + $0x2c] sm:$0xf]
      %v10039 = vld [vmem:[%s9 + $0x30] sm:$0x3]
      %v10053 = vunpack.c.l.b16 %v10027
      %v10054 = vunpack.c.l.b16 %v10028
      %v10055 = vunpack.c.l.b16 %v10029
      %v10056 = vunpack.c.l.b16 %v10030
      %v10057 = vunpack.c.l.b16 %v10031
      %v10058 = vunpack.c.l.b16 %v10032
      %v10059 = vunpack.c.l.b16 %v10033
      %v10060 = vunpack.c.l.b16 %v10034
      %v10061 = vunpack.c.l.b16 %v10035
      %v10062 = vunpack.c.l.b16 %v10036
      %v10063 = vunpack.c.l.b16 %v10037
      %v10064 = vunpack.c.l.b16 %v10038
      %v10065 = vunpack.c.l.b16 %v10039
      %v10066 = vpack.c.b16 %v10054, %v10053
      %v10067 = vpack.c.b16 %v10056, %v10055
      %v10068 = vpack.c.b16 %v10058, %v10057
      %v10069 = vpack.c.b16 %v10060, %v10059
      %v10070 = vpack.c.b16 %v10062, %v10061
      %v10071 = vpack.c.b16 %v10064, %v10063
      %v10072 = vpack.c.b16 %v10065, %v10065
      %vm10079 = vcmask 818176
      %v10081 = vsel %vm10079, %v10026, 0
      %vm10083 = vcmask 1041408
      %v10085 = vsel %vm10083, %v10072, 0
      %10087 = vmatprep.subr.bf16.mxu0 0
      %10088 = vmatpush1.bf16.msra.mxu0 %v10066
      %10089 = vmatprep.subr.bf16.mxu0 0
      %10090 = vmatpush1.bf16.msra.mxu0 %v10067
      %10091 = vmatprep.subr.bf16.mxu0 0
      %10092 = vmatpush1.bf16.msra.mxu0 %v10068
      %10093 = vmatprep.subr.bf16.mxu0 0
      %10094 = vmatpush1.bf16.msra.mxu0 %v10069
      %10095 = vmatprep.subr.bf16.mxu0 0
      %10096 = vmatpush1.bf16.msra.mxu0 %v10070
      %10097 = vmatprep.subr.bf16.mxu0 0
      %10098 = vmatpush1.bf16.msra.mxu0 %v10071
      %10099 = vmatprep.subr.bf16.mxu0 0
      %10100 = vmatpush1.bf16.msra.mxu0 %v10085
      %10101 = vmatprep.subr.bf16.mxu0 0
      %10102 = vmatpush1.bf16.msra.mxu0 0
      %10103 = vmatprep.subr.bf16.mxu0 0
      %10104 = vmatpush1.bf16.msra.mxu0 0
      %10105 = vmatprep.subr.bf16.mxu0 0
      %10106 = vmatpush1.bf16.msra.mxu0 0
      %10107 = vmatprep.subr.bf16.mxu0 0
      %10108 = vmatpush1.bf16.msra.mxu0 0
      %10109 = vmatprep.subr.bf16.mxu0 0
      %10110 = vmatpush1.bf16.msra.mxu0 0
      %10111 = vmatprep.subr.bf16.mxu0 0
      %10112 = vmatpush1.bf16.msra.mxu0 0
      %10113 = vmatprep.subr.bf16.mxu0 0
      %10114 = vmatpush1.bf16.msra.mxu0 0
      %10115 = vmatprep.subr.bf16.mxu0 0
      %10116 = vmatpush1.bf16.msra.mxu0 0
      %10117 = vmatprep.subr.bf16.mxu0 0
      %10118 = vmatpush1.bf16.msra.mxu0 0
      %10119 = vmatprep.mubr.bf16.mxu0 0
      %10120 = vmatmul.mubr.bf16.gmra.mrb[0].mxu0 %v10081
      %v10121 = vpop.f32.mrb[0].mxu0
      %v10122 = vadd.f32 0.0, %v10121
      %v10123 = vpop.f32.mrb[0].mxu0
      %v10124 = vpop.f32.mrb[0].mxu0
      %v10125 = vpop.f32.mrb[0].mxu0
      %10126 = vdwg.mxu0
      %v10127 = vadd.f32 %v10024, %v10122
      %v10128 = vpack.c.bf16 %v10015, %v10015
      %s10129 = scalar_lea.vmem %s9, 52
      %v10130 = vld [vmem:[%s10129] sm:$0xf]
      %v10131 = vld [vmem:[%s10129 + $0x4] sm:$0xf]
      %v10132 = vld [vmem:[%s10129 + $0x8] sm:$0xf]
      %v10133 = vld [vmem:[%s10129 + $0xc] sm:$0xf]
      %v10134 = vld [vmem:[%s10129 + $0x10] sm:$0xf]
      %v10135 = vld [vmem:[%s10129 + $0x14] sm:$0xf]
      %v10136 = vld [vmem:[%s10129 + $0x18] sm:$0xf]
      %v10137 = vld [vmem:[%s10129 + $0x1c] sm:$0xf]
      %v10138 = vld [vmem:[%s10129 + $0x20] sm:$0xf]
      %v10139 = vld [vmem:[%s10129 + $0x24] sm:$0xf]
      %v10140 = vld [vmem:[%s10129 + $0x28] sm:$0xf]
      %v10141 = vld [vmem:[%s10129 + $0x2c] sm:$0xf]
      %v10142 = vld [vmem:[%s10129 + $0x30] sm:$0x3]
      %v10156 = vunpack.c.l.b16 %v10130
      %v10157 = vunpack.c.l.b16 %v10131
      %v10158 = vunpack.c.l.b16 %v10132
      %v10159 = vunpack.c.l.b16 %v10133
      %v10160 = vunpack.c.l.b16 %v10134
      %v10161 = vunpack.c.l.b16 %v10135
      %v10162 = vunpack.c.l.b16 %v10136
      %v10163 = vunpack.c.l.b16 %v10137
      %v10164 = vunpack.c.l.b16 %v10138
      %v10165 = vunpack.c.l.b16 %v10139
      %v10166 = vunpack.c.l.b16 %v10140
      %v10167 = vunpack.c.l.b16 %v10141
      %v10168 = vunpack.c.l.b16 %v10142
      %v10169 = vpack.c.b16 %v10157, %v10156
      %v10170 = vpack.c.b16 %v10159, %v10158
      %v10171 = vpack.c.b16 %v10161, %v10160
      %v10172 = vpack.c.b16 %v10163, %v10162
      %v10173 = vpack.c.b16 %v10165, %v10164
      %v10174 = vpack.c.b16 %v10167, %v10166
      %v10175 = vpack.c.b16 %v10168, %v10168
      %v10183 = vsel %vm10079, %v10128, 0
      %v10186 = vsel %vm10083, %v10175, 0
      %10188 = vmatprep.subr.bf16.mxu0 0
      %10189 = vmatpush1.bf16.msra.mxu0 %v10169
      %10190 = vmatprep.subr.bf16.mxu0 0
      %10191 = vmatpush1.bf16.msra.mxu0 %v10170
      %10192 = vmatprep.subr.bf16.mxu0 0
      %10193 = vmatpush1.bf16.msra.mxu0 %v10171
      %10194 = vmatprep.subr.bf16.mxu0 0
      %10195 = vmatpush1.bf16.msra.mxu0 %v10172
      %10196 = vmatprep.subr.bf16.mxu0 0
      %10197 = vmatpush1.bf16.msra.mxu0 %v10173
      %10198 = vmatprep.subr.bf16.mxu0 0
      %10199 = vmatpush1.bf16.msra.mxu0 %v10174
      %10200 = vmatprep.subr.bf16.mxu0 0
      %10201 = vmatpush1.bf16.msra.mxu0 %v10186
      %10202 = vmatprep.subr.bf16.mxu0 0
      %10203 = vmatpush1.bf16.msra.mxu0 0
      %10204 = vmatprep.subr.bf16.mxu0 0
      %10205 = vmatpush1.bf16.msra.mxu0 0
      %10206 = vmatprep.subr.bf16.mxu0 0
      %10207 = vmatpush1.bf16.msra.mxu0 0
      %10208 = vmatprep.subr.bf16.mxu0 0
      %10209 = vmatpush1.bf16.msra.mxu0 0
      %10210 = vmatprep.subr.bf16.mxu0 0
      %10211 = vmatpush1.bf16.msra.mxu0 0
      %10212 = vmatprep.subr.bf16.mxu0 0
      %10213 = vmatpush1.bf16.msra.mxu0 0
      %10214 = vmatprep.subr.bf16.mxu0 0
      %10215 = vmatpush1.bf16.msra.mxu0 0
      %10216 = vmatprep.subr.bf16.mxu0 0
      %10217 = vmatpush1.bf16.msra.mxu0 0
      %10218 = vmatprep.subr.bf16.mxu0 0
      %10219 = vmatpush1.bf16.msra.mxu0 0
      %10220 = vmatprep.mubr.bf16.mxu0 0
      %10221 = vmatmul.mubr.bf16.gmra.mrb[0].mxu0 %v10183
      %v10222 = vpop.f32.mrb[0].mxu0
      %v10223 = vadd.f32 0.0, %v10222
      %v10224 = vpop.f32.mrb[0].mxu0
      %v10225 = vpop.f32.mrb[0].mxu0
      %v10226 = vpop.f32.mrb[0].mxu0
      %10227 = vdwg.mxu0
      %v10228 = vadd.f32 %v10127, %v10223
      %v10229 = vpack.c.bf16 %v10016, %v10016
      %s10230 = scalar_lea.vmem %s9, 104
      %v10231 = vld [vmem:[%s10230] sm:$0xf]
      %v10232 = vld [vmem:[%s10230 + $0x4] sm:$0xf]
      %v10233 = vld [vmem:[%s10230 + $0x8] sm:$0xf]
      %v10234 = vld [vmem:[%s10230 + $0xc] sm:$0xf]
      %v10235 = vld [vmem:[%s10230 + $0x10] sm:$0xf]
      %v10236 = vld [vmem:[%s10230 + $0x14] sm:$0xf]
      %v10237 = vld [vmem:[%s10230 + $0x18] sm:$0xf]
      %v10238 = vld [vmem:[%s10230 + $0x1c] sm:$0xf]
      %v10239 = vld [vmem:[%s10230 + $0x20] sm:$0xf]
      %v10240 = vld [vmem:[%s10230 + $0x24] sm:$0xf]
      %v10241 = vld [vmem:[%s10230 + $0x28] sm:$0xf]
      %v10242 = vld [vmem:[%s10230 + $0x2c] sm:$0xf]
      %v10243 = vld [vmem:[%s10230 + $0x30] sm:$0x3]
      %v10257 = vunpack.c.l.b16 %v10231
      %v10258 = vunpack.c.l.b16 %v10232
      %v10259 = vunpack.c.l.b16 %v10233
      %v10260 = vunpack.c.l.b16 %v10234
      %v10261 = vunpack.c.l.b16 %v10235
      %v10262 = vunpack.c.l.b16 %v10236
      %v10263 = vunpack.c.l.b16 %v10237
      %v10264 = vunpack.c.l.b16 %v10238
      %v10265 = vunpack.c.l.b16 %v10239
      %v10266 = vunpack.c.l.b16 %v10240
      %v10267 = vunpack.c.l.b16 %v10241
      %v10268 = vunpack.c.l.b16 %v10242
      %v10269 = vunpack.c.l.b16 %v10243
      %v10270 = vpack.c.b16 %v10258, %v10257
      %v10271 = vpack.c.b16 %v10260, %v10259
      %v10272 = vpack.c.b16 %v10262, %v10261
      %v10273 = vpack.c.b16 %v10264, %v10263
      %v10274 = vpack.c.b16 %v10266, %v10265
      %v10275 = vpack.c.b16 %v10268, %v10267
      %v10276 = vpack.c.b16 %v10269, %v10269
      %v10284 = vsel %vm10079, %v10229, 0
      %v10287 = vsel %vm10083, %v10276, 0
      %10289 = vmatprep.subr.bf16.mxu0 0
      %10290 = vmatpush1.bf16.msra.mxu0 %v10270
      %10291 = vmatprep.subr.bf16.mxu0 0
      %10292 = vmatpush1.bf16.msra.mxu0 %v10271
      %10293 = vmatprep.subr.bf16.mxu0 0
      %10294 = vmatpush1.bf16.msra.mxu0 %v10272
      %10295 = vmatprep.subr.bf16.mxu0 0
      %10296 = vmatpush1.bf16.msra.mxu0 %v10273
      %10297 = vmatprep.subr.bf16.mxu0 0
      %10298 = vmatpush1.bf16.msra.mxu0 %v10274
      %10299 = vmatprep.subr.bf16.mxu0 0
      %10300 = vmatpush1.bf16.msra.mxu0 %v10275
      %10301 = vmatprep.subr.bf16.mxu0 0
      %10302 = vmatpush1.bf16.msra.mxu0 %v10287
      %10303 = vmatprep.subr.bf16.mxu0 0
      %10304 = vmatpush1.bf16.msra.mxu0 0
      %10305 = vmatprep.subr.bf16.mxu0 0
      %10306 = vmatpush1.bf16.msra.mxu0 0
      %10307 = vmatprep.subr.bf16.mxu0 0
      %10308 = vmatpush1.bf16.msra.mxu0 0
      %10309 = vmatprep.subr.bf16.mxu0 0
      %10310 = vmatpush1.bf16.msra.mxu0 0
      %10311 = vmatprep.subr.bf16.mxu0 0
      %10312 = vmatpush1.bf16.msra.mxu0 0
      %10313 = vmatprep.subr.bf16.mxu0 0
      %10314 = vmatpush1.bf16.msra.mxu0 0
      %10315 = vmatprep.subr.bf16.mxu0 0
      %10316 = vmatpush1.bf16.msra.mxu0 0
      %10317 = vmatprep.subr.bf16.mxu0 0
      %10318 = vmatpush1.bf16.msra.mxu0 0
      %10319 = vmatprep.subr.bf16.mxu0 0
      %10320 = vmatpush1.bf16.msra.mxu0 0
      %10321 = vmatprep.mubr.bf16.mxu0 0
      %10322 = vmatmul.mubr.bf16.gmra.mrb[0].mxu0 %v10284
      %v10323 = vpop.f32.mrb[0].mxu0
      %v10324 = vadd.f32 0.0, %v10323
      %v10325 = vpop.f32.mrb[0].mxu0
      %v10326 = vpop.f32.mrb[0].mxu0
      %v10327 = vpop.f32.mrb[0].mxu0
      %10328 = vdwg.mxu0
      %v10329 = vadd.f32 %v10228, %v10324
      %v10330 = vpack.c.bf16 %v10017, %v10017
      %s10331 = scalar_lea.vmem %s9, 156
      %v10332 = vld [vmem:[%s10331] sm:$0xf]
      %v10333 = vld [vmem:[%s10331 + $0x4] sm:$0xf]
      %v10334 = vld [vmem:[%s10331 + $0x8] sm:$0xf]
      %v10335 = vld [vmem:[%s10331 + $0xc] sm:$0xf]
      %v10336 = vld [vmem:[%s10331 + $0x10] sm:$0xf]
      %v10337 = vld [vmem:[%s10331 + $0x14] sm:$0xf]
      %v10338 = vld [vmem:[%s10331 + $0x18] sm:$0xf]
      %v10339 = vld [vmem:[%s10331 + $0x1c] sm:$0xf]
      %v10340 = vld [vmem:[%s10331 + $0x20] sm:$0xf]
      %v10341 = vld [vmem:[%s10331 + $0x24] sm:$0xf]
      %v10342 = vld [vmem:[%s10331 + $0x28] sm:$0xf]
      %v10343 = vld [vmem:[%s10331 + $0x2c] sm:$0xf]
      %v10344 = vld [vmem:[%s10331 + $0x30] sm:$0x3]
      %v10358 = vunpack.c.l.b16 %v10332
      %v10359 = vunpack.c.l.b16 %v10333
      %v10360 = vunpack.c.l.b16 %v10334
      %v10361 = vunpack.c.l.b16 %v10335
      %v10362 = vunpack.c.l.b16 %v10336
      %v10363 = vunpack.c.l.b16 %v10337
      %v10364 = vunpack.c.l.b16 %v10338
      %v10365 = vunpack.c.l.b16 %v10339
      %v10366 = vunpack.c.l.b16 %v10340
      %v10367 = vunpack.c.l.b16 %v10341
      %v10368 = vunpack.c.l.b16 %v10342
      %v10369 = vunpack.c.l.b16 %v10343
      %v10370 = vunpack.c.l.b16 %v10344
      %v10371 = vpack.c.b16 %v10359, %v10358
      %v10372 = vpack.c.b16 %v10361, %v10360
      %v10373 = vpack.c.b16 %v10363, %v10362
      %v10374 = vpack.c.b16 %v10365, %v10364
      %v10375 = vpack.c.b16 %v10367, %v10366
      %v10376 = vpack.c.b16 %v10369, %v10368
      %v10377 = vpack.c.b16 %v10370, %v10370
      %v10385 = vsel %vm10079, %v10330, 0
      %v10388 = vsel %vm10083, %v10377, 0
      %10390 = vmatprep.subr.bf16.mxu0 0
      %10391 = vmatpush1.bf16.msra.mxu0 %v10371
      %10392 = vmatprep.subr.bf16.mxu0 0
      %10393 = vmatpush1.bf16.msra.mxu0 %v10372
      %10394 = vmatprep.subr.bf16.mxu0 0
      %10395 = vmatpush1.bf16.msra.mxu0 %v10373
      %10396 = vmatprep.subr.bf16.mxu0 0
      %10397 = vmatpush1.bf16.msra.mxu0 %v10374
      %10398 = vmatprep.subr.bf16.mxu0 0
      %10399 = vmatpush1.bf16.msra.mxu0 %v10375
      %10400 = vmatprep.subr.bf16.mxu0 0
      %10401 = vmatpush1.bf16.msra.mxu0 %v10376
      %10402 = vmatprep.subr.bf16.mxu0 0
      %10403 = vmatpush1.bf16.msra.mxu0 %v10388
      %10404 = vmatprep.subr.bf16.mxu0 0
      %10405 = vmatpush1.bf16.msra.mxu0 0
      %10406 = vmatprep.subr.bf16.mxu0 0
      %10407 = vmatpush1.bf16.msra.mxu0 0
      %10408 = vmatprep.subr.bf16.mxu0 0
      %10409 = vmatpush1.bf16.msra.mxu0 0
      %10410 = vmatprep.subr.bf16.mxu0 0
      %10411 = vmatpush1.bf16.msra.mxu0 0
      %10412 = vmatprep.subr.bf16.mxu0 0
      %10413 = vmatpush1.bf16.msra.mxu0 0
      %10414 = vmatprep.subr.bf16.mxu0 0
      %10415 = vmatpush1.bf16.msra.mxu0 0
      %10416 = vmatprep.subr.bf16.mxu0 0
      %10417 = vmatpush1.bf16.msra.mxu0 0
      %10418 = vmatprep.subr.bf16.mxu0 0
      %10419 = vmatpush1.bf16.msra.mxu0 0
      %10420 = vmatprep.subr.bf16.mxu0 0
      %10421 = vmatpush1.bf16.msra.mxu0 0
      %10422 = vmatprep.mubr.bf16.mxu0 0
      %10423 = vmatmul.mubr.bf16.gmra.mrb[0].mxu0 %v10385
      %v10424 = vpop.f32.mrb[0].mxu0
      %v10425 = vadd.f32 0.0, %v10424
      %v10426 = vpop.f32.mrb[0].mxu0
      %v10427 = vpop.f32.mrb[0].mxu0
      %v10428 = vpop.f32.mrb[0].mxu0
      %10429 = vdwg.mxu0
      %v10430 = vadd.f32 %v10329, %v10425
      %v10431 = vpack.c.bf16 %v10018, %v10018
      %s10432 = scalar_lea.vmem %s9, 208
      %v10433 = vld [vmem:[%s10432] sm:$0xf]
      %v10434 = vld [vmem:[%s10432 + $0x4] sm:$0xf]
      %v10435 = vld [vmem:[%s10432 + $0x8] sm:$0xf]
      %v10436 = vld [vmem:[%s10432 + $0xc] sm:$0xf]
      %v10437 = vld [vmem:[%s10432 + $0x10] sm:$0xf]
      %v10438 = vld [vmem:[%s10432 + $0x14] sm:$0xf]
      %v10439 = vld [vmem:[%s10432 + $0x18] sm:$0xf]
      %v10440 = vld [vmem:[%s10432 + $0x1c] sm:$0xf]
      %v10441 = vld [vmem:[%s10432 + $0x20] sm:$0xf]
      %v10442 = vld [vmem:[%s10432 + $0x24] sm:$0xf]
      %v10443 = vld [vmem:[%s10432 + $0x28] sm:$0xf]
      %v10444 = vld [vmem:[%s10432 + $0x2c] sm:$0xf]
      %v10445 = vld [vmem:[%s10432 + $0x30] sm:$0x3]
      %v10459 = vunpack.c.l.b16 %v10433
      %v10460 = vunpack.c.l.b16 %v10434
      %v10461 = vunpack.c.l.b16 %v10435
      %v10462 = vunpack.c.l.b16 %v10436
      %v10463 = vunpack.c.l.b16 %v10437
      %v10464 = vunpack.c.l.b16 %v10438
      %v10465 = vunpack.c.l.b16 %v10439
      %v10466 = vunpack.c.l.b16 %v10440
      %v10467 = vunpack.c.l.b16 %v10441
      %v10468 = vunpack.c.l.b16 %v10442
      %v10469 = vunpack.c.l.b16 %v10443
      %v10470 = vunpack.c.l.b16 %v10444
      %v10471 = vunpack.c.l.b16 %v10445
      %v10472 = vpack.c.b16 %v10460, %v10459
      %v10473 = vpack.c.b16 %v10462, %v10461
      %v10474 = vpack.c.b16 %v10464, %v10463
      %v10475 = vpack.c.b16 %v10466, %v10465
      %v10476 = vpack.c.b16 %v10468, %v10467
      %v10477 = vpack.c.b16 %v10470, %v10469
      %v10478 = vpack.c.b16 %v10471, %v10471
      %v10486 = vsel %vm10079, %v10431, 0
      %v10489 = vsel %vm10083, %v10478, 0
      %10491 = vmatprep.subr.bf16.mxu0 0
      %10492 = vmatpush1.bf16.msra.mxu0 %v10472
      %10493 = vmatprep.subr.bf16.mxu0 0
      %10494 = vmatpush1.bf16.msra.mxu0 %v10473
      %10495 = vmatprep.subr.bf16.mxu0 0
      %10496 = vmatpush1.bf16.msra.mxu0 %v10474
      %10497 = vmatprep.subr.bf16.mxu0 0
      %10498 = vmatpush1.bf16.msra.mxu0 %v10475
      %10499 = vmatprep.subr.bf16.mxu0 0
      %10500 = vmatpush1.bf16.msra.mxu0 %v10476
      %10501 = vmatprep.subr.bf16.mxu0 0
      %10502 = vmatpush1.bf16.msra.mxu0 %v10477
      %10503 = vmatprep.subr.bf16.mxu0 0
      %10504 = vmatpush1.bf16.msra.mxu0 %v10489
      %10505 = vmatprep.subr.bf16.mxu0 0
      %10506 = vmatpush1.bf16.msra.mxu0 0
      %10507 = vmatprep.subr.bf16.mxu0 0
      %10508 = vmatpush1.bf16.msra.mxu0 0
      %10509 = vmatprep.subr.bf16.mxu0 0
      %10510 = vmatpush1.bf16.msra.mxu0 0
      %10511 = vmatprep.subr.bf16.mxu0 0
      %10512 = vmatpush1.bf16.msra.mxu0 0
      %10513 = vmatprep.subr.bf16.mxu0 0
      %10514 = vmatpush1.bf16.msra.mxu0 0
      %10515 = vmatprep.subr.bf16.mxu0 0
      %10516 = vmatpush1.bf16.msra.mxu0 0
      %10517 = vmatprep.subr.bf16.mxu0 0
      %10518 = vmatpush1.bf16.msra.mxu0 0
      %10519 = vmatprep.subr.bf16.mxu0 0
      %10520 = vmatpush1.bf16.msra.mxu0 0
      %10521 = vmatprep.subr.bf16.mxu0 0
      %10522 = vmatpush1.bf16.msra.mxu0 0
      %10523 = vmatprep.mubr.bf16.mxu0 0
      %10524 = vmatmul.mubr.bf16.gmra.mrb[0].mxu0 %v10486
      %v10525 = vpop.f32.mrb[0].mxu0
      %v10526 = vadd.f32 0.0, %v10525
      %v10527 = vpop.f32.mrb[0].mxu0
      %v10528 = vpop.f32.mrb[0].mxu0
      %v10529 = vpop.f32.mrb[0].mxu0
      %10530 = vdwg.mxu0
      %v10531 = vadd.f32 %v10430, %v10526
      %v10532 = vpack.c.bf16 %v10531, %v10531
      %v10533 = vld [vmem:[%s11] sm:$0xf]
      %v10534 = vld [vmem:[%s11 + $0x4] sm:$0xf]
      %v10535 = vld [vmem:[%s11 + $0x8] sm:$0xf]
      %v10536 = vld [vmem:[%s11 + $0xc] sm:$0xf]
      %v10537 = vld [vmem:[%s11 + $0x10] sm:$0xf]
      %v10538 = vld [vmem:[%s11 + $0x14] sm:$0xf]
      %v10539 = vld [vmem:[%s11 + $0x18] sm:$0x1]
      %v10540 = vld [vmem:[%s12] sm:$0x1]
      %v10542 = vlaneseq
      %v10543 = vshrl.u32 %v10542, 7
      %v10544 = vsub.s32 0, %v10543
      %v10545 = vrot.slane %v10540, %v10544
      %v10554 = vunpack.c.l.b16 %v10533
      %v10555 = vunpack.c.l.b16 %v10534
      %v10556 = vunpack.c.l.b16 %v10535
      %v10557 = vunpack.c.l.b16 %v10536
      %v10558 = vunpack.c.l.b16 %v10537
      %v10559 = vunpack.c.l.b16 %v10538
      %v10560 = vunpack.c.l.b16 %v10539
      %v10561 = vpack.c.b16 %v10555, %v10554
      %v10562 = vpack.c.b16 %v10557, %v10556
      %v10563 = vpack.c.b16 %v10559, %v10558
      %v10564 = vpack.c.b16 %v10560, %v10560
      %vm10568 = vcmask 408576
      %v10570 = vsel %vm10568, %v10532, 0
      %vm10572 = vcmask 1040384
      %v10574 = vsel %vm10572, %v10564, 0
      %10576 = vmatprep.subr.bf16.mxu0 0
      %10577 = vmatpush1.bf16.msra.mxu0 %v10561
      %10578 = vmatprep.subr.bf16.mxu0 0
      %10579 = vmatpush1.bf16.msra.mxu0 %v10562
      %10580 = vmatprep.subr.bf16.mxu0 0
      %10581 = vmatpush1.bf16.msra.mxu0 %v10563
      %10582 = vmatprep.subr.bf16.mxu0 0
      %10583 = vmatpush1.bf16.msra.mxu0 %v10574
      %10584 = vmatprep.subr.bf16.mxu0 0
      %10585 = vmatpush1.bf16.msra.mxu0 0
      %10586 = vmatprep.subr.bf16.mxu0 0
      %10587 = vmatpush1.bf16.msra.mxu0 0
      %10588 = vmatprep.subr.bf16.mxu0 0
      %10589 = vmatpush1.bf16.msra.mxu0 0
      %10590 = vmatprep.subr.bf16.mxu0 0
      %10591 = vmatpush1.bf16.msra.mxu0 0
      %10592 = vmatprep.subr.bf16.mxu0 0
      %10593 = vmatpush1.bf16.msra.mxu0 0
      %10594 = vmatprep.subr.bf16.mxu0 0
      %10595 = vmatpush1.bf16.msra.mxu0 0
      %10596 = vmatprep.subr.bf16.mxu0 0
      %10597 = vmatpush1.bf16.msra.mxu0 0
      %10598 = vmatprep.subr.bf16.mxu0 0
      %10599 = vmatpush1.bf16.msra.mxu0 0
      %10600 = vmatprep.subr.bf16.mxu0 0
      %10601 = vmatpush1.bf16.msra.mxu0 0
      %10602 = vmatprep.subr.bf16.mxu0 0
      %10603 = vmatpush1.bf16.msra.mxu0 0
      %10604 = vmatprep.subr.bf16.mxu0 0
      %10605 = vmatpush1.bf16.msra.mxu0 0
      %10606 = vmatprep.subr.bf16.mxu0 0
      %10607 = vmatpush1.bf16.msra.mxu0 0
      %10608 = vmatprep.mubr.bf16.mxu0 0
      %10609 = vmatmul.mubr.bf16.gmra.mrb[0].mxu0 %v10570
      %v10610 = vpop.f32.mrb[0].mxu0
      %v10611 = vadd.f32 %v10545, %v10610
      %v10612 = vpop.f32.mrb[0].mxu0
      %v10613 = vpop.f32.mrb[0].mxu0
      %v10614 = vpop.f32.mrb[0].mxu0
      %10615 = vdwg.mxu0
      %10616 = vst [vmem:[%s440] sm:$0xff] %v10611
      %p10617 = scmp.lt.s32.totalorder %s24, 1
      %s10618 = scalar_select %p10617, %s24, 1
      %s10619 = smul.addr %s10618, 8
      %s10620 = scalar_lea.vmem %s13, %s10619
      // Predicated region
      $region73: #{detector_forward.1} parent=71 // pred_check
        %p10621 = pneg %p320
      $region74: #{detector_forward.1} parent=71 // pred_check_branch
        %10623 = sbr.rel (%p10621) target = $region76
      $region75: #{detector_forward.1} parent=71 // pred_region
        _
      $region76: #{detector_forward.1} parent=71 // pred_fallthru
        _
    $region72: #{detector_forward.1} parent=5 // pred_fallthru
      _
    %p10624 = scmp.le.s32.totalorder 2, %s19
    // Predicated region
    $region77: #{detector_forward.1} parent=5 // pred_check
      %p10625 = pneg %p10624
    $region78: #{detector_forward.1} parent=5 // pred_check_branch
      %10627 = sbr.rel (%p10625) target = $region80
    $region79: #{detector_forward.1} parent=5 // pred_region
      %s10628 = ssub.s32 %s19, 2
      // Predicated region
      $region81: #{detector_forward.1} parent=79 // pred_check
        %p10629 = pneg %p326
      $region82: #{detector_forward.1} parent=79 // pred_check_branch
        %10631 = sbr.rel (%p10629) target = $region84
      $region83: #{detector_forward.1} parent=79 // pred_region
        %p10632 = scmp.lt.s32.totalorder %s25, 1
        %s10633 = scalar_select %p10632, %s25, 1
        %s10634 = smul.addr %s10633, 8
        %s10635 = scalar_lea.vmem %s13, %s10634
      $region84: #{detector_forward.1} parent=79 // pred_fallthru
        _
    $region80: #{detector_forward.1} parent=5 // pred_fallthru
      _
  $region6: #{detector_forward.1} parent=0 // loop_footer
    %s23 = sadd.s32 1, %s19
  $region7: #{detector_forward.1} parent=0 // loop_footer_branch
    %18 = sbr.rel target = $region3
  $region8: #{detector_forward.1} parent=0 // loop_exit
    _

</llo_original>
